<compile_context>
chip_gen: v5e
topology: v5e:2x2
jax: 0.10.0
libtpu: 0.0.40
codegen_flags: <defaults>
</compile_context>

<pallas_src>
import functools

import jax
import jax.numpy as jnp
from jax.experimental import pallas as pl
from jax.experimental.pallas import tpu as pltpu


def _round_up(x, m):
    return ((x + m - 1) // m) * m


# ----------------------------------------------------------------------------
# Generic single-K-step GEMM kernel: act(x @ w + bias)
#   bf16 operands, f32 MXU accumulation, result stored straight to the output
#   (no accumulator scratch, no zero-init).
# ----------------------------------------------------------------------------
def _gemm_bias_act_kernel(x_ref, w_ref, b_ref, o_ref, *, act):
    y = jnp.dot(x_ref[...], w_ref[...], preferred_element_type=jnp.float32)
    y = y + b_ref[...]
    if act == "relu":
        y = jnp.maximum(y, 0.0)
    elif act == "tanh":
        y = jnp.tanh(y)
    o_ref[...] = y.astype(o_ref.dtype)


def matmul_bias_act(x, w, bias, act="none", out_dtype=jnp.float32, tm=1024):
    """act(x @ w + bias).  x:(M,K), w:(K,N), bias:(N,) or (1,N) -> (M,N).

    Single K step (whole K resident in VMEM).  Blocks equal the full K / N
    dims, so no padding or post-slice is needed; M is tiled with tm (partial
    last tile rows are masked by Pallas on store).
    """
    m, k = x.shape
    k2, n = w.shape
    assert k == k2

    x = x.astype(jnp.bfloat16)
    w = w.astype(jnp.bfloat16)
    bias = bias.reshape(1, n).astype(jnp.float32)

    tm = min(tm, _round_up(m, 8))
    grid = (pl.cdiv(m, tm),)

    return pl.pallas_call(
        functools.partial(_gemm_bias_act_kernel, act=act),
        out_shape=jax.ShapeDtypeStruct((m, n), out_dtype),
        grid=grid,
        in_specs=[
            pl.BlockSpec((tm, k), lambda i: (i, 0)),
            pl.BlockSpec((k, n), lambda i: (0, 0)),
            pl.BlockSpec((1, n), lambda i: (0, 0)),
        ],
        out_specs=pl.BlockSpec((tm, n), lambda i: (i, 0)),
        compiler_params=pltpu.CompilerParams(dimension_semantics=("parallel",)),
    )(x, w, bias)


# ----------------------------------------------------------------------------
# Conv2d as NHWC im2col + Pallas GEMM (glue = lane-dense concat / reshape only)
# ----------------------------------------------------------------------------
def conv2d_gemm(x, w_mat, bias, kh, kw, stride, act="relu"):
    """x: NHWC (N,H,W,C) bf16; w_mat: pre-laid-out (kh*kw*C, OC) bf16 GEMM matrix."""
    n, h, wd, c = x.shape
    oc = w_mat.shape[1]
    oh = (h - kh) // stride + 1
    ow = (wd - kw) // stride + 1
    # (ky, kx, c) column ordering, built lane-dense via concat along the last axis.
    cols = [x[:, i:i + stride * oh:stride, j:j + stride * ow:stride, :]
            for i in range(kh) for j in range(kw)]
    patches = jnp.concatenate(cols, axis=-1).reshape(n * oh * ow, kh * kw * c)
    y = matmul_bias_act(patches, w_mat, bias, act=act, out_dtype=jnp.bfloat16)
    return y.reshape(n, oh, ow, oc)                       # stays NHWC, true channel count


# ----------------------------------------------------------------------------
# Fused state-token kernel:
#   tanh(x @ lin_w + lin_b) + pos  ->  LayerNorm  ->  @ w_head
# (decoder == identity, so only state tokens reach the returned logits)
# ----------------------------------------------------------------------------
def _state_ln_head_kernel(x_ref, lw_ref, lb_ref, pos_ref, g_ref, beta_ref,
                          wh_ref, o_ref):
    h = jnp.tanh(jnp.dot(x_ref[...], lw_ref[...],
                         preferred_element_type=jnp.float32) + lb_ref[...])
    tok = h + pos_ref[...]
    mu = jnp.mean(tok, axis=-1, keepdims=True)
    xc = tok - mu
    var = jnp.mean(xc * xc, axis=-1, keepdims=True)
    y = xc * jax.lax.rsqrt(var + 1e-5) * g_ref[...] + beta_ref[...]   # torch LN eps
    o_ref[...] = jnp.dot(y, wh_ref[...], preferred_element_type=jnp.float32)


def state_linear_ln_head(xf, lin_w, lin_b, pos_rows, ln_g, ln_b, w_head, tm=512):
    m, kf = xf.shape
    d = lin_w.shape[1]
    hp = w_head.shape[1]
    tm = min(tm, _round_up(m, 8))
    grid = (pl.cdiv(m, tm),)
    return pl.pallas_call(
        _state_ln_head_kernel,
        out_shape=jax.ShapeDtypeStruct((m, hp), jnp.float32),
        grid=grid,
        in_specs=[
            pl.BlockSpec((tm, kf), lambda i: (i, 0)),     # conv features (bf16)
            pl.BlockSpec((kf, d), lambda i: (0, 0)),      # state Linear weight (bf16)
            pl.BlockSpec((1, d), lambda i: (0, 0)),       # state Linear bias
            pl.BlockSpec((tm, d), lambda i: (i, 0)),      # abs+rel positional rows
            pl.BlockSpec((1, d), lambda i: (0, 0)),       # LN gamma
            pl.BlockSpec((1, d), lambda i: (0, 0)),       # LN beta
            pl.BlockSpec((d, hp), lambda i: (0, 0)),      # head weight (N padded to 128)
        ],
        out_specs=pl.BlockSpec((tm, hp), lambda i: (i, 0)),
        compiler_params=pltpu.CompilerParams(dimension_semantics=("parallel",)),
    )(xf.astype(jnp.bfloat16), lin_w, lin_b, pos_rows, ln_g, ln_b, w_head)


# ----------------------------------------------------------------------------
# One-time (outside jit) parameter preparation: layout transforms, pads, casts
# ----------------------------------------------------------------------------
def prepare_params(params, d_action):
    d = params["lin_w"].shape[1]

    def conv_mat(w):                       # torch (OC,C,kh,kw) -> (kh*kw*C, OC) bf16
        oc, c, kh, kw = w.shape
        return jnp.transpose(w, (2, 3, 1, 0)).reshape(kh * kw * c, oc).astype(jnp.bfloat16)

    # Permute Linear weight rows from torch NCHW-flatten order to NHWC-flatten order.
    lw = (params["lin_w"].reshape(64, 7, 7, d).transpose(1, 2, 0, 3)
          .reshape(64 * 7 * 7, d).astype(jnp.bfloat16))

    hp = _round_up(d_action, 128)
    w_head = params["w_head"].astype(jnp.float32)
    if hp != d_action:
        w_head = jnp.pad(w_head, ((0, 0), (0, hp - d_action)))

    return {
        "conv1_w": conv_mat(params["conv1_w"]),
        "conv1_b": params["conv1_b"].reshape(1, -1).astype(jnp.float32),
        "conv2_w": conv_mat(params["conv2_w"]),
        "conv2_b": params["conv2_b"].reshape(1, -1).astype(jnp.float32),
        "conv3_w": conv_mat(params["conv3_w"]),
        "conv3_b": params["conv3_b"].reshape(1, -1).astype(jnp.float32),
        "lin_w": lw,
        "lin_b": params["lin_b"].reshape(1, d).astype(jnp.float32),
        "abs_pos": params["abs_pos"].astype(jnp.float32),
        "rel_pos": params["rel_pos"].astype(jnp.float32),
        "ln_g": params["ln_g"].reshape(1, d).astype(jnp.float32),
        "ln_b": params["ln_b"].reshape(1, d).astype(jnp.float32),
        "w_head": w_head,
    }


# ----------------------------------------------------------------------------
# Decision.forward (expects params from prepare_params)
# ----------------------------------------------------------------------------
def decision_forward(params, rtgs, states, actions, timesteps, *, d_action):
    # TODO(synk): StackedUnet decoder source not provided; treated as identity.
    # With an identity decoder only the state tokens can reach logits[:, 1::3],
    # so the rtg/action embeddings and the interleaved (B, 3S, D) token tensor
    # are skipped entirely (dropout is identity in eval mode).  Re-enable them
    # when the real decoder is wired in.
    del rtgs, actions

    b, s = states.shape[0], states.shape[1]
    d = params["lin_w"].shape[1]

    # --- StatesEmbedding CNN: one NCHW->NHWC transpose, then NHWC/bf16 chain ---
    x = states.reshape(b * s, 4, 84, 84).astype(jnp.bfloat16)
    x = jnp.transpose(x, (0, 2, 3, 1))                               # (BS, 84, 84, 4)
    x = conv2d_gemm(x, params["conv1_w"], params["conv1_b"], kh=8, kw=8, stride=4)
    x = conv2d_gemm(x, params["conv2_w"], params["conv2_b"], kh=4, kw=4, stride=2)
    x = conv2d_gemm(x, params["conv3_w"], params["conv3_b"], kh=3, kw=3, stride=1)
    xf = x.reshape(b * s, 64 * 7 * 7)        # NHWC flatten; lin_w rows pre-permuted

    # --- positional terms for the state-token slots (token indices 1, 4, 7, ...) ---
    ap = params["abs_pos"][timesteps.reshape(-1)]                    # (B, D)
    rel_s = params["rel_pos"][: 3 * s].reshape(s, 3, d)[:, 1]        # (S, D) state slots
    pos_rows = (ap[:, None, :] + rel_s[None, :, :]).reshape(b * s, d)

    # --- fused: state Linear + tanh + positional add + LayerNorm + head ---
    logits = state_linear_ln_head(xf, params["lin_w"], params["lin_b"], pos_rows,
                                  params["ln_g"], params["ln_b"], params["w_head"])
    return logits[:, :d_action].reshape(b, s, d_action)              # == logits[:, 1::3]


# ----------------------------------------------------------------------------
# Deterministic parameter construction + demo run
# ----------------------------------------------------------------------------
def make_params(key, d_model, d_action, max_timestamp, seq_max):
    ks = jax.random.split(key, 16)

    def init(k, shape, scale=0.02):
        return jax.random.normal(k, shape, jnp.float32) * scale

    return {
        # torch Conv2d weight layout (OC, C, kh, kw)
        "conv1_w": init(ks[0], (32, 4, 8, 8), 0.05),
        "conv1_b": init(ks[1], (32,)),
        "conv2_w": init(ks[2], (64, 32, 4, 4), 0.05),
        "conv2_b": init(ks[3], (64,)),
        "conv3_w": init(ks[4], (64, 64, 3, 3), 0.05),
        "conv3_b": init(ks[5], (64,)),
        # Linear weights stored as (in, out) = torch weight.T
        "lin_w": init(ks[6], (64 * 7 * 7, d_model)),
        "lin_b": init(ks[7], (d_model,)),
        # rtg / action embedding params kept for module fidelity; unused until
        # the StackedUnet decoder is wired in (see TODO in decision_forward).
        "rtg_w": init(ks[8], (1, d_model)),
        "rtg_b": init(ks[9], (d_model,)),
        "embed": init(ks[10], (d_action, d_model)),
        "abs_pos": init(ks[11], (max_timestamp + 1, d_model)),
        "rel_pos": init(ks[12], (seq_max * 3 + 1, d_model)),
        "ln_g": jnp.ones((d_model,), jnp.float32),
        "ln_b": jnp.zeros((d_model,), jnp.float32),
        "w_head": init(ks[13], (d_model, d_action)),
    }


if __name__ == "__main__":
    # small config consistent with the module (84x84x4 frames are required by the CNN)
    B, S = 2, 4
    D_MODEL, D_ACTION = 128, 4
    MAX_TIMESTAMP, SEQ_MAX = 16, 8

    key = jax.random.PRNGKey(0)
    kp, kr, kst, ka, kt = jax.random.split(key, 5)

    params = make_params(kp, D_MODEL, D_ACTION, MAX_TIMESTAMP, SEQ_MAX)
    prepared = prepare_params(params, D_ACTION)            # weight relayout, outside jit

    rtgs = jax.random.normal(kr, (B, S, 1), jnp.float32)
    states = jax.random.normal(kst, (B, S, 4, 84, 84), jnp.float32)
    actions = jax.random.randint(ka, (B, S), 0, D_ACTION, jnp.int32)
    timesteps = jax.random.randint(kt, (B, 1, 1), 0, MAX_TIMESTAMP + 1, jnp.int32)

    fwd = jax.jit(functools.partial(decision_forward, d_action=D_ACTION))
    logits = fwd(prepared, rtgs, states, actions, timesteps)
    logits = jax.block_until_ready(logits)

    assert logits.shape == (B, S, D_ACTION), logits.shape
    assert jnp.all(jnp.isfinite(logits))
    print("KERNEL_OK")
</pallas_src>

<mosaic_0001>
module attributes {stable_mosaic.version = 11 : i64} {
  func.func @_gemm_bias_act_kernel(%arg0: i32, %arg1: memref<1024x256xbf16, #tpu.memory_space<vmem>>, %arg2: memref<256x32xbf16, #tpu.memory_space<vmem>>, %arg3: memref<1x32xf32, #tpu.memory_space<vmem>>, %arg4: memref<1024x32xbf16, #tpu.memory_space<vmem>>) attributes {dimension_semantics = [#tpu.dimension_semantics<parallel>], iteration_bounds = array<i64: 4>, scalar_prefetch = 0 : i64, scratch_operands = 0 : i64, tpu.core_type = #tpu.core_type<tc>, window_params = [{transform_indices = @transform_0, window_bounds = array<i64: 1024, 256>}, {pipeline_mode = #tpu.pipeline_mode<synchronous>, transform_indices = @transform_1, window_bounds = array<i64: 256, 32>}, {pipeline_mode = #tpu.pipeline_mode<synchronous>, transform_indices = @transform_2, window_bounds = array<i64: 1, 32>}, {transform_indices = @transform_3, window_bounds = array<i64: 1024, 32>}]} {
    %c0 = arith.constant 0 : index
    %c0_0 = arith.constant 0 : index
    %0 = vector.load %arg1[%c0, %c0_0] : memref<1024x256xbf16, #tpu.memory_space<vmem>>, vector<1024x256xbf16>
    %c0_1 = arith.constant 0 : index
    %c0_2 = arith.constant 0 : index
    %1 = vector.load %arg2[%c0_1, %c0_2] : memref<256x32xbf16, #tpu.memory_space<vmem>>, vector<256x32xbf16>
    %cst = arith.constant dense<0.000000e+00> : vector<1024x32xf32>
    %2 = tpu.matmul %0, %1, %cst {dimension_numbers = #tpu.dot_dimension_numbers<[1], [0], [0], [1], [0, 0, 1, 1], [], []>} : vector<1024x256xbf16>, vector<256x32xbf16>, vector<1024x32xf32> -> vector<1024x32xf32>
    %c0_3 = arith.constant 0 : index
    %c0_4 = arith.constant 0 : index
    %3 = vector.load %arg3[%c0_3, %c0_4] : memref<1x32xf32, #tpu.memory_space<vmem>>, vector<1x32xf32>
    %4 = vector.broadcast %3 : vector<1x32xf32> to vector<1024x32xf32>
    %5 = arith.addf %2, %4 : vector<1024x32xf32>
    %cst_5 = arith.constant 0.000000e+00 : f32
    %6 = vector.broadcast %cst_5 : f32 to vector<1024x32xf32>
    %7 = arith.maximumf %5, %6 : vector<1024x32xf32>
    %8 = arith.truncf %7 : vector<1024x32xf32> to vector<1024x32xbf16>
    %c0_6 = arith.constant 0 : index
    %c0_7 = arith.constant 0 : index
    %9 = vector.load %arg4[%c0_6, %c0_7] : memref<1024x32xbf16, #tpu.memory_space<vmem>>, vector<1024x32xbf16>
    tpu.vector_store %arg4[%c0_6, %c0_7], %8 {strides = array<i32>} : memref<1024x32xbf16, #tpu.memory_space<vmem>>, vector<1024x32xbf16>,
    return
  }
  func.func @transform_0(%arg0: i32) -> (i32, i32) {
    %c0_i32 = arith.constant 0 : i32
    %c0_i32_0 = arith.constant 0 : i32
    return %arg0, %c0_i32 : i32, i32
  }
  func.func @transform_1(%arg0: i32) -> (i32, i32) {
    %c0_i32 = arith.constant 0 : i32
    %c0_i32_0 = arith.constant 0 : i32
    %c0_i32_1 = arith.constant 0 : i32
    return %c0_i32, %c0_i32_0 : i32, i32
  }
  func.func @transform_2(%arg0: i32) -> (i32, i32) {
    %c0_i32 = arith.constant 0 : i32
    %c0_i32_0 = arith.constant 0 : i32
    %c0_i32_1 = arith.constant 0 : i32
    return %c0_i32, %c0_i32_0 : i32, i32
  }
  func.func @transform_3(%arg0: i32) -> (i32, i32) {
    %c0_i32 = arith.constant 0 : i32
    %c0_i32_0 = arith.constant 0 : i32
    return %arg0, %c0_i32 : i32, i32
  }
}

module attributes {stable_mosaic.version = 11 : i64} {
  func.func @_gemm_bias_act_kernel(%arg0: i32, %arg1: memref<648x512xbf16, #tpu.memory_space<vmem>>, %arg2: memref<512x64xbf16, #tpu.memory_space<vmem>>, %arg3: memref<1x64xf32, #tpu.memory_space<vmem>>, %arg4: memref<648x64xbf16, #tpu.memory_space<vmem>>) attributes {dimension_semantics = [#tpu.dimension_semantics<parallel>], iteration_bounds = array<i64: 1>, scalar_prefetch = 0 : i64, scratch_operands = 0 : i64, tpu.core_type = #tpu.core_type<tc>, window_params = [{transform_indices = @transform_0, window_bounds = array<i64: 648, 512>}, {pipeline_mode = #tpu.pipeline_mode<synchronous>, transform_indices = @transform_1, window_bounds = array<i64: 512, 64>}, {pipeline_mode = #tpu.pipeline_mode<synchronous>, transform_indices = @transform_2, window_bounds = array<i64: 1, 64>}, {transform_indices = @transform_3, window_bounds = array<i64: 648, 64>}]} {
    %c0 = arith.constant 0 : index
    %c0_0 = arith.constant 0 : index
    %0 = vector.load %arg1[%c0, %c0_0] : memref<648x512xbf16, #tpu.memory_space<vmem>>, vector<648x512xbf16>
    %c0_1 = arith.constant 0 : index
    %c0_2 = arith.constant 0 : index
    %1 = vector.load %arg2[%c0_1, %c0_2] : memref<512x64xbf16, #tpu.memory_space<vmem>>, vector<512x64xbf16>
    %cst = arith.constant dense<0.000000e+00> : vector<648x64xf32>
    %2 = tpu.matmul %0, %1, %cst {dimension_numbers = #tpu.dot_dimension_numbers<[1], [0], [0], [1], [0, 0, 1, 1], [], []>} : vector<648x512xbf16>, vector<512x64xbf16>, vector<648x64xf32> -> vector<648x64xf32>
    %c0_3 = arith.constant 0 : index
    %c0_4 = arith.constant 0 : index
    %3 = vector.load %arg3[%c0_3, %c0_4] : memref<1x64xf32, #tpu.memory_space<vmem>>, vector<1x64xf32>
    %4 = vector.broadcast %3 : vector<1x64xf32> to vector<648x64xf32>
    %5 = arith.addf %2, %4 : vector<648x64xf32>
    %cst_5 = arith.constant 0.000000e+00 : f32
    %6 = vector.broadcast %cst_5 : f32 to vector<648x64xf32>
    %7 = arith.maximumf %5, %6 : vector<648x64xf32>
    %8 = arith.truncf %7 : vector<648x64xf32> to vector<648x64xbf16>
    %c0_6 = arith.constant 0 : index
    %c0_7 = arith.constant 0 : index
    %9 = vector.load %arg4[%c0_6, %c0_7] : memref<648x64xbf16, #tpu.memory_space<vmem>>, vector<648x64xbf16>
    tpu.vector_store %arg4[%c0_6, %c0_7], %8 {strides = array<i32>} : memref<648x64xbf16, #tpu.memory_space<vmem>>, vector<648x64xbf16>,
    return
  }
  func.func @transform_0(%arg0: i32) -> (i32, i32) {
    %c0_i32 = arith.constant 0 : i32
    %c0_i32_0 = arith.constant 0 : i32
    return %arg0, %c0_i32 : i32, i32
  }
  func.func @transform_1(%arg0: i32) -> (i32, i32) {
    %c0_i32 = arith.constant 0 : i32
    %c0_i32_0 = arith.constant 0 : i32
    %c0_i32_1 = arith.constant 0 : i32
    return %c0_i32, %c0_i32_0 : i32, i32
  }
  func.func @transform_2(%arg0: i32) -> (i32, i32) {
    %c0_i32 = arith.constant 0 : i32
    %c0_i32_0 = arith.constant 0 : i32
    %c0_i32_1 = arith.constant 0 : i32
    return %c0_i32, %c0_i32_0 : i32, i32
  }
  func.func @transform_3(%arg0: i32) -> (i32, i32) {
    %c0_i32 = arith.constant 0 : i32
    %c0_i32_0 = arith.constant 0 : i32
    return %arg0, %c0_i32 : i32, i32
  }
}

module attributes {stable_mosaic.version = 11 : i64} {
  func.func @_gemm_bias_act_kernel(%arg0: i32, %arg1: memref<392x576xbf16, #tpu.memory_space<vmem>>, %arg2: memref<576x64xbf16, #tpu.memory_space<vmem>>, %arg3: memref<1x64xf32, #tpu.memory_space<vmem>>, %arg4: memref<392x64xbf16, #tpu.memory_space<vmem>>) attributes {dimension_semantics = [#tpu.dimension_semantics<parallel>], iteration_bounds = array<i64: 1>, scalar_prefetch = 0 : i64, scratch_operands = 0 : i64, tpu.core_type = #tpu.core_type<tc>, window_params = [{transform_indices = @transform_0, window_bounds = array<i64: 392, 576>}, {pipeline_mode = #tpu.pipeline_mode<synchronous>, transform_indices = @transform_1, window_bounds = array<i64: 576, 64>}, {pipeline_mode = #tpu.pipeline_mode<synchronous>, transform_indices = @transform_2, window_bounds = array<i64: 1, 64>}, {transform_indices = @transform_3, window_bounds = array<i64: 392, 64>}]} {
    %c0 = arith.constant 0 : index
    %c0_0 = arith.constant 0 : index
    %0 = vector.load %arg1[%c0, %c0_0] : memref<392x576xbf16, #tpu.memory_space<vmem>>, vector<392x576xbf16>
    %c0_1 = arith.constant 0 : index
    %c0_2 = arith.constant 0 : index
    %1 = vector.load %arg2[%c0_1, %c0_2] : memref<576x64xbf16, #tpu.memory_space<vmem>>, vector<576x64xbf16>
    %cst = arith.constant dense<0.000000e+00> : vector<392x64xf32>
    %2 = tpu.matmul %0, %1, %cst {dimension_numbers = #tpu.dot_dimension_numbers<[1], [0], [0], [1], [0, 0, 1, 1], [], []>} : vector<392x576xbf16>, vector<576x64xbf16>, vector<392x64xf32> -> vector<392x64xf32>
    %c0_3 = arith.constant 0 : index
    %c0_4 = arith.constant 0 : index
    %3 = vector.load %arg3[%c0_3, %c0_4] : memref<1x64xf32, #tpu.memory_space<vmem>>, vector<1x64xf32>
    %4 = vector.broadcast %3 : vector<1x64xf32> to vector<392x64xf32>
    %5 = arith.addf %2, %4 : vector<392x64xf32>
    %cst_5 = arith.constant 0.000000e+00 : f32
    %6 = vector.broadcast %cst_5 : f32 to vector<392x64xf32>
    %7 = arith.maximumf %5, %6 : vector<392x64xf32>
    %8 = arith.truncf %7 : vector<392x64xf32> to vector<392x64xbf16>
    %c0_6 = arith.constant 0 : index
    %c0_7 = arith.constant 0 : index
    %9 = vector.load %arg4[%c0_6, %c0_7] : memref<392x64xbf16, #tpu.memory_space<vmem>>, vector<392x64xbf16>
    tpu.vector_store %arg4[%c0_6, %c0_7], %8 {strides = array<i32>} : memref<392x64xbf16, #tpu.memory_space<vmem>>, vector<392x64xbf16>,
    return
  }
  func.func @transform_0(%arg0: i32) -> (i32, i32) {
    %c0_i32 = arith.constant 0 : i32
    %c0_i32_0 = arith.constant 0 : i32
    return %arg0, %c0_i32 : i32, i32
  }
  func.func @transform_1(%arg0: i32) -> (i32, i32) {
    %c0_i32 = arith.constant 0 : i32
    %c0_i32_0 = arith.constant 0 : i32
    %c0_i32_1 = arith.constant 0 : i32
    return %c0_i32, %c0_i32_0 : i32, i32
  }
  func.func @transform_2(%arg0: i32) -> (i32, i32) {
    %c0_i32 = arith.constant 0 : i32
    %c0_i32_0 = arith.constant 0 : i32
    %c0_i32_1 = arith.constant 0 : i32
    return %c0_i32, %c0_i32_0 : i32, i32
  }
  func.func @transform_3(%arg0: i32) -> (i32, i32) {
    %c0_i32 = arith.constant 0 : i32
    %c0_i32_0 = arith.constant 0 : i32
    return %arg0, %c0_i32 : i32, i32
  }
}

module attributes {stable_mosaic.version = 11 : i64} {
  func.func @_state_ln_head_kernel(%arg0: i32, %arg1: memref<8x3136xbf16, #tpu.memory_space<vmem>>, %arg2: memref<3136x128xbf16, #tpu.memory_space<vmem>>, %arg3: memref<1x128xf32, #tpu.memory_space<vmem>>, %arg4: memref<8x128xf32, #tpu.memory_space<vmem>>, %arg5: memref<1x128xf32, #tpu.memory_space<vmem>>, %arg6: memref<1x128xf32, #tpu.memory_space<vmem>>, %arg7: memref<128x128xf32, #tpu.memory_space<vmem>>, %arg8: memref<8x128xf32, #tpu.memory_space<vmem>>) attributes {dimension_semantics = [#tpu.dimension_semantics<parallel>], iteration_bounds = array<i64: 1>, scalar_prefetch = 0 : i64, scratch_operands = 0 : i64, tpu.core_type = #tpu.core_type<tc>, window_params = [{transform_indices = @transform_0, window_bounds = array<i64: 8, 3136>}, {pipeline_mode = #tpu.pipeline_mode<synchronous>, transform_indices = @transform_1, window_bounds = array<i64: 3136, 128>}, {pipeline_mode = #tpu.pipeline_mode<synchronous>, transform_indices = @transform_2, window_bounds = array<i64: 1, 128>}, {transform_indices = @transform_3, window_bounds = array<i64: 8, 128>}, {pipeline_mode = #tpu.pipeline_mode<synchronous>, transform_indices = @transform_4, window_bounds = array<i64: 1, 128>}, {pipeline_mode = #tpu.pipeline_mode<synchronous>, transform_indices = @transform_5, window_bounds = array<i64: 1, 128>}, {pipeline_mode = #tpu.pipeline_mode<synchronous>, transform_indices = @transform_6, window_bounds = array<i64: 128, 128>}, {transform_indices = @transform_7, window_bounds = array<i64: 8, 128>}]} {
    %c0 = arith.constant 0 : index
    %c0_0 = arith.constant 0 : index
    %0 = vector.load %arg1[%c0, %c0_0] : memref<8x3136xbf16, #tpu.memory_space<vmem>>, vector<8x3136xbf16>
    %c0_1 = arith.constant 0 : index
    %c0_2 = arith.constant 0 : index
    %1 = vector.load %arg2[%c0_1, %c0_2] : memref<3136x128xbf16, #tpu.memory_space<vmem>>, vector<3136x128xbf16>
    %cst = arith.constant dense<0.000000e+00> : vector<8x128xf32>
    %2 = tpu.matmul %0, %1, %cst {dimension_numbers = #tpu.dot_dimension_numbers<[1], [0], [0], [1], [0, 0, 1, 1], [], []>} : vector<8x3136xbf16>, vector<3136x128xbf16>, vector<8x128xf32> -> vector<8x128xf32>
    %c0_3 = arith.constant 0 : index
    %c0_4 = arith.constant 0 : index
    %3 = vector.load %arg3[%c0_3, %c0_4] : memref<1x128xf32, #tpu.memory_space<vmem>>, vector<1x128xf32>
    %4 = vector.broadcast %3 : vector<1x128xf32> to vector<8x128xf32>
    %5 = arith.addf %2, %4 : vector<8x128xf32>
    %6 = math.tanh %5 : vector<8x128xf32>
    %c0_5 = arith.constant 0 : index
    %c0_6 = arith.constant 0 : index
    %7 = vector.load %arg4[%c0_5, %c0_6] : memref<8x128xf32, #tpu.memory_space<vmem>>, vector<8x128xf32>
    %8 = arith.addf %6, %7 : vector<8x128xf32>
    %cst_7 = arith.constant dense<0.000000e+00> : vector<8xf32>
    %9 = vector.multi_reduction <add>, %8, %cst_7 [1] : vector<8x128xf32> to vector<8xf32>
    %10 = vector.shape_cast %9 : vector<8xf32> to vector<8x1xf32>
    %cst_8 = arith.constant 1.280000e+02 : f32
    %11 = vector.broadcast %cst_8 : f32 to vector<8x1xf32>
    %12 = arith.divf %10, %11 : vector<8x1xf32>
    %13 = vector.broadcast %12 : vector<8x1xf32> to vector<8x128xf32>
    %14 = arith.subf %8, %13 : vector<8x128xf32>
    %15 = arith.mulf %14, %14 : vector<8x128xf32>
    %cst_9 = arith.constant dense<0.000000e+00> : vector<8xf32>
    %16 = vector.multi_reduction <add>, %15, %cst_9 [1] : vector<8x128xf32> to vector<8xf32>
    %17 = vector.shape_cast %16 : vector<8xf32> to vector<8x1xf32>
    %cst_10 = arith.constant 1.280000e+02 : f32
    %18 = vector.broadcast %cst_10 : f32 to vector<8x1xf32>
    %19 = arith.divf %17, %18 : vector<8x1xf32>
    %cst_11 = arith.constant 9.99999974E-6 : f32
    %20 = vector.broadcast %cst_11 : f32 to vector<8x1xf32>
    %21 = arith.addf %19, %20 : vector<8x1xf32>
    %22 = math.rsqrt %21 : vector<8x1xf32>
    %23 = vector.broadcast %22 : vector<8x1xf32> to vector<8x128xf32>
    %24 = arith.mulf %14, %23 : vector<8x128xf32>
    %c0_12 = arith.constant 0 : index
    %c0_13 = arith.constant 0 : index
    %25 = vector.load %arg5[%c0_12, %c0_13] : memref<1x128xf32, #tpu.memory_space<vmem>>, vector<1x128xf32>
    %26 = vector.broadcast %25 : vector<1x128xf32> to vector<8x128xf32>
    %27 = arith.mulf %24, %26 : vector<8x128xf32>
    %c0_14 = arith.constant 0 : index
    %c0_15 = arith.constant 0 : index
    %28 = vector.load %arg6[%c0_14, %c0_15] : memref<1x128xf32, #tpu.memory_space<vmem>>, vector<1x128xf32>
    %29 = vector.broadcast %28 : vector<1x128xf32> to vector<8x128xf32>
    %30 = arith.addf %27, %29 : vector<8x128xf32>
    %c0_16 = arith.constant 0 : index
    %c0_17 = arith.constant 0 : index
    %31 = vector.load %arg7[%c0_16, %c0_17] : memref<128x128xf32, #tpu.memory_space<vmem>>, vector<128x128xf32>
    %cst_18 = arith.constant dense<0.000000e+00> : vector<8x128xf32>
    %32 = tpu.matmul %30, %31, %cst_18 {dimension_numbers = #tpu.dot_dimension_numbers<[1], [0], [0], [1], [0, 0, 1, 1], [], []>} : vector<8x128xf32>, vector<128x128xf32>, vector<8x128xf32> -> vector<8x128xf32>
    %c0_19 = arith.constant 0 : index
    %c0_20 = arith.constant 0 : index
    %33 = vector.load %arg8[%c0_19, %c0_20] : memref<8x128xf32, #tpu.memory_space<vmem>>, vector<8x128xf32>
    tpu.vector_store %arg8[%c0_19, %c0_20], %32 {strides = array<i32>} : memref<8x128xf32, #tpu.memory_space<vmem>>, vector<8x128xf32>,
    return
  }
  func.func @transform_0(%arg0: i32) -> (i32, i32) {
    %c0_i32 = arith.constant 0 : i32
    %c0_i32_0 = arith.constant 0 : i32
    return %arg0, %c0_i32 : i32, i32
  }
  func.func @transform_1(%arg0: i32) -> (i32, i32) {
    %c0_i32 = arith.constant 0 : i32
    %c0_i32_0 = arith.constant 0 : i32
    %c0_i32_1 = arith.constant 0 : i32
    return %c0_i32, %c0_i32_0 : i32, i32
  }
  func.func @transform_2(%arg0: i32) -> (i32, i32) {
    %c0_i32 = arith.constant 0 : i32
    %c0_i32_0 = arith.constant 0 : i32
    %c0_i32_1 = arith.constant 0 : i32
    return %c0_i32, %c0_i32_0 : i32, i32
  }
  func.func @transform_3(%arg0: i32) -> (i32, i32) {
    %c0_i32 = arith.constant 0 : i32
    %c0_i32_0 = arith.constant 0 : i32
    return %arg0, %c0_i32 : i32, i32
  }
  func.func @transform_4(%arg0: i32) -> (i32, i32) {
    %c0_i32 = arith.constant 0 : i32
    %c0_i32_0 = arith.constant 0 : i32
    %c0_i32_1 = arith.constant 0 : i32
    return %c0_i32, %c0_i32_0 : i32, i32
  }
  func.func @transform_5(%arg0: i32) -> (i32, i32) {
    %c0_i32 = arith.constant 0 : i32
    %c0_i32_0 = arith.constant 0 : i32
    %c0_i32_1 = arith.constant 0 : i32
    return %c0_i32, %c0_i32_0 : i32, i32
  }
  func.func @transform_6(%arg0: i32) -> (i32, i32) {
    %c0_i32 = arith.constant 0 : i32
    %c0_i32_0 = arith.constant 0 : i32
    %c0_i32_1 = arith.constant 0 : i32
    return %c0_i32, %c0_i32_0 : i32, i32
  }
  func.func @transform_7(%arg0: i32) -> (i32, i32) {
    %c0_i32 = arith.constant 0 : i32
    %c0_i32_0 = arith.constant 0 : i32
    return %arg0, %c0_i32 : i32, i32
  }
}

</mosaic_0001>

<llo_original>
// kernel: decision_forward.4
$region0: #{decision_forward.4}
  #allocation0 [shape = 'u32[]', space=smem, size = 0x4, offset = 0x4, fixed_abs, tag = 'smem constant byte address 0x4 - core index']
  #allocation1 [shape = 'u32[72,128]{1,0:T(1,128)}', space=vmem, size = 0x9000, scoped, tag = 'internal scratch']
  %s0 = inlined_call_operand.vmem [shape: bf16[3200,256], index: 0, kind: input, shape index: {}]
  %s1 = inlined_call_operand.vmem [shape: bf16[256,32], index: 1, kind: input, shape index: {}]
  %s2 = inlined_call_operand.vmem [shape: f32[1,32], index: 2, kind: input, shape index: {}]
  %s3 = inlined_call_operand.vmem [shape: bf16[3200,32], index: 3, kind: output, shape index: {}]
  %s4 = sld [smem:[#allocation0]]
  $region89: #{decision_forward.4} parent=0
    _
  %s6 = ssub.s32 1, %s4
  %s7 = scalar_select 0, %s6, %s4
  $region1: #{decision_forward.4} parent=0
    #allocation2 [shape = 'u8[524288]{0}', space=vmem, size = 0x80000, scoped, tag = 'output window, operand 0']
    loop: start=0, step=1, limit=6
    $region2: #{decision_forward.4} parent=1 // loop_pre_header
      _
    $region3: #{decision_forward.4} parent=1 // loop_header
      %s9 = sphi 0, %s13
      %p10 = scmp.ge.s32.totalorder %s9, 6
      %s19 = sphi 0, %s21
      %s22 = sphi 0, %s19
      %s23 = sphi 0, %s22
      %s39 = sphi 0, %s23
      %s43 = sphi 0, %s43
      %s45 = sphi 0, %s43
      %s46 = sphi 0, %s45
      %s60 = sphi 0, %s46
      %s64 = sphi 0, %s64
      %s66 = sphi 0, %s64
      %s67 = sphi 0, %s66
      %s81 = sphi 0, %s67
      %s87 = sphi 0, %s89
      %s90 = sphi 0, %s87
      %s91 = sphi 0, %s90
      %s107 = sphi 0, %s91
    $region4: #{decision_forward.4} parent=1 // loop_header_branch
      %12 = sbr.rel (%p10) target = $region8
    $region5: #{decision_forward.4} parent=1 // loop_body
      %s14 = ssub.s32 %s9, 1
      %s15 = ssub.s32 %s9, 2
      %s16 = sadd.s32 %s9, 1
      %s17 = ssub.s32 %s9, %s16
      %p18 = scmp.eq.s32.totalorder %s17, 0
      %s20 = sadd.s32 %s19, 1
      %s21 = scalar_select %p18, %s19, %s20
      %p24 = pneg %p18
      %p25 = scmp.eq.s32.totalorder %s9, 3
      %p26 = por %p24, %p25
      %p27 = scmp.ne.s32.totalorder %s19, %s22
      %p28 = scmp.eq.s32.totalorder %s9, 0
      %p29 = por %p27, %p28
      %p30 = scmp.ne.s32.totalorder %s19, %s22
      %p31 = scmp.eq.s32.totalorder %s14, 3
      %p32 = por %p30, %p31
      %p33 = scmp.ne.s32.totalorder %s22, %s23
      %p34 = scmp.eq.s32.totalorder %s14, 0
      %p35 = por %p33, %p34
      %p36 = scmp.ne.s32.totalorder %s22, %s23
      %p37 = scmp.eq.s32.totalorder %s15, 3
      %p38 = por %p36, %p37
      %p40 = scmp.ne.s32.totalorder %s23, %s39
      %p41 = scmp.eq.s32.totalorder %s15, 0
      %p42 = por %p40, %p41
      %s44 = sadd.s32 %s43, 1
      %p47 = scmp.eq.s32.totalorder %s9, 3
      %p48 = scmp.ne.s32.totalorder %s43, %s45
      %p49 = scmp.eq.s32.totalorder %s9, 0
      %p50 = por %p48, %p49
      %p51 = scmp.ne.s32.totalorder %s43, %s45
      %p52 = scmp.eq.s32.totalorder %s14, 3
      %p53 = por %p51, %p52
      %p54 = scmp.ne.s32.totalorder %s45, %s46
      %p55 = scmp.eq.s32.totalorder %s14, 0
      %p56 = por %p54, %p55
      %p57 = scmp.ne.s32.totalorder %s45, %s46
      %p58 = scmp.eq.s32.totalorder %s15, 3
      %p59 = por %p57, %p58
      %p61 = scmp.ne.s32.totalorder %s46, %s60
      %p62 = scmp.eq.s32.totalorder %s15, 0
      %p63 = por %p61, %p62
      %s65 = sadd.s32 %s64, 1
      %p68 = scmp.eq.s32.totalorder %s9, 3
      %p69 = scmp.ne.s32.totalorder %s64, %s66
      %p70 = scmp.eq.s32.totalorder %s9, 0
      %p71 = por %p69, %p70
      %p72 = scmp.ne.s32.totalorder %s64, %s66
      %p73 = scmp.eq.s32.totalorder %s14, 3
      %p74 = por %p72, %p73
      %p75 = scmp.ne.s32.totalorder %s66, %s67
      %p76 = scmp.eq.s32.totalorder %s14, 0
      %p77 = por %p75, %p76
      %p78 = scmp.ne.s32.totalorder %s66, %s67
      %p79 = scmp.eq.s32.totalorder %s15, 3
      %p80 = por %p78, %p79
      %p82 = scmp.ne.s32.totalorder %s67, %s81
      %p83 = scmp.eq.s32.totalorder %s15, 0
      %p84 = por %p82, %p83
      %s85 = ssub.s32 %s9, %s16
      %p86 = scmp.eq.s32.totalorder %s85, 0
      %s88 = sadd.s32 %s87, 1
      %s89 = scalar_select %p86, %s87, %s88
      %p92 = pneg %p86
      %p93 = scmp.eq.s32.totalorder %s9, 3
      %p94 = por %p92, %p93
      %p95 = scmp.ne.s32.totalorder %s87, %s90
      %p96 = scmp.eq.s32.totalorder %s9, 0
      %p97 = por %p95, %p96
      %p98 = scmp.ne.s32.totalorder %s87, %s90
      %p99 = scmp.eq.s32.totalorder %s14, 3
      %p100 = por %p98, %p99
      %p101 = scmp.ne.s32.totalorder %s90, %s91
      %p102 = scmp.eq.s32.totalorder %s14, 0
      %p103 = por %p101, %p102
      %p104 = scmp.ne.s32.totalorder %s90, %s91
      %p105 = scmp.eq.s32.totalorder %s15, 3
      %p106 = por %p104, %p105
      %p108 = scmp.ne.s32.totalorder %s91, %s107
      %p109 = scmp.eq.s32.totalorder %s15, 0
      %p110 = por %p108, %p109
      %p111 = scmp.le.s32.totalorder 1, %s9
      %p112 = scmp.lt.s32.totalorder %s9, 5
      %p113 = pnand %p111, %p112
      %p114 = pneg %p113
      // Predicated region
      $region9: #{decision_forward.4} parent=5 // pred_check
        _
      $region10: #{decision_forward.4} parent=5 // pred_check_branch
        %116 = sbr.rel (%p113) target = $region12
      $region11: #{decision_forward.4} parent=5 // pred_region
        %s117 = ssub.s32 %s9, 1
        // Predicated region
        $region13: #{decision_forward.4} parent=11 // pred_check
          %p118 = pneg %p56
        $region14: #{decision_forward.4} parent=11 // pred_check_branch
          %120 = sbr.rel (%p118) target = $region16
        $region15: #{decision_forward.4} parent=11 // pred_region
          _
        $region16: #{decision_forward.4} parent=11 // pred_fallthru
          _
        // Predicated region
        $region17: #{decision_forward.4} parent=11 // pred_check
          %p121 = pneg %p77
        $region18: #{decision_forward.4} parent=11 // pred_check_branch
          %123 = sbr.rel (%p121) target = $region20
        $region19: #{decision_forward.4} parent=11 // pred_region
          _
        $region20: #{decision_forward.4} parent=11 // pred_fallthru
          _
      $region12: #{decision_forward.4} parent=5 // pred_fallthru
        _
      %p124 = scmp.lt.s32.totalorder %s9, 4
      // Predicated region
      $region21: #{decision_forward.4} parent=5 // pred_check
        %p125 = pneg %p124
      $region22: #{decision_forward.4} parent=5 // pred_check_branch
        %127 = sbr.rel (%p125) target = $region24
      $region23: #{decision_forward.4} parent=5 // pred_region
        // Predicated region
        $region25: #{decision_forward.4} parent=23 // pred_check
          %p128 = pneg %p29
        $region26: #{decision_forward.4} parent=23 // pred_check_branch
          %130 = sbr.rel (%p128) target = $region28
        $region27: #{decision_forward.4} parent=23 // pred_region
          %s131 = smul.u32 128, %s9
          %s132 = ssub.s32 400, %s131
          %p133 = scmp.lt.s32.totalorder %s132, 128
          %s134 = scalar_select %p133, %s132, 128
          %s135 = smul.u32 4, %s134
          %s136 = smul.u32 %s135, 2
          %p137 = scmp.lt.s32.totalorder %s131, 399
          %s138 = scalar_select %p137, %s131, 399
          %s139 = smul.addr %s138, 2
          %s140 = smul.addr %s139, 4
          %s141 = scalar_lea.vmem %s0, %s140
          %s142 = smul.u32 128, %s9
          %s143 = ssub.s32 400, %s142
          %p144 = scmp.lt.s32.totalorder %s143, 128
          %s145 = scalar_select %p144, %s143, 128
          %s146 = smul.u32 4, %s145
          %s147 = smul.u32 %s146, 2
        $region28: #{decision_forward.4} parent=23 // pred_fallthru
          _
      $region24: #{decision_forward.4} parent=5 // pred_fallthru
        _
      %p148 = scmp.le.s32.totalorder 1, %s9
      %p149 = scmp.lt.s32.totalorder %s9, 5
      %p150 = pnand %p148, %p149
      %p151 = pneg %p150
      // Predicated region
      $region29: #{decision_forward.4} parent=5 // pred_check
        _
      $region30: #{decision_forward.4} parent=5 // pred_check_branch
        %153 = sbr.rel (%p150) target = $region32
      $region31: #{decision_forward.4} parent=5 // pred_region
        %s154 = ssub.s32 %s9, 1
        %s155 = smul.u32 128, %s14
        %s156 = ssub.s32 400, %s155
        %p157 = scmp.lt.s32.totalorder %s156, 128
        %s158 = scalar_select %p157, %s156, 128
        %s159 = smul.u32 4, %s158
        %s160 = smul.u32 %s159, 2
        %p161 = scmp.lt.s32.totalorder %s155, 399
        %s162 = scalar_select %p161, %s155, 399
        %s163 = smul.addr %s162, 2
        %s164 = smul.addr %s163, 4
        %s165 = scalar_lea.vmem %s0, %s164
        %p166 = pneg %p35
        %p167 = pneg %p32
        %p168 = pneg %p56
        %p169 = pneg %p53
        %p170 = pneg %p77
        %p171 = pneg %p74
        %p172 = pneg %p103
        %p173 = pneg %p100
        %s174 = sand.u32 %s90, 1
        %s175 = sand.u32 %s90, 1
        %s176 = smul.addr %s175, 512
        %s177 = scalar_lea.vmem [#allocation2], %s176
        %s178 = smul.u32 128, %s14
        %s179 = ssub.s32 400, %s178
        %p180 = scmp.lt.s32.totalorder %s179, 128
        %s181 = scalar_select %p180, %s179, 128
        %s182 = smul.u32 4, %s181
        %s183 = smul.u32 %s182, 2
        %p184 = scmp.lt.s32.totalorder %s178, 399
        %s185 = scalar_select %p184, %s178, 399
        %s186 = smul.addr %s185, 2
        %s187 = smul.addr %s186, 4
        %s188 = scalar_lea.vmem %s0, %s187
        %s189 = smul.u32 128, %s14
        %s190 = ssub.s32 400, %s189
        %p191 = scmp.lt.s32.totalorder %s190, 128
        %s192 = scalar_select %p191, %s190, 128
        %s193 = smul.u32 4, %s192
        %s194 = smul.u32 %s193, 2
        %s195 = smul.u32 128, %s14
        %s196 = ssub.s32 400, %s195
        %p197 = scmp.lt.s32.totalorder %s196, 128
        %s198 = scalar_select %p197, %s196, 128
        %s199 = smul.u32 4, %s198
        %v200 = vld [vmem:[%s188] sm:$0xff]
        %v201 = vld [vmem:[%s188 + $0x8] sm:$0xff]
        %v202 = vld [vmem:[%s188 + $0x10] sm:$0xff]
        %v203 = vld [vmem:[%s188 + $0x18] sm:$0xff]
        %v204 = vld [vmem:[%s188 + $0x20] sm:$0xff]
        %v205 = vld [vmem:[%s188 + $0x28] sm:$0xff]
        %v206 = vld [vmem:[%s188 + $0x30] sm:$0xff]
        %v207 = vld [vmem:[%s188 + $0x38] sm:$0xff]
        %v208 = vld [vmem:[%s188 + $0x40] sm:$0xff]
        %v209 = vld [vmem:[%s188 + $0x48] sm:$0xff]
        %v210 = vld [vmem:[%s188 + $0x50] sm:$0xff]
        %v211 = vld [vmem:[%s188 + $0x58] sm:$0xff]
        %v212 = vld [vmem:[%s188 + $0x60] sm:$0xff]
        %v213 = vld [vmem:[%s188 + $0x68] sm:$0xff]
        %v214 = vld [vmem:[%s188 + $0x70] sm:$0xff]
        %v215 = vld [vmem:[%s188 + $0x78] sm:$0xff]
        %v216 = vld [vmem:[%s188 + $0x80] sm:$0xff]
        %v217 = vld [vmem:[%s188 + $0x88] sm:$0xff]
        %v218 = vld [vmem:[%s188 + $0x90] sm:$0xff]
        %v219 = vld [vmem:[%s188 + $0x98] sm:$0xff]
        %v220 = vld [vmem:[%s188 + $0xa0] sm:$0xff]
        %v221 = vld [vmem:[%s188 + $0xa8] sm:$0xff]
        %v222 = vld [vmem:[%s188 + $0xb0] sm:$0xff]
        %v223 = vld [vmem:[%s188 + $0xb8] sm:$0xff]
        %v224 = vld [vmem:[%s188 + $0xc0] sm:$0xff]
        %v225 = vld [vmem:[%s188 + $0xc8] sm:$0xff]
        %v226 = vld [vmem:[%s188 + $0xd0] sm:$0xff]
        %v227 = vld [vmem:[%s188 + $0xd8] sm:$0xff]
        %v228 = vld [vmem:[%s188 + $0xe0] sm:$0xff]
        %v229 = vld [vmem:[%s188 + $0xe8] sm:$0xff]
        %v230 = vld [vmem:[%s188 + $0xf0] sm:$0xff]
        %v231 = vld [vmem:[%s188 + $0xf8] sm:$0xff]
        %v232 = vld [vmem:[%s188 + $0x100] sm:$0xff]
        %v233 = vld [vmem:[%s188 + $0x108] sm:$0xff]
        %v234 = vld [vmem:[%s188 + $0x110] sm:$0xff]
        %v235 = vld [vmem:[%s188 + $0x118] sm:$0xff]
        %v236 = vld [vmem:[%s188 + $0x120] sm:$0xff]
        %v237 = vld [vmem:[%s188 + $0x128] sm:$0xff]
        %v238 = vld [vmem:[%s188 + $0x130] sm:$0xff]
        %v239 = vld [vmem:[%s188 + $0x138] sm:$0xff]
        %v240 = vld [vmem:[%s188 + $0x140] sm:$0xff]
        %v241 = vld [vmem:[%s188 + $0x148] sm:$0xff]
        %v242 = vld [vmem:[%s188 + $0x150] sm:$0xff]
        %v243 = vld [vmem:[%s188 + $0x158] sm:$0xff]
        %v244 = vld [vmem:[%s188 + $0x160] sm:$0xff]
        %v245 = vld [vmem:[%s188 + $0x168] sm:$0xff]
        %v246 = vld [vmem:[%s188 + $0x170] sm:$0xff]
        %v247 = vld [vmem:[%s188 + $0x178] sm:$0xff]
        %v248 = vld [vmem:[%s188 + $0x180] sm:$0xff]
        %v249 = vld [vmem:[%s188 + $0x188] sm:$0xff]
        %v250 = vld [vmem:[%s188 + $0x190] sm:$0xff]
        %v251 = vld [vmem:[%s188 + $0x198] sm:$0xff]
        %v252 = vld [vmem:[%s188 + $0x1a0] sm:$0xff]
        %v253 = vld [vmem:[%s188 + $0x1a8] sm:$0xff]
        %v254 = vld [vmem:[%s188 + $0x1b0] sm:$0xff]
        %v255 = vld [vmem:[%s188 + $0x1b8] sm:$0xff]
        %v256 = vld [vmem:[%s188 + $0x1c0] sm:$0xff]
        %v257 = vld [vmem:[%s188 + $0x1c8] sm:$0xff]
        %v258 = vld [vmem:[%s188 + $0x1d0] sm:$0xff]
        %v259 = vld [vmem:[%s188 + $0x1d8] sm:$0xff]
        %v260 = vld [vmem:[%s188 + $0x1e0] sm:$0xff]
        %v261 = vld [vmem:[%s188 + $0x1e8] sm:$0xff]
        %v262 = vld [vmem:[%s188 + $0x1f0] sm:$0xff]
        %v263 = vld [vmem:[%s188 + $0x1f8] sm:$0xff]
        %v264 = vld [vmem:[%s188 + $0x200] sm:$0xff]
        %v265 = vld [vmem:[%s188 + $0x208] sm:$0xff]
        %v266 = vld [vmem:[%s188 + $0x210] sm:$0xff]
        %v267 = vld [vmem:[%s188 + $0x218] sm:$0xff]
        %v268 = vld [vmem:[%s188 + $0x220] sm:$0xff]
        %v269 = vld [vmem:[%s188 + $0x228] sm:$0xff]
        %v270 = vld [vmem:[%s188 + $0x230] sm:$0xff]
        %v271 = vld [vmem:[%s188 + $0x238] sm:$0xff]
        %v272 = vld [vmem:[%s188 + $0x240] sm:$0xff]
        %v273 = vld [vmem:[%s188 + $0x248] sm:$0xff]
        %v274 = vld [vmem:[%s188 + $0x250] sm:$0xff]
        %v275 = vld [vmem:[%s188 + $0x258] sm:$0xff]
        %v276 = vld [vmem:[%s188 + $0x260] sm:$0xff]
        %v277 = vld [vmem:[%s188 + $0x268] sm:$0xff]
        %v278 = vld [vmem:[%s188 + $0x270] sm:$0xff]
        %v279 = vld [vmem:[%s188 + $0x278] sm:$0xff]
        %v280 = vld [vmem:[%s188 + $0x280] sm:$0xff]
        %v281 = vld [vmem:[%s188 + $0x288] sm:$0xff]
        %v282 = vld [vmem:[%s188 + $0x290] sm:$0xff]
        %v283 = vld [vmem:[%s188 + $0x298] sm:$0xff]
        %v284 = vld [vmem:[%s188 + $0x2a0] sm:$0xff]
        %v285 = vld [vmem:[%s188 + $0x2a8] sm:$0xff]
        %v286 = vld [vmem:[%s188 + $0x2b0] sm:$0xff]
        %v287 = vld [vmem:[%s188 + $0x2b8] sm:$0xff]
        %v288 = vld [vmem:[%s188 + $0x2c0] sm:$0xff]
        %v289 = vld [vmem:[%s188 + $0x2c8] sm:$0xff]
        %v290 = vld [vmem:[%s188 + $0x2d0] sm:$0xff]
        %v291 = vld [vmem:[%s188 + $0x2d8] sm:$0xff]
        %v292 = vld [vmem:[%s188 + $0x2e0] sm:$0xff]
        %v293 = vld [vmem:[%s188 + $0x2e8] sm:$0xff]
        %v294 = vld [vmem:[%s188 + $0x2f0] sm:$0xff]
        %v295 = vld [vmem:[%s188 + $0x2f8] sm:$0xff]
        %v296 = vld [vmem:[%s188 + $0x300] sm:$0xff]
        %v297 = vld [vmem:[%s188 + $0x308] sm:$0xff]
        %v298 = vld [vmem:[%s188 + $0x310] sm:$0xff]
        %v299 = vld [vmem:[%s188 + $0x318] sm:$0xff]
        %v300 = vld [vmem:[%s188 + $0x320] sm:$0xff]
        %v301 = vld [vmem:[%s188 + $0x328] sm:$0xff]
        %v302 = vld [vmem:[%s188 + $0x330] sm:$0xff]
        %v303 = vld [vmem:[%s188 + $0x338] sm:$0xff]
        %v304 = vld [vmem:[%s188 + $0x340] sm:$0xff]
        %v305 = vld [vmem:[%s188 + $0x348] sm:$0xff]
        %v306 = vld [vmem:[%s188 + $0x350] sm:$0xff]
        %v307 = vld [vmem:[%s188 + $0x358] sm:$0xff]
        %v308 = vld [vmem:[%s188 + $0x360] sm:$0xff]
        %v309 = vld [vmem:[%s188 + $0x368] sm:$0xff]
        %v310 = vld [vmem:[%s188 + $0x370] sm:$0xff]
        %v311 = vld [vmem:[%s188 + $0x378] sm:$0xff]
        %v312 = vld [vmem:[%s188 + $0x380] sm:$0xff]
        %v313 = vld [vmem:[%s188 + $0x388] sm:$0xff]
        %v314 = vld [vmem:[%s188 + $0x390] sm:$0xff]
        %v315 = vld [vmem:[%s188 + $0x398] sm:$0xff]
        %v316 = vld [vmem:[%s188 + $0x3a0] sm:$0xff]
        %v317 = vld [vmem:[%s188 + $0x3a8] sm:$0xff]
        %v318 = vld [vmem:[%s188 + $0x3b0] sm:$0xff]
        %v319 = vld [vmem:[%s188 + $0x3b8] sm:$0xff]
        %v320 = vld [vmem:[%s188 + $0x3c0] sm:$0xff]
        %v321 = vld [vmem:[%s188 + $0x3c8] sm:$0xff]
        %v322 = vld [vmem:[%s188 + $0x3d0] sm:$0xff]
        %v323 = vld [vmem:[%s188 + $0x3d8] sm:$0xff]
        %v324 = vld [vmem:[%s188 + $0x3e0] sm:$0xff]
        %v325 = vld [vmem:[%s188 + $0x3e8] sm:$0xff]
        %v326 = vld [vmem:[%s188 + $0x3f0] sm:$0xff]
        %v327 = vld [vmem:[%s188 + $0x3f8] sm:$0xff]
        %v328 = vld [vmem:[%s1] sm:$0xf]
        %v329 = vld [vmem:[%s1 + $0x4] sm:$0xf]
        %v330 = vld [vmem:[%s1 + $0x8] sm:$0xf]
        %v331 = vld [vmem:[%s1 + $0xc] sm:$0xf]
        %v332 = vld [vmem:[%s1 + $0x10] sm:$0xf]
        %v333 = vld [vmem:[%s1 + $0x14] sm:$0xf]
        %v334 = vld [vmem:[%s1 + $0x18] sm:$0xf]
        %v335 = vld [vmem:[%s1 + $0x1c] sm:$0xf]
        %v336 = vld [vmem:[%s1 + $0x20] sm:$0xf]
        %v337 = vld [vmem:[%s1 + $0x24] sm:$0xf]
        %v338 = vld [vmem:[%s1 + $0x28] sm:$0xf]
        %v339 = vld [vmem:[%s1 + $0x2c] sm:$0xf]
        %v340 = vld [vmem:[%s1 + $0x30] sm:$0xf]
        %v341 = vld [vmem:[%s1 + $0x34] sm:$0xf]
        %v342 = vld [vmem:[%s1 + $0x38] sm:$0xf]
        %v343 = vld [vmem:[%s1 + $0x3c] sm:$0xf]
        %v344 = vld [vmem:[%s1 + $0x40] sm:$0xf]
        %v345 = vld [vmem:[%s1 + $0x44] sm:$0xf]
        %v346 = vld [vmem:[%s1 + $0x48] sm:$0xf]
        %v347 = vld [vmem:[%s1 + $0x4c] sm:$0xf]
        %v348 = vld [vmem:[%s1 + $0x50] sm:$0xf]
        %v349 = vld [vmem:[%s1 + $0x54] sm:$0xf]
        %v350 = vld [vmem:[%s1 + $0x58] sm:$0xf]
        %v351 = vld [vmem:[%s1 + $0x5c] sm:$0xf]
        %v352 = vld [vmem:[%s1 + $0x60] sm:$0xf]
        %v353 = vld [vmem:[%s1 + $0x64] sm:$0xf]
        %v354 = vld [vmem:[%s1 + $0x68] sm:$0xf]
        %v355 = vld [vmem:[%s1 + $0x6c] sm:$0xf]
        %v356 = vld [vmem:[%s1 + $0x70] sm:$0xf]
        %v357 = vld [vmem:[%s1 + $0x74] sm:$0xf]
        %v358 = vld [vmem:[%s1 + $0x78] sm:$0xf]
        %v359 = vld [vmem:[%s1 + $0x7c] sm:$0xf]
        %v360 = vld [vmem:[%s2] sm:$0x1]
        %v362 = vperm.slane %v360, 0
        %v492 = vunpack.c.l.b16 %v200
        %v493 = vunpack.c.h.b16 %v200
        %v494 = vunpack.c.l.b16 %v201
        %v495 = vunpack.c.h.b16 %v201
        %v496 = vunpack.c.l.b16 %v202
        %v497 = vunpack.c.h.b16 %v202
        %v498 = vunpack.c.l.b16 %v203
        %v499 = vunpack.c.h.b16 %v203
        %v500 = vunpack.c.l.b16 %v204
        %v501 = vunpack.c.h.b16 %v204
        %v502 = vunpack.c.l.b16 %v205
        %v503 = vunpack.c.h.b16 %v205
        %v504 = vunpack.c.l.b16 %v206
        %v505 = vunpack.c.h.b16 %v206
        %v506 = vunpack.c.l.b16 %v207
        %v507 = vunpack.c.h.b16 %v207
        %v508 = vunpack.c.l.b16 %v208
        %v509 = vunpack.c.h.b16 %v208
        %v510 = vunpack.c.l.b16 %v209
        %v511 = vunpack.c.h.b16 %v209
        %v512 = vunpack.c.l.b16 %v210
        %v513 = vunpack.c.h.b16 %v210
        %v514 = vunpack.c.l.b16 %v211
        %v515 = vunpack.c.h.b16 %v211
        %v516 = vunpack.c.l.b16 %v212
        %v517 = vunpack.c.h.b16 %v212
        %v518 = vunpack.c.l.b16 %v213
        %v519 = vunpack.c.h.b16 %v213
        %v520 = vunpack.c.l.b16 %v214
        %v521 = vunpack.c.h.b16 %v214
        %v522 = vunpack.c.l.b16 %v215
        %v523 = vunpack.c.h.b16 %v215
        %v524 = vunpack.c.l.b16 %v216
        %v525 = vunpack.c.h.b16 %v216
        %v526 = vunpack.c.l.b16 %v217
        %v527 = vunpack.c.h.b16 %v217
        %v528 = vunpack.c.l.b16 %v218
        %v529 = vunpack.c.h.b16 %v218
        %v530 = vunpack.c.l.b16 %v219
        %v531 = vunpack.c.h.b16 %v219
        %v532 = vunpack.c.l.b16 %v220
        %v533 = vunpack.c.h.b16 %v220
        %v534 = vunpack.c.l.b16 %v221
        %v535 = vunpack.c.h.b16 %v221
        %v536 = vunpack.c.l.b16 %v222
        %v537 = vunpack.c.h.b16 %v222
        %v538 = vunpack.c.l.b16 %v223
        %v539 = vunpack.c.h.b16 %v223
        %v540 = vunpack.c.l.b16 %v224
        %v541 = vunpack.c.h.b16 %v224
        %v542 = vunpack.c.l.b16 %v225
        %v543 = vunpack.c.h.b16 %v225
        %v544 = vunpack.c.l.b16 %v226
        %v545 = vunpack.c.h.b16 %v226
        %v546 = vunpack.c.l.b16 %v227
        %v547 = vunpack.c.h.b16 %v227
        %v548 = vunpack.c.l.b16 %v228
        %v549 = vunpack.c.h.b16 %v228
        %v550 = vunpack.c.l.b16 %v229
        %v551 = vunpack.c.h.b16 %v229
        %v552 = vunpack.c.l.b16 %v230
        %v553 = vunpack.c.h.b16 %v230
        %v554 = vunpack.c.l.b16 %v231
        %v555 = vunpack.c.h.b16 %v231
        %v556 = vunpack.c.l.b16 %v232
        %v557 = vunpack.c.h.b16 %v232
        %v558 = vunpack.c.l.b16 %v233
        %v559 = vunpack.c.h.b16 %v233
        %v560 = vunpack.c.l.b16 %v234
        %v561 = vunpack.c.h.b16 %v234
        %v562 = vunpack.c.l.b16 %v235
        %v563 = vunpack.c.h.b16 %v235
        %v564 = vunpack.c.l.b16 %v236
        %v565 = vunpack.c.h.b16 %v236
        %v566 = vunpack.c.l.b16 %v237
        %v567 = vunpack.c.h.b16 %v237
        %v568 = vunpack.c.l.b16 %v238
        %v569 = vunpack.c.h.b16 %v238
        %v570 = vunpack.c.l.b16 %v239
        %v571 = vunpack.c.h.b16 %v239
        %v572 = vunpack.c.l.b16 %v240
        %v573 = vunpack.c.h.b16 %v240
        %v574 = vunpack.c.l.b16 %v241
        %v575 = vunpack.c.h.b16 %v241
        %v576 = vunpack.c.l.b16 %v242
        %v577 = vunpack.c.h.b16 %v242
        %v578 = vunpack.c.l.b16 %v243
        %v579 = vunpack.c.h.b16 %v243
        %v580 = vunpack.c.l.b16 %v244
        %v581 = vunpack.c.h.b16 %v244
        %v582 = vunpack.c.l.b16 %v245
        %v583 = vunpack.c.h.b16 %v245
        %v584 = vunpack.c.l.b16 %v246
        %v585 = vunpack.c.h.b16 %v246
        %v586 = vunpack.c.l.b16 %v247
        %v587 = vunpack.c.h.b16 %v247
        %v588 = vunpack.c.l.b16 %v248
        %v589 = vunpack.c.h.b16 %v248
        %v590 = vunpack.c.l.b16 %v249
        %v591 = vunpack.c.h.b16 %v249
        %v592 = vunpack.c.l.b16 %v250
        %v593 = vunpack.c.h.b16 %v250
        %v594 = vunpack.c.l.b16 %v251
        %v595 = vunpack.c.h.b16 %v251
        %v596 = vunpack.c.l.b16 %v252
        %v597 = vunpack.c.h.b16 %v252
        %v598 = vunpack.c.l.b16 %v253
        %v599 = vunpack.c.h.b16 %v253
        %v600 = vunpack.c.l.b16 %v254
        %v601 = vunpack.c.h.b16 %v254
        %v602 = vunpack.c.l.b16 %v255
        %v603 = vunpack.c.h.b16 %v255
        %v604 = vunpack.c.l.b16 %v256
        %v605 = vunpack.c.h.b16 %v256
        %v606 = vunpack.c.l.b16 %v257
        %v607 = vunpack.c.h.b16 %v257
        %v608 = vunpack.c.l.b16 %v258
        %v609 = vunpack.c.h.b16 %v258
        %v610 = vunpack.c.l.b16 %v259
        %v611 = vunpack.c.h.b16 %v259
        %v612 = vunpack.c.l.b16 %v260
        %v613 = vunpack.c.h.b16 %v260
        %v614 = vunpack.c.l.b16 %v261
        %v615 = vunpack.c.h.b16 %v261
        %v616 = vunpack.c.l.b16 %v262
        %v617 = vunpack.c.h.b16 %v262
        %v618 = vunpack.c.l.b16 %v263
        %v619 = vunpack.c.h.b16 %v263
        %v620 = vunpack.c.l.b16 %v264
        %v621 = vunpack.c.h.b16 %v264
        %v622 = vunpack.c.l.b16 %v265
        %v623 = vunpack.c.h.b16 %v265
        %v624 = vunpack.c.l.b16 %v266
        %v625 = vunpack.c.h.b16 %v266
        %v626 = vunpack.c.l.b16 %v267
        %v627 = vunpack.c.h.b16 %v267
        %v628 = vunpack.c.l.b16 %v268
        %v629 = vunpack.c.h.b16 %v268
        %v630 = vunpack.c.l.b16 %v269
        %v631 = vunpack.c.h.b16 %v269
        %v632 = vunpack.c.l.b16 %v270
        %v633 = vunpack.c.h.b16 %v270
        %v634 = vunpack.c.l.b16 %v271
        %v635 = vunpack.c.h.b16 %v271
        %v636 = vunpack.c.l.b16 %v272
        %v637 = vunpack.c.h.b16 %v272
        %v638 = vunpack.c.l.b16 %v273
        %v639 = vunpack.c.h.b16 %v273
        %v640 = vunpack.c.l.b16 %v274
        %v641 = vunpack.c.h.b16 %v274
        %v642 = vunpack.c.l.b16 %v275
        %v643 = vunpack.c.h.b16 %v275
        %v644 = vunpack.c.l.b16 %v276
        %v645 = vunpack.c.h.b16 %v276
        %v646 = vunpack.c.l.b16 %v277
        %v647 = vunpack.c.h.b16 %v277
        %v648 = vunpack.c.l.b16 %v278
        %v649 = vunpack.c.h.b16 %v278
        %v650 = vunpack.c.l.b16 %v279
        %v651 = vunpack.c.h.b16 %v279
        %v652 = vunpack.c.l.b16 %v280
        %v653 = vunpack.c.h.b16 %v280
        %v654 = vunpack.c.l.b16 %v281
        %v655 = vunpack.c.h.b16 %v281
        %v656 = vunpack.c.l.b16 %v282
        %v657 = vunpack.c.h.b16 %v282
        %v658 = vunpack.c.l.b16 %v283
        %v659 = vunpack.c.h.b16 %v283
        %v660 = vunpack.c.l.b16 %v284
        %v661 = vunpack.c.h.b16 %v284
        %v662 = vunpack.c.l.b16 %v285
        %v663 = vunpack.c.h.b16 %v285
        %v664 = vunpack.c.l.b16 %v286
        %v665 = vunpack.c.h.b16 %v286
        %v666 = vunpack.c.l.b16 %v287
        %v667 = vunpack.c.h.b16 %v287
        %v668 = vunpack.c.l.b16 %v288
        %v669 = vunpack.c.h.b16 %v288
        %v670 = vunpack.c.l.b16 %v289
        %v671 = vunpack.c.h.b16 %v289
        %v672 = vunpack.c.l.b16 %v290
        %v673 = vunpack.c.h.b16 %v290
        %v674 = vunpack.c.l.b16 %v291
        %v675 = vunpack.c.h.b16 %v291
        %v676 = vunpack.c.l.b16 %v292
        %v677 = vunpack.c.h.b16 %v292
        %v678 = vunpack.c.l.b16 %v293
        %v679 = vunpack.c.h.b16 %v293
        %v680 = vunpack.c.l.b16 %v294
        %v681 = vunpack.c.h.b16 %v294
        %v682 = vunpack.c.l.b16 %v295
        %v683 = vunpack.c.h.b16 %v295
        %v684 = vunpack.c.l.b16 %v296
        %v685 = vunpack.c.h.b16 %v296
        %v686 = vunpack.c.l.b16 %v297
        %v687 = vunpack.c.h.b16 %v297
        %v688 = vunpack.c.l.b16 %v298
        %v689 = vunpack.c.h.b16 %v298
        %v690 = vunpack.c.l.b16 %v299
        %v691 = vunpack.c.h.b16 %v299
        %v692 = vunpack.c.l.b16 %v300
        %v693 = vunpack.c.h.b16 %v300
        %v694 = vunpack.c.l.b16 %v301
        %v695 = vunpack.c.h.b16 %v301
        %v696 = vunpack.c.l.b16 %v302
        %v697 = vunpack.c.h.b16 %v302
        %v698 = vunpack.c.l.b16 %v303
        %v699 = vunpack.c.h.b16 %v303
        %v700 = vunpack.c.l.b16 %v304
        %v701 = vunpack.c.h.b16 %v304
        %v702 = vunpack.c.l.b16 %v305
        %v703 = vunpack.c.h.b16 %v305
        %v704 = vunpack.c.l.b16 %v306
        %v705 = vunpack.c.h.b16 %v306
        %v706 = vunpack.c.l.b16 %v307
        %v707 = vunpack.c.h.b16 %v307
        %v708 = vunpack.c.l.b16 %v308
        %v709 = vunpack.c.h.b16 %v308
        %v710 = vunpack.c.l.b16 %v309
        %v711 = vunpack.c.h.b16 %v309
        %v712 = vunpack.c.l.b16 %v310
        %v713 = vunpack.c.h.b16 %v310
        %v714 = vunpack.c.l.b16 %v311
        %v715 = vunpack.c.h.b16 %v311
        %v716 = vunpack.c.l.b16 %v312
        %v717 = vunpack.c.h.b16 %v312
        %v718 = vunpack.c.l.b16 %v313
        %v719 = vunpack.c.h.b16 %v313
        %v720 = vunpack.c.l.b16 %v314
        %v721 = vunpack.c.h.b16 %v314
        %v722 = vunpack.c.l.b16 %v315
        %v723 = vunpack.c.h.b16 %v315
        %v724 = vunpack.c.l.b16 %v316
        %v725 = vunpack.c.h.b16 %v316
        %v726 = vunpack.c.l.b16 %v317
        %v727 = vunpack.c.h.b16 %v317
        %v728 = vunpack.c.l.b16 %v318
        %v729 = vunpack.c.h.b16 %v318
        %v730 = vunpack.c.l.b16 %v319
        %v731 = vunpack.c.h.b16 %v319
        %v732 = vunpack.c.l.b16 %v320
        %v733 = vunpack.c.h.b16 %v320
        %v734 = vunpack.c.l.b16 %v321
        %v735 = vunpack.c.h.b16 %v321
        %v736 = vunpack.c.l.b16 %v322
        %v737 = vunpack.c.h.b16 %v322
        %v738 = vunpack.c.l.b16 %v323
        %v739 = vunpack.c.h.b16 %v323
        %v740 = vunpack.c.l.b16 %v324
        %v741 = vunpack.c.h.b16 %v324
        %v742 = vunpack.c.l.b16 %v325
        %v743 = vunpack.c.h.b16 %v325
        %v744 = vunpack.c.l.b16 %v326
        %v745 = vunpack.c.h.b16 %v326
        %v746 = vunpack.c.l.b16 %v327
        %v747 = vunpack.c.h.b16 %v327
        %v748 = vpack.c.b16 %v494, %v492
        %v749 = vpack.c.b16 %v495, %v493
        %v750 = vpack.c.b16 %v498, %v496
        %v751 = vpack.c.b16 %v499, %v497
        %v752 = vpack.c.b16 %v502, %v500
        %v753 = vpack.c.b16 %v503, %v501
        %v754 = vpack.c.b16 %v506, %v504
        %v755 = vpack.c.b16 %v507, %v505
        %v756 = vpack.c.b16 %v510, %v508
        %v757 = vpack.c.b16 %v511, %v509
        %v758 = vpack.c.b16 %v514, %v512
        %v759 = vpack.c.b16 %v515, %v513
        %v760 = vpack.c.b16 %v518, %v516
        %v761 = vpack.c.b16 %v519, %v517
        %v762 = vpack.c.b16 %v522, %v520
        %v763 = vpack.c.b16 %v523, %v521
        %v764 = vpack.c.b16 %v526, %v524
        %v765 = vpack.c.b16 %v527, %v525
        %v766 = vpack.c.b16 %v530, %v528
        %v767 = vpack.c.b16 %v531, %v529
        %v768 = vpack.c.b16 %v534, %v532
        %v769 = vpack.c.b16 %v535, %v533
        %v770 = vpack.c.b16 %v538, %v536
        %v771 = vpack.c.b16 %v539, %v537
        %v772 = vpack.c.b16 %v542, %v540
        %v773 = vpack.c.b16 %v543, %v541
        %v774 = vpack.c.b16 %v546, %v544
        %v775 = vpack.c.b16 %v547, %v545
        %v776 = vpack.c.b16 %v550, %v548
        %v777 = vpack.c.b16 %v551, %v549
        %v778 = vpack.c.b16 %v554, %v552
        %v779 = vpack.c.b16 %v555, %v553
        %v780 = vpack.c.b16 %v558, %v556
        %v781 = vpack.c.b16 %v559, %v557
        %v782 = vpack.c.b16 %v562, %v560
        %v783 = vpack.c.b16 %v563, %v561
        %v784 = vpack.c.b16 %v566, %v564
        %v785 = vpack.c.b16 %v567, %v565
        %v786 = vpack.c.b16 %v570, %v568
        %v787 = vpack.c.b16 %v571, %v569
        %v788 = vpack.c.b16 %v574, %v572
        %v789 = vpack.c.b16 %v575, %v573
        %v790 = vpack.c.b16 %v578, %v576
        %v791 = vpack.c.b16 %v579, %v577
        %v792 = vpack.c.b16 %v582, %v580
        %v793 = vpack.c.b16 %v583, %v581
        %v794 = vpack.c.b16 %v586, %v584
        %v795 = vpack.c.b16 %v587, %v585
        %v796 = vpack.c.b16 %v590, %v588
        %v797 = vpack.c.b16 %v591, %v589
        %v798 = vpack.c.b16 %v594, %v592
        %v799 = vpack.c.b16 %v595, %v593
        %v800 = vpack.c.b16 %v598, %v596
        %v801 = vpack.c.b16 %v599, %v597
        %v802 = vpack.c.b16 %v602, %v600
        %v803 = vpack.c.b16 %v603, %v601
        %v804 = vpack.c.b16 %v606, %v604
        %v805 = vpack.c.b16 %v607, %v605
        %v806 = vpack.c.b16 %v610, %v608
        %v807 = vpack.c.b16 %v611, %v609
        %v808 = vpack.c.b16 %v614, %v612
        %v809 = vpack.c.b16 %v615, %v613
        %v810 = vpack.c.b16 %v618, %v616
        %v811 = vpack.c.b16 %v619, %v617
        %v812 = vpack.c.b16 %v622, %v620
        %v813 = vpack.c.b16 %v623, %v621
        %v814 = vpack.c.b16 %v626, %v624
        %v815 = vpack.c.b16 %v627, %v625
        %v816 = vpack.c.b16 %v630, %v628
        %v817 = vpack.c.b16 %v631, %v629
        %v818 = vpack.c.b16 %v634, %v632
        %v819 = vpack.c.b16 %v635, %v633
        %v820 = vpack.c.b16 %v638, %v636
        %v821 = vpack.c.b16 %v639, %v637
        %v822 = vpack.c.b16 %v642, %v640
        %v823 = vpack.c.b16 %v643, %v641
        %v824 = vpack.c.b16 %v646, %v644
        %v825 = vpack.c.b16 %v647, %v645
        %v826 = vpack.c.b16 %v650, %v648
        %v827 = vpack.c.b16 %v651, %v649
        %v828 = vpack.c.b16 %v654, %v652
        %v829 = vpack.c.b16 %v655, %v653
        %v830 = vpack.c.b16 %v658, %v656
        %v831 = vpack.c.b16 %v659, %v657
        %v832 = vpack.c.b16 %v662, %v660
        %v833 = vpack.c.b16 %v663, %v661
        %v834 = vpack.c.b16 %v666, %v664
        %v835 = vpack.c.b16 %v667, %v665
        %v836 = vpack.c.b16 %v670, %v668
        %v837 = vpack.c.b16 %v671, %v669
        %v838 = vpack.c.b16 %v674, %v672
        %v839 = vpack.c.b16 %v675, %v673
        %v840 = vpack.c.b16 %v678, %v676
        %v841 = vpack.c.b16 %v679, %v677
        %v842 = vpack.c.b16 %v682, %v680
        %v843 = vpack.c.b16 %v683, %v681
        %v844 = vpack.c.b16 %v686, %v684
        %v845 = vpack.c.b16 %v687, %v685
        %v846 = vpack.c.b16 %v690, %v688
        %v847 = vpack.c.b16 %v691, %v689
        %v848 = vpack.c.b16 %v694, %v692
        %v849 = vpack.c.b16 %v695, %v693
        %v850 = vpack.c.b16 %v698, %v696
        %v851 = vpack.c.b16 %v699, %v697
        %v852 = vpack.c.b16 %v702, %v700
        %v853 = vpack.c.b16 %v703, %v701
        %v854 = vpack.c.b16 %v706, %v704
        %v855 = vpack.c.b16 %v707, %v705
        %v856 = vpack.c.b16 %v710, %v708
        %v857 = vpack.c.b16 %v711, %v709
        %v858 = vpack.c.b16 %v714, %v712
        %v859 = vpack.c.b16 %v715, %v713
        %v860 = vpack.c.b16 %v718, %v716
        %v861 = vpack.c.b16 %v719, %v717
        %v862 = vpack.c.b16 %v722, %v720
        %v863 = vpack.c.b16 %v723, %v721
        %v864 = vpack.c.b16 %v726, %v724
        %v865 = vpack.c.b16 %v727, %v725
        %v866 = vpack.c.b16 %v730, %v728
        %v867 = vpack.c.b16 %v731, %v729
        %v868 = vpack.c.b16 %v734, %v732
        %v869 = vpack.c.b16 %v735, %v733
        %v870 = vpack.c.b16 %v738, %v736
        %v871 = vpack.c.b16 %v739, %v737
        %v872 = vpack.c.b16 %v742, %v740
        %v873 = vpack.c.b16 %v743, %v741
        %v874 = vpack.c.b16 %v746, %v744
        %v875 = vpack.c.b16 %v747, %v745
        %v1036 = vunpack.c.l.b16 %v328
        %v1037 = vunpack.c.l.b16 %v329
        %v1038 = vunpack.c.l.b16 %v330
        %v1039 = vunpack.c.l.b16 %v331
        %v1040 = vunpack.c.l.b16 %v332
        %v1041 = vunpack.c.l.b16 %v333
        %v1042 = vunpack.c.l.b16 %v334
        %v1043 = vunpack.c.l.b16 %v335
        %v1044 = vunpack.c.l.b16 %v336
        %v1045 = vunpack.c.l.b16 %v337
        %v1046 = vunpack.c.l.b16 %v338
        %v1047 = vunpack.c.l.b16 %v339
        %v1048 = vunpack.c.l.b16 %v340
        %v1049 = vunpack.c.l.b16 %v341
        %v1050 = vunpack.c.l.b16 %v342
        %v1051 = vunpack.c.l.b16 %v343
        %v1052 = vunpack.c.l.b16 %v344
        %v1053 = vunpack.c.l.b16 %v345
        %v1054 = vunpack.c.l.b16 %v346
        %v1055 = vunpack.c.l.b16 %v347
        %v1056 = vunpack.c.l.b16 %v348
        %v1057 = vunpack.c.l.b16 %v349
        %v1058 = vunpack.c.l.b16 %v350
        %v1059 = vunpack.c.l.b16 %v351
        %v1060 = vunpack.c.l.b16 %v352
        %v1061 = vunpack.c.l.b16 %v353
        %v1062 = vunpack.c.l.b16 %v354
        %v1063 = vunpack.c.l.b16 %v355
        %v1064 = vunpack.c.l.b16 %v356
        %v1065 = vunpack.c.l.b16 %v357
        %v1066 = vunpack.c.l.b16 %v358
        %v1067 = vunpack.c.l.b16 %v359
        %v1068 = vpack.c.b16 %v1037, %v1036
        %v1069 = vpack.c.b16 %v1039, %v1038
        %v1070 = vpack.c.b16 %v1041, %v1040
        %v1071 = vpack.c.b16 %v1043, %v1042
        %v1072 = vpack.c.b16 %v1045, %v1044
        %v1073 = vpack.c.b16 %v1047, %v1046
        %v1074 = vpack.c.b16 %v1049, %v1048
        %v1075 = vpack.c.b16 %v1051, %v1050
        %v1076 = vpack.c.b16 %v1053, %v1052
        %v1077 = vpack.c.b16 %v1055, %v1054
        %v1078 = vpack.c.b16 %v1057, %v1056
        %v1079 = vpack.c.b16 %v1059, %v1058
        %v1080 = vpack.c.b16 %v1061, %v1060
        %v1081 = vpack.c.b16 %v1063, %v1062
        %v1082 = vpack.c.b16 %v1065, %v1064
        %v1083 = vpack.c.b16 %v1067, %v1066
        %1100 = vmatpush.bf16.msra.mxu0 %v1075
        %1101 = vmatpush.bf16.msra.mxu0 %v1074
        %1102 = vmatpush.bf16.msra.mxu0 %v1073
        %1103 = vmatpush.bf16.msra.mxu0 %v1072
        %1104 = vmatpush.bf16.msra.mxu0 %v1071
        %1105 = vmatpush.bf16.msra.mxu0 %v1070
        %1106 = vmatpush.bf16.msra.mxu0 %v1069
        %1107 = vmatpush.bf16.msra.mxu0 %v1068
        %1108 = vmatmul.bf16.gmra.mxu0 %v748
        %v1109 = vpop.f32.mrf.mxu0
        %v1110 = vadd.f32 %v362, %v1109
        %v1111 = vpop.f32.mrf.mxu0
        %v1112 = vadd.f32 %v362, %v1111
        %1113 = vmatmul.bf16.gmra.mxu0 %v750
        %v1114 = vpop.f32.mrf.mxu0
        %v1115 = vadd.f32 %v362, %v1114
        %v1116 = vpop.f32.mrf.mxu0
        %v1117 = vadd.f32 %v362, %v1116
        %1118 = vmatmul.bf16.gmra.mxu0 %v752
        %v1119 = vpop.f32.mrf.mxu0
        %v1120 = vadd.f32 %v362, %v1119
        %v1121 = vpop.f32.mrf.mxu0
        %v1122 = vadd.f32 %v362, %v1121
        %1123 = vmatmul.bf16.gmra.mxu0 %v754
        %v1124 = vpop.f32.mrf.mxu0
        %v1125 = vadd.f32 %v362, %v1124
        %v1126 = vpop.f32.mrf.mxu0
        %v1127 = vadd.f32 %v362, %v1126
        %1128 = vmatmul.bf16.gmra.mxu0 %v756
        %v1129 = vpop.f32.mrf.mxu0
        %v1130 = vadd.f32 %v362, %v1129
        %v1131 = vpop.f32.mrf.mxu0
        %v1132 = vadd.f32 %v362, %v1131
        %1133 = vmatmul.bf16.gmra.mxu0 %v758
        %v1134 = vpop.f32.mrf.mxu0
        %v1135 = vadd.f32 %v362, %v1134
        %v1136 = vpop.f32.mrf.mxu0
        %v1137 = vadd.f32 %v362, %v1136
        %1138 = vmatmul.bf16.gmra.mxu0 %v760
        %v1139 = vpop.f32.mrf.mxu0
        %v1140 = vadd.f32 %v362, %v1139
        %v1141 = vpop.f32.mrf.mxu0
        %v1142 = vadd.f32 %v362, %v1141
        %1143 = vmatmul.bf16.gmra.mxu0 %v762
        %v1144 = vpop.f32.mrf.mxu0
        %v1145 = vadd.f32 %v362, %v1144
        %v1146 = vpop.f32.mrf.mxu0
        %v1147 = vadd.f32 %v362, %v1146
        %1148 = vmatmul.bf16.gmra.mxu0 %v764
        %v1149 = vpop.f32.mrf.mxu0
        %v1150 = vadd.f32 %v362, %v1149
        %v1151 = vpop.f32.mrf.mxu0
        %v1152 = vadd.f32 %v362, %v1151
        %1153 = vmatmul.bf16.gmra.mxu0 %v766
        %v1154 = vpop.f32.mrf.mxu0
        %v1155 = vadd.f32 %v362, %v1154
        %v1156 = vpop.f32.mrf.mxu0
        %v1157 = vadd.f32 %v362, %v1156
        %1158 = vmatmul.bf16.gmra.mxu0 %v768
        %v1159 = vpop.f32.mrf.mxu0
        %v1160 = vadd.f32 %v362, %v1159
        %v1161 = vpop.f32.mrf.mxu0
        %v1162 = vadd.f32 %v362, %v1161
        %1163 = vmatmul.bf16.gmra.mxu0 %v770
        %v1164 = vpop.f32.mrf.mxu0
        %v1165 = vadd.f32 %v362, %v1164
        %v1166 = vpop.f32.mrf.mxu0
        %v1167 = vadd.f32 %v362, %v1166
        %1168 = vmatmul.bf16.gmra.mxu0 %v772
        %v1169 = vpop.f32.mrf.mxu0
        %v1170 = vadd.f32 %v362, %v1169
        %v1171 = vpop.f32.mrf.mxu0
        %v1172 = vadd.f32 %v362, %v1171
        %1173 = vmatmul.bf16.gmra.mxu0 %v774
        %v1174 = vpop.f32.mrf.mxu0
        %v1175 = vadd.f32 %v362, %v1174
        %v1176 = vpop.f32.mrf.mxu0
        %v1177 = vadd.f32 %v362, %v1176
        %1178 = vmatmul.bf16.gmra.mxu0 %v776
        %v1179 = vpop.f32.mrf.mxu0
        %v1180 = vadd.f32 %v362, %v1179
        %v1181 = vpop.f32.mrf.mxu0
        %v1182 = vadd.f32 %v362, %v1181
        %1183 = vmatmul.bf16.gmra.mxu0 %v778
        %v1184 = vpop.f32.mrf.mxu0
        %v1185 = vadd.f32 %v362, %v1184
        %v1186 = vpop.f32.mrf.mxu0
        %v1187 = vadd.f32 %v362, %v1186
        %1188 = vmatmul.bf16.gmra.mxu0 %v780
        %v1189 = vpop.f32.mrf.mxu0
        %v1190 = vadd.f32 %v362, %v1189
        %v1191 = vpop.f32.mrf.mxu0
        %v1192 = vadd.f32 %v362, %v1191
        %1193 = vmatmul.bf16.gmra.mxu0 %v782
        %v1194 = vpop.f32.mrf.mxu0
        %v1195 = vadd.f32 %v362, %v1194
        %v1196 = vpop.f32.mrf.mxu0
        %v1197 = vadd.f32 %v362, %v1196
        %1198 = vmatmul.bf16.gmra.mxu0 %v784
        %v1199 = vpop.f32.mrf.mxu0
        %v1200 = vadd.f32 %v362, %v1199
        %v1201 = vpop.f32.mrf.mxu0
        %v1202 = vadd.f32 %v362, %v1201
        %1203 = vmatmul.bf16.gmra.mxu0 %v786
        %v1204 = vpop.f32.mrf.mxu0
        %v1205 = vadd.f32 %v362, %v1204
        %v1206 = vpop.f32.mrf.mxu0
        %v1207 = vadd.f32 %v362, %v1206
        %1208 = vmatmul.bf16.gmra.mxu0 %v788
        %v1209 = vpop.f32.mrf.mxu0
        %v1210 = vadd.f32 %v362, %v1209
        %v1211 = vpop.f32.mrf.mxu0
        %v1212 = vadd.f32 %v362, %v1211
        %1213 = vmatmul.bf16.gmra.mxu0 %v790
        %v1214 = vpop.f32.mrf.mxu0
        %v1215 = vadd.f32 %v362, %v1214
        %v1216 = vpop.f32.mrf.mxu0
        %v1217 = vadd.f32 %v362, %v1216
        %1218 = vmatmul.bf16.gmra.mxu0 %v792
        %v1219 = vpop.f32.mrf.mxu0
        %v1220 = vadd.f32 %v362, %v1219
        %v1221 = vpop.f32.mrf.mxu0
        %v1222 = vadd.f32 %v362, %v1221
        %1223 = vmatmul.bf16.gmra.mxu0 %v794
        %v1224 = vpop.f32.mrf.mxu0
        %v1225 = vadd.f32 %v362, %v1224
        %v1226 = vpop.f32.mrf.mxu0
        %v1227 = vadd.f32 %v362, %v1226
        %1228 = vmatmul.bf16.gmra.mxu0 %v796
        %v1229 = vpop.f32.mrf.mxu0
        %v1230 = vadd.f32 %v362, %v1229
        %v1231 = vpop.f32.mrf.mxu0
        %v1232 = vadd.f32 %v362, %v1231
        %1233 = vmatmul.bf16.gmra.mxu0 %v798
        %v1234 = vpop.f32.mrf.mxu0
        %v1235 = vadd.f32 %v362, %v1234
        %v1236 = vpop.f32.mrf.mxu0
        %v1237 = vadd.f32 %v362, %v1236
        %1238 = vmatmul.bf16.gmra.mxu0 %v800
        %v1239 = vpop.f32.mrf.mxu0
        %v1240 = vadd.f32 %v362, %v1239
        %v1241 = vpop.f32.mrf.mxu0
        %v1242 = vadd.f32 %v362, %v1241
        %1243 = vmatmul.bf16.gmra.mxu0 %v802
        %v1244 = vpop.f32.mrf.mxu0
        %v1245 = vadd.f32 %v362, %v1244
        %v1246 = vpop.f32.mrf.mxu0
        %v1247 = vadd.f32 %v362, %v1246
        %1248 = vmatmul.bf16.gmra.mxu0 %v804
        %v1249 = vpop.f32.mrf.mxu0
        %v1250 = vadd.f32 %v362, %v1249
        %v1251 = vpop.f32.mrf.mxu0
        %v1252 = vadd.f32 %v362, %v1251
        %1253 = vmatmul.bf16.gmra.mxu0 %v806
        %v1254 = vpop.f32.mrf.mxu0
        %v1255 = vadd.f32 %v362, %v1254
        %v1256 = vpop.f32.mrf.mxu0
        %v1257 = vadd.f32 %v362, %v1256
        %1258 = vmatmul.bf16.gmra.mxu0 %v808
        %v1259 = vpop.f32.mrf.mxu0
        %v1260 = vadd.f32 %v362, %v1259
        %v1261 = vpop.f32.mrf.mxu0
        %v1262 = vadd.f32 %v362, %v1261
        %1263 = vmatmul.bf16.gmra.mxu0 %v810
        %v1264 = vpop.f32.mrf.mxu0
        %v1265 = vadd.f32 %v362, %v1264
        %v1266 = vpop.f32.mrf.mxu0
        %v1267 = vadd.f32 %v362, %v1266
        %1268 = vmatmul.bf16.gmra.mxu0 %v812
        %v1269 = vpop.f32.mrf.mxu0
        %v1270 = vadd.f32 %v362, %v1269
        %v1271 = vpop.f32.mrf.mxu0
        %v1272 = vadd.f32 %v362, %v1271
        %1273 = vmatmul.bf16.gmra.mxu0 %v814
        %v1274 = vpop.f32.mrf.mxu0
        %v1275 = vadd.f32 %v362, %v1274
        %v1276 = vpop.f32.mrf.mxu0
        %v1277 = vadd.f32 %v362, %v1276
        %1278 = vmatmul.bf16.gmra.mxu0 %v816
        %v1279 = vpop.f32.mrf.mxu0
        %v1280 = vadd.f32 %v362, %v1279
        %v1281 = vpop.f32.mrf.mxu0
        %v1282 = vadd.f32 %v362, %v1281
        %1283 = vmatmul.bf16.gmra.mxu0 %v818
        %v1284 = vpop.f32.mrf.mxu0
        %v1285 = vadd.f32 %v362, %v1284
        %v1286 = vpop.f32.mrf.mxu0
        %v1287 = vadd.f32 %v362, %v1286
        %1288 = vmatmul.bf16.gmra.mxu0 %v820
        %v1289 = vpop.f32.mrf.mxu0
        %v1290 = vadd.f32 %v362, %v1289
        %v1291 = vpop.f32.mrf.mxu0
        %v1292 = vadd.f32 %v362, %v1291
        %1293 = vmatmul.bf16.gmra.mxu0 %v822
        %v1294 = vpop.f32.mrf.mxu0
        %v1295 = vadd.f32 %v362, %v1294
        %v1296 = vpop.f32.mrf.mxu0
        %v1297 = vadd.f32 %v362, %v1296
        %1298 = vmatmul.bf16.gmra.mxu0 %v824
        %v1299 = vpop.f32.mrf.mxu0
        %v1300 = vadd.f32 %v362, %v1299
        %v1301 = vpop.f32.mrf.mxu0
        %v1302 = vadd.f32 %v362, %v1301
        %1303 = vmatmul.bf16.gmra.mxu0 %v826
        %v1304 = vpop.f32.mrf.mxu0
        %v1305 = vadd.f32 %v362, %v1304
        %v1306 = vpop.f32.mrf.mxu0
        %v1307 = vadd.f32 %v362, %v1306
        %1308 = vmatmul.bf16.gmra.mxu0 %v828
        %v1309 = vpop.f32.mrf.mxu0
        %v1310 = vadd.f32 %v362, %v1309
        %v1311 = vpop.f32.mrf.mxu0
        %v1312 = vadd.f32 %v362, %v1311
        %1313 = vmatmul.bf16.gmra.mxu0 %v830
        %v1314 = vpop.f32.mrf.mxu0
        %v1315 = vadd.f32 %v362, %v1314
        %v1316 = vpop.f32.mrf.mxu0
        %v1317 = vadd.f32 %v362, %v1316
        %1318 = vmatmul.bf16.gmra.mxu0 %v832
        %v1319 = vpop.f32.mrf.mxu0
        %v1320 = vadd.f32 %v362, %v1319
        %v1321 = vpop.f32.mrf.mxu0
        %v1322 = vadd.f32 %v362, %v1321
        %1323 = vmatmul.bf16.gmra.mxu0 %v834
        %v1324 = vpop.f32.mrf.mxu0
        %v1325 = vadd.f32 %v362, %v1324
        %v1326 = vpop.f32.mrf.mxu0
        %v1327 = vadd.f32 %v362, %v1326
        %1328 = vmatmul.bf16.gmra.mxu0 %v836
        %v1329 = vpop.f32.mrf.mxu0
        %v1330 = vadd.f32 %v362, %v1329
        %v1331 = vpop.f32.mrf.mxu0
        %v1332 = vadd.f32 %v362, %v1331
        %1333 = vmatmul.bf16.gmra.mxu0 %v838
        %v1334 = vpop.f32.mrf.mxu0
        %v1335 = vadd.f32 %v362, %v1334
        %v1336 = vpop.f32.mrf.mxu0
        %v1337 = vadd.f32 %v362, %v1336
        %1338 = vmatmul.bf16.gmra.mxu0 %v840
        %v1339 = vpop.f32.mrf.mxu0
        %v1340 = vadd.f32 %v362, %v1339
        %v1341 = vpop.f32.mrf.mxu0
        %v1342 = vadd.f32 %v362, %v1341
        %1343 = vmatmul.bf16.gmra.mxu0 %v842
        %v1344 = vpop.f32.mrf.mxu0
        %v1345 = vadd.f32 %v362, %v1344
        %v1346 = vpop.f32.mrf.mxu0
        %v1347 = vadd.f32 %v362, %v1346
        %1348 = vmatmul.bf16.gmra.mxu0 %v844
        %v1349 = vpop.f32.mrf.mxu0
        %v1350 = vadd.f32 %v362, %v1349
        %v1351 = vpop.f32.mrf.mxu0
        %v1352 = vadd.f32 %v362, %v1351
        %1353 = vmatmul.bf16.gmra.mxu0 %v846
        %v1354 = vpop.f32.mrf.mxu0
        %v1355 = vadd.f32 %v362, %v1354
        %v1356 = vpop.f32.mrf.mxu0
        %v1357 = vadd.f32 %v362, %v1356
        %1358 = vmatmul.bf16.gmra.mxu0 %v848
        %v1359 = vpop.f32.mrf.mxu0
        %v1360 = vadd.f32 %v362, %v1359
        %v1361 = vpop.f32.mrf.mxu0
        %v1362 = vadd.f32 %v362, %v1361
        %1363 = vmatmul.bf16.gmra.mxu0 %v850
        %v1364 = vpop.f32.mrf.mxu0
        %v1365 = vadd.f32 %v362, %v1364
        %v1366 = vpop.f32.mrf.mxu0
        %v1367 = vadd.f32 %v362, %v1366
        %1368 = vmatmul.bf16.gmra.mxu0 %v852
        %v1369 = vpop.f32.mrf.mxu0
        %v1370 = vadd.f32 %v362, %v1369
        %v1371 = vpop.f32.mrf.mxu0
        %v1372 = vadd.f32 %v362, %v1371
        %1373 = vmatmul.bf16.gmra.mxu0 %v854
        %v1374 = vpop.f32.mrf.mxu0
        %v1375 = vadd.f32 %v362, %v1374
        %v1376 = vpop.f32.mrf.mxu0
        %v1377 = vadd.f32 %v362, %v1376
        %1378 = vmatmul.bf16.gmra.mxu0 %v856
        %v1379 = vpop.f32.mrf.mxu0
        %v1380 = vadd.f32 %v362, %v1379
        %v1381 = vpop.f32.mrf.mxu0
        %v1382 = vadd.f32 %v362, %v1381
        %1383 = vmatmul.bf16.gmra.mxu0 %v858
        %v1384 = vpop.f32.mrf.mxu0
        %v1385 = vadd.f32 %v362, %v1384
        %v1386 = vpop.f32.mrf.mxu0
        %v1387 = vadd.f32 %v362, %v1386
        %1388 = vmatmul.bf16.gmra.mxu0 %v860
        %v1389 = vpop.f32.mrf.mxu0
        %v1390 = vadd.f32 %v362, %v1389
        %v1391 = vpop.f32.mrf.mxu0
        %v1392 = vadd.f32 %v362, %v1391
        %1393 = vmatmul.bf16.gmra.mxu0 %v862
        %v1394 = vpop.f32.mrf.mxu0
        %v1395 = vadd.f32 %v362, %v1394
        %v1396 = vpop.f32.mrf.mxu0
        %v1397 = vadd.f32 %v362, %v1396
        %1398 = vmatmul.bf16.gmra.mxu0 %v864
        %v1399 = vpop.f32.mrf.mxu0
        %v1400 = vadd.f32 %v362, %v1399
        %v1401 = vpop.f32.mrf.mxu0
        %v1402 = vadd.f32 %v362, %v1401
        %1403 = vmatmul.bf16.gmra.mxu0 %v866
        %v1404 = vpop.f32.mrf.mxu0
        %v1405 = vadd.f32 %v362, %v1404
        %v1406 = vpop.f32.mrf.mxu0
        %v1407 = vadd.f32 %v362, %v1406
        %1408 = vmatmul.bf16.gmra.mxu0 %v868
        %v1409 = vpop.f32.mrf.mxu0
        %v1410 = vadd.f32 %v362, %v1409
        %v1411 = vpop.f32.mrf.mxu0
        %v1412 = vadd.f32 %v362, %v1411
        %1413 = vmatmul.bf16.gmra.mxu0 %v870
        %v1414 = vpop.f32.mrf.mxu0
        %v1415 = vadd.f32 %v362, %v1414
        %v1416 = vpop.f32.mrf.mxu0
        %v1417 = vadd.f32 %v362, %v1416
        %1418 = vmatmul.bf16.gmra.mxu0 %v872
        %v1419 = vpop.f32.mrf.mxu0
        %v1420 = vadd.f32 %v362, %v1419
        %v1421 = vpop.f32.mrf.mxu0
        %v1422 = vadd.f32 %v362, %v1421
        %1423 = vmatmul.bf16.gmra.mxu0 %v874
        %v1424 = vpop.f32.mrf.mxu0
        %v1425 = vadd.f32 %v362, %v1424
        %v1426 = vpop.f32.mrf.mxu0
        %v1427 = vadd.f32 %v362, %v1426
        %1428 = vdwg.mxu0
        %1429 = vmatpush.bf16.msra.mxu0 %v1083
        %1430 = vmatpush.bf16.msra.mxu0 %v1082
        %1431 = vmatpush.bf16.msra.mxu0 %v1081
        %1432 = vmatpush.bf16.msra.mxu0 %v1080
        %1433 = vmatpush.bf16.msra.mxu0 %v1079
        %1434 = vmatpush.bf16.msra.mxu0 %v1078
        %1435 = vmatpush.bf16.msra.mxu0 %v1077
        %1436 = vmatpush.bf16.msra.mxu0 %v1076
        %1437 = vmatmul.bf16.gmra.mxu0 %v749
        %v1438 = vpop.f32.mrf.mxu0
        %v1439 = vadd.f32 %v1110, %v1438
        %v1440 = vpop.f32.mrf.mxu0
        %v1441 = vadd.f32 %v1112, %v1440
        %1442 = vmatmul.bf16.gmra.mxu0 %v751
        %v1443 = vpop.f32.mrf.mxu0
        %v1444 = vadd.f32 %v1115, %v1443
        %v1445 = vpop.f32.mrf.mxu0
        %v1446 = vadd.f32 %v1117, %v1445
        %1447 = vmatmul.bf16.gmra.mxu0 %v753
        %v1448 = vpop.f32.mrf.mxu0
        %v1449 = vadd.f32 %v1120, %v1448
        %v1450 = vpop.f32.mrf.mxu0
        %v1451 = vadd.f32 %v1122, %v1450
        %1452 = vmatmul.bf16.gmra.mxu0 %v755
        %v1453 = vpop.f32.mrf.mxu0
        %v1454 = vadd.f32 %v1125, %v1453
        %v1455 = vpop.f32.mrf.mxu0
        %v1456 = vadd.f32 %v1127, %v1455
        %1457 = vmatmul.bf16.gmra.mxu0 %v757
        %v1458 = vpop.f32.mrf.mxu0
        %v1459 = vadd.f32 %v1130, %v1458
        %v1460 = vpop.f32.mrf.mxu0
        %v1461 = vadd.f32 %v1132, %v1460
        %1462 = vmatmul.bf16.gmra.mxu0 %v759
        %v1463 = vpop.f32.mrf.mxu0
        %v1464 = vadd.f32 %v1135, %v1463
        %v1465 = vpop.f32.mrf.mxu0
        %v1466 = vadd.f32 %v1137, %v1465
        %1467 = vmatmul.bf16.gmra.mxu0 %v761
        %v1468 = vpop.f32.mrf.mxu0
        %v1469 = vadd.f32 %v1140, %v1468
        %v1470 = vpop.f32.mrf.mxu0
        %v1471 = vadd.f32 %v1142, %v1470
        %1472 = vmatmul.bf16.gmra.mxu0 %v763
        %v1473 = vpop.f32.mrf.mxu0
        %v1474 = vadd.f32 %v1145, %v1473
        %v1475 = vpop.f32.mrf.mxu0
        %v1476 = vadd.f32 %v1147, %v1475
        %1477 = vmatmul.bf16.gmra.mxu0 %v765
        %v1478 = vpop.f32.mrf.mxu0
        %v1479 = vadd.f32 %v1150, %v1478
        %v1480 = vpop.f32.mrf.mxu0
        %v1481 = vadd.f32 %v1152, %v1480
        %1482 = vmatmul.bf16.gmra.mxu0 %v767
        %v1483 = vpop.f32.mrf.mxu0
        %v1484 = vadd.f32 %v1155, %v1483
        %v1485 = vpop.f32.mrf.mxu0
        %v1486 = vadd.f32 %v1157, %v1485
        %1487 = vmatmul.bf16.gmra.mxu0 %v769
        %v1488 = vpop.f32.mrf.mxu0
        %v1489 = vadd.f32 %v1160, %v1488
        %v1490 = vpop.f32.mrf.mxu0
        %v1491 = vadd.f32 %v1162, %v1490
        %1492 = vmatmul.bf16.gmra.mxu0 %v771
        %v1493 = vpop.f32.mrf.mxu0
        %v1494 = vadd.f32 %v1165, %v1493
        %v1495 = vpop.f32.mrf.mxu0
        %v1496 = vadd.f32 %v1167, %v1495
        %1497 = vmatmul.bf16.gmra.mxu0 %v773
        %v1498 = vpop.f32.mrf.mxu0
        %v1499 = vadd.f32 %v1170, %v1498
        %v1500 = vpop.f32.mrf.mxu0
        %v1501 = vadd.f32 %v1172, %v1500
        %1502 = vmatmul.bf16.gmra.mxu0 %v775
        %v1503 = vpop.f32.mrf.mxu0
        %v1504 = vadd.f32 %v1175, %v1503
        %v1505 = vpop.f32.mrf.mxu0
        %v1506 = vadd.f32 %v1177, %v1505
        %1507 = vmatmul.bf16.gmra.mxu0 %v777
        %v1508 = vpop.f32.mrf.mxu0
        %v1509 = vadd.f32 %v1180, %v1508
        %v1510 = vpop.f32.mrf.mxu0
        %v1511 = vadd.f32 %v1182, %v1510
        %1512 = vmatmul.bf16.gmra.mxu0 %v779
        %v1513 = vpop.f32.mrf.mxu0
        %v1514 = vadd.f32 %v1185, %v1513
        %v1515 = vpop.f32.mrf.mxu0
        %v1516 = vadd.f32 %v1187, %v1515
        %1517 = vmatmul.bf16.gmra.mxu0 %v781
        %v1518 = vpop.f32.mrf.mxu0
        %v1519 = vadd.f32 %v1190, %v1518
        %v1520 = vpop.f32.mrf.mxu0
        %v1521 = vadd.f32 %v1192, %v1520
        %1522 = vmatmul.bf16.gmra.mxu0 %v783
        %v1523 = vpop.f32.mrf.mxu0
        %v1524 = vadd.f32 %v1195, %v1523
        %v1525 = vpop.f32.mrf.mxu0
        %v1526 = vadd.f32 %v1197, %v1525
        %1527 = vmatmul.bf16.gmra.mxu0 %v785
        %v1528 = vpop.f32.mrf.mxu0
        %v1529 = vadd.f32 %v1200, %v1528
        %v1530 = vpop.f32.mrf.mxu0
        %v1531 = vadd.f32 %v1202, %v1530
        %1532 = vmatmul.bf16.gmra.mxu0 %v787
        %v1533 = vpop.f32.mrf.mxu0
        %v1534 = vadd.f32 %v1205, %v1533
        %v1535 = vpop.f32.mrf.mxu0
        %v1536 = vadd.f32 %v1207, %v1535
        %1537 = vmatmul.bf16.gmra.mxu0 %v789
        %v1538 = vpop.f32.mrf.mxu0
        %v1539 = vadd.f32 %v1210, %v1538
        %v1540 = vpop.f32.mrf.mxu0
        %v1541 = vadd.f32 %v1212, %v1540
        %1542 = vmatmul.bf16.gmra.mxu0 %v791
        %v1543 = vpop.f32.mrf.mxu0
        %v1544 = vadd.f32 %v1215, %v1543
        %v1545 = vpop.f32.mrf.mxu0
        %v1546 = vadd.f32 %v1217, %v1545
        %1547 = vmatmul.bf16.gmra.mxu0 %v793
        %v1548 = vpop.f32.mrf.mxu0
        %v1549 = vadd.f32 %v1220, %v1548
        %v1550 = vpop.f32.mrf.mxu0
        %v1551 = vadd.f32 %v1222, %v1550
        %1552 = vmatmul.bf16.gmra.mxu0 %v795
        %v1553 = vpop.f32.mrf.mxu0
        %v1554 = vadd.f32 %v1225, %v1553
        %v1555 = vpop.f32.mrf.mxu0
        %v1556 = vadd.f32 %v1227, %v1555
        %1557 = vmatmul.bf16.gmra.mxu0 %v797
        %v1558 = vpop.f32.mrf.mxu0
        %v1559 = vadd.f32 %v1230, %v1558
        %v1560 = vpop.f32.mrf.mxu0
        %v1561 = vadd.f32 %v1232, %v1560
        %1562 = vmatmul.bf16.gmra.mxu0 %v799
        %v1563 = vpop.f32.mrf.mxu0
        %v1564 = vadd.f32 %v1235, %v1563
        %v1565 = vpop.f32.mrf.mxu0
        %v1566 = vadd.f32 %v1237, %v1565
        %1567 = vmatmul.bf16.gmra.mxu0 %v801
        %v1568 = vpop.f32.mrf.mxu0
        %v1569 = vadd.f32 %v1240, %v1568
        %v1570 = vpop.f32.mrf.mxu0
        %v1571 = vadd.f32 %v1242, %v1570
        %1572 = vmatmul.bf16.gmra.mxu0 %v803
        %v1573 = vpop.f32.mrf.mxu0
        %v1574 = vadd.f32 %v1245, %v1573
        %v1575 = vpop.f32.mrf.mxu0
        %v1576 = vadd.f32 %v1247, %v1575
        %1577 = vmatmul.bf16.gmra.mxu0 %v805
        %v1578 = vpop.f32.mrf.mxu0
        %v1579 = vadd.f32 %v1250, %v1578
        %v1580 = vpop.f32.mrf.mxu0
        %v1581 = vadd.f32 %v1252, %v1580
        %1582 = vmatmul.bf16.gmra.mxu0 %v807
        %v1583 = vpop.f32.mrf.mxu0
        %v1584 = vadd.f32 %v1255, %v1583
        %v1585 = vpop.f32.mrf.mxu0
        %v1586 = vadd.f32 %v1257, %v1585
        %1587 = vmatmul.bf16.gmra.mxu0 %v809
        %v1588 = vpop.f32.mrf.mxu0
        %v1589 = vadd.f32 %v1260, %v1588
        %v1590 = vpop.f32.mrf.mxu0
        %v1591 = vadd.f32 %v1262, %v1590
        %1592 = vmatmul.bf16.gmra.mxu0 %v811
        %v1593 = vpop.f32.mrf.mxu0
        %v1594 = vadd.f32 %v1265, %v1593
        %v1595 = vpop.f32.mrf.mxu0
        %v1596 = vadd.f32 %v1267, %v1595
        %1597 = vmatmul.bf16.gmra.mxu0 %v813
        %v1598 = vpop.f32.mrf.mxu0
        %v1599 = vadd.f32 %v1270, %v1598
        %v1600 = vpop.f32.mrf.mxu0
        %v1601 = vadd.f32 %v1272, %v1600
        %1602 = vmatmul.bf16.gmra.mxu0 %v815
        %v1603 = vpop.f32.mrf.mxu0
        %v1604 = vadd.f32 %v1275, %v1603
        %v1605 = vpop.f32.mrf.mxu0
        %v1606 = vadd.f32 %v1277, %v1605
        %1607 = vmatmul.bf16.gmra.mxu0 %v817
        %v1608 = vpop.f32.mrf.mxu0
        %v1609 = vadd.f32 %v1280, %v1608
        %v1610 = vpop.f32.mrf.mxu0
        %v1611 = vadd.f32 %v1282, %v1610
        %1612 = vmatmul.bf16.gmra.mxu0 %v819
        %v1613 = vpop.f32.mrf.mxu0
        %v1614 = vadd.f32 %v1285, %v1613
        %v1615 = vpop.f32.mrf.mxu0
        %v1616 = vadd.f32 %v1287, %v1615
        %1617 = vmatmul.bf16.gmra.mxu0 %v821
        %v1618 = vpop.f32.mrf.mxu0
        %v1619 = vadd.f32 %v1290, %v1618
        %v1620 = vpop.f32.mrf.mxu0
        %v1621 = vadd.f32 %v1292, %v1620
        %1622 = vmatmul.bf16.gmra.mxu0 %v823
        %v1623 = vpop.f32.mrf.mxu0
        %v1624 = vadd.f32 %v1295, %v1623
        %v1625 = vpop.f32.mrf.mxu0
        %v1626 = vadd.f32 %v1297, %v1625
        %1627 = vmatmul.bf16.gmra.mxu0 %v825
        %v1628 = vpop.f32.mrf.mxu0
        %v1629 = vadd.f32 %v1300, %v1628
        %v1630 = vpop.f32.mrf.mxu0
        %v1631 = vadd.f32 %v1302, %v1630
        %1632 = vmatmul.bf16.gmra.mxu0 %v827
        %v1633 = vpop.f32.mrf.mxu0
        %v1634 = vadd.f32 %v1305, %v1633
        %v1635 = vpop.f32.mrf.mxu0
        %v1636 = vadd.f32 %v1307, %v1635
        %1637 = vmatmul.bf16.gmra.mxu0 %v829
        %v1638 = vpop.f32.mrf.mxu0
        %v1639 = vadd.f32 %v1310, %v1638
        %v1640 = vpop.f32.mrf.mxu0
        %v1641 = vadd.f32 %v1312, %v1640
        %1642 = vmatmul.bf16.gmra.mxu0 %v831
        %v1643 = vpop.f32.mrf.mxu0
        %v1644 = vadd.f32 %v1315, %v1643
        %v1645 = vpop.f32.mrf.mxu0
        %v1646 = vadd.f32 %v1317, %v1645
        %1647 = vmatmul.bf16.gmra.mxu0 %v833
        %v1648 = vpop.f32.mrf.mxu0
        %v1649 = vadd.f32 %v1320, %v1648
        %v1650 = vpop.f32.mrf.mxu0
        %v1651 = vadd.f32 %v1322, %v1650
        %1652 = vmatmul.bf16.gmra.mxu0 %v835
        %v1653 = vpop.f32.mrf.mxu0
        %v1654 = vadd.f32 %v1325, %v1653
        %v1655 = vpop.f32.mrf.mxu0
        %v1656 = vadd.f32 %v1327, %v1655
        %1657 = vmatmul.bf16.gmra.mxu0 %v837
        %v1658 = vpop.f32.mrf.mxu0
        %v1659 = vadd.f32 %v1330, %v1658
        %v1660 = vpop.f32.mrf.mxu0
        %v1661 = vadd.f32 %v1332, %v1660
        %1662 = vmatmul.bf16.gmra.mxu0 %v839
        %v1663 = vpop.f32.mrf.mxu0
        %v1664 = vadd.f32 %v1335, %v1663
        %v1665 = vpop.f32.mrf.mxu0
        %v1666 = vadd.f32 %v1337, %v1665
        %1667 = vmatmul.bf16.gmra.mxu0 %v841
        %v1668 = vpop.f32.mrf.mxu0
        %v1669 = vadd.f32 %v1340, %v1668
        %v1670 = vpop.f32.mrf.mxu0
        %v1671 = vadd.f32 %v1342, %v1670
        %1672 = vmatmul.bf16.gmra.mxu0 %v843
        %v1673 = vpop.f32.mrf.mxu0
        %v1674 = vadd.f32 %v1345, %v1673
        %v1675 = vpop.f32.mrf.mxu0
        %v1676 = vadd.f32 %v1347, %v1675
        %1677 = vmatmul.bf16.gmra.mxu0 %v845
        %v1678 = vpop.f32.mrf.mxu0
        %v1679 = vadd.f32 %v1350, %v1678
        %v1680 = vpop.f32.mrf.mxu0
        %v1681 = vadd.f32 %v1352, %v1680
        %1682 = vmatmul.bf16.gmra.mxu0 %v847
        %v1683 = vpop.f32.mrf.mxu0
        %v1684 = vadd.f32 %v1355, %v1683
        %v1685 = vpop.f32.mrf.mxu0
        %v1686 = vadd.f32 %v1357, %v1685
        %1687 = vmatmul.bf16.gmra.mxu0 %v849
        %v1688 = vpop.f32.mrf.mxu0
        %v1689 = vadd.f32 %v1360, %v1688
        %v1690 = vpop.f32.mrf.mxu0
        %v1691 = vadd.f32 %v1362, %v1690
        %1692 = vmatmul.bf16.gmra.mxu0 %v851
        %v1693 = vpop.f32.mrf.mxu0
        %v1694 = vadd.f32 %v1365, %v1693
        %v1695 = vpop.f32.mrf.mxu0
        %v1696 = vadd.f32 %v1367, %v1695
        %1697 = vmatmul.bf16.gmra.mxu0 %v853
        %v1698 = vpop.f32.mrf.mxu0
        %v1699 = vadd.f32 %v1370, %v1698
        %v1700 = vpop.f32.mrf.mxu0
        %v1701 = vadd.f32 %v1372, %v1700
        %1702 = vmatmul.bf16.gmra.mxu0 %v855
        %v1703 = vpop.f32.mrf.mxu0
        %v1704 = vadd.f32 %v1375, %v1703
        %v1705 = vpop.f32.mrf.mxu0
        %v1706 = vadd.f32 %v1377, %v1705
        %1707 = vmatmul.bf16.gmra.mxu0 %v857
        %v1708 = vpop.f32.mrf.mxu0
        %v1709 = vadd.f32 %v1380, %v1708
        %v1710 = vpop.f32.mrf.mxu0
        %v1711 = vadd.f32 %v1382, %v1710
        %1712 = vmatmul.bf16.gmra.mxu0 %v859
        %v1713 = vpop.f32.mrf.mxu0
        %v1714 = vadd.f32 %v1385, %v1713
        %v1715 = vpop.f32.mrf.mxu0
        %v1716 = vadd.f32 %v1387, %v1715
        %1717 = vmatmul.bf16.gmra.mxu0 %v861
        %v1718 = vpop.f32.mrf.mxu0
        %v1719 = vadd.f32 %v1390, %v1718
        %v1720 = vpop.f32.mrf.mxu0
        %v1721 = vadd.f32 %v1392, %v1720
        %1722 = vmatmul.bf16.gmra.mxu0 %v863
        %v1723 = vpop.f32.mrf.mxu0
        %v1724 = vadd.f32 %v1395, %v1723
        %v1725 = vpop.f32.mrf.mxu0
        %v1726 = vadd.f32 %v1397, %v1725
        %1727 = vmatmul.bf16.gmra.mxu0 %v865
        %v1728 = vpop.f32.mrf.mxu0
        %v1729 = vadd.f32 %v1400, %v1728
        %v1730 = vpop.f32.mrf.mxu0
        %v1731 = vadd.f32 %v1402, %v1730
        %1732 = vmatmul.bf16.gmra.mxu0 %v867
        %v1733 = vpop.f32.mrf.mxu0
        %v1734 = vadd.f32 %v1405, %v1733
        %v1735 = vpop.f32.mrf.mxu0
        %v1736 = vadd.f32 %v1407, %v1735
        %1737 = vmatmul.bf16.gmra.mxu0 %v869
        %v1738 = vpop.f32.mrf.mxu0
        %v1739 = vadd.f32 %v1410, %v1738
        %v1740 = vpop.f32.mrf.mxu0
        %v1741 = vadd.f32 %v1412, %v1740
        %1742 = vmatmul.bf16.gmra.mxu0 %v871
        %v1743 = vpop.f32.mrf.mxu0
        %v1744 = vadd.f32 %v1415, %v1743
        %v1745 = vpop.f32.mrf.mxu0
        %v1746 = vadd.f32 %v1417, %v1745
        %1747 = vmatmul.bf16.gmra.mxu0 %v873
        %v1748 = vpop.f32.mrf.mxu0
        %v1749 = vadd.f32 %v1420, %v1748
        %v1750 = vpop.f32.mrf.mxu0
        %v1751 = vadd.f32 %v1422, %v1750
        %1752 = vmatmul.bf16.gmra.mxu0 %v875
        %v1753 = vpop.f32.mrf.mxu0
        %v1754 = vadd.f32 %v1425, %v1753
        %v1755 = vpop.f32.mrf.mxu0
        %v1756 = vadd.f32 %v1427, %v1755
        %1757 = vdwg.mxu0
        %v1758 = vmax.f32 %v1439, 0.0
        %v1759 = vmax.f32 %v1441, 0.0
        %v1760 = vmax.f32 %v1444, 0.0
        %v1761 = vmax.f32 %v1446, 0.0
        %v1762 = vmax.f32 %v1449, 0.0
        %v1763 = vmax.f32 %v1451, 0.0
        %v1764 = vmax.f32 %v1454, 0.0
        %v1765 = vmax.f32 %v1456, 0.0
        %v1766 = vmax.f32 %v1459, 0.0
        %v1767 = vmax.f32 %v1461, 0.0
        %v1768 = vmax.f32 %v1464, 0.0
        %v1769 = vmax.f32 %v1466, 0.0
        %v1770 = vmax.f32 %v1469, 0.0
        %v1771 = vmax.f32 %v1471, 0.0
        %v1772 = vmax.f32 %v1474, 0.0
        %v1773 = vmax.f32 %v1476, 0.0
        %v1774 = vmax.f32 %v1479, 0.0
        %v1775 = vmax.f32 %v1481, 0.0
        %v1776 = vmax.f32 %v1484, 0.0
        %v1777 = vmax.f32 %v1486, 0.0
        %v1778 = vmax.f32 %v1489, 0.0
        %v1779 = vmax.f32 %v1491, 0.0
        %v1780 = vmax.f32 %v1494, 0.0
        %v1781 = vmax.f32 %v1496, 0.0
        %v1782 = vmax.f32 %v1499, 0.0
        %v1783 = vmax.f32 %v1501, 0.0
        %v1784 = vmax.f32 %v1504, 0.0
        %v1785 = vmax.f32 %v1506, 0.0
        %v1786 = vmax.f32 %v1509, 0.0
        %v1787 = vmax.f32 %v1511, 0.0
        %v1788 = vmax.f32 %v1514, 0.0
        %v1789 = vmax.f32 %v1516, 0.0
        %v1790 = vmax.f32 %v1519, 0.0
        %v1791 = vmax.f32 %v1521, 0.0
        %v1792 = vmax.f32 %v1524, 0.0
        %v1793 = vmax.f32 %v1526, 0.0
        %v1794 = vmax.f32 %v1529, 0.0
        %v1795 = vmax.f32 %v1531, 0.0
        %v1796 = vmax.f32 %v1534, 0.0
        %v1797 = vmax.f32 %v1536, 0.0
        %v1798 = vmax.f32 %v1539, 0.0
        %v1799 = vmax.f32 %v1541, 0.0
        %v1800 = vmax.f32 %v1544, 0.0
        %v1801 = vmax.f32 %v1546, 0.0
        %v1802 = vmax.f32 %v1549, 0.0
        %v1803 = vmax.f32 %v1551, 0.0
        %v1804 = vmax.f32 %v1554, 0.0
        %v1805 = vmax.f32 %v1556, 0.0
        %v1806 = vmax.f32 %v1559, 0.0
        %v1807 = vmax.f32 %v1561, 0.0
        %v1808 = vmax.f32 %v1564, 0.0
        %v1809 = vmax.f32 %v1566, 0.0
        %v1810 = vmax.f32 %v1569, 0.0
        %v1811 = vmax.f32 %v1571, 0.0
        %v1812 = vmax.f32 %v1574, 0.0
        %v1813 = vmax.f32 %v1576, 0.0
        %v1814 = vmax.f32 %v1579, 0.0
        %v1815 = vmax.f32 %v1581, 0.0
        %v1816 = vmax.f32 %v1584, 0.0
        %v1817 = vmax.f32 %v1586, 0.0
        %v1818 = vmax.f32 %v1589, 0.0
        %v1819 = vmax.f32 %v1591, 0.0
        %v1820 = vmax.f32 %v1594, 0.0
        %v1821 = vmax.f32 %v1596, 0.0
        %v1822 = vmax.f32 %v1599, 0.0
        %v1823 = vmax.f32 %v1601, 0.0
        %v1824 = vmax.f32 %v1604, 0.0
        %v1825 = vmax.f32 %v1606, 0.0
        %v1826 = vmax.f32 %v1609, 0.0
        %v1827 = vmax.f32 %v1611, 0.0
        %v1828 = vmax.f32 %v1614, 0.0
        %v1829 = vmax.f32 %v1616, 0.0
        %v1830 = vmax.f32 %v1619, 0.0
        %v1831 = vmax.f32 %v1621, 0.0
        %v1832 = vmax.f32 %v1624, 0.0
        %v1833 = vmax.f32 %v1626, 0.0
        %v1834 = vmax.f32 %v1629, 0.0
        %v1835 = vmax.f32 %v1631, 0.0
        %v1836 = vmax.f32 %v1634, 0.0
        %v1837 = vmax.f32 %v1636, 0.0
        %v1838 = vmax.f32 %v1639, 0.0
        %v1839 = vmax.f32 %v1641, 0.0
        %v1840 = vmax.f32 %v1644, 0.0
        %v1841 = vmax.f32 %v1646, 0.0
        %v1842 = vmax.f32 %v1649, 0.0
        %v1843 = vmax.f32 %v1651, 0.0
        %v1844 = vmax.f32 %v1654, 0.0
        %v1845 = vmax.f32 %v1656, 0.0
        %v1846 = vmax.f32 %v1659, 0.0
        %v1847 = vmax.f32 %v1661, 0.0
        %v1848 = vmax.f32 %v1664, 0.0
        %v1849 = vmax.f32 %v1666, 0.0
        %v1850 = vmax.f32 %v1669, 0.0
        %v1851 = vmax.f32 %v1671, 0.0
        %v1852 = vmax.f32 %v1674, 0.0
        %v1853 = vmax.f32 %v1676, 0.0
        %v1854 = vmax.f32 %v1679, 0.0
        %v1855 = vmax.f32 %v1681, 0.0
        %v1856 = vmax.f32 %v1684, 0.0
        %v1857 = vmax.f32 %v1686, 0.0
        %v1858 = vmax.f32 %v1689, 0.0
        %v1859 = vmax.f32 %v1691, 0.0
        %v1860 = vmax.f32 %v1694, 0.0
        %v1861 = vmax.f32 %v1696, 0.0
        %v1862 = vmax.f32 %v1699, 0.0
        %v1863 = vmax.f32 %v1701, 0.0
        %v1864 = vmax.f32 %v1704, 0.0
        %v1865 = vmax.f32 %v1706, 0.0
        %v1866 = vmax.f32 %v1709, 0.0
        %v1867 = vmax.f32 %v1711, 0.0
        %v1868 = vmax.f32 %v1714, 0.0
        %v1869 = vmax.f32 %v1716, 0.0
        %v1870 = vmax.f32 %v1719, 0.0
        %v1871 = vmax.f32 %v1721, 0.0
        %v1872 = vmax.f32 %v1724, 0.0
        %v1873 = vmax.f32 %v1726, 0.0
        %v1874 = vmax.f32 %v1729, 0.0
        %v1875 = vmax.f32 %v1731, 0.0
        %v1876 = vmax.f32 %v1734, 0.0
        %v1877 = vmax.f32 %v1736, 0.0
        %v1878 = vmax.f32 %v1739, 0.0
        %v1879 = vmax.f32 %v1741, 0.0
        %v1880 = vmax.f32 %v1744, 0.0
        %v1881 = vmax.f32 %v1746, 0.0
        %v1882 = vmax.f32 %v1749, 0.0
        %v1883 = vmax.f32 %v1751, 0.0
        %v1884 = vmax.f32 %v1754, 0.0
        %v1885 = vmax.f32 %v1756, 0.0
        %v1886 = vpack.c.bf16 %v1758, %v1758
        %v1887 = vpack.c.bf16 %v1759, %v1759
        %v1888 = vpack.c.bf16 %v1760, %v1760
        %v1889 = vpack.c.bf16 %v1761, %v1761
        %v1890 = vpack.c.bf16 %v1762, %v1762
        %v1891 = vpack.c.bf16 %v1763, %v1763
        %v1892 = vpack.c.bf16 %v1764, %v1764
        %v1893 = vpack.c.bf16 %v1765, %v1765
        %v1894 = vpack.c.bf16 %v1766, %v1766
        %v1895 = vpack.c.bf16 %v1767, %v1767
        %v1896 = vpack.c.bf16 %v1768, %v1768
        %v1897 = vpack.c.bf16 %v1769, %v1769
        %v1898 = vpack.c.bf16 %v1770, %v1770
        %v1899 = vpack.c.bf16 %v1771, %v1771
        %v1900 = vpack.c.bf16 %v1772, %v1772
        %v1901 = vpack.c.bf16 %v1773, %v1773
        %v1902 = vpack.c.bf16 %v1774, %v1774
        %v1903 = vpack.c.bf16 %v1775, %v1775
        %v1904 = vpack.c.bf16 %v1776, %v1776
        %v1905 = vpack.c.bf16 %v1777, %v1777
        %v1906 = vpack.c.bf16 %v1778, %v1778
        %v1907 = vpack.c.bf16 %v1779, %v1779
        %v1908 = vpack.c.bf16 %v1780, %v1780
        %v1909 = vpack.c.bf16 %v1781, %v1781
        %v1910 = vpack.c.bf16 %v1782, %v1782
        %v1911 = vpack.c.bf16 %v1783, %v1783
        %v1912 = vpack.c.bf16 %v1784, %v1784
        %v1913 = vpack.c.bf16 %v1785, %v1785
        %v1914 = vpack.c.bf16 %v1786, %v1786
        %v1915 = vpack.c.bf16 %v1787, %v1787
        %v1916 = vpack.c.bf16 %v1788, %v1788
        %v1917 = vpack.c.bf16 %v1789, %v1789
        %v1918 = vpack.c.bf16 %v1790, %v1790
        %v1919 = vpack.c.bf16 %v1791, %v1791
        %v1920 = vpack.c.bf16 %v1792, %v1792
        %v1921 = vpack.c.bf16 %v1793, %v1793
        %v1922 = vpack.c.bf16 %v1794, %v1794
        %v1923 = vpack.c.bf16 %v1795, %v1795
        %v1924 = vpack.c.bf16 %v1796, %v1796
        %v1925 = vpack.c.bf16 %v1797, %v1797
        %v1926 = vpack.c.bf16 %v1798, %v1798
        %v1927 = vpack.c.bf16 %v1799, %v1799
        %v1928 = vpack.c.bf16 %v1800, %v1800
        %v1929 = vpack.c.bf16 %v1801, %v1801
        %v1930 = vpack.c.bf16 %v1802, %v1802
        %v1931 = vpack.c.bf16 %v1803, %v1803
        %v1932 = vpack.c.bf16 %v1804, %v1804
        %v1933 = vpack.c.bf16 %v1805, %v1805
        %v1934 = vpack.c.bf16 %v1806, %v1806
        %v1935 = vpack.c.bf16 %v1807, %v1807
        %v1936 = vpack.c.bf16 %v1808, %v1808
        %v1937 = vpack.c.bf16 %v1809, %v1809
        %v1938 = vpack.c.bf16 %v1810, %v1810
        %v1939 = vpack.c.bf16 %v1811, %v1811
        %v1940 = vpack.c.bf16 %v1812, %v1812
        %v1941 = vpack.c.bf16 %v1813, %v1813
        %v1942 = vpack.c.bf16 %v1814, %v1814
        %v1943 = vpack.c.bf16 %v1815, %v1815
        %v1944 = vpack.c.bf16 %v1816, %v1816
        %v1945 = vpack.c.bf16 %v1817, %v1817
        %v1946 = vpack.c.bf16 %v1818, %v1818
        %v1947 = vpack.c.bf16 %v1819, %v1819
        %v1948 = vpack.c.bf16 %v1820, %v1820
        %v1949 = vpack.c.bf16 %v1821, %v1821
        %v1950 = vpack.c.bf16 %v1822, %v1822
        %v1951 = vpack.c.bf16 %v1823, %v1823
        %v1952 = vpack.c.bf16 %v1824, %v1824
        %v1953 = vpack.c.bf16 %v1825, %v1825
        %v1954 = vpack.c.bf16 %v1826, %v1826
        %v1955 = vpack.c.bf16 %v1827, %v1827
        %v1956 = vpack.c.bf16 %v1828, %v1828
        %v1957 = vpack.c.bf16 %v1829, %v1829
        %v1958 = vpack.c.bf16 %v1830, %v1830
        %v1959 = vpack.c.bf16 %v1831, %v1831
        %v1960 = vpack.c.bf16 %v1832, %v1832
        %v1961 = vpack.c.bf16 %v1833, %v1833
        %v1962 = vpack.c.bf16 %v1834, %v1834
        %v1963 = vpack.c.bf16 %v1835, %v1835
        %v1964 = vpack.c.bf16 %v1836, %v1836
        %v1965 = vpack.c.bf16 %v1837, %v1837
        %v1966 = vpack.c.bf16 %v1838, %v1838
        %v1967 = vpack.c.bf16 %v1839, %v1839
        %v1968 = vpack.c.bf16 %v1840, %v1840
        %v1969 = vpack.c.bf16 %v1841, %v1841
        %v1970 = vpack.c.bf16 %v1842, %v1842
        %v1971 = vpack.c.bf16 %v1843, %v1843
        %v1972 = vpack.c.bf16 %v1844, %v1844
        %v1973 = vpack.c.bf16 %v1845, %v1845
        %v1974 = vpack.c.bf16 %v1846, %v1846
        %v1975 = vpack.c.bf16 %v1847, %v1847
        %v1976 = vpack.c.bf16 %v1848, %v1848
        %v1977 = vpack.c.bf16 %v1849, %v1849
        %v1978 = vpack.c.bf16 %v1850, %v1850
        %v1979 = vpack.c.bf16 %v1851, %v1851
        %v1980 = vpack.c.bf16 %v1852, %v1852
        %v1981 = vpack.c.bf16 %v1853, %v1853
        %v1982 = vpack.c.bf16 %v1854, %v1854
        %v1983 = vpack.c.bf16 %v1855, %v1855
        %v1984 = vpack.c.bf16 %v1856, %v1856
        %v1985 = vpack.c.bf16 %v1857, %v1857
        %v1986 = vpack.c.bf16 %v1858, %v1858
        %v1987 = vpack.c.bf16 %v1859, %v1859
        %v1988 = vpack.c.bf16 %v1860, %v1860
        %v1989 = vpack.c.bf16 %v1861, %v1861
        %v1990 = vpack.c.bf16 %v1862, %v1862
        %v1991 = vpack.c.bf16 %v1863, %v1863
        %v1992 = vpack.c.bf16 %v1864, %v1864
        %v1993 = vpack.c.bf16 %v1865, %v1865
        %v1994 = vpack.c.bf16 %v1866, %v1866
        %v1995 = vpack.c.bf16 %v1867, %v1867
        %v1996 = vpack.c.bf16 %v1868, %v1868
        %v1997 = vpack.c.bf16 %v1869, %v1869
        %v1998 = vpack.c.bf16 %v1870, %v1870
        %v1999 = vpack.c.bf16 %v1871, %v1871
        %v2000 = vpack.c.bf16 %v1872, %v1872
        %v2001 = vpack.c.bf16 %v1873, %v1873
        %v2002 = vpack.c.bf16 %v1874, %v1874
        %v2003 = vpack.c.bf16 %v1875, %v1875
        %v2004 = vpack.c.bf16 %v1876, %v1876
        %v2005 = vpack.c.bf16 %v1877, %v1877
        %v2006 = vpack.c.bf16 %v1878, %v1878
        %v2007 = vpack.c.bf16 %v1879, %v1879
        %v2008 = vpack.c.bf16 %v1880, %v1880
        %v2009 = vpack.c.bf16 %v1881, %v1881
        %v2010 = vpack.c.bf16 %v1882, %v1882
        %v2011 = vpack.c.bf16 %v1883, %v1883
        %v2012 = vpack.c.bf16 %v1884, %v1884
        %v2013 = vpack.c.bf16 %v1885, %v1885
        %vm2014 = vcmask 257024
        %2015 = vst.msk [vmem:[%s177] sm:$0xf] %vm2014, %v1886
        %2016 = vst.msk [vmem:[%s177 + $0x4] sm:$0xf] %vm2014, %v1887
        %2017 = vst.msk [vmem:[%s177 + $0x8] sm:$0xf] %vm2014, %v1888
        %2018 = vst.msk [vmem:[%s177 + $0xc] sm:$0xf] %vm2014, %v1889
        %2019 = vst.msk [vmem:[%s177 + $0x10] sm:$0xf] %vm2014, %v1890
        %2020 = vst.msk [vmem:[%s177 + $0x14] sm:$0xf] %vm2014, %v1891
        %2021 = vst.msk [vmem:[%s177 + $0x18] sm:$0xf] %vm2014, %v1892
        %2022 = vst.msk [vmem:[%s177 + $0x1c] sm:$0xf] %vm2014, %v1893
        %2023 = vst.msk [vmem:[%s177 + $0x20] sm:$0xf] %vm2014, %v1894
        %2024 = vst.msk [vmem:[%s177 + $0x24] sm:$0xf] %vm2014, %v1895
        %2025 = vst.msk [vmem:[%s177 + $0x28] sm:$0xf] %vm2014, %v1896
        %2026 = vst.msk [vmem:[%s177 + $0x2c] sm:$0xf] %vm2014, %v1897
        %2027 = vst.msk [vmem:[%s177 + $0x30] sm:$0xf] %vm2014, %v1898
        %2028 = vst.msk [vmem:[%s177 + $0x34] sm:$0xf] %vm2014, %v1899
        %2029 = vst.msk [vmem:[%s177 + $0x38] sm:$0xf] %vm2014, %v1900
        %2030 = vst.msk [vmem:[%s177 + $0x3c] sm:$0xf] %vm2014, %v1901
        %2031 = vst.msk [vmem:[%s177 + $0x40] sm:$0xf] %vm2014, %v1902
        %2032 = vst.msk [vmem:[%s177 + $0x44] sm:$0xf] %vm2014, %v1903
        %2033 = vst.msk [vmem:[%s177 + $0x48] sm:$0xf] %vm2014, %v1904
        %2034 = vst.msk [vmem:[%s177 + $0x4c] sm:$0xf] %vm2014, %v1905
        %2035 = vst.msk [vmem:[%s177 + $0x50] sm:$0xf] %vm2014, %v1906
        %2036 = vst.msk [vmem:[%s177 + $0x54] sm:$0xf] %vm2014, %v1907
        %2037 = vst.msk [vmem:[%s177 + $0x58] sm:$0xf] %vm2014, %v1908
        %2038 = vst.msk [vmem:[%s177 + $0x5c] sm:$0xf] %vm2014, %v1909
        %2039 = vst.msk [vmem:[%s177 + $0x60] sm:$0xf] %vm2014, %v1910
        %2040 = vst.msk [vmem:[%s177 + $0x64] sm:$0xf] %vm2014, %v1911
        %2041 = vst.msk [vmem:[%s177 + $0x68] sm:$0xf] %vm2014, %v1912
        %2042 = vst.msk [vmem:[%s177 + $0x6c] sm:$0xf] %vm2014, %v1913
        %2043 = vst.msk [vmem:[%s177 + $0x70] sm:$0xf] %vm2014, %v1914
        %2044 = vst.msk [vmem:[%s177 + $0x74] sm:$0xf] %vm2014, %v1915
        %2045 = vst.msk [vmem:[%s177 + $0x78] sm:$0xf] %vm2014, %v1916
        %2046 = vst.msk [vmem:[%s177 + $0x7c] sm:$0xf] %vm2014, %v1917
        %2047 = vst.msk [vmem:[%s177 + $0x80] sm:$0xf] %vm2014, %v1918
        %2048 = vst.msk [vmem:[%s177 + $0x84] sm:$0xf] %vm2014, %v1919
        %2049 = vst.msk [vmem:[%s177 + $0x88] sm:$0xf] %vm2014, %v1920
        %2050 = vst.msk [vmem:[%s177 + $0x8c] sm:$0xf] %vm2014, %v1921
        %2051 = vst.msk [vmem:[%s177 + $0x90] sm:$0xf] %vm2014, %v1922
        %2052 = vst.msk [vmem:[%s177 + $0x94] sm:$0xf] %vm2014, %v1923
        %2053 = vst.msk [vmem:[%s177 + $0x98] sm:$0xf] %vm2014, %v1924
        %2054 = vst.msk [vmem:[%s177 + $0x9c] sm:$0xf] %vm2014, %v1925
        %2055 = vst.msk [vmem:[%s177 + $0xa0] sm:$0xf] %vm2014, %v1926
        %2056 = vst.msk [vmem:[%s177 + $0xa4] sm:$0xf] %vm2014, %v1927
        %2057 = vst.msk [vmem:[%s177 + $0xa8] sm:$0xf] %vm2014, %v1928
        %2058 = vst.msk [vmem:[%s177 + $0xac] sm:$0xf] %vm2014, %v1929
        %2059 = vst.msk [vmem:[%s177 + $0xb0] sm:$0xf] %vm2014, %v1930
        %2060 = vst.msk [vmem:[%s177 + $0xb4] sm:$0xf] %vm2014, %v1931
        %2061 = vst.msk [vmem:[%s177 + $0xb8] sm:$0xf] %vm2014, %v1932
        %2062 = vst.msk [vmem:[%s177 + $0xbc] sm:$0xf] %vm2014, %v1933
        %2063 = vst.msk [vmem:[%s177 + $0xc0] sm:$0xf] %vm2014, %v1934
        %2064 = vst.msk [vmem:[%s177 + $0xc4] sm:$0xf] %vm2014, %v1935
        %2065 = vst.msk [vmem:[%s177 + $0xc8] sm:$0xf] %vm2014, %v1936
        %2066 = vst.msk [vmem:[%s177 + $0xcc] sm:$0xf] %vm2014, %v1937
        %2067 = vst.msk [vmem:[%s177 + $0xd0] sm:$0xf] %vm2014, %v1938
        %2068 = vst.msk [vmem:[%s177 + $0xd4] sm:$0xf] %vm2014, %v1939
        %2069 = vst.msk [vmem:[%s177 + $0xd8] sm:$0xf] %vm2014, %v1940
        %2070 = vst.msk [vmem:[%s177 + $0xdc] sm:$0xf] %vm2014, %v1941
        %2071 = vst.msk [vmem:[%s177 + $0xe0] sm:$0xf] %vm2014, %v1942
        %2072 = vst.msk [vmem:[%s177 + $0xe4] sm:$0xf] %vm2014, %v1943
        %2073 = vst.msk [vmem:[%s177 + $0xe8] sm:$0xf] %vm2014, %v1944
        %2074 = vst.msk [vmem:[%s177 + $0xec] sm:$0xf] %vm2014, %v1945
        %2075 = vst.msk [vmem:[%s177 + $0xf0] sm:$0xf] %vm2014, %v1946
        %2076 = vst.msk [vmem:[%s177 + $0xf4] sm:$0xf] %vm2014, %v1947
        %2077 = vst.msk [vmem:[%s177 + $0xf8] sm:$0xf] %vm2014, %v1948
        %2078 = vst.msk [vmem:[%s177 + $0xfc] sm:$0xf] %vm2014, %v1949
        %2079 = vst.msk [vmem:[%s177 + $0x100] sm:$0xf] %vm2014, %v1950
        %2080 = vst.msk [vmem:[%s177 + $0x104] sm:$0xf] %vm2014, %v1951
        %2081 = vst.msk [vmem:[%s177 + $0x108] sm:$0xf] %vm2014, %v1952
        %2082 = vst.msk [vmem:[%s177 + $0x10c] sm:$0xf] %vm2014, %v1953
        %2083 = vst.msk [vmem:[%s177 + $0x110] sm:$0xf] %vm2014, %v1954
        %2084 = vst.msk [vmem:[%s177 + $0x114] sm:$0xf] %vm2014, %v1955
        %2085 = vst.msk [vmem:[%s177 + $0x118] sm:$0xf] %vm2014, %v1956
        %2086 = vst.msk [vmem:[%s177 + $0x11c] sm:$0xf] %vm2014, %v1957
        %2087 = vst.msk [vmem:[%s177 + $0x120] sm:$0xf] %vm2014, %v1958
        %2088 = vst.msk [vmem:[%s177 + $0x124] sm:$0xf] %vm2014, %v1959
        %2089 = vst.msk [vmem:[%s177 + $0x128] sm:$0xf] %vm2014, %v1960
        %2090 = vst.msk [vmem:[%s177 + $0x12c] sm:$0xf] %vm2014, %v1961
        %2091 = vst.msk [vmem:[%s177 + $0x130] sm:$0xf] %vm2014, %v1962
        %2092 = vst.msk [vmem:[%s177 + $0x134] sm:$0xf] %vm2014, %v1963
        %2093 = vst.msk [vmem:[%s177 + $0x138] sm:$0xf] %vm2014, %v1964
        %2094 = vst.msk [vmem:[%s177 + $0x13c] sm:$0xf] %vm2014, %v1965
        %2095 = vst.msk [vmem:[%s177 + $0x140] sm:$0xf] %vm2014, %v1966
        %2096 = vst.msk [vmem:[%s177 + $0x144] sm:$0xf] %vm2014, %v1967
        %2097 = vst.msk [vmem:[%s177 + $0x148] sm:$0xf] %vm2014, %v1968
        %2098 = vst.msk [vmem:[%s177 + $0x14c] sm:$0xf] %vm2014, %v1969
        %2099 = vst.msk [vmem:[%s177 + $0x150] sm:$0xf] %vm2014, %v1970
        %2100 = vst.msk [vmem:[%s177 + $0x154] sm:$0xf] %vm2014, %v1971
        %2101 = vst.msk [vmem:[%s177 + $0x158] sm:$0xf] %vm2014, %v1972
        %2102 = vst.msk [vmem:[%s177 + $0x15c] sm:$0xf] %vm2014, %v1973
        %2103 = vst.msk [vmem:[%s177 + $0x160] sm:$0xf] %vm2014, %v1974
        %2104 = vst.msk [vmem:[%s177 + $0x164] sm:$0xf] %vm2014, %v1975
        %2105 = vst.msk [vmem:[%s177 + $0x168] sm:$0xf] %vm2014, %v1976
        %2106 = vst.msk [vmem:[%s177 + $0x16c] sm:$0xf] %vm2014, %v1977
        %2107 = vst.msk [vmem:[%s177 + $0x170] sm:$0xf] %vm2014, %v1978
        %2108 = vst.msk [vmem:[%s177 + $0x174] sm:$0xf] %vm2014, %v1979
        %2109 = vst.msk [vmem:[%s177 + $0x178] sm:$0xf] %vm2014, %v1980
        %2110 = vst.msk [vmem:[%s177 + $0x17c] sm:$0xf] %vm2014, %v1981
        %2111 = vst.msk [vmem:[%s177 + $0x180] sm:$0xf] %vm2014, %v1982
        %2112 = vst.msk [vmem:[%s177 + $0x184] sm:$0xf] %vm2014, %v1983
        %2113 = vst.msk [vmem:[%s177 + $0x188] sm:$0xf] %vm2014, %v1984
        %2114 = vst.msk [vmem:[%s177 + $0x18c] sm:$0xf] %vm2014, %v1985
        %2115 = vst.msk [vmem:[%s177 + $0x190] sm:$0xf] %vm2014, %v1986
        %2116 = vst.msk [vmem:[%s177 + $0x194] sm:$0xf] %vm2014, %v1987
        %2117 = vst.msk [vmem:[%s177 + $0x198] sm:$0xf] %vm2014, %v1988
        %2118 = vst.msk [vmem:[%s177 + $0x19c] sm:$0xf] %vm2014, %v1989
        %2119 = vst.msk [vmem:[%s177 + $0x1a0] sm:$0xf] %vm2014, %v1990
        %2120 = vst.msk [vmem:[%s177 + $0x1a4] sm:$0xf] %vm2014, %v1991
        %2121 = vst.msk [vmem:[%s177 + $0x1a8] sm:$0xf] %vm2014, %v1992
        %2122 = vst.msk [vmem:[%s177 + $0x1ac] sm:$0xf] %vm2014, %v1993
        %2123 = vst.msk [vmem:[%s177 + $0x1b0] sm:$0xf] %vm2014, %v1994
        %2124 = vst.msk [vmem:[%s177 + $0x1b4] sm:$0xf] %vm2014, %v1995
        %2125 = vst.msk [vmem:[%s177 + $0x1b8] sm:$0xf] %vm2014, %v1996
        %2126 = vst.msk [vmem:[%s177 + $0x1bc] sm:$0xf] %vm2014, %v1997
        %2127 = vst.msk [vmem:[%s177 + $0x1c0] sm:$0xf] %vm2014, %v1998
        %2128 = vst.msk [vmem:[%s177 + $0x1c4] sm:$0xf] %vm2014, %v1999
        %2129 = vst.msk [vmem:[%s177 + $0x1c8] sm:$0xf] %vm2014, %v2000
        %2130 = vst.msk [vmem:[%s177 + $0x1cc] sm:$0xf] %vm2014, %v2001
        %2131 = vst.msk [vmem:[%s177 + $0x1d0] sm:$0xf] %vm2014, %v2002
        %2132 = vst.msk [vmem:[%s177 + $0x1d4] sm:$0xf] %vm2014, %v2003
        %2133 = vst.msk [vmem:[%s177 + $0x1d8] sm:$0xf] %vm2014, %v2004
        %2134 = vst.msk [vmem:[%s177 + $0x1dc] sm:$0xf] %vm2014, %v2005
        %2135 = vst.msk [vmem:[%s177 + $0x1e0] sm:$0xf] %vm2014, %v2006
        %2136 = vst.msk [vmem:[%s177 + $0x1e4] sm:$0xf] %vm2014, %v2007
        %2137 = vst.msk [vmem:[%s177 + $0x1e8] sm:$0xf] %vm2014, %v2008
        %2138 = vst.msk [vmem:[%s177 + $0x1ec] sm:$0xf] %vm2014, %v2009
        %2139 = vst.msk [vmem:[%s177 + $0x1f0] sm:$0xf] %vm2014, %v2010
        %2140 = vst.msk [vmem:[%s177 + $0x1f4] sm:$0xf] %vm2014, %v2011
        %2141 = vst.msk [vmem:[%s177 + $0x1f8] sm:$0xf] %vm2014, %v2012
        %2142 = vst.msk [vmem:[%s177 + $0x1fc] sm:$0xf] %vm2014, %v2013
        %s2143 = sand.u32 %s90, 1
        %s2144 = sand.u32 %s90, 1
        %s2145 = smul.addr %s2144, 512
        %s2146 = scalar_lea.vmem [#allocation2], %s2145
        // Predicated region
        $region33: #{decision_forward.4} parent=31 // pred_check
          %p2147 = pneg %p100
        $region34: #{decision_forward.4} parent=31 // pred_check_branch
          %2149 = sbr.rel (%p2147) target = $region36
        $region35: #{decision_forward.4} parent=31 // pred_region
          %s2150 = smul.u32 128, %s14
          %s2151 = ssub.s32 400, %s2150
          %p2152 = scmp.lt.s32.totalorder %s2151, 128
          %s2153 = scalar_select %p2152, %s2151, 128
          %s2154 = smul.u32 4, %s2153
          %p2155 = scmp.ne.s32.totalorder 0, %s2154
          %s2156 = smul.addr %s2150, 4
          %s2157 = scalar_lea.vmem %s3, %s2156
          // Predicated region
          $region37: #{decision_forward.4} parent=35 // pred_check
            %p2158 = pneg %p2155
          $region38: #{decision_forward.4} parent=35 // pred_check_branch
            %2160 = sbr.rel (%p2158) target = $region40
          $region39: #{decision_forward.4} parent=35 // pred_region
            // Predicated region
            $region41: #{decision_forward.4} parent=39 // pred_check
              _
            $region42: #{decision_forward.4} parent=39 // pred_check_branch
              %2162 = sbr.rel target = $region44
            $region43: #{decision_forward.4} parent=39 // pred_region
              // Predicated region
              $region63: #{decision_forward.4} parent=43 // pred_check
                _
              $region64: #{decision_forward.4} parent=43 // pred_check_branch
                %2274 = sbr.rel (0) target = $region66
              $region65: #{decision_forward.4} parent=43 // pred_region
                %s2276 = ssub.s32 16, 1
                %s2277 = sshrl.u32 %s2153, 5
                // While loop
                $region67: #{decision_forward.4} parent=65 // loop_pre_header
                  _
                $region68: #{decision_forward.4} parent=65 // loop_header
                  %s2279 = sphi 0, %s2281
                  %p2280 = scmp.ge.s32.totalorder %s2279, %s2277
                  %s2284 = sphi 0, %s2353
                  %s2285 = sphi %s2146, %s2356
                  %s2286 = sphi %s2157, %s2357
                $region69: #{decision_forward.4} parent=65 // loop_header_branch
                  %2283 = sbr.rel (%p2280) target = $region73
                $region70: #{decision_forward.4} parent=65 // loop_body
                  %v2287 = vld [vmem:[%s2285] sm:%s2276]
                  %2288 = vst [vmem:[%s2286] sm:%s2276] %v2287
                  %v2289 = vld [vmem:[%s2285 + $0x4] sm:%s2276]
                  %2290 = vst [vmem:[%s2286 + $0x4] sm:%s2276] %v2289
                  %v2291 = vld [vmem:[%s2285 + $0x8] sm:%s2276]
                  %2292 = vst [vmem:[%s2286 + $0x8] sm:%s2276] %v2291
                  %v2293 = vld [vmem:[%s2285 + $0xc] sm:%s2276]
                  %2294 = vst [vmem:[%s2286 + $0xc] sm:%s2276] %v2293
                  %v2295 = vld [vmem:[%s2285 + $0x10] sm:%s2276]
                  %2296 = vst [vmem:[%s2286 + $0x10] sm:%s2276] %v2295
                  %v2297 = vld [vmem:[%s2285 + $0x14] sm:%s2276]
                  %2298 = vst [vmem:[%s2286 + $0x14] sm:%s2276] %v2297
                  %v2299 = vld [vmem:[%s2285 + $0x18] sm:%s2276]
                  %2300 = vst [vmem:[%s2286 + $0x18] sm:%s2276] %v2299
                  %v2301 = vld [vmem:[%s2285 + $0x1c] sm:%s2276]
                  %2302 = vst [vmem:[%s2286 + $0x1c] sm:%s2276] %v2301
                  %v2303 = vld [vmem:[%s2285 + $0x20] sm:%s2276]
                  %2304 = vst [vmem:[%s2286 + $0x20] sm:%s2276] %v2303
                  %v2305 = vld [vmem:[%s2285 + $0x24] sm:%s2276]
                  %2306 = vst [vmem:[%s2286 + $0x24] sm:%s2276] %v2305
                  %v2307 = vld [vmem:[%s2285 + $0x28] sm:%s2276]
                  %2308 = vst [vmem:[%s2286 + $0x28] sm:%s2276] %v2307
                  %v2309 = vld [vmem:[%s2285 + $0x2c] sm:%s2276]
                  %2310 = vst [vmem:[%s2286 + $0x2c] sm:%s2276] %v2309
                  %v2311 = vld [vmem:[%s2285 + $0x30] sm:%s2276]
                  %2312 = vst [vmem:[%s2286 + $0x30] sm:%s2276] %v2311
                  %v2313 = vld [vmem:[%s2285 + $0x34] sm:%s2276]
                  %2314 = vst [vmem:[%s2286 + $0x34] sm:%s2276] %v2313
                  %v2315 = vld [vmem:[%s2285 + $0x38] sm:%s2276]
                  %2316 = vst [vmem:[%s2286 + $0x38] sm:%s2276] %v2315
                  %v2317 = vld [vmem:[%s2285 + $0x3c] sm:%s2276]
                  %2318 = vst [vmem:[%s2286 + $0x3c] sm:%s2276] %v2317
                  %v2319 = vld [vmem:[%s2285 + $0x40] sm:%s2276]
                  %2320 = vst [vmem:[%s2286 + $0x40] sm:%s2276] %v2319
                  %v2321 = vld [vmem:[%s2285 + $0x44] sm:%s2276]
                  %2322 = vst [vmem:[%s2286 + $0x44] sm:%s2276] %v2321
                  %v2323 = vld [vmem:[%s2285 + $0x48] sm:%s2276]
                  %2324 = vst [vmem:[%s2286 + $0x48] sm:%s2276] %v2323
                  %v2325 = vld [vmem:[%s2285 + $0x4c] sm:%s2276]
                  %2326 = vst [vmem:[%s2286 + $0x4c] sm:%s2276] %v2325
                  %v2327 = vld [vmem:[%s2285 + $0x50] sm:%s2276]
                  %2328 = vst [vmem:[%s2286 + $0x50] sm:%s2276] %v2327
                  %v2329 = vld [vmem:[%s2285 + $0x54] sm:%s2276]
                  %2330 = vst [vmem:[%s2286 + $0x54] sm:%s2276] %v2329
                  %v2331 = vld [vmem:[%s2285 + $0x58] sm:%s2276]
                  %2332 = vst [vmem:[%s2286 + $0x58] sm:%s2276] %v2331
                  %v2333 = vld [vmem:[%s2285 + $0x5c] sm:%s2276]
                  %2334 = vst [vmem:[%s2286 + $0x5c] sm:%s2276] %v2333
                  %v2335 = vld [vmem:[%s2285 + $0x60] sm:%s2276]
                  %2336 = vst [vmem:[%s2286 + $0x60] sm:%s2276] %v2335
                  %v2337 = vld [vmem:[%s2285 + $0x64] sm:%s2276]
                  %2338 = vst [vmem:[%s2286 + $0x64] sm:%s2276] %v2337
                  %v2339 = vld [vmem:[%s2285 + $0x68] sm:%s2276]
                  %2340 = vst [vmem:[%s2286 + $0x68] sm:%s2276] %v2339
                  %v2341 = vld [vmem:[%s2285 + $0x6c] sm:%s2276]
                  %2342 = vst [vmem:[%s2286 + $0x6c] sm:%s2276] %v2341
                  %v2343 = vld [vmem:[%s2285 + $0x70] sm:%s2276]
                  %2344 = vst [vmem:[%s2286 + $0x70] sm:%s2276] %v2343
                  %v2345 = vld [vmem:[%s2285 + $0x74] sm:%s2276]
                  %2346 = vst [vmem:[%s2286 + $0x74] sm:%s2276] %v2345
                  %v2347 = vld [vmem:[%s2285 + $0x78] sm:%s2276]
                  %2348 = vst [vmem:[%s2286 + $0x78] sm:%s2276] %v2347
                  %v2349 = vld [vmem:[%s2285 + $0x7c] sm:%s2276]
                  %2350 = vst [vmem:[%s2286 + $0x7c] sm:%s2276] %v2349
                  %s2351 = sadd.s32 1, %s2284
                  %p2352 = scmp.ge.s32.totalorder %s2351, %s2277
                  %s2353 = scalar_select %p2352, 0, %s2351
                  %s2354 = smul.u32 %s2353, 128
                  %s2355 = smul.u32 %s2353, 128
                  %s2356 = scalar_lea.vmem %s2146, %s2354 [#allocation2]
                  %s2357 = scalar_lea.vmem %s2157, %s2355
                $region71: #{decision_forward.4} parent=65 // loop_footer
                  %s2281 = sadd.s32 %s2279, 1
                $region72: #{decision_forward.4} parent=65 // loop_footer_branch
                  %2278 = sbr.rel target = $region68
                $region73: #{decision_forward.4} parent=65 // loop_exit
                  _
                %s2358 = sshrl.u32 %s2153, 5
                %s2359 = sand.u32 %s2153, 31
                %s2360 = smul.u32 %s2358, 32
                %s2361 = smul.u32 4, %s2360
                %s2362 = scalar_lea.vmem %s2146, %s2361 [#allocation2]
                %s2363 = smul.u32 4, %s2360
                %s2364 = scalar_lea.vmem %s2157, %s2363
                // While loop
                $region74: #{decision_forward.4} parent=65 // loop_pre_header
                  _
                $region75: #{decision_forward.4} parent=65 // loop_header
                  %s2366 = sphi 0, %s2368
                  %p2367 = scmp.ge.s32.totalorder %s2366, %s2359
                  %s2371 = sphi 0, %s2378
                  %s2372 = sphi %s2362, %s2381
                  %s2373 = sphi %s2364, %s2382
                $region76: #{decision_forward.4} parent=65 // loop_header_branch
                  %2370 = sbr.rel (%p2367) target = $region80
                $region77: #{decision_forward.4} parent=65 // loop_body
                  %v2374 = vld [vmem:[%s2372] sm:%s2276]
                  %2375 = vst [vmem:[%s2373] sm:%s2276] %v2374
                  %s2376 = sadd.s32 1, %s2371
                  %p2377 = scmp.ge.s32.totalorder %s2376, %s2359
                  %s2378 = scalar_select %p2377, 0, %s2376
                  %s2379 = smul.u32 %s2378, 4
                  %s2380 = smul.u32 %s2378, 4
                  %s2381 = scalar_lea.vmem %s2362, %s2379 [#allocation2]
                  %s2382 = scalar_lea.vmem %s2364, %s2380
                $region78: #{decision_forward.4} parent=65 // loop_footer
                  %s2368 = sadd.s32 %s2366, 1
                $region79: #{decision_forward.4} parent=65 // loop_footer_branch
                  %2365 = sbr.rel target = $region75
                $region80: #{decision_forward.4} parent=65 // loop_exit
                  _
              $region66: #{decision_forward.4} parent=43 // pred_fallthru
                _
            $region44: #{decision_forward.4} parent=39 // pred_fallthru
              _
            // Predicated region
            $region45: #{decision_forward.4} parent=39 // pred_check
              _
            $region46: #{decision_forward.4} parent=39 // pred_check_branch
              %2164 = sbr.rel (0) target = $region48
            $region47: #{decision_forward.4} parent=39 // pred_region
              %s2166 = ssub.s32 16, 1
              %s2167 = sshrl.u32 %s2153, 5
              // While loop
              $region49: #{decision_forward.4} parent=47 // loop_pre_header
                _
              $region50: #{decision_forward.4} parent=47 // loop_header
                %s2169 = sphi 0, %s2171
                %p2170 = scmp.ge.s32.totalorder %s2169, %s2167
                %s2174 = sphi 0, %s2243
                %s2175 = sphi %s2146, %s2246
                %s2176 = sphi %s2157, %s2247
              $region51: #{decision_forward.4} parent=47 // loop_header_branch
                %2173 = sbr.rel (%p2170) target = $region55
              $region52: #{decision_forward.4} parent=47 // loop_body
                %v2177 = vld [vmem:[%s2175] sm:%s2166]
                %2178 = vst [vmem:[%s2176] sm:%s2166] %v2177
                %v2179 = vld [vmem:[%s2175 + $0x4] sm:%s2166]
                %2180 = vst [vmem:[%s2176 + $0x4] sm:%s2166] %v2179
                %v2181 = vld [vmem:[%s2175 + $0x8] sm:%s2166]
                %2182 = vst [vmem:[%s2176 + $0x8] sm:%s2166] %v2181
                %v2183 = vld [vmem:[%s2175 + $0xc] sm:%s2166]
                %2184 = vst [vmem:[%s2176 + $0xc] sm:%s2166] %v2183
                %v2185 = vld [vmem:[%s2175 + $0x10] sm:%s2166]
                %2186 = vst [vmem:[%s2176 + $0x10] sm:%s2166] %v2185
                %v2187 = vld [vmem:[%s2175 + $0x14] sm:%s2166]
                %2188 = vst [vmem:[%s2176 + $0x14] sm:%s2166] %v2187
                %v2189 = vld [vmem:[%s2175 + $0x18] sm:%s2166]
                %2190 = vst [vmem:[%s2176 + $0x18] sm:%s2166] %v2189
                %v2191 = vld [vmem:[%s2175 + $0x1c] sm:%s2166]
                %2192 = vst [vmem:[%s2176 + $0x1c] sm:%s2166] %v2191
                %v2193 = vld [vmem:[%s2175 + $0x20] sm:%s2166]
                %2194 = vst [vmem:[%s2176 + $0x20] sm:%s2166] %v2193
                %v2195 = vld [vmem:[%s2175 + $0x24] sm:%s2166]
                %2196 = vst [vmem:[%s2176 + $0x24] sm:%s2166] %v2195
                %v2197 = vld [vmem:[%s2175 + $0x28] sm:%s2166]
                %2198 = vst [vmem:[%s2176 + $0x28] sm:%s2166] %v2197
                %v2199 = vld [vmem:[%s2175 + $0x2c] sm:%s2166]
                %2200 = vst [vmem:[%s2176 + $0x2c] sm:%s2166] %v2199
                %v2201 = vld [vmem:[%s2175 + $0x30] sm:%s2166]
                %2202 = vst [vmem:[%s2176 + $0x30] sm:%s2166] %v2201
                %v2203 = vld [vmem:[%s2175 + $0x34] sm:%s2166]
                %2204 = vst [vmem:[%s2176 + $0x34] sm:%s2166] %v2203
                %v2205 = vld [vmem:[%s2175 + $0x38] sm:%s2166]
                %2206 = vst [vmem:[%s2176 + $0x38] sm:%s2166] %v2205
                %v2207 = vld [vmem:[%s2175 + $0x3c] sm:%s2166]
                %2208 = vst [vmem:[%s2176 + $0x3c] sm:%s2166] %v2207
                %v2209 = vld [vmem:[%s2175 + $0x40] sm:%s2166]
                %2210 = vst [vmem:[%s2176 + $0x40] sm:%s2166] %v2209
                %v2211 = vld [vmem:[%s2175 + $0x44] sm:%s2166]
                %2212 = vst [vmem:[%s2176 + $0x44] sm:%s2166] %v2211
                %v2213 = vld [vmem:[%s2175 + $0x48] sm:%s2166]
                %2214 = vst [vmem:[%s2176 + $0x48] sm:%s2166] %v2213
                %v2215 = vld [vmem:[%s2175 + $0x4c] sm:%s2166]
                %2216 = vst [vmem:[%s2176 + $0x4c] sm:%s2166] %v2215
                %v2217 = vld [vmem:[%s2175 + $0x50] sm:%s2166]
                %2218 = vst [vmem:[%s2176 + $0x50] sm:%s2166] %v2217
                %v2219 = vld [vmem:[%s2175 + $0x54] sm:%s2166]
                %2220 = vst [vmem:[%s2176 + $0x54] sm:%s2166] %v2219
                %v2221 = vld [vmem:[%s2175 + $0x58] sm:%s2166]
                %2222 = vst [vmem:[%s2176 + $0x58] sm:%s2166] %v2221
                %v2223 = vld [vmem:[%s2175 + $0x5c] sm:%s2166]
                %2224 = vst [vmem:[%s2176 + $0x5c] sm:%s2166] %v2223
                %v2225 = vld [vmem:[%s2175 + $0x60] sm:%s2166]
                %2226 = vst [vmem:[%s2176 + $0x60] sm:%s2166] %v2225
                %v2227 = vld [vmem:[%s2175 + $0x64] sm:%s2166]
                %2228 = vst [vmem:[%s2176 + $0x64] sm:%s2166] %v2227
                %v2229 = vld [vmem:[%s2175 + $0x68] sm:%s2166]
                %2230 = vst [vmem:[%s2176 + $0x68] sm:%s2166] %v2229
                %v2231 = vld [vmem:[%s2175 + $0x6c] sm:%s2166]
                %2232 = vst [vmem:[%s2176 + $0x6c] sm:%s2166] %v2231
                %v2233 = vld [vmem:[%s2175 + $0x70] sm:%s2166]
                %2234 = vst [vmem:[%s2176 + $0x70] sm:%s2166] %v2233
                %v2235 = vld [vmem:[%s2175 + $0x74] sm:%s2166]
                %2236 = vst [vmem:[%s2176 + $0x74] sm:%s2166] %v2235
                %v2237 = vld [vmem:[%s2175 + $0x78] sm:%s2166]
                %2238 = vst [vmem:[%s2176 + $0x78] sm:%s2166] %v2237
                %v2239 = vld [vmem:[%s2175 + $0x7c] sm:%s2166]
                %2240 = vst [vmem:[%s2176 + $0x7c] sm:%s2166] %v2239
                %s2241 = sadd.s32 1, %s2174
                %p2242 = scmp.ge.s32.totalorder %s2241, %s2167
                %s2243 = scalar_select %p2242, 0, %s2241
                %s2244 = smul.u32 %s2243, 128
                %s2245 = smul.u32 %s2243, 128
                %s2246 = scalar_lea.vmem %s2146, %s2244 [#allocation2]
                %s2247 = scalar_lea.vmem %s2157, %s2245
              $region53: #{decision_forward.4} parent=47 // loop_footer
                %s2171 = sadd.s32 %s2169, 1
              $region54: #{decision_forward.4} parent=47 // loop_footer_branch
                %2168 = sbr.rel target = $region50
              $region55: #{decision_forward.4} parent=47 // loop_exit
                _
              %s2248 = sshrl.u32 %s2153, 5
              %s2249 = sand.u32 %s2153, 31
              %s2250 = smul.u32 %s2248, 32
              %s2251 = smul.u32 4, %s2250
              %s2252 = scalar_lea.vmem %s2146, %s2251 [#allocation2]
              %s2253 = smul.u32 4, %s2250
              %s2254 = scalar_lea.vmem %s2157, %s2253
              // While loop
              $region56: #{decision_forward.4} parent=47 // loop_pre_header
                _
              $region57: #{decision_forward.4} parent=47 // loop_header
                %s2256 = sphi 0, %s2258
                %p2257 = scmp.ge.s32.totalorder %s2256, %s2249
                %s2261 = sphi 0, %s2268
                %s2262 = sphi %s2252, %s2271
                %s2263 = sphi %s2254, %s2272
              $region58: #{decision_forward.4} parent=47 // loop_header_branch
                %2260 = sbr.rel (%p2257) target = $region62
              $region59: #{decision_forward.4} parent=47 // loop_body
                %v2264 = vld [vmem:[%s2262] sm:%s2166]
                %2265 = vst [vmem:[%s2263] sm:%s2166] %v2264
                %s2266 = sadd.s32 1, %s2261
                %p2267 = scmp.ge.s32.totalorder %s2266, %s2249
                %s2268 = scalar_select %p2267, 0, %s2266
                %s2269 = smul.u32 %s2268, 4
                %s2270 = smul.u32 %s2268, 4
                %s2271 = scalar_lea.vmem %s2252, %s2269 [#allocation2]
                %s2272 = scalar_lea.vmem %s2254, %s2270
              $region60: #{decision_forward.4} parent=47 // loop_footer
                %s2258 = sadd.s32 %s2256, 1
              $region61: #{decision_forward.4} parent=47 // loop_footer_branch
                %2255 = sbr.rel target = $region57
              $region62: #{decision_forward.4} parent=47 // loop_exit
                _
            $region48: #{decision_forward.4} parent=39 // pred_fallthru
              _
          $region40: #{decision_forward.4} parent=35 // pred_fallthru
            _
          %2383 = vnop
        $region36: #{decision_forward.4} parent=31 // pred_fallthru
          _
      $region32: #{decision_forward.4} parent=5 // pred_fallthru
        _
      %p2384 = scmp.le.s32.totalorder 2, %s9
      // Predicated region
      $region81: #{decision_forward.4} parent=5 // pred_check
        %p2385 = pneg %p2384
      $region82: #{decision_forward.4} parent=5 // pred_check_branch
        %2387 = sbr.rel (%p2385) target = $region84
      $region83: #{decision_forward.4} parent=5 // pred_region
        %s2388 = ssub.s32 %s9, 2
        // Predicated region
        $region85: #{decision_forward.4} parent=83 // pred_check
          %p2389 = pneg %p106
        $region86: #{decision_forward.4} parent=83 // pred_check_branch
          %2391 = sbr.rel (%p2389) target = $region88
        $region87: #{decision_forward.4} parent=83 // pred_region
          %s2392 = sand.u32 %s91, 1
          %s2393 = sand.u32 %s91, 1
          %s2394 = smul.addr %s2393, 512
          %s2395 = scalar_lea.vmem [#allocation2], %s2394
        $region88: #{decision_forward.4} parent=83 // pred_fallthru
          _
      $region84: #{decision_forward.4} parent=5 // pred_fallthru
        _
    $region6: #{decision_forward.4} parent=1 // loop_footer
      %s13 = sadd.s32 1, %s9
    $region7: #{decision_forward.4} parent=1 // loop_footer_branch
      %8 = sbr.rel target = $region3
    $region8: #{decision_forward.4} parent=1 // loop_exit
      _

// kernel: decision_forward.5
$region0: #{decision_forward.5}
  #allocation0 [shape = 'u32[]', space=smem, size = 0x4, offset = 0x4, fixed_abs, tag = 'smem constant byte address 0x4 - core index']
  #allocation1 [shape = 'u32[72,128]{1,0:T(1,128)}', space=vmem, size = 0x9000, scoped, tag = 'internal scratch']
  %s0 = inlined_call_operand.vmem [shape: bf16[648,512], index: 0, kind: input, shape index: {}]
  %s1 = inlined_call_operand.vmem [shape: bf16[512,64], index: 1, kind: input, shape index: {}]
  %s2 = inlined_call_operand.vmem [shape: f32[1,64], index: 2, kind: input, shape index: {}]
  %s3 = inlined_call_operand.vmem [shape: bf16[648,64], index: 3, kind: output, shape index: {}]
  %s4 = sld [smem:[#allocation0]]
  $region22: #{decision_forward.5} parent=0
    _
  %s6 = ssub.s32 1, %s4
  %s7 = scalar_select 0, %s6, %s4
  // Predicated region
  $region2: #{decision_forward.5} parent=0 // pred_check
    _
  $region3: #{decision_forward.5} parent=0 // pred_check_branch
    %9 = sbr.rel (0) target = $region5
  $region4: #{decision_forward.5} parent=0 // pred_region
    _
  $region5: #{decision_forward.5} parent=0 // pred_fallthru
    _
  // Predicated region
  $region6: #{decision_forward.5} parent=0 // pred_check
    _
  $region7: #{decision_forward.5} parent=0 // pred_check_branch
    %11 = sbr.rel (0) target = $region9
  $region8: #{decision_forward.5} parent=0 // pred_region
    _
  $region9: #{decision_forward.5} parent=0 // pred_fallthru
    _
  // Predicated region
  $region10: #{decision_forward.5} parent=0 // pred_check
    _
  $region11: #{decision_forward.5} parent=0 // pred_check_branch
    %13 = sbr.rel (0) target = $region13
  $region12: #{decision_forward.5} parent=0 // pred_region
    _
  $region13: #{decision_forward.5} parent=0 // pred_fallthru
    _
  %v14 = vld [vmem:[%s0] sm:$0xff]
  %v15 = vld [vmem:[%s0 + $0x8] sm:$0xff]
  %v16 = vld [vmem:[%s0 + $0x10] sm:$0xff]
  %v17 = vld [vmem:[%s0 + $0x18] sm:$0xff]
  %v18 = vld [vmem:[%s0 + $0x20] sm:$0xff]
  %v19 = vld [vmem:[%s0 + $0x28] sm:$0xff]
  %v20 = vld [vmem:[%s0 + $0x30] sm:$0xff]
  %v21 = vld [vmem:[%s0 + $0x38] sm:$0xff]
  %v22 = vld [vmem:[%s0 + $0x40] sm:$0xff]
  %v23 = vld [vmem:[%s0 + $0x48] sm:$0xff]
  %v24 = vld [vmem:[%s0 + $0x50] sm:$0xff]
  %v25 = vld [vmem:[%s0 + $0x58] sm:$0xff]
  %v26 = vld [vmem:[%s0 + $0x60] sm:$0xff]
  %v27 = vld [vmem:[%s0 + $0x68] sm:$0xff]
  %v28 = vld [vmem:[%s0 + $0x70] sm:$0xff]
  %v29 = vld [vmem:[%s0 + $0x78] sm:$0xff]
  %v30 = vld [vmem:[%s0 + $0x80] sm:$0xff]
  %v31 = vld [vmem:[%s0 + $0x88] sm:$0xff]
  %v32 = vld [vmem:[%s0 + $0x90] sm:$0xff]
  %v33 = vld [vmem:[%s0 + $0x98] sm:$0xff]
  %v34 = vld [vmem:[%s0 + $0xa0] sm:$0xff]
  %v35 = vld [vmem:[%s0 + $0xa8] sm:$0xff]
  %v36 = vld [vmem:[%s0 + $0xb0] sm:$0xff]
  %v37 = vld [vmem:[%s0 + $0xb8] sm:$0xff]
  %v38 = vld [vmem:[%s0 + $0xc0] sm:$0xff]
  %v39 = vld [vmem:[%s0 + $0xc8] sm:$0xff]
  %v40 = vld [vmem:[%s0 + $0xd0] sm:$0xff]
  %v41 = vld [vmem:[%s0 + $0xd8] sm:$0xff]
  %v42 = vld [vmem:[%s0 + $0xe0] sm:$0xff]
  %v43 = vld [vmem:[%s0 + $0xe8] sm:$0xff]
  %v44 = vld [vmem:[%s0 + $0xf0] sm:$0xff]
  %v45 = vld [vmem:[%s0 + $0xf8] sm:$0xff]
  %v46 = vld [vmem:[%s0 + $0x100] sm:$0xff]
  %v47 = vld [vmem:[%s0 + $0x108] sm:$0xff]
  %v48 = vld [vmem:[%s0 + $0x110] sm:$0xff]
  %v49 = vld [vmem:[%s0 + $0x118] sm:$0xff]
  %v50 = vld [vmem:[%s0 + $0x120] sm:$0xff]
  %v51 = vld [vmem:[%s0 + $0x128] sm:$0xff]
  %v52 = vld [vmem:[%s0 + $0x130] sm:$0xff]
  %v53 = vld [vmem:[%s0 + $0x138] sm:$0xff]
  %v54 = vld [vmem:[%s0 + $0x140] sm:$0xff]
  %v55 = vld [vmem:[%s0 + $0x148] sm:$0xff]
  %v56 = vld [vmem:[%s0 + $0x150] sm:$0xff]
  %v57 = vld [vmem:[%s0 + $0x158] sm:$0xff]
  %v58 = vld [vmem:[%s0 + $0x160] sm:$0xff]
  %v59 = vld [vmem:[%s0 + $0x168] sm:$0xff]
  %v60 = vld [vmem:[%s0 + $0x170] sm:$0xff]
  %v61 = vld [vmem:[%s0 + $0x178] sm:$0xff]
  %v62 = vld [vmem:[%s0 + $0x180] sm:$0xff]
  %v63 = vld [vmem:[%s0 + $0x188] sm:$0xff]
  %v64 = vld [vmem:[%s0 + $0x190] sm:$0xff]
  %v65 = vld [vmem:[%s0 + $0x198] sm:$0xff]
  %v66 = vld [vmem:[%s0 + $0x1a0] sm:$0xff]
  %v67 = vld [vmem:[%s0 + $0x1a8] sm:$0xff]
  %v68 = vld [vmem:[%s0 + $0x1b0] sm:$0xff]
  %v69 = vld [vmem:[%s0 + $0x1b8] sm:$0xff]
  %v70 = vld [vmem:[%s0 + $0x1c0] sm:$0xff]
  %v71 = vld [vmem:[%s0 + $0x1c8] sm:$0xff]
  %v72 = vld [vmem:[%s0 + $0x1d0] sm:$0xff]
  %v73 = vld [vmem:[%s0 + $0x1d8] sm:$0xff]
  %v74 = vld [vmem:[%s0 + $0x1e0] sm:$0xff]
  %v75 = vld [vmem:[%s0 + $0x1e8] sm:$0xff]
  %v76 = vld [vmem:[%s0 + $0x1f0] sm:$0xff]
  %v77 = vld [vmem:[%s0 + $0x1f8] sm:$0xff]
  %v78 = vld [vmem:[%s0 + $0x200] sm:$0xff]
  %v79 = vld [vmem:[%s0 + $0x208] sm:$0xff]
  %v80 = vld [vmem:[%s0 + $0x210] sm:$0xff]
  %v81 = vld [vmem:[%s0 + $0x218] sm:$0xff]
  %v82 = vld [vmem:[%s0 + $0x220] sm:$0xff]
  %v83 = vld [vmem:[%s0 + $0x228] sm:$0xff]
  %v84 = vld [vmem:[%s0 + $0x230] sm:$0xff]
  %v85 = vld [vmem:[%s0 + $0x238] sm:$0xff]
  %v86 = vld [vmem:[%s0 + $0x240] sm:$0xff]
  %v87 = vld [vmem:[%s0 + $0x248] sm:$0xff]
  %v88 = vld [vmem:[%s0 + $0x250] sm:$0xff]
  %v89 = vld [vmem:[%s0 + $0x258] sm:$0xff]
  %v90 = vld [vmem:[%s0 + $0x260] sm:$0xff]
  %v91 = vld [vmem:[%s0 + $0x268] sm:$0xff]
  %v92 = vld [vmem:[%s0 + $0x270] sm:$0xff]
  %v93 = vld [vmem:[%s0 + $0x278] sm:$0xff]
  %v94 = vld [vmem:[%s0 + $0x280] sm:$0xff]
  %v95 = vld [vmem:[%s0 + $0x288] sm:$0xff]
  %v96 = vld [vmem:[%s0 + $0x290] sm:$0xff]
  %v97 = vld [vmem:[%s0 + $0x298] sm:$0xff]
  %v98 = vld [vmem:[%s0 + $0x2a0] sm:$0xff]
  %v99 = vld [vmem:[%s0 + $0x2a8] sm:$0xff]
  %v100 = vld [vmem:[%s0 + $0x2b0] sm:$0xff]
  %v101 = vld [vmem:[%s0 + $0x2b8] sm:$0xff]
  %v102 = vld [vmem:[%s0 + $0x2c0] sm:$0xff]
  %v103 = vld [vmem:[%s0 + $0x2c8] sm:$0xff]
  %v104 = vld [vmem:[%s0 + $0x2d0] sm:$0xff]
  %v105 = vld [vmem:[%s0 + $0x2d8] sm:$0xff]
  %v106 = vld [vmem:[%s0 + $0x2e0] sm:$0xff]
  %v107 = vld [vmem:[%s0 + $0x2e8] sm:$0xff]
  %v108 = vld [vmem:[%s0 + $0x2f0] sm:$0xff]
  %v109 = vld [vmem:[%s0 + $0x2f8] sm:$0xff]
  %v110 = vld [vmem:[%s0 + $0x300] sm:$0xff]
  %v111 = vld [vmem:[%s0 + $0x308] sm:$0xff]
  %v112 = vld [vmem:[%s0 + $0x310] sm:$0xff]
  %v113 = vld [vmem:[%s0 + $0x318] sm:$0xff]
  %v114 = vld [vmem:[%s0 + $0x320] sm:$0xff]
  %v115 = vld [vmem:[%s0 + $0x328] sm:$0xff]
  %v116 = vld [vmem:[%s0 + $0x330] sm:$0xff]
  %v117 = vld [vmem:[%s0 + $0x338] sm:$0xff]
  %v118 = vld [vmem:[%s0 + $0x340] sm:$0xff]
  %v119 = vld [vmem:[%s0 + $0x348] sm:$0xff]
  %v120 = vld [vmem:[%s0 + $0x350] sm:$0xff]
  %v121 = vld [vmem:[%s0 + $0x358] sm:$0xff]
  %v122 = vld [vmem:[%s0 + $0x360] sm:$0xff]
  %v123 = vld [vmem:[%s0 + $0x368] sm:$0xff]
  %v124 = vld [vmem:[%s0 + $0x370] sm:$0xff]
  %v125 = vld [vmem:[%s0 + $0x378] sm:$0xff]
  %v126 = vld [vmem:[%s0 + $0x380] sm:$0xff]
  %v127 = vld [vmem:[%s0 + $0x388] sm:$0xff]
  %v128 = vld [vmem:[%s0 + $0x390] sm:$0xff]
  %v129 = vld [vmem:[%s0 + $0x398] sm:$0xff]
  %v130 = vld [vmem:[%s0 + $0x3a0] sm:$0xff]
  %v131 = vld [vmem:[%s0 + $0x3a8] sm:$0xff]
  %v132 = vld [vmem:[%s0 + $0x3b0] sm:$0xff]
  %v133 = vld [vmem:[%s0 + $0x3b8] sm:$0xff]
  %v134 = vld [vmem:[%s0 + $0x3c0] sm:$0xff]
  %v135 = vld [vmem:[%s0 + $0x3c8] sm:$0xff]
  %v136 = vld [vmem:[%s0 + $0x3d0] sm:$0xff]
  %v137 = vld [vmem:[%s0 + $0x3d8] sm:$0xff]
  %v138 = vld [vmem:[%s0 + $0x3e0] sm:$0xff]
  %v139 = vld [vmem:[%s0 + $0x3e8] sm:$0xff]
  %v140 = vld [vmem:[%s0 + $0x3f0] sm:$0xff]
  %v141 = vld [vmem:[%s0 + $0x3f8] sm:$0xff]
  %v142 = vld [vmem:[%s0 + $0x400] sm:$0xff]
  %v143 = vld [vmem:[%s0 + $0x408] sm:$0xff]
  %v144 = vld [vmem:[%s0 + $0x410] sm:$0xff]
  %v145 = vld [vmem:[%s0 + $0x418] sm:$0xff]
  %v146 = vld [vmem:[%s0 + $0x420] sm:$0xff]
  %v147 = vld [vmem:[%s0 + $0x428] sm:$0xff]
  %v148 = vld [vmem:[%s0 + $0x430] sm:$0xff]
  %v149 = vld [vmem:[%s0 + $0x438] sm:$0xff]
  %v150 = vld [vmem:[%s0 + $0x440] sm:$0xff]
  %v151 = vld [vmem:[%s0 + $0x448] sm:$0xff]
  %v152 = vld [vmem:[%s0 + $0x450] sm:$0xff]
  %v153 = vld [vmem:[%s0 + $0x458] sm:$0xff]
  %v154 = vld [vmem:[%s0 + $0x460] sm:$0xff]
  %v155 = vld [vmem:[%s0 + $0x468] sm:$0xff]
  %v156 = vld [vmem:[%s0 + $0x470] sm:$0xff]
  %v157 = vld [vmem:[%s0 + $0x478] sm:$0xff]
  %v158 = vld [vmem:[%s0 + $0x480] sm:$0xff]
  %v159 = vld [vmem:[%s0 + $0x488] sm:$0xff]
  %v160 = vld [vmem:[%s0 + $0x490] sm:$0xff]
  %v161 = vld [vmem:[%s0 + $0x498] sm:$0xff]
  %v162 = vld [vmem:[%s0 + $0x4a0] sm:$0xff]
  %v163 = vld [vmem:[%s0 + $0x4a8] sm:$0xff]
  %v164 = vld [vmem:[%s0 + $0x4b0] sm:$0xff]
  %v165 = vld [vmem:[%s0 + $0x4b8] sm:$0xff]
  %v166 = vld [vmem:[%s0 + $0x4c0] sm:$0xff]
  %v167 = vld [vmem:[%s0 + $0x4c8] sm:$0xff]
  %v168 = vld [vmem:[%s0 + $0x4d0] sm:$0xff]
  %v169 = vld [vmem:[%s0 + $0x4d8] sm:$0xff]
  %v170 = vld [vmem:[%s0 + $0x4e0] sm:$0xff]
  %v171 = vld [vmem:[%s0 + $0x4e8] sm:$0xff]
  %v172 = vld [vmem:[%s0 + $0x4f0] sm:$0xff]
  %v173 = vld [vmem:[%s0 + $0x4f8] sm:$0xff]
  %v174 = vld [vmem:[%s0 + $0x500] sm:$0xff]
  %v175 = vld [vmem:[%s0 + $0x508] sm:$0xff]
  %v176 = vld [vmem:[%s1] sm:$0xf]
  %v177 = vld [vmem:[%s1 + $0x4] sm:$0xf]
  %v178 = vld [vmem:[%s1 + $0x8] sm:$0xf]
  %v179 = vld [vmem:[%s1 + $0xc] sm:$0xf]
  %v180 = vld [vmem:[%s1 + $0x10] sm:$0xf]
  %v181 = vld [vmem:[%s1 + $0x14] sm:$0xf]
  %v182 = vld [vmem:[%s1 + $0x18] sm:$0xf]
  %v183 = vld [vmem:[%s1 + $0x1c] sm:$0xf]
  %v184 = vld [vmem:[%s1 + $0x20] sm:$0xf]
  %v185 = vld [vmem:[%s1 + $0x24] sm:$0xf]
  %v186 = vld [vmem:[%s1 + $0x28] sm:$0xf]
  %v187 = vld [vmem:[%s1 + $0x2c] sm:$0xf]
  %v188 = vld [vmem:[%s1 + $0x30] sm:$0xf]
  %v189 = vld [vmem:[%s1 + $0x34] sm:$0xf]
  %v190 = vld [vmem:[%s1 + $0x38] sm:$0xf]
  %v191 = vld [vmem:[%s1 + $0x3c] sm:$0xf]
  %v192 = vld [vmem:[%s1 + $0x40] sm:$0xf]
  %v193 = vld [vmem:[%s1 + $0x44] sm:$0xf]
  %v194 = vld [vmem:[%s1 + $0x48] sm:$0xf]
  %v195 = vld [vmem:[%s1 + $0x4c] sm:$0xf]
  %v196 = vld [vmem:[%s1 + $0x50] sm:$0xf]
  %v197 = vld [vmem:[%s1 + $0x54] sm:$0xf]
  %v198 = vld [vmem:[%s1 + $0x58] sm:$0xf]
  %v199 = vld [vmem:[%s1 + $0x5c] sm:$0xf]
  %v200 = vld [vmem:[%s1 + $0x60] sm:$0xf]
  %v201 = vld [vmem:[%s1 + $0x64] sm:$0xf]
  %v202 = vld [vmem:[%s1 + $0x68] sm:$0xf]
  %v203 = vld [vmem:[%s1 + $0x6c] sm:$0xf]
  %v204 = vld [vmem:[%s1 + $0x70] sm:$0xf]
  %v205 = vld [vmem:[%s1 + $0x74] sm:$0xf]
  %v206 = vld [vmem:[%s1 + $0x78] sm:$0xf]
  %v207 = vld [vmem:[%s1 + $0x7c] sm:$0xf]
  %v208 = vld [vmem:[%s1 + $0x80] sm:$0xf]
  %v209 = vld [vmem:[%s1 + $0x84] sm:$0xf]
  %v210 = vld [vmem:[%s1 + $0x88] sm:$0xf]
  %v211 = vld [vmem:[%s1 + $0x8c] sm:$0xf]
  %v212 = vld [vmem:[%s1 + $0x90] sm:$0xf]
  %v213 = vld [vmem:[%s1 + $0x94] sm:$0xf]
  %v214 = vld [vmem:[%s1 + $0x98] sm:$0xf]
  %v215 = vld [vmem:[%s1 + $0x9c] sm:$0xf]
  %v216 = vld [vmem:[%s1 + $0xa0] sm:$0xf]
  %v217 = vld [vmem:[%s1 + $0xa4] sm:$0xf]
  %v218 = vld [vmem:[%s1 + $0xa8] sm:$0xf]
  %v219 = vld [vmem:[%s1 + $0xac] sm:$0xf]
  %v220 = vld [vmem:[%s1 + $0xb0] sm:$0xf]
  %v221 = vld [vmem:[%s1 + $0xb4] sm:$0xf]
  %v222 = vld [vmem:[%s1 + $0xb8] sm:$0xf]
  %v223 = vld [vmem:[%s1 + $0xbc] sm:$0xf]
  %v224 = vld [vmem:[%s1 + $0xc0] sm:$0xf]
  %v225 = vld [vmem:[%s1 + $0xc4] sm:$0xf]
  %v226 = vld [vmem:[%s1 + $0xc8] sm:$0xf]
  %v227 = vld [vmem:[%s1 + $0xcc] sm:$0xf]
  %v228 = vld [vmem:[%s1 + $0xd0] sm:$0xf]
  %v229 = vld [vmem:[%s1 + $0xd4] sm:$0xf]
  %v230 = vld [vmem:[%s1 + $0xd8] sm:$0xf]
  %v231 = vld [vmem:[%s1 + $0xdc] sm:$0xf]
  %v232 = vld [vmem:[%s1 + $0xe0] sm:$0xf]
  %v233 = vld [vmem:[%s1 + $0xe4] sm:$0xf]
  %v234 = vld [vmem:[%s1 + $0xe8] sm:$0xf]
  %v235 = vld [vmem:[%s1 + $0xec] sm:$0xf]
  %v236 = vld [vmem:[%s1 + $0xf0] sm:$0xf]
  %v237 = vld [vmem:[%s1 + $0xf4] sm:$0xf]
  %v238 = vld [vmem:[%s1 + $0xf8] sm:$0xf]
  %v239 = vld [vmem:[%s1 + $0xfc] sm:$0xf]
  %v240 = vld [vmem:[%s2] sm:$0x1]
  %v242 = vperm.slane %v240, 0
  %v406 = vunpack.c.l.b16 %v14
  %v407 = vunpack.c.h.b16 %v14
  %v408 = vunpack.c.l.b16 %v15
  %v409 = vunpack.c.h.b16 %v15
  %v410 = vunpack.c.l.b16 %v16
  %v411 = vunpack.c.h.b16 %v16
  %v412 = vunpack.c.l.b16 %v17
  %v413 = vunpack.c.h.b16 %v17
  %v414 = vunpack.c.l.b16 %v18
  %v415 = vunpack.c.h.b16 %v18
  %v416 = vunpack.c.l.b16 %v19
  %v417 = vunpack.c.h.b16 %v19
  %v418 = vunpack.c.l.b16 %v20
  %v419 = vunpack.c.h.b16 %v20
  %v420 = vunpack.c.l.b16 %v21
  %v421 = vunpack.c.h.b16 %v21
  %v422 = vunpack.c.l.b16 %v22
  %v423 = vunpack.c.h.b16 %v22
  %v424 = vunpack.c.l.b16 %v23
  %v425 = vunpack.c.h.b16 %v23
  %v426 = vunpack.c.l.b16 %v24
  %v427 = vunpack.c.h.b16 %v24
  %v428 = vunpack.c.l.b16 %v25
  %v429 = vunpack.c.h.b16 %v25
  %v430 = vunpack.c.l.b16 %v26
  %v431 = vunpack.c.h.b16 %v26
  %v432 = vunpack.c.l.b16 %v27
  %v433 = vunpack.c.h.b16 %v27
  %v434 = vunpack.c.l.b16 %v28
  %v435 = vunpack.c.h.b16 %v28
  %v436 = vunpack.c.l.b16 %v29
  %v437 = vunpack.c.h.b16 %v29
  %v438 = vunpack.c.l.b16 %v30
  %v439 = vunpack.c.h.b16 %v30
  %v440 = vunpack.c.l.b16 %v31
  %v441 = vunpack.c.h.b16 %v31
  %v442 = vunpack.c.l.b16 %v32
  %v443 = vunpack.c.h.b16 %v32
  %v444 = vunpack.c.l.b16 %v33
  %v445 = vunpack.c.h.b16 %v33
  %v446 = vunpack.c.l.b16 %v34
  %v447 = vunpack.c.h.b16 %v34
  %v448 = vunpack.c.l.b16 %v35
  %v449 = vunpack.c.h.b16 %v35
  %v450 = vunpack.c.l.b16 %v36
  %v451 = vunpack.c.h.b16 %v36
  %v452 = vunpack.c.l.b16 %v37
  %v453 = vunpack.c.h.b16 %v37
  %v454 = vunpack.c.l.b16 %v38
  %v455 = vunpack.c.h.b16 %v38
  %v456 = vunpack.c.l.b16 %v39
  %v457 = vunpack.c.h.b16 %v39
  %v458 = vunpack.c.l.b16 %v40
  %v459 = vunpack.c.h.b16 %v40
  %v460 = vunpack.c.l.b16 %v41
  %v461 = vunpack.c.h.b16 %v41
  %v462 = vunpack.c.l.b16 %v42
  %v463 = vunpack.c.h.b16 %v42
  %v464 = vunpack.c.l.b16 %v43
  %v465 = vunpack.c.h.b16 %v43
  %v466 = vunpack.c.l.b16 %v44
  %v467 = vunpack.c.h.b16 %v44
  %v468 = vunpack.c.l.b16 %v45
  %v469 = vunpack.c.h.b16 %v45
  %v470 = vunpack.c.l.b16 %v46
  %v471 = vunpack.c.h.b16 %v46
  %v472 = vunpack.c.l.b16 %v47
  %v473 = vunpack.c.h.b16 %v47
  %v474 = vunpack.c.l.b16 %v48
  %v475 = vunpack.c.h.b16 %v48
  %v476 = vunpack.c.l.b16 %v49
  %v477 = vunpack.c.h.b16 %v49
  %v478 = vunpack.c.l.b16 %v50
  %v479 = vunpack.c.h.b16 %v50
  %v480 = vunpack.c.l.b16 %v51
  %v481 = vunpack.c.h.b16 %v51
  %v482 = vunpack.c.l.b16 %v52
  %v483 = vunpack.c.h.b16 %v52
  %v484 = vunpack.c.l.b16 %v53
  %v485 = vunpack.c.h.b16 %v53
  %v486 = vunpack.c.l.b16 %v54
  %v487 = vunpack.c.h.b16 %v54
  %v488 = vunpack.c.l.b16 %v55
  %v489 = vunpack.c.h.b16 %v55
  %v490 = vunpack.c.l.b16 %v56
  %v491 = vunpack.c.h.b16 %v56
  %v492 = vunpack.c.l.b16 %v57
  %v493 = vunpack.c.h.b16 %v57
  %v494 = vunpack.c.l.b16 %v58
  %v495 = vunpack.c.h.b16 %v58
  %v496 = vunpack.c.l.b16 %v59
  %v497 = vunpack.c.h.b16 %v59
  %v498 = vunpack.c.l.b16 %v60
  %v499 = vunpack.c.h.b16 %v60
  %v500 = vunpack.c.l.b16 %v61
  %v501 = vunpack.c.h.b16 %v61
  %v502 = vunpack.c.l.b16 %v62
  %v503 = vunpack.c.h.b16 %v62
  %v504 = vunpack.c.l.b16 %v63
  %v505 = vunpack.c.h.b16 %v63
  %v506 = vunpack.c.l.b16 %v64
  %v507 = vunpack.c.h.b16 %v64
  %v508 = vunpack.c.l.b16 %v65
  %v509 = vunpack.c.h.b16 %v65
  %v510 = vunpack.c.l.b16 %v66
  %v511 = vunpack.c.h.b16 %v66
  %v512 = vunpack.c.l.b16 %v67
  %v513 = vunpack.c.h.b16 %v67
  %v514 = vunpack.c.l.b16 %v68
  %v515 = vunpack.c.h.b16 %v68
  %v516 = vunpack.c.l.b16 %v69
  %v517 = vunpack.c.h.b16 %v69
  %v518 = vunpack.c.l.b16 %v70
  %v519 = vunpack.c.h.b16 %v70
  %v520 = vunpack.c.l.b16 %v71
  %v521 = vunpack.c.h.b16 %v71
  %v522 = vunpack.c.l.b16 %v72
  %v523 = vunpack.c.h.b16 %v72
  %v524 = vunpack.c.l.b16 %v73
  %v525 = vunpack.c.h.b16 %v73
  %v526 = vunpack.c.l.b16 %v74
  %v527 = vunpack.c.h.b16 %v74
  %v528 = vunpack.c.l.b16 %v75
  %v529 = vunpack.c.h.b16 %v75
  %v530 = vunpack.c.l.b16 %v76
  %v531 = vunpack.c.h.b16 %v76
  %v532 = vunpack.c.l.b16 %v77
  %v533 = vunpack.c.h.b16 %v77
  %v534 = vunpack.c.l.b16 %v78
  %v535 = vunpack.c.h.b16 %v78
  %v536 = vunpack.c.l.b16 %v79
  %v537 = vunpack.c.h.b16 %v79
  %v538 = vunpack.c.l.b16 %v80
  %v539 = vunpack.c.h.b16 %v80
  %v540 = vunpack.c.l.b16 %v81
  %v541 = vunpack.c.h.b16 %v81
  %v542 = vunpack.c.l.b16 %v82
  %v543 = vunpack.c.h.b16 %v82
  %v544 = vunpack.c.l.b16 %v83
  %v545 = vunpack.c.h.b16 %v83
  %v546 = vunpack.c.l.b16 %v84
  %v547 = vunpack.c.h.b16 %v84
  %v548 = vunpack.c.l.b16 %v85
  %v549 = vunpack.c.h.b16 %v85
  %v550 = vunpack.c.l.b16 %v86
  %v551 = vunpack.c.h.b16 %v86
  %v552 = vunpack.c.l.b16 %v87
  %v553 = vunpack.c.h.b16 %v87
  %v554 = vunpack.c.l.b16 %v88
  %v555 = vunpack.c.h.b16 %v88
  %v556 = vunpack.c.l.b16 %v89
  %v557 = vunpack.c.h.b16 %v89
  %v558 = vunpack.c.l.b16 %v90
  %v559 = vunpack.c.h.b16 %v90
  %v560 = vunpack.c.l.b16 %v91
  %v561 = vunpack.c.h.b16 %v91
  %v562 = vunpack.c.l.b16 %v92
  %v563 = vunpack.c.h.b16 %v92
  %v564 = vunpack.c.l.b16 %v93
  %v565 = vunpack.c.h.b16 %v93
  %v566 = vunpack.c.l.b16 %v94
  %v567 = vunpack.c.h.b16 %v94
  %v568 = vunpack.c.l.b16 %v95
  %v569 = vunpack.c.h.b16 %v95
  %v570 = vunpack.c.l.b16 %v96
  %v571 = vunpack.c.h.b16 %v96
  %v572 = vunpack.c.l.b16 %v97
  %v573 = vunpack.c.h.b16 %v97
  %v574 = vunpack.c.l.b16 %v98
  %v575 = vunpack.c.h.b16 %v98
  %v576 = vunpack.c.l.b16 %v99
  %v577 = vunpack.c.h.b16 %v99
  %v578 = vunpack.c.l.b16 %v100
  %v579 = vunpack.c.h.b16 %v100
  %v580 = vunpack.c.l.b16 %v101
  %v581 = vunpack.c.h.b16 %v101
  %v582 = vunpack.c.l.b16 %v102
  %v583 = vunpack.c.h.b16 %v102
  %v584 = vunpack.c.l.b16 %v103
  %v585 = vunpack.c.h.b16 %v103
  %v586 = vunpack.c.l.b16 %v104
  %v587 = vunpack.c.h.b16 %v104
  %v588 = vunpack.c.l.b16 %v105
  %v589 = vunpack.c.h.b16 %v105
  %v590 = vunpack.c.l.b16 %v106
  %v591 = vunpack.c.h.b16 %v106
  %v592 = vunpack.c.l.b16 %v107
  %v593 = vunpack.c.h.b16 %v107
  %v594 = vunpack.c.l.b16 %v108
  %v595 = vunpack.c.h.b16 %v108
  %v596 = vunpack.c.l.b16 %v109
  %v597 = vunpack.c.h.b16 %v109
  %v598 = vunpack.c.l.b16 %v110
  %v599 = vunpack.c.h.b16 %v110
  %v600 = vunpack.c.l.b16 %v111
  %v601 = vunpack.c.h.b16 %v111
  %v602 = vunpack.c.l.b16 %v112
  %v603 = vunpack.c.h.b16 %v112
  %v604 = vunpack.c.l.b16 %v113
  %v605 = vunpack.c.h.b16 %v113
  %v606 = vunpack.c.l.b16 %v114
  %v607 = vunpack.c.h.b16 %v114
  %v608 = vunpack.c.l.b16 %v115
  %v609 = vunpack.c.h.b16 %v115
  %v610 = vunpack.c.l.b16 %v116
  %v611 = vunpack.c.h.b16 %v116
  %v612 = vunpack.c.l.b16 %v117
  %v613 = vunpack.c.h.b16 %v117
  %v614 = vunpack.c.l.b16 %v118
  %v615 = vunpack.c.h.b16 %v118
  %v616 = vunpack.c.l.b16 %v119
  %v617 = vunpack.c.h.b16 %v119
  %v618 = vunpack.c.l.b16 %v120
  %v619 = vunpack.c.h.b16 %v120
  %v620 = vunpack.c.l.b16 %v121
  %v621 = vunpack.c.h.b16 %v121
  %v622 = vunpack.c.l.b16 %v122
  %v623 = vunpack.c.h.b16 %v122
  %v624 = vunpack.c.l.b16 %v123
  %v625 = vunpack.c.h.b16 %v123
  %v626 = vunpack.c.l.b16 %v124
  %v627 = vunpack.c.h.b16 %v124
  %v628 = vunpack.c.l.b16 %v125
  %v629 = vunpack.c.h.b16 %v125
  %v630 = vunpack.c.l.b16 %v126
  %v631 = vunpack.c.h.b16 %v126
  %v632 = vunpack.c.l.b16 %v127
  %v633 = vunpack.c.h.b16 %v127
  %v634 = vunpack.c.l.b16 %v128
  %v635 = vunpack.c.h.b16 %v128
  %v636 = vunpack.c.l.b16 %v129
  %v637 = vunpack.c.h.b16 %v129
  %v638 = vunpack.c.l.b16 %v130
  %v639 = vunpack.c.h.b16 %v130
  %v640 = vunpack.c.l.b16 %v131
  %v641 = vunpack.c.h.b16 %v131
  %v642 = vunpack.c.l.b16 %v132
  %v643 = vunpack.c.h.b16 %v132
  %v644 = vunpack.c.l.b16 %v133
  %v645 = vunpack.c.h.b16 %v133
  %v646 = vunpack.c.l.b16 %v134
  %v647 = vunpack.c.h.b16 %v134
  %v648 = vunpack.c.l.b16 %v135
  %v649 = vunpack.c.h.b16 %v135
  %v650 = vunpack.c.l.b16 %v136
  %v651 = vunpack.c.h.b16 %v136
  %v652 = vunpack.c.l.b16 %v137
  %v653 = vunpack.c.h.b16 %v137
  %v654 = vunpack.c.l.b16 %v138
  %v655 = vunpack.c.h.b16 %v138
  %v656 = vunpack.c.l.b16 %v139
  %v657 = vunpack.c.h.b16 %v139
  %v658 = vunpack.c.l.b16 %v140
  %v659 = vunpack.c.h.b16 %v140
  %v660 = vunpack.c.l.b16 %v141
  %v661 = vunpack.c.h.b16 %v141
  %v662 = vunpack.c.l.b16 %v142
  %v663 = vunpack.c.h.b16 %v142
  %v664 = vunpack.c.l.b16 %v143
  %v665 = vunpack.c.h.b16 %v143
  %v666 = vunpack.c.l.b16 %v144
  %v667 = vunpack.c.h.b16 %v144
  %v668 = vunpack.c.l.b16 %v145
  %v669 = vunpack.c.h.b16 %v145
  %v670 = vunpack.c.l.b16 %v146
  %v671 = vunpack.c.h.b16 %v146
  %v672 = vunpack.c.l.b16 %v147
  %v673 = vunpack.c.h.b16 %v147
  %v674 = vunpack.c.l.b16 %v148
  %v675 = vunpack.c.h.b16 %v148
  %v676 = vunpack.c.l.b16 %v149
  %v677 = vunpack.c.h.b16 %v149
  %v678 = vunpack.c.l.b16 %v150
  %v679 = vunpack.c.h.b16 %v150
  %v680 = vunpack.c.l.b16 %v151
  %v681 = vunpack.c.h.b16 %v151
  %v682 = vunpack.c.l.b16 %v152
  %v683 = vunpack.c.h.b16 %v152
  %v684 = vunpack.c.l.b16 %v153
  %v685 = vunpack.c.h.b16 %v153
  %v686 = vunpack.c.l.b16 %v154
  %v687 = vunpack.c.h.b16 %v154
  %v688 = vunpack.c.l.b16 %v155
  %v689 = vunpack.c.h.b16 %v155
  %v690 = vunpack.c.l.b16 %v156
  %v691 = vunpack.c.h.b16 %v156
  %v692 = vunpack.c.l.b16 %v157
  %v693 = vunpack.c.h.b16 %v157
  %v694 = vunpack.c.l.b16 %v158
  %v695 = vunpack.c.h.b16 %v158
  %v696 = vunpack.c.l.b16 %v159
  %v697 = vunpack.c.h.b16 %v159
  %v698 = vunpack.c.l.b16 %v160
  %v699 = vunpack.c.h.b16 %v160
  %v700 = vunpack.c.l.b16 %v161
  %v701 = vunpack.c.h.b16 %v161
  %v702 = vunpack.c.l.b16 %v162
  %v703 = vunpack.c.h.b16 %v162
  %v704 = vunpack.c.l.b16 %v163
  %v705 = vunpack.c.h.b16 %v163
  %v706 = vunpack.c.l.b16 %v164
  %v707 = vunpack.c.h.b16 %v164
  %v708 = vunpack.c.l.b16 %v165
  %v709 = vunpack.c.h.b16 %v165
  %v710 = vunpack.c.l.b16 %v166
  %v711 = vunpack.c.h.b16 %v166
  %v712 = vunpack.c.l.b16 %v167
  %v713 = vunpack.c.h.b16 %v167
  %v714 = vunpack.c.l.b16 %v168
  %v715 = vunpack.c.h.b16 %v168
  %v716 = vunpack.c.l.b16 %v169
  %v717 = vunpack.c.h.b16 %v169
  %v718 = vunpack.c.l.b16 %v170
  %v719 = vunpack.c.h.b16 %v170
  %v720 = vunpack.c.l.b16 %v171
  %v721 = vunpack.c.h.b16 %v171
  %v722 = vunpack.c.l.b16 %v172
  %v723 = vunpack.c.h.b16 %v172
  %v724 = vunpack.c.l.b16 %v173
  %v725 = vunpack.c.h.b16 %v173
  %v726 = vunpack.c.l.b16 %v174
  %v727 = vunpack.c.h.b16 %v174
  %v728 = vunpack.c.l.b16 %v175
  %v729 = vunpack.c.h.b16 %v175
  %v730 = vpack.c.b16 %v410, %v406
  %v731 = vpack.c.b16 %v411, %v407
  %v732 = vpack.c.b16 %v412, %v408
  %v733 = vpack.c.b16 %v413, %v409
  %v734 = vpack.c.b16 %v418, %v414
  %v735 = vpack.c.b16 %v419, %v415
  %v736 = vpack.c.b16 %v420, %v416
  %v737 = vpack.c.b16 %v421, %v417
  %v738 = vpack.c.b16 %v426, %v422
  %v739 = vpack.c.b16 %v427, %v423
  %v740 = vpack.c.b16 %v428, %v424
  %v741 = vpack.c.b16 %v429, %v425
  %v742 = vpack.c.b16 %v434, %v430
  %v743 = vpack.c.b16 %v435, %v431
  %v744 = vpack.c.b16 %v436, %v432
  %v745 = vpack.c.b16 %v437, %v433
  %v746 = vpack.c.b16 %v442, %v438
  %v747 = vpack.c.b16 %v443, %v439
  %v748 = vpack.c.b16 %v444, %v440
  %v749 = vpack.c.b16 %v445, %v441
  %v750 = vpack.c.b16 %v450, %v446
  %v751 = vpack.c.b16 %v451, %v447
  %v752 = vpack.c.b16 %v452, %v448
  %v753 = vpack.c.b16 %v453, %v449
  %v754 = vpack.c.b16 %v458, %v454
  %v755 = vpack.c.b16 %v459, %v455
  %v756 = vpack.c.b16 %v460, %v456
  %v757 = vpack.c.b16 %v461, %v457
  %v758 = vpack.c.b16 %v466, %v462
  %v759 = vpack.c.b16 %v467, %v463
  %v760 = vpack.c.b16 %v468, %v464
  %v761 = vpack.c.b16 %v469, %v465
  %v762 = vpack.c.b16 %v474, %v470
  %v763 = vpack.c.b16 %v475, %v471
  %v764 = vpack.c.b16 %v476, %v472
  %v765 = vpack.c.b16 %v477, %v473
  %v766 = vpack.c.b16 %v482, %v478
  %v767 = vpack.c.b16 %v483, %v479
  %v768 = vpack.c.b16 %v484, %v480
  %v769 = vpack.c.b16 %v485, %v481
  %v770 = vpack.c.b16 %v490, %v486
  %v771 = vpack.c.b16 %v491, %v487
  %v772 = vpack.c.b16 %v492, %v488
  %v773 = vpack.c.b16 %v493, %v489
  %v774 = vpack.c.b16 %v498, %v494
  %v775 = vpack.c.b16 %v499, %v495
  %v776 = vpack.c.b16 %v500, %v496
  %v777 = vpack.c.b16 %v501, %v497
  %v778 = vpack.c.b16 %v506, %v502
  %v779 = vpack.c.b16 %v507, %v503
  %v780 = vpack.c.b16 %v508, %v504
  %v781 = vpack.c.b16 %v509, %v505
  %v782 = vpack.c.b16 %v514, %v510
  %v783 = vpack.c.b16 %v515, %v511
  %v784 = vpack.c.b16 %v516, %v512
  %v785 = vpack.c.b16 %v517, %v513
  %v786 = vpack.c.b16 %v522, %v518
  %v787 = vpack.c.b16 %v523, %v519
  %v788 = vpack.c.b16 %v524, %v520
  %v789 = vpack.c.b16 %v525, %v521
  %v790 = vpack.c.b16 %v530, %v526
  %v791 = vpack.c.b16 %v531, %v527
  %v792 = vpack.c.b16 %v532, %v528
  %v793 = vpack.c.b16 %v533, %v529
  %v794 = vpack.c.b16 %v538, %v534
  %v795 = vpack.c.b16 %v539, %v535
  %v796 = vpack.c.b16 %v540, %v536
  %v797 = vpack.c.b16 %v541, %v537
  %v798 = vpack.c.b16 %v546, %v542
  %v799 = vpack.c.b16 %v547, %v543
  %v800 = vpack.c.b16 %v548, %v544
  %v801 = vpack.c.b16 %v549, %v545
  %v802 = vpack.c.b16 %v554, %v550
  %v803 = vpack.c.b16 %v555, %v551
  %v804 = vpack.c.b16 %v556, %v552
  %v805 = vpack.c.b16 %v557, %v553
  %v806 = vpack.c.b16 %v562, %v558
  %v807 = vpack.c.b16 %v563, %v559
  %v808 = vpack.c.b16 %v564, %v560
  %v809 = vpack.c.b16 %v565, %v561
  %v810 = vpack.c.b16 %v570, %v566
  %v811 = vpack.c.b16 %v571, %v567
  %v812 = vpack.c.b16 %v572, %v568
  %v813 = vpack.c.b16 %v573, %v569
  %v814 = vpack.c.b16 %v578, %v574
  %v815 = vpack.c.b16 %v579, %v575
  %v816 = vpack.c.b16 %v580, %v576
  %v817 = vpack.c.b16 %v581, %v577
  %v818 = vpack.c.b16 %v586, %v582
  %v819 = vpack.c.b16 %v587, %v583
  %v820 = vpack.c.b16 %v588, %v584
  %v821 = vpack.c.b16 %v589, %v585
  %v822 = vpack.c.b16 %v594, %v590
  %v823 = vpack.c.b16 %v595, %v591
  %v824 = vpack.c.b16 %v596, %v592
  %v825 = vpack.c.b16 %v597, %v593
  %v826 = vpack.c.b16 %v602, %v598
  %v827 = vpack.c.b16 %v603, %v599
  %v828 = vpack.c.b16 %v604, %v600
  %v829 = vpack.c.b16 %v605, %v601
  %v830 = vpack.c.b16 %v610, %v606
  %v831 = vpack.c.b16 %v611, %v607
  %v832 = vpack.c.b16 %v612, %v608
  %v833 = vpack.c.b16 %v613, %v609
  %v834 = vpack.c.b16 %v618, %v614
  %v835 = vpack.c.b16 %v619, %v615
  %v836 = vpack.c.b16 %v620, %v616
  %v837 = vpack.c.b16 %v621, %v617
  %v838 = vpack.c.b16 %v626, %v622
  %v839 = vpack.c.b16 %v627, %v623
  %v840 = vpack.c.b16 %v628, %v624
  %v841 = vpack.c.b16 %v629, %v625
  %v842 = vpack.c.b16 %v634, %v630
  %v843 = vpack.c.b16 %v635, %v631
  %v844 = vpack.c.b16 %v636, %v632
  %v845 = vpack.c.b16 %v637, %v633
  %v846 = vpack.c.b16 %v642, %v638
  %v847 = vpack.c.b16 %v643, %v639
  %v848 = vpack.c.b16 %v644, %v640
  %v849 = vpack.c.b16 %v645, %v641
  %v850 = vpack.c.b16 %v650, %v646
  %v851 = vpack.c.b16 %v651, %v647
  %v852 = vpack.c.b16 %v652, %v648
  %v853 = vpack.c.b16 %v653, %v649
  %v854 = vpack.c.b16 %v658, %v654
  %v855 = vpack.c.b16 %v659, %v655
  %v856 = vpack.c.b16 %v660, %v656
  %v857 = vpack.c.b16 %v661, %v657
  %v858 = vpack.c.b16 %v666, %v662
  %v859 = vpack.c.b16 %v667, %v663
  %v860 = vpack.c.b16 %v668, %v664
  %v861 = vpack.c.b16 %v669, %v665
  %v862 = vpack.c.b16 %v674, %v670
  %v863 = vpack.c.b16 %v675, %v671
  %v864 = vpack.c.b16 %v676, %v672
  %v865 = vpack.c.b16 %v677, %v673
  %v866 = vpack.c.b16 %v682, %v678
  %v867 = vpack.c.b16 %v683, %v679
  %v868 = vpack.c.b16 %v684, %v680
  %v869 = vpack.c.b16 %v685, %v681
  %v870 = vpack.c.b16 %v690, %v686
  %v871 = vpack.c.b16 %v691, %v687
  %v872 = vpack.c.b16 %v692, %v688
  %v873 = vpack.c.b16 %v693, %v689
  %v874 = vpack.c.b16 %v698, %v694
  %v875 = vpack.c.b16 %v699, %v695
  %v876 = vpack.c.b16 %v700, %v696
  %v877 = vpack.c.b16 %v701, %v697
  %v878 = vpack.c.b16 %v706, %v702
  %v879 = vpack.c.b16 %v707, %v703
  %v880 = vpack.c.b16 %v708, %v704
  %v881 = vpack.c.b16 %v709, %v705
  %v882 = vpack.c.b16 %v714, %v710
  %v883 = vpack.c.b16 %v715, %v711
  %v884 = vpack.c.b16 %v716, %v712
  %v885 = vpack.c.b16 %v717, %v713
  %v886 = vpack.c.b16 %v722, %v718
  %v887 = vpack.c.b16 %v723, %v719
  %v888 = vpack.c.b16 %v724, %v720
  %v889 = vpack.c.b16 %v725, %v721
  %v890 = vpack.c.b16 %v726, %v726
  %v891 = vpack.c.b16 %v727, %v727
  %v892 = vpack.c.b16 %v728, %v728
  %v893 = vpack.c.b16 %v729, %v729
  %v1122 = vunpack.c.l.b16 %v176
  %v1123 = vunpack.c.l.b16 %v177
  %v1124 = vunpack.c.l.b16 %v178
  %v1125 = vunpack.c.l.b16 %v179
  %v1126 = vunpack.c.l.b16 %v180
  %v1127 = vunpack.c.l.b16 %v181
  %v1128 = vunpack.c.l.b16 %v182
  %v1129 = vunpack.c.l.b16 %v183
  %v1130 = vunpack.c.l.b16 %v184
  %v1131 = vunpack.c.l.b16 %v185
  %v1132 = vunpack.c.l.b16 %v186
  %v1133 = vunpack.c.l.b16 %v187
  %v1134 = vunpack.c.l.b16 %v188
  %v1135 = vunpack.c.l.b16 %v189
  %v1136 = vunpack.c.l.b16 %v190
  %v1137 = vunpack.c.l.b16 %v191
  %v1138 = vunpack.c.l.b16 %v192
  %v1139 = vunpack.c.l.b16 %v193
  %v1140 = vunpack.c.l.b16 %v194
  %v1141 = vunpack.c.l.b16 %v195
  %v1142 = vunpack.c.l.b16 %v196
  %v1143 = vunpack.c.l.b16 %v197
  %v1144 = vunpack.c.l.b16 %v198
  %v1145 = vunpack.c.l.b16 %v199
  %v1146 = vunpack.c.l.b16 %v200
  %v1147 = vunpack.c.l.b16 %v201
  %v1148 = vunpack.c.l.b16 %v202
  %v1149 = vunpack.c.l.b16 %v203
  %v1150 = vunpack.c.l.b16 %v204
  %v1151 = vunpack.c.l.b16 %v205
  %v1152 = vunpack.c.l.b16 %v206
  %v1153 = vunpack.c.l.b16 %v207
  %v1154 = vunpack.c.l.b16 %v208
  %v1155 = vunpack.c.l.b16 %v209
  %v1156 = vunpack.c.l.b16 %v210
  %v1157 = vunpack.c.l.b16 %v211
  %v1158 = vunpack.c.l.b16 %v212
  %v1159 = vunpack.c.l.b16 %v213
  %v1160 = vunpack.c.l.b16 %v214
  %v1161 = vunpack.c.l.b16 %v215
  %v1162 = vunpack.c.l.b16 %v216
  %v1163 = vunpack.c.l.b16 %v217
  %v1164 = vunpack.c.l.b16 %v218
  %v1165 = vunpack.c.l.b16 %v219
  %v1166 = vunpack.c.l.b16 %v220
  %v1167 = vunpack.c.l.b16 %v221
  %v1168 = vunpack.c.l.b16 %v222
  %v1169 = vunpack.c.l.b16 %v223
  %v1170 = vunpack.c.l.b16 %v224
  %v1171 = vunpack.c.l.b16 %v225
  %v1172 = vunpack.c.l.b16 %v226
  %v1173 = vunpack.c.l.b16 %v227
  %v1174 = vunpack.c.l.b16 %v228
  %v1175 = vunpack.c.l.b16 %v229
  %v1176 = vunpack.c.l.b16 %v230
  %v1177 = vunpack.c.l.b16 %v231
  %v1178 = vunpack.c.l.b16 %v232
  %v1179 = vunpack.c.l.b16 %v233
  %v1180 = vunpack.c.l.b16 %v234
  %v1181 = vunpack.c.l.b16 %v235
  %v1182 = vunpack.c.l.b16 %v236
  %v1183 = vunpack.c.l.b16 %v237
  %v1184 = vunpack.c.l.b16 %v238
  %v1185 = vunpack.c.l.b16 %v239
  %v1186 = vpack.c.b16 %v1123, %v1122
  %v1187 = vpack.c.b16 %v1125, %v1124
  %v1188 = vpack.c.b16 %v1127, %v1126
  %v1189 = vpack.c.b16 %v1129, %v1128
  %v1190 = vpack.c.b16 %v1131, %v1130
  %v1191 = vpack.c.b16 %v1133, %v1132
  %v1192 = vpack.c.b16 %v1135, %v1134
  %v1193 = vpack.c.b16 %v1137, %v1136
  %v1194 = vpack.c.b16 %v1139, %v1138
  %v1195 = vpack.c.b16 %v1141, %v1140
  %v1196 = vpack.c.b16 %v1143, %v1142
  %v1197 = vpack.c.b16 %v1145, %v1144
  %v1198 = vpack.c.b16 %v1147, %v1146
  %v1199 = vpack.c.b16 %v1149, %v1148
  %v1200 = vpack.c.b16 %v1151, %v1150
  %v1201 = vpack.c.b16 %v1153, %v1152
  %v1202 = vpack.c.b16 %v1155, %v1154
  %v1203 = vpack.c.b16 %v1157, %v1156
  %v1204 = vpack.c.b16 %v1159, %v1158
  %v1205 = vpack.c.b16 %v1161, %v1160
  %v1206 = vpack.c.b16 %v1163, %v1162
  %v1207 = vpack.c.b16 %v1165, %v1164
  %v1208 = vpack.c.b16 %v1167, %v1166
  %v1209 = vpack.c.b16 %v1169, %v1168
  %v1210 = vpack.c.b16 %v1171, %v1170
  %v1211 = vpack.c.b16 %v1173, %v1172
  %v1212 = vpack.c.b16 %v1175, %v1174
  %v1213 = vpack.c.b16 %v1177, %v1176
  %v1214 = vpack.c.b16 %v1179, %v1178
  %v1215 = vpack.c.b16 %v1181, %v1180
  %v1216 = vpack.c.b16 %v1183, %v1182
  %v1217 = vpack.c.b16 %v1185, %v1184
  %1250 = vmatpush.bf16.msra.mxu0 %v1193
  %1251 = vmatpush.bf16.msra.mxu0 %v1192
  %1252 = vmatpush.bf16.msra.mxu0 %v1191
  %1253 = vmatpush.bf16.msra.mxu0 %v1190
  %1254 = vmatpush.bf16.msra.mxu0 %v1189
  %1255 = vmatpush.bf16.msra.mxu0 %v1188
  %1256 = vmatpush.bf16.msra.mxu0 %v1187
  %1257 = vmatpush.bf16.msra.mxu0 %v1186
  %1258 = vmatmul.bf16.gmra.mxu0 %v730
  %v1259 = vpop.f32.mrf.mxu0
  %v1260 = vadd.f32 %v242, %v1259
  %v1261 = vpop.f32.mrf.mxu0
  %v1262 = vadd.f32 %v242, %v1261
  %1263 = vmatmul.bf16.gmra.mxu0 %v734
  %v1264 = vpop.f32.mrf.mxu0
  %v1265 = vadd.f32 %v242, %v1264
  %v1266 = vpop.f32.mrf.mxu0
  %v1267 = vadd.f32 %v242, %v1266
  %1268 = vmatmul.bf16.gmra.mxu0 %v738
  %v1269 = vpop.f32.mrf.mxu0
  %v1270 = vadd.f32 %v242, %v1269
  %v1271 = vpop.f32.mrf.mxu0
  %v1272 = vadd.f32 %v242, %v1271
  %1273 = vmatmul.bf16.gmra.mxu0 %v742
  %v1274 = vpop.f32.mrf.mxu0
  %v1275 = vadd.f32 %v242, %v1274
  %v1276 = vpop.f32.mrf.mxu0
  %v1277 = vadd.f32 %v242, %v1276
  %1278 = vmatmul.bf16.gmra.mxu0 %v746
  %v1279 = vpop.f32.mrf.mxu0
  %v1280 = vadd.f32 %v242, %v1279
  %v1281 = vpop.f32.mrf.mxu0
  %v1282 = vadd.f32 %v242, %v1281
  %1283 = vmatmul.bf16.gmra.mxu0 %v750
  %v1284 = vpop.f32.mrf.mxu0
  %v1285 = vadd.f32 %v242, %v1284
  %v1286 = vpop.f32.mrf.mxu0
  %v1287 = vadd.f32 %v242, %v1286
  %1288 = vmatmul.bf16.gmra.mxu0 %v754
  %v1289 = vpop.f32.mrf.mxu0
  %v1290 = vadd.f32 %v242, %v1289
  %v1291 = vpop.f32.mrf.mxu0
  %v1292 = vadd.f32 %v242, %v1291
  %1293 = vmatmul.bf16.gmra.mxu0 %v758
  %v1294 = vpop.f32.mrf.mxu0
  %v1295 = vadd.f32 %v242, %v1294
  %v1296 = vpop.f32.mrf.mxu0
  %v1297 = vadd.f32 %v242, %v1296
  %1298 = vmatmul.bf16.gmra.mxu0 %v762
  %v1299 = vpop.f32.mrf.mxu0
  %v1300 = vadd.f32 %v242, %v1299
  %v1301 = vpop.f32.mrf.mxu0
  %v1302 = vadd.f32 %v242, %v1301
  %1303 = vmatmul.bf16.gmra.mxu0 %v766
  %v1304 = vpop.f32.mrf.mxu0
  %v1305 = vadd.f32 %v242, %v1304
  %v1306 = vpop.f32.mrf.mxu0
  %v1307 = vadd.f32 %v242, %v1306
  %1308 = vmatmul.bf16.gmra.mxu0 %v770
  %v1309 = vpop.f32.mrf.mxu0
  %v1310 = vadd.f32 %v242, %v1309
  %v1311 = vpop.f32.mrf.mxu0
  %v1312 = vadd.f32 %v242, %v1311
  %1313 = vmatmul.bf16.gmra.mxu0 %v774
  %v1314 = vpop.f32.mrf.mxu0
  %v1315 = vadd.f32 %v242, %v1314
  %v1316 = vpop.f32.mrf.mxu0
  %v1317 = vadd.f32 %v242, %v1316
  %1318 = vmatmul.bf16.gmra.mxu0 %v778
  %v1319 = vpop.f32.mrf.mxu0
  %v1320 = vadd.f32 %v242, %v1319
  %v1321 = vpop.f32.mrf.mxu0
  %v1322 = vadd.f32 %v242, %v1321
  %1323 = vmatmul.bf16.gmra.mxu0 %v782
  %v1324 = vpop.f32.mrf.mxu0
  %v1325 = vadd.f32 %v242, %v1324
  %v1326 = vpop.f32.mrf.mxu0
  %v1327 = vadd.f32 %v242, %v1326
  %1328 = vmatmul.bf16.gmra.mxu0 %v786
  %v1329 = vpop.f32.mrf.mxu0
  %v1330 = vadd.f32 %v242, %v1329
  %v1331 = vpop.f32.mrf.mxu0
  %v1332 = vadd.f32 %v242, %v1331
  %1333 = vmatmul.bf16.gmra.mxu0 %v790
  %v1334 = vpop.f32.mrf.mxu0
  %v1335 = vadd.f32 %v242, %v1334
  %v1336 = vpop.f32.mrf.mxu0
  %v1337 = vadd.f32 %v242, %v1336
  %1338 = vmatmul.bf16.gmra.mxu0 %v794
  %v1339 = vpop.f32.mrf.mxu0
  %v1340 = vadd.f32 %v242, %v1339
  %v1341 = vpop.f32.mrf.mxu0
  %v1342 = vadd.f32 %v242, %v1341
  %1343 = vmatmul.bf16.gmra.mxu0 %v798
  %v1344 = vpop.f32.mrf.mxu0
  %v1345 = vadd.f32 %v242, %v1344
  %v1346 = vpop.f32.mrf.mxu0
  %v1347 = vadd.f32 %v242, %v1346
  %1348 = vmatmul.bf16.gmra.mxu0 %v802
  %v1349 = vpop.f32.mrf.mxu0
  %v1350 = vadd.f32 %v242, %v1349
  %v1351 = vpop.f32.mrf.mxu0
  %v1352 = vadd.f32 %v242, %v1351
  %1353 = vmatmul.bf16.gmra.mxu0 %v806
  %v1354 = vpop.f32.mrf.mxu0
  %v1355 = vadd.f32 %v242, %v1354
  %v1356 = vpop.f32.mrf.mxu0
  %v1357 = vadd.f32 %v242, %v1356
  %1358 = vmatmul.bf16.gmra.mxu0 %v810
  %v1359 = vpop.f32.mrf.mxu0
  %v1360 = vadd.f32 %v242, %v1359
  %v1361 = vpop.f32.mrf.mxu0
  %v1362 = vadd.f32 %v242, %v1361
  %1363 = vmatmul.bf16.gmra.mxu0 %v814
  %v1364 = vpop.f32.mrf.mxu0
  %v1365 = vadd.f32 %v242, %v1364
  %v1366 = vpop.f32.mrf.mxu0
  %v1367 = vadd.f32 %v242, %v1366
  %1368 = vmatmul.bf16.gmra.mxu0 %v818
  %v1369 = vpop.f32.mrf.mxu0
  %v1370 = vadd.f32 %v242, %v1369
  %v1371 = vpop.f32.mrf.mxu0
  %v1372 = vadd.f32 %v242, %v1371
  %1373 = vmatmul.bf16.gmra.mxu0 %v822
  %v1374 = vpop.f32.mrf.mxu0
  %v1375 = vadd.f32 %v242, %v1374
  %v1376 = vpop.f32.mrf.mxu0
  %v1377 = vadd.f32 %v242, %v1376
  %1378 = vmatmul.bf16.gmra.mxu0 %v826
  %v1379 = vpop.f32.mrf.mxu0
  %v1380 = vadd.f32 %v242, %v1379
  %v1381 = vpop.f32.mrf.mxu0
  %v1382 = vadd.f32 %v242, %v1381
  %1383 = vmatmul.bf16.gmra.mxu0 %v830
  %v1384 = vpop.f32.mrf.mxu0
  %v1385 = vadd.f32 %v242, %v1384
  %v1386 = vpop.f32.mrf.mxu0
  %v1387 = vadd.f32 %v242, %v1386
  %1388 = vmatmul.bf16.gmra.mxu0 %v834
  %v1389 = vpop.f32.mrf.mxu0
  %v1390 = vadd.f32 %v242, %v1389
  %v1391 = vpop.f32.mrf.mxu0
  %v1392 = vadd.f32 %v242, %v1391
  %1393 = vmatmul.bf16.gmra.mxu0 %v838
  %v1394 = vpop.f32.mrf.mxu0
  %v1395 = vadd.f32 %v242, %v1394
  %v1396 = vpop.f32.mrf.mxu0
  %v1397 = vadd.f32 %v242, %v1396
  %1398 = vmatmul.bf16.gmra.mxu0 %v842
  %v1399 = vpop.f32.mrf.mxu0
  %v1400 = vadd.f32 %v242, %v1399
  %v1401 = vpop.f32.mrf.mxu0
  %v1402 = vadd.f32 %v242, %v1401
  %1403 = vmatmul.bf16.gmra.mxu0 %v846
  %v1404 = vpop.f32.mrf.mxu0
  %v1405 = vadd.f32 %v242, %v1404
  %v1406 = vpop.f32.mrf.mxu0
  %v1407 = vadd.f32 %v242, %v1406
  %1408 = vmatmul.bf16.gmra.mxu0 %v850
  %v1409 = vpop.f32.mrf.mxu0
  %v1410 = vadd.f32 %v242, %v1409
  %v1411 = vpop.f32.mrf.mxu0
  %v1412 = vadd.f32 %v242, %v1411
  %1413 = vmatmul.bf16.gmra.mxu0 %v854
  %v1414 = vpop.f32.mrf.mxu0
  %v1415 = vadd.f32 %v242, %v1414
  %v1416 = vpop.f32.mrf.mxu0
  %v1417 = vadd.f32 %v242, %v1416
  %1418 = vmatmul.bf16.gmra.mxu0 %v858
  %v1419 = vpop.f32.mrf.mxu0
  %v1420 = vadd.f32 %v242, %v1419
  %v1421 = vpop.f32.mrf.mxu0
  %v1422 = vadd.f32 %v242, %v1421
  %1423 = vmatmul.bf16.gmra.mxu0 %v862
  %v1424 = vpop.f32.mrf.mxu0
  %v1425 = vadd.f32 %v242, %v1424
  %v1426 = vpop.f32.mrf.mxu0
  %v1427 = vadd.f32 %v242, %v1426
  %1428 = vmatmul.bf16.gmra.mxu0 %v866
  %v1429 = vpop.f32.mrf.mxu0
  %v1430 = vadd.f32 %v242, %v1429
  %v1431 = vpop.f32.mrf.mxu0
  %v1432 = vadd.f32 %v242, %v1431
  %1433 = vmatmul.bf16.gmra.mxu0 %v870
  %v1434 = vpop.f32.mrf.mxu0
  %v1435 = vadd.f32 %v242, %v1434
  %v1436 = vpop.f32.mrf.mxu0
  %v1437 = vadd.f32 %v242, %v1436
  %1438 = vmatmul.bf16.gmra.mxu0 %v874
  %v1439 = vpop.f32.mrf.mxu0
  %v1440 = vadd.f32 %v242, %v1439
  %v1441 = vpop.f32.mrf.mxu0
  %v1442 = vadd.f32 %v242, %v1441
  %1443 = vmatmul.bf16.gmra.mxu0 %v878
  %v1444 = vpop.f32.mrf.mxu0
  %v1445 = vadd.f32 %v242, %v1444
  %v1446 = vpop.f32.mrf.mxu0
  %v1447 = vadd.f32 %v242, %v1446
  %1448 = vmatmul.bf16.gmra.mxu0 %v882
  %v1449 = vpop.f32.mrf.mxu0
  %v1450 = vadd.f32 %v242, %v1449
  %v1451 = vpop.f32.mrf.mxu0
  %v1452 = vadd.f32 %v242, %v1451
  %1453 = vmatmul.bf16.gmra.mxu0 %v886
  %v1454 = vpop.f32.mrf.mxu0
  %v1455 = vadd.f32 %v242, %v1454
  %v1456 = vpop.f32.mrf.mxu0
  %v1457 = vadd.f32 %v242, %v1456
  %1458 = vmatmul.bf16.gmra.mxu0 %v890
  %v1459 = vpop.f32.mrf.mxu0
  %v1460 = vadd.f32 %v242, %v1459
  %v1461 = vpop.f32.mrf.mxu0
  %1462 = vdwg.mxu0
  %1463 = vmatpush.bf16.msra.mxu0 %v1201
  %1464 = vmatpush.bf16.msra.mxu0 %v1200
  %1465 = vmatpush.bf16.msra.mxu0 %v1199
  %1466 = vmatpush.bf16.msra.mxu0 %v1198
  %1467 = vmatpush.bf16.msra.mxu0 %v1197
  %1468 = vmatpush.bf16.msra.mxu0 %v1196
  %1469 = vmatpush.bf16.msra.mxu0 %v1195
  %1470 = vmatpush.bf16.msra.mxu0 %v1194
  %1471 = vmatmul.bf16.gmra.mxu0 %v731
  %v1472 = vpop.f32.mrf.mxu0
  %v1473 = vadd.f32 %v1260, %v1472
  %v1474 = vpop.f32.mrf.mxu0
  %v1475 = vadd.f32 %v1262, %v1474
  %1476 = vmatmul.bf16.gmra.mxu0 %v735
  %v1477 = vpop.f32.mrf.mxu0
  %v1478 = vadd.f32 %v1265, %v1477
  %v1479 = vpop.f32.mrf.mxu0
  %v1480 = vadd.f32 %v1267, %v1479
  %1481 = vmatmul.bf16.gmra.mxu0 %v739
  %v1482 = vpop.f32.mrf.mxu0
  %v1483 = vadd.f32 %v1270, %v1482
  %v1484 = vpop.f32.mrf.mxu0
  %v1485 = vadd.f32 %v1272, %v1484
  %1486 = vmatmul.bf16.gmra.mxu0 %v743
  %v1487 = vpop.f32.mrf.mxu0
  %v1488 = vadd.f32 %v1275, %v1487
  %v1489 = vpop.f32.mrf.mxu0
  %v1490 = vadd.f32 %v1277, %v1489
  %1491 = vmatmul.bf16.gmra.mxu0 %v747
  %v1492 = vpop.f32.mrf.mxu0
  %v1493 = vadd.f32 %v1280, %v1492
  %v1494 = vpop.f32.mrf.mxu0
  %v1495 = vadd.f32 %v1282, %v1494
  %1496 = vmatmul.bf16.gmra.mxu0 %v751
  %v1497 = vpop.f32.mrf.mxu0
  %v1498 = vadd.f32 %v1285, %v1497
  %v1499 = vpop.f32.mrf.mxu0
  %v1500 = vadd.f32 %v1287, %v1499
  %1501 = vmatmul.bf16.gmra.mxu0 %v755
  %v1502 = vpop.f32.mrf.mxu0
  %v1503 = vadd.f32 %v1290, %v1502
  %v1504 = vpop.f32.mrf.mxu0
  %v1505 = vadd.f32 %v1292, %v1504
  %1506 = vmatmul.bf16.gmra.mxu0 %v759
  %v1507 = vpop.f32.mrf.mxu0
  %v1508 = vadd.f32 %v1295, %v1507
  %v1509 = vpop.f32.mrf.mxu0
  %v1510 = vadd.f32 %v1297, %v1509
  %1511 = vmatmul.bf16.gmra.mxu0 %v763
  %v1512 = vpop.f32.mrf.mxu0
  %v1513 = vadd.f32 %v1300, %v1512
  %v1514 = vpop.f32.mrf.mxu0
  %v1515 = vadd.f32 %v1302, %v1514
  %1516 = vmatmul.bf16.gmra.mxu0 %v767
  %v1517 = vpop.f32.mrf.mxu0
  %v1518 = vadd.f32 %v1305, %v1517
  %v1519 = vpop.f32.mrf.mxu0
  %v1520 = vadd.f32 %v1307, %v1519
  %1521 = vmatmul.bf16.gmra.mxu0 %v771
  %v1522 = vpop.f32.mrf.mxu0
  %v1523 = vadd.f32 %v1310, %v1522
  %v1524 = vpop.f32.mrf.mxu0
  %v1525 = vadd.f32 %v1312, %v1524
  %1526 = vmatmul.bf16.gmra.mxu0 %v775
  %v1527 = vpop.f32.mrf.mxu0
  %v1528 = vadd.f32 %v1315, %v1527
  %v1529 = vpop.f32.mrf.mxu0
  %v1530 = vadd.f32 %v1317, %v1529
  %1531 = vmatmul.bf16.gmra.mxu0 %v779
  %v1532 = vpop.f32.mrf.mxu0
  %v1533 = vadd.f32 %v1320, %v1532
  %v1534 = vpop.f32.mrf.mxu0
  %v1535 = vadd.f32 %v1322, %v1534
  %1536 = vmatmul.bf16.gmra.mxu0 %v783
  %v1537 = vpop.f32.mrf.mxu0
  %v1538 = vadd.f32 %v1325, %v1537
  %v1539 = vpop.f32.mrf.mxu0
  %v1540 = vadd.f32 %v1327, %v1539
  %1541 = vmatmul.bf16.gmra.mxu0 %v787
  %v1542 = vpop.f32.mrf.mxu0
  %v1543 = vadd.f32 %v1330, %v1542
  %v1544 = vpop.f32.mrf.mxu0
  %v1545 = vadd.f32 %v1332, %v1544
  %1546 = vmatmul.bf16.gmra.mxu0 %v791
  %v1547 = vpop.f32.mrf.mxu0
  %v1548 = vadd.f32 %v1335, %v1547
  %v1549 = vpop.f32.mrf.mxu0
  %v1550 = vadd.f32 %v1337, %v1549
  %1551 = vmatmul.bf16.gmra.mxu0 %v795
  %v1552 = vpop.f32.mrf.mxu0
  %v1553 = vadd.f32 %v1340, %v1552
  %v1554 = vpop.f32.mrf.mxu0
  %v1555 = vadd.f32 %v1342, %v1554
  %1556 = vmatmul.bf16.gmra.mxu0 %v799
  %v1557 = vpop.f32.mrf.mxu0
  %v1558 = vadd.f32 %v1345, %v1557
  %v1559 = vpop.f32.mrf.mxu0
  %v1560 = vadd.f32 %v1347, %v1559
  %1561 = vmatmul.bf16.gmra.mxu0 %v803
  %v1562 = vpop.f32.mrf.mxu0
  %v1563 = vadd.f32 %v1350, %v1562
  %v1564 = vpop.f32.mrf.mxu0
  %v1565 = vadd.f32 %v1352, %v1564
  %1566 = vmatmul.bf16.gmra.mxu0 %v807
  %v1567 = vpop.f32.mrf.mxu0
  %v1568 = vadd.f32 %v1355, %v1567
  %v1569 = vpop.f32.mrf.mxu0
  %v1570 = vadd.f32 %v1357, %v1569
  %1571 = vmatmul.bf16.gmra.mxu0 %v811
  %v1572 = vpop.f32.mrf.mxu0
  %v1573 = vadd.f32 %v1360, %v1572
  %v1574 = vpop.f32.mrf.mxu0
  %v1575 = vadd.f32 %v1362, %v1574
  %1576 = vmatmul.bf16.gmra.mxu0 %v815
  %v1577 = vpop.f32.mrf.mxu0
  %v1578 = vadd.f32 %v1365, %v1577
  %v1579 = vpop.f32.mrf.mxu0
  %v1580 = vadd.f32 %v1367, %v1579
  %1581 = vmatmul.bf16.gmra.mxu0 %v819
  %v1582 = vpop.f32.mrf.mxu0
  %v1583 = vadd.f32 %v1370, %v1582
  %v1584 = vpop.f32.mrf.mxu0
  %v1585 = vadd.f32 %v1372, %v1584
  %1586 = vmatmul.bf16.gmra.mxu0 %v823
  %v1587 = vpop.f32.mrf.mxu0
  %v1588 = vadd.f32 %v1375, %v1587
  %v1589 = vpop.f32.mrf.mxu0
  %v1590 = vadd.f32 %v1377, %v1589
  %1591 = vmatmul.bf16.gmra.mxu0 %v827
  %v1592 = vpop.f32.mrf.mxu0
  %v1593 = vadd.f32 %v1380, %v1592
  %v1594 = vpop.f32.mrf.mxu0
  %v1595 = vadd.f32 %v1382, %v1594
  %1596 = vmatmul.bf16.gmra.mxu0 %v831
  %v1597 = vpop.f32.mrf.mxu0
  %v1598 = vadd.f32 %v1385, %v1597
  %v1599 = vpop.f32.mrf.mxu0
  %v1600 = vadd.f32 %v1387, %v1599
  %1601 = vmatmul.bf16.gmra.mxu0 %v835
  %v1602 = vpop.f32.mrf.mxu0
  %v1603 = vadd.f32 %v1390, %v1602
  %v1604 = vpop.f32.mrf.mxu0
  %v1605 = vadd.f32 %v1392, %v1604
  %1606 = vmatmul.bf16.gmra.mxu0 %v839
  %v1607 = vpop.f32.mrf.mxu0
  %v1608 = vadd.f32 %v1395, %v1607
  %v1609 = vpop.f32.mrf.mxu0
  %v1610 = vadd.f32 %v1397, %v1609
  %1611 = vmatmul.bf16.gmra.mxu0 %v843
  %v1612 = vpop.f32.mrf.mxu0
  %v1613 = vadd.f32 %v1400, %v1612
  %v1614 = vpop.f32.mrf.mxu0
  %v1615 = vadd.f32 %v1402, %v1614
  %1616 = vmatmul.bf16.gmra.mxu0 %v847
  %v1617 = vpop.f32.mrf.mxu0
  %v1618 = vadd.f32 %v1405, %v1617
  %v1619 = vpop.f32.mrf.mxu0
  %v1620 = vadd.f32 %v1407, %v1619
  %1621 = vmatmul.bf16.gmra.mxu0 %v851
  %v1622 = vpop.f32.mrf.mxu0
  %v1623 = vadd.f32 %v1410, %v1622
  %v1624 = vpop.f32.mrf.mxu0
  %v1625 = vadd.f32 %v1412, %v1624
  %1626 = vmatmul.bf16.gmra.mxu0 %v855
  %v1627 = vpop.f32.mrf.mxu0
  %v1628 = vadd.f32 %v1415, %v1627
  %v1629 = vpop.f32.mrf.mxu0
  %v1630 = vadd.f32 %v1417, %v1629
  %1631 = vmatmul.bf16.gmra.mxu0 %v859
  %v1632 = vpop.f32.mrf.mxu0
  %v1633 = vadd.f32 %v1420, %v1632
  %v1634 = vpop.f32.mrf.mxu0
  %v1635 = vadd.f32 %v1422, %v1634
  %1636 = vmatmul.bf16.gmra.mxu0 %v863
  %v1637 = vpop.f32.mrf.mxu0
  %v1638 = vadd.f32 %v1425, %v1637
  %v1639 = vpop.f32.mrf.mxu0
  %v1640 = vadd.f32 %v1427, %v1639
  %1641 = vmatmul.bf16.gmra.mxu0 %v867
  %v1642 = vpop.f32.mrf.mxu0
  %v1643 = vadd.f32 %v1430, %v1642
  %v1644 = vpop.f32.mrf.mxu0
  %v1645 = vadd.f32 %v1432, %v1644
  %1646 = vmatmul.bf16.gmra.mxu0 %v871
  %v1647 = vpop.f32.mrf.mxu0
  %v1648 = vadd.f32 %v1435, %v1647
  %v1649 = vpop.f32.mrf.mxu0
  %v1650 = vadd.f32 %v1437, %v1649
  %1651 = vmatmul.bf16.gmra.mxu0 %v875
  %v1652 = vpop.f32.mrf.mxu0
  %v1653 = vadd.f32 %v1440, %v1652
  %v1654 = vpop.f32.mrf.mxu0
  %v1655 = vadd.f32 %v1442, %v1654
  %1656 = vmatmul.bf16.gmra.mxu0 %v879
  %v1657 = vpop.f32.mrf.mxu0
  %v1658 = vadd.f32 %v1445, %v1657
  %v1659 = vpop.f32.mrf.mxu0
  %v1660 = vadd.f32 %v1447, %v1659
  %1661 = vmatmul.bf16.gmra.mxu0 %v883
  %v1662 = vpop.f32.mrf.mxu0
  %v1663 = vadd.f32 %v1450, %v1662
  %v1664 = vpop.f32.mrf.mxu0
  %v1665 = vadd.f32 %v1452, %v1664
  %1666 = vmatmul.bf16.gmra.mxu0 %v887
  %v1667 = vpop.f32.mrf.mxu0
  %v1668 = vadd.f32 %v1455, %v1667
  %v1669 = vpop.f32.mrf.mxu0
  %v1670 = vadd.f32 %v1457, %v1669
  %1671 = vmatmul.bf16.gmra.mxu0 %v891
  %v1672 = vpop.f32.mrf.mxu0
  %v1673 = vadd.f32 %v1460, %v1672
  %v1674 = vpop.f32.mrf.mxu0
  %1675 = vdwg.mxu0
  %1676 = vmatpush.bf16.msra.mxu0 %v1209
  %1677 = vmatpush.bf16.msra.mxu0 %v1208
  %1678 = vmatpush.bf16.msra.mxu0 %v1207
  %1679 = vmatpush.bf16.msra.mxu0 %v1206
  %1680 = vmatpush.bf16.msra.mxu0 %v1205
  %1681 = vmatpush.bf16.msra.mxu0 %v1204
  %1682 = vmatpush.bf16.msra.mxu0 %v1203
  %1683 = vmatpush.bf16.msra.mxu0 %v1202
  %1684 = vmatmul.bf16.gmra.mxu0 %v732
  %v1685 = vpop.f32.mrf.mxu0
  %v1686 = vadd.f32 %v1473, %v1685
  %v1687 = vpop.f32.mrf.mxu0
  %v1688 = vadd.f32 %v1475, %v1687
  %1689 = vmatmul.bf16.gmra.mxu0 %v736
  %v1690 = vpop.f32.mrf.mxu0
  %v1691 = vadd.f32 %v1478, %v1690
  %v1692 = vpop.f32.mrf.mxu0
  %v1693 = vadd.f32 %v1480, %v1692
  %1694 = vmatmul.bf16.gmra.mxu0 %v740
  %v1695 = vpop.f32.mrf.mxu0
  %v1696 = vadd.f32 %v1483, %v1695
  %v1697 = vpop.f32.mrf.mxu0
  %v1698 = vadd.f32 %v1485, %v1697
  %1699 = vmatmul.bf16.gmra.mxu0 %v744
  %v1700 = vpop.f32.mrf.mxu0
  %v1701 = vadd.f32 %v1488, %v1700
  %v1702 = vpop.f32.mrf.mxu0
  %v1703 = vadd.f32 %v1490, %v1702
  %1704 = vmatmul.bf16.gmra.mxu0 %v748
  %v1705 = vpop.f32.mrf.mxu0
  %v1706 = vadd.f32 %v1493, %v1705
  %v1707 = vpop.f32.mrf.mxu0
  %v1708 = vadd.f32 %v1495, %v1707
  %1709 = vmatmul.bf16.gmra.mxu0 %v752
  %v1710 = vpop.f32.mrf.mxu0
  %v1711 = vadd.f32 %v1498, %v1710
  %v1712 = vpop.f32.mrf.mxu0
  %v1713 = vadd.f32 %v1500, %v1712
  %1714 = vmatmul.bf16.gmra.mxu0 %v756
  %v1715 = vpop.f32.mrf.mxu0
  %v1716 = vadd.f32 %v1503, %v1715
  %v1717 = vpop.f32.mrf.mxu0
  %v1718 = vadd.f32 %v1505, %v1717
  %1719 = vmatmul.bf16.gmra.mxu0 %v760
  %v1720 = vpop.f32.mrf.mxu0
  %v1721 = vadd.f32 %v1508, %v1720
  %v1722 = vpop.f32.mrf.mxu0
  %v1723 = vadd.f32 %v1510, %v1722
  %1724 = vmatmul.bf16.gmra.mxu0 %v764
  %v1725 = vpop.f32.mrf.mxu0
  %v1726 = vadd.f32 %v1513, %v1725
  %v1727 = vpop.f32.mrf.mxu0
  %v1728 = vadd.f32 %v1515, %v1727
  %1729 = vmatmul.bf16.gmra.mxu0 %v768
  %v1730 = vpop.f32.mrf.mxu0
  %v1731 = vadd.f32 %v1518, %v1730
  %v1732 = vpop.f32.mrf.mxu0
  %v1733 = vadd.f32 %v1520, %v1732
  %1734 = vmatmul.bf16.gmra.mxu0 %v772
  %v1735 = vpop.f32.mrf.mxu0
  %v1736 = vadd.f32 %v1523, %v1735
  %v1737 = vpop.f32.mrf.mxu0
  %v1738 = vadd.f32 %v1525, %v1737
  %1739 = vmatmul.bf16.gmra.mxu0 %v776
  %v1740 = vpop.f32.mrf.mxu0
  %v1741 = vadd.f32 %v1528, %v1740
  %v1742 = vpop.f32.mrf.mxu0
  %v1743 = vadd.f32 %v1530, %v1742
  %1744 = vmatmul.bf16.gmra.mxu0 %v780
  %v1745 = vpop.f32.mrf.mxu0
  %v1746 = vadd.f32 %v1533, %v1745
  %v1747 = vpop.f32.mrf.mxu0
  %v1748 = vadd.f32 %v1535, %v1747
  %1749 = vmatmul.bf16.gmra.mxu0 %v784
  %v1750 = vpop.f32.mrf.mxu0
  %v1751 = vadd.f32 %v1538, %v1750
  %v1752 = vpop.f32.mrf.mxu0
  %v1753 = vadd.f32 %v1540, %v1752
  %1754 = vmatmul.bf16.gmra.mxu0 %v788
  %v1755 = vpop.f32.mrf.mxu0
  %v1756 = vadd.f32 %v1543, %v1755
  %v1757 = vpop.f32.mrf.mxu0
  %v1758 = vadd.f32 %v1545, %v1757
  %1759 = vmatmul.bf16.gmra.mxu0 %v792
  %v1760 = vpop.f32.mrf.mxu0
  %v1761 = vadd.f32 %v1548, %v1760
  %v1762 = vpop.f32.mrf.mxu0
  %v1763 = vadd.f32 %v1550, %v1762
  %1764 = vmatmul.bf16.gmra.mxu0 %v796
  %v1765 = vpop.f32.mrf.mxu0
  %v1766 = vadd.f32 %v1553, %v1765
  %v1767 = vpop.f32.mrf.mxu0
  %v1768 = vadd.f32 %v1555, %v1767
  %1769 = vmatmul.bf16.gmra.mxu0 %v800
  %v1770 = vpop.f32.mrf.mxu0
  %v1771 = vadd.f32 %v1558, %v1770
  %v1772 = vpop.f32.mrf.mxu0
  %v1773 = vadd.f32 %v1560, %v1772
  %1774 = vmatmul.bf16.gmra.mxu0 %v804
  %v1775 = vpop.f32.mrf.mxu0
  %v1776 = vadd.f32 %v1563, %v1775
  %v1777 = vpop.f32.mrf.mxu0
  %v1778 = vadd.f32 %v1565, %v1777
  %1779 = vmatmul.bf16.gmra.mxu0 %v808
  %v1780 = vpop.f32.mrf.mxu0
  %v1781 = vadd.f32 %v1568, %v1780
  %v1782 = vpop.f32.mrf.mxu0
  %v1783 = vadd.f32 %v1570, %v1782
  %1784 = vmatmul.bf16.gmra.mxu0 %v812
  %v1785 = vpop.f32.mrf.mxu0
  %v1786 = vadd.f32 %v1573, %v1785
  %v1787 = vpop.f32.mrf.mxu0
  %v1788 = vadd.f32 %v1575, %v1787
  %1789 = vmatmul.bf16.gmra.mxu0 %v816
  %v1790 = vpop.f32.mrf.mxu0
  %v1791 = vadd.f32 %v1578, %v1790
  %v1792 = vpop.f32.mrf.mxu0
  %v1793 = vadd.f32 %v1580, %v1792
  %1794 = vmatmul.bf16.gmra.mxu0 %v820
  %v1795 = vpop.f32.mrf.mxu0
  %v1796 = vadd.f32 %v1583, %v1795
  %v1797 = vpop.f32.mrf.mxu0
  %v1798 = vadd.f32 %v1585, %v1797
  %1799 = vmatmul.bf16.gmra.mxu0 %v824
  %v1800 = vpop.f32.mrf.mxu0
  %v1801 = vadd.f32 %v1588, %v1800
  %v1802 = vpop.f32.mrf.mxu0
  %v1803 = vadd.f32 %v1590, %v1802
  %1804 = vmatmul.bf16.gmra.mxu0 %v828
  %v1805 = vpop.f32.mrf.mxu0
  %v1806 = vadd.f32 %v1593, %v1805
  %v1807 = vpop.f32.mrf.mxu0
  %v1808 = vadd.f32 %v1595, %v1807
  %1809 = vmatmul.bf16.gmra.mxu0 %v832
  %v1810 = vpop.f32.mrf.mxu0
  %v1811 = vadd.f32 %v1598, %v1810
  %v1812 = vpop.f32.mrf.mxu0
  %v1813 = vadd.f32 %v1600, %v1812
  %1814 = vmatmul.bf16.gmra.mxu0 %v836
  %v1815 = vpop.f32.mrf.mxu0
  %v1816 = vadd.f32 %v1603, %v1815
  %v1817 = vpop.f32.mrf.mxu0
  %v1818 = vadd.f32 %v1605, %v1817
  %1819 = vmatmul.bf16.gmra.mxu0 %v840
  %v1820 = vpop.f32.mrf.mxu0
  %v1821 = vadd.f32 %v1608, %v1820
  %v1822 = vpop.f32.mrf.mxu0
  %v1823 = vadd.f32 %v1610, %v1822
  %1824 = vmatmul.bf16.gmra.mxu0 %v844
  %v1825 = vpop.f32.mrf.mxu0
  %v1826 = vadd.f32 %v1613, %v1825
  %v1827 = vpop.f32.mrf.mxu0
  %v1828 = vadd.f32 %v1615, %v1827
  %1829 = vmatmul.bf16.gmra.mxu0 %v848
  %v1830 = vpop.f32.mrf.mxu0
  %v1831 = vadd.f32 %v1618, %v1830
  %v1832 = vpop.f32.mrf.mxu0
  %v1833 = vadd.f32 %v1620, %v1832
  %1834 = vmatmul.bf16.gmra.mxu0 %v852
  %v1835 = vpop.f32.mrf.mxu0
  %v1836 = vadd.f32 %v1623, %v1835
  %v1837 = vpop.f32.mrf.mxu0
  %v1838 = vadd.f32 %v1625, %v1837
  %1839 = vmatmul.bf16.gmra.mxu0 %v856
  %v1840 = vpop.f32.mrf.mxu0
  %v1841 = vadd.f32 %v1628, %v1840
  %v1842 = vpop.f32.mrf.mxu0
  %v1843 = vadd.f32 %v1630, %v1842
  %1844 = vmatmul.bf16.gmra.mxu0 %v860
  %v1845 = vpop.f32.mrf.mxu0
  %v1846 = vadd.f32 %v1633, %v1845
  %v1847 = vpop.f32.mrf.mxu0
  %v1848 = vadd.f32 %v1635, %v1847
  %1849 = vmatmul.bf16.gmra.mxu0 %v864
  %v1850 = vpop.f32.mrf.mxu0
  %v1851 = vadd.f32 %v1638, %v1850
  %v1852 = vpop.f32.mrf.mxu0
  %v1853 = vadd.f32 %v1640, %v1852
  %1854 = vmatmul.bf16.gmra.mxu0 %v868
  %v1855 = vpop.f32.mrf.mxu0
  %v1856 = vadd.f32 %v1643, %v1855
  %v1857 = vpop.f32.mrf.mxu0
  %v1858 = vadd.f32 %v1645, %v1857
  %1859 = vmatmul.bf16.gmra.mxu0 %v872
  %v1860 = vpop.f32.mrf.mxu0
  %v1861 = vadd.f32 %v1648, %v1860
  %v1862 = vpop.f32.mrf.mxu0
  %v1863 = vadd.f32 %v1650, %v1862
  %1864 = vmatmul.bf16.gmra.mxu0 %v876
  %v1865 = vpop.f32.mrf.mxu0
  %v1866 = vadd.f32 %v1653, %v1865
  %v1867 = vpop.f32.mrf.mxu0
  %v1868 = vadd.f32 %v1655, %v1867
  %1869 = vmatmul.bf16.gmra.mxu0 %v880
  %v1870 = vpop.f32.mrf.mxu0
  %v1871 = vadd.f32 %v1658, %v1870
  %v1872 = vpop.f32.mrf.mxu0
  %v1873 = vadd.f32 %v1660, %v1872
  %1874 = vmatmul.bf16.gmra.mxu0 %v884
  %v1875 = vpop.f32.mrf.mxu0
  %v1876 = vadd.f32 %v1663, %v1875
  %v1877 = vpop.f32.mrf.mxu0
  %v1878 = vadd.f32 %v1665, %v1877
  %1879 = vmatmul.bf16.gmra.mxu0 %v888
  %v1880 = vpop.f32.mrf.mxu0
  %v1881 = vadd.f32 %v1668, %v1880
  %v1882 = vpop.f32.mrf.mxu0
  %v1883 = vadd.f32 %v1670, %v1882
  %1884 = vmatmul.bf16.gmra.mxu0 %v892
  %v1885 = vpop.f32.mrf.mxu0
  %v1886 = vadd.f32 %v1673, %v1885
  %v1887 = vpop.f32.mrf.mxu0
  %1888 = vdwg.mxu0
  %1889 = vmatpush.bf16.msra.mxu0 %v1217
  %1890 = vmatpush.bf16.msra.mxu0 %v1216
  %1891 = vmatpush.bf16.msra.mxu0 %v1215
  %1892 = vmatpush.bf16.msra.mxu0 %v1214
  %1893 = vmatpush.bf16.msra.mxu0 %v1213
  %1894 = vmatpush.bf16.msra.mxu0 %v1212
  %1895 = vmatpush.bf16.msra.mxu0 %v1211
  %1896 = vmatpush.bf16.msra.mxu0 %v1210
  %1897 = vmatmul.bf16.gmra.mxu0 %v733
  %v1898 = vpop.f32.mrf.mxu0
  %v1899 = vadd.f32 %v1686, %v1898
  %v1900 = vpop.f32.mrf.mxu0
  %v1901 = vadd.f32 %v1688, %v1900
  %1902 = vmatmul.bf16.gmra.mxu0 %v737
  %v1903 = vpop.f32.mrf.mxu0
  %v1904 = vadd.f32 %v1691, %v1903
  %v1905 = vpop.f32.mrf.mxu0
  %v1906 = vadd.f32 %v1693, %v1905
  %1907 = vmatmul.bf16.gmra.mxu0 %v741
  %v1908 = vpop.f32.mrf.mxu0
  %v1909 = vadd.f32 %v1696, %v1908
  %v1910 = vpop.f32.mrf.mxu0
  %v1911 = vadd.f32 %v1698, %v1910
  %1912 = vmatmul.bf16.gmra.mxu0 %v745
  %v1913 = vpop.f32.mrf.mxu0
  %v1914 = vadd.f32 %v1701, %v1913
  %v1915 = vpop.f32.mrf.mxu0
  %v1916 = vadd.f32 %v1703, %v1915
  %1917 = vmatmul.bf16.gmra.mxu0 %v749
  %v1918 = vpop.f32.mrf.mxu0
  %v1919 = vadd.f32 %v1706, %v1918
  %v1920 = vpop.f32.mrf.mxu0
  %v1921 = vadd.f32 %v1708, %v1920
  %1922 = vmatmul.bf16.gmra.mxu0 %v753
  %v1923 = vpop.f32.mrf.mxu0
  %v1924 = vadd.f32 %v1711, %v1923
  %v1925 = vpop.f32.mrf.mxu0
  %v1926 = vadd.f32 %v1713, %v1925
  %1927 = vmatmul.bf16.gmra.mxu0 %v757
  %v1928 = vpop.f32.mrf.mxu0
  %v1929 = vadd.f32 %v1716, %v1928
  %v1930 = vpop.f32.mrf.mxu0
  %v1931 = vadd.f32 %v1718, %v1930
  %1932 = vmatmul.bf16.gmra.mxu0 %v761
  %v1933 = vpop.f32.mrf.mxu0
  %v1934 = vadd.f32 %v1721, %v1933
  %v1935 = vpop.f32.mrf.mxu0
  %v1936 = vadd.f32 %v1723, %v1935
  %1937 = vmatmul.bf16.gmra.mxu0 %v765
  %v1938 = vpop.f32.mrf.mxu0
  %v1939 = vadd.f32 %v1726, %v1938
  %v1940 = vpop.f32.mrf.mxu0
  %v1941 = vadd.f32 %v1728, %v1940
  %1942 = vmatmul.bf16.gmra.mxu0 %v769
  %v1943 = vpop.f32.mrf.mxu0
  %v1944 = vadd.f32 %v1731, %v1943
  %v1945 = vpop.f32.mrf.mxu0
  %v1946 = vadd.f32 %v1733, %v1945
  %1947 = vmatmul.bf16.gmra.mxu0 %v773
  %v1948 = vpop.f32.mrf.mxu0
  %v1949 = vadd.f32 %v1736, %v1948
  %v1950 = vpop.f32.mrf.mxu0
  %v1951 = vadd.f32 %v1738, %v1950
  %1952 = vmatmul.bf16.gmra.mxu0 %v777
  %v1953 = vpop.f32.mrf.mxu0
  %v1954 = vadd.f32 %v1741, %v1953
  %v1955 = vpop.f32.mrf.mxu0
  %v1956 = vadd.f32 %v1743, %v1955
  %1957 = vmatmul.bf16.gmra.mxu0 %v781
  %v1958 = vpop.f32.mrf.mxu0
  %v1959 = vadd.f32 %v1746, %v1958
  %v1960 = vpop.f32.mrf.mxu0
  %v1961 = vadd.f32 %v1748, %v1960
  %1962 = vmatmul.bf16.gmra.mxu0 %v785
  %v1963 = vpop.f32.mrf.mxu0
  %v1964 = vadd.f32 %v1751, %v1963
  %v1965 = vpop.f32.mrf.mxu0
  %v1966 = vadd.f32 %v1753, %v1965
  %1967 = vmatmul.bf16.gmra.mxu0 %v789
  %v1968 = vpop.f32.mrf.mxu0
  %v1969 = vadd.f32 %v1756, %v1968
  %v1970 = vpop.f32.mrf.mxu0
  %v1971 = vadd.f32 %v1758, %v1970
  %1972 = vmatmul.bf16.gmra.mxu0 %v793
  %v1973 = vpop.f32.mrf.mxu0
  %v1974 = vadd.f32 %v1761, %v1973
  %v1975 = vpop.f32.mrf.mxu0
  %v1976 = vadd.f32 %v1763, %v1975
  %1977 = vmatmul.bf16.gmra.mxu0 %v797
  %v1978 = vpop.f32.mrf.mxu0
  %v1979 = vadd.f32 %v1766, %v1978
  %v1980 = vpop.f32.mrf.mxu0
  %v1981 = vadd.f32 %v1768, %v1980
  %1982 = vmatmul.bf16.gmra.mxu0 %v801
  %v1983 = vpop.f32.mrf.mxu0
  %v1984 = vadd.f32 %v1771, %v1983
  %v1985 = vpop.f32.mrf.mxu0
  %v1986 = vadd.f32 %v1773, %v1985
  %1987 = vmatmul.bf16.gmra.mxu0 %v805
  %v1988 = vpop.f32.mrf.mxu0
  %v1989 = vadd.f32 %v1776, %v1988
  %v1990 = vpop.f32.mrf.mxu0
  %v1991 = vadd.f32 %v1778, %v1990
  %1992 = vmatmul.bf16.gmra.mxu0 %v809
  %v1993 = vpop.f32.mrf.mxu0
  %v1994 = vadd.f32 %v1781, %v1993
  %v1995 = vpop.f32.mrf.mxu0
  %v1996 = vadd.f32 %v1783, %v1995
  %1997 = vmatmul.bf16.gmra.mxu0 %v813
  %v1998 = vpop.f32.mrf.mxu0
  %v1999 = vadd.f32 %v1786, %v1998
  %v2000 = vpop.f32.mrf.mxu0
  %v2001 = vadd.f32 %v1788, %v2000
  %2002 = vmatmul.bf16.gmra.mxu0 %v817
  %v2003 = vpop.f32.mrf.mxu0
  %v2004 = vadd.f32 %v1791, %v2003
  %v2005 = vpop.f32.mrf.mxu0
  %v2006 = vadd.f32 %v1793, %v2005
  %2007 = vmatmul.bf16.gmra.mxu0 %v821
  %v2008 = vpop.f32.mrf.mxu0
  %v2009 = vadd.f32 %v1796, %v2008
  %v2010 = vpop.f32.mrf.mxu0
  %v2011 = vadd.f32 %v1798, %v2010
  %2012 = vmatmul.bf16.gmra.mxu0 %v825
  %v2013 = vpop.f32.mrf.mxu0
  %v2014 = vadd.f32 %v1801, %v2013
  %v2015 = vpop.f32.mrf.mxu0
  %v2016 = vadd.f32 %v1803, %v2015
  %2017 = vmatmul.bf16.gmra.mxu0 %v829
  %v2018 = vpop.f32.mrf.mxu0
  %v2019 = vadd.f32 %v1806, %v2018
  %v2020 = vpop.f32.mrf.mxu0
  %v2021 = vadd.f32 %v1808, %v2020
  %2022 = vmatmul.bf16.gmra.mxu0 %v833
  %v2023 = vpop.f32.mrf.mxu0
  %v2024 = vadd.f32 %v1811, %v2023
  %v2025 = vpop.f32.mrf.mxu0
  %v2026 = vadd.f32 %v1813, %v2025
  %2027 = vmatmul.bf16.gmra.mxu0 %v837
  %v2028 = vpop.f32.mrf.mxu0
  %v2029 = vadd.f32 %v1816, %v2028
  %v2030 = vpop.f32.mrf.mxu0
  %v2031 = vadd.f32 %v1818, %v2030
  %2032 = vmatmul.bf16.gmra.mxu0 %v841
  %v2033 = vpop.f32.mrf.mxu0
  %v2034 = vadd.f32 %v1821, %v2033
  %v2035 = vpop.f32.mrf.mxu0
  %v2036 = vadd.f32 %v1823, %v2035
  %2037 = vmatmul.bf16.gmra.mxu0 %v845
  %v2038 = vpop.f32.mrf.mxu0
  %v2039 = vadd.f32 %v1826, %v2038
  %v2040 = vpop.f32.mrf.mxu0
  %v2041 = vadd.f32 %v1828, %v2040
  %2042 = vmatmul.bf16.gmra.mxu0 %v849
  %v2043 = vpop.f32.mrf.mxu0
  %v2044 = vadd.f32 %v1831, %v2043
  %v2045 = vpop.f32.mrf.mxu0
  %v2046 = vadd.f32 %v1833, %v2045
  %2047 = vmatmul.bf16.gmra.mxu0 %v853
  %v2048 = vpop.f32.mrf.mxu0
  %v2049 = vadd.f32 %v1836, %v2048
  %v2050 = vpop.f32.mrf.mxu0
  %v2051 = vadd.f32 %v1838, %v2050
  %2052 = vmatmul.bf16.gmra.mxu0 %v857
  %v2053 = vpop.f32.mrf.mxu0
  %v2054 = vadd.f32 %v1841, %v2053
  %v2055 = vpop.f32.mrf.mxu0
  %v2056 = vadd.f32 %v1843, %v2055
  %2057 = vmatmul.bf16.gmra.mxu0 %v861
  %v2058 = vpop.f32.mrf.mxu0
  %v2059 = vadd.f32 %v1846, %v2058
  %v2060 = vpop.f32.mrf.mxu0
  %v2061 = vadd.f32 %v1848, %v2060
  %2062 = vmatmul.bf16.gmra.mxu0 %v865
  %v2063 = vpop.f32.mrf.mxu0
  %v2064 = vadd.f32 %v1851, %v2063
  %v2065 = vpop.f32.mrf.mxu0
  %v2066 = vadd.f32 %v1853, %v2065
  %2067 = vmatmul.bf16.gmra.mxu0 %v869
  %v2068 = vpop.f32.mrf.mxu0
  %v2069 = vadd.f32 %v1856, %v2068
  %v2070 = vpop.f32.mrf.mxu0
  %v2071 = vadd.f32 %v1858, %v2070
  %2072 = vmatmul.bf16.gmra.mxu0 %v873
  %v2073 = vpop.f32.mrf.mxu0
  %v2074 = vadd.f32 %v1861, %v2073
  %v2075 = vpop.f32.mrf.mxu0
  %v2076 = vadd.f32 %v1863, %v2075
  %2077 = vmatmul.bf16.gmra.mxu0 %v877
  %v2078 = vpop.f32.mrf.mxu0
  %v2079 = vadd.f32 %v1866, %v2078
  %v2080 = vpop.f32.mrf.mxu0
  %v2081 = vadd.f32 %v1868, %v2080
  %2082 = vmatmul.bf16.gmra.mxu0 %v881
  %v2083 = vpop.f32.mrf.mxu0
  %v2084 = vadd.f32 %v1871, %v2083
  %v2085 = vpop.f32.mrf.mxu0
  %v2086 = vadd.f32 %v1873, %v2085
  %2087 = vmatmul.bf16.gmra.mxu0 %v885
  %v2088 = vpop.f32.mrf.mxu0
  %v2089 = vadd.f32 %v1876, %v2088
  %v2090 = vpop.f32.mrf.mxu0
  %v2091 = vadd.f32 %v1878, %v2090
  %2092 = vmatmul.bf16.gmra.mxu0 %v889
  %v2093 = vpop.f32.mrf.mxu0
  %v2094 = vadd.f32 %v1881, %v2093
  %v2095 = vpop.f32.mrf.mxu0
  %v2096 = vadd.f32 %v1883, %v2095
  %2097 = vmatmul.bf16.gmra.mxu0 %v893
  %v2098 = vpop.f32.mrf.mxu0
  %v2099 = vadd.f32 %v1886, %v2098
  %v2100 = vpop.f32.mrf.mxu0
  %2101 = vdwg.mxu0
  %v2102 = vmax.f32 %v1899, 0.0
  %v2103 = vmax.f32 %v1901, 0.0
  %v2104 = vmax.f32 %v1904, 0.0
  %v2105 = vmax.f32 %v1906, 0.0
  %v2106 = vmax.f32 %v1909, 0.0
  %v2107 = vmax.f32 %v1911, 0.0
  %v2108 = vmax.f32 %v1914, 0.0
  %v2109 = vmax.f32 %v1916, 0.0
  %v2110 = vmax.f32 %v1919, 0.0
  %v2111 = vmax.f32 %v1921, 0.0
  %v2112 = vmax.f32 %v1924, 0.0
  %v2113 = vmax.f32 %v1926, 0.0
  %v2114 = vmax.f32 %v1929, 0.0
  %v2115 = vmax.f32 %v1931, 0.0
  %v2116 = vmax.f32 %v1934, 0.0
  %v2117 = vmax.f32 %v1936, 0.0
  %v2118 = vmax.f32 %v1939, 0.0
  %v2119 = vmax.f32 %v1941, 0.0
  %v2120 = vmax.f32 %v1944, 0.0
  %v2121 = vmax.f32 %v1946, 0.0
  %v2122 = vmax.f32 %v1949, 0.0
  %v2123 = vmax.f32 %v1951, 0.0
  %v2124 = vmax.f32 %v1954, 0.0
  %v2125 = vmax.f32 %v1956, 0.0
  %v2126 = vmax.f32 %v1959, 0.0
  %v2127 = vmax.f32 %v1961, 0.0
  %v2128 = vmax.f32 %v1964, 0.0
  %v2129 = vmax.f32 %v1966, 0.0
  %v2130 = vmax.f32 %v1969, 0.0
  %v2131 = vmax.f32 %v1971, 0.0
  %v2132 = vmax.f32 %v1974, 0.0
  %v2133 = vmax.f32 %v1976, 0.0
  %v2134 = vmax.f32 %v1979, 0.0
  %v2135 = vmax.f32 %v1981, 0.0
  %v2136 = vmax.f32 %v1984, 0.0
  %v2137 = vmax.f32 %v1986, 0.0
  %v2138 = vmax.f32 %v1989, 0.0
  %v2139 = vmax.f32 %v1991, 0.0
  %v2140 = vmax.f32 %v1994, 0.0
  %v2141 = vmax.f32 %v1996, 0.0
  %v2142 = vmax.f32 %v1999, 0.0
  %v2143 = vmax.f32 %v2001, 0.0
  %v2144 = vmax.f32 %v2004, 0.0
  %v2145 = vmax.f32 %v2006, 0.0
  %v2146 = vmax.f32 %v2009, 0.0
  %v2147 = vmax.f32 %v2011, 0.0
  %v2148 = vmax.f32 %v2014, 0.0
  %v2149 = vmax.f32 %v2016, 0.0
  %v2150 = vmax.f32 %v2019, 0.0
  %v2151 = vmax.f32 %v2021, 0.0
  %v2152 = vmax.f32 %v2024, 0.0
  %v2153 = vmax.f32 %v2026, 0.0
  %v2154 = vmax.f32 %v2029, 0.0
  %v2155 = vmax.f32 %v2031, 0.0
  %v2156 = vmax.f32 %v2034, 0.0
  %v2157 = vmax.f32 %v2036, 0.0
  %v2158 = vmax.f32 %v2039, 0.0
  %v2159 = vmax.f32 %v2041, 0.0
  %v2160 = vmax.f32 %v2044, 0.0
  %v2161 = vmax.f32 %v2046, 0.0
  %v2162 = vmax.f32 %v2049, 0.0
  %v2163 = vmax.f32 %v2051, 0.0
  %v2164 = vmax.f32 %v2054, 0.0
  %v2165 = vmax.f32 %v2056, 0.0
  %v2166 = vmax.f32 %v2059, 0.0
  %v2167 = vmax.f32 %v2061, 0.0
  %v2168 = vmax.f32 %v2064, 0.0
  %v2169 = vmax.f32 %v2066, 0.0
  %v2170 = vmax.f32 %v2069, 0.0
  %v2171 = vmax.f32 %v2071, 0.0
  %v2172 = vmax.f32 %v2074, 0.0
  %v2173 = vmax.f32 %v2076, 0.0
  %v2174 = vmax.f32 %v2079, 0.0
  %v2175 = vmax.f32 %v2081, 0.0
  %v2176 = vmax.f32 %v2084, 0.0
  %v2177 = vmax.f32 %v2086, 0.0
  %v2178 = vmax.f32 %v2089, 0.0
  %v2179 = vmax.f32 %v2091, 0.0
  %v2180 = vmax.f32 %v2094, 0.0
  %v2181 = vmax.f32 %v2096, 0.0
  %v2182 = vmax.f32 %v2099, 0.0
  %v2183 = vpack.c.bf16 %v2102, %v2102
  %v2184 = vpack.c.bf16 %v2103, %v2103
  %v2185 = vpack.c.bf16 %v2104, %v2104
  %v2186 = vpack.c.bf16 %v2105, %v2105
  %v2187 = vpack.c.bf16 %v2106, %v2106
  %v2188 = vpack.c.bf16 %v2107, %v2107
  %v2189 = vpack.c.bf16 %v2108, %v2108
  %v2190 = vpack.c.bf16 %v2109, %v2109
  %v2191 = vpack.c.bf16 %v2110, %v2110
  %v2192 = vpack.c.bf16 %v2111, %v2111
  %v2193 = vpack.c.bf16 %v2112, %v2112
  %v2194 = vpack.c.bf16 %v2113, %v2113
  %v2195 = vpack.c.bf16 %v2114, %v2114
  %v2196 = vpack.c.bf16 %v2115, %v2115
  %v2197 = vpack.c.bf16 %v2116, %v2116
  %v2198 = vpack.c.bf16 %v2117, %v2117
  %v2199 = vpack.c.bf16 %v2118, %v2118
  %v2200 = vpack.c.bf16 %v2119, %v2119
  %v2201 = vpack.c.bf16 %v2120, %v2120
  %v2202 = vpack.c.bf16 %v2121, %v2121
  %v2203 = vpack.c.bf16 %v2122, %v2122
  %v2204 = vpack.c.bf16 %v2123, %v2123
  %v2205 = vpack.c.bf16 %v2124, %v2124
  %v2206 = vpack.c.bf16 %v2125, %v2125
  %v2207 = vpack.c.bf16 %v2126, %v2126
  %v2208 = vpack.c.bf16 %v2127, %v2127
  %v2209 = vpack.c.bf16 %v2128, %v2128
  %v2210 = vpack.c.bf16 %v2129, %v2129
  %v2211 = vpack.c.bf16 %v2130, %v2130
  %v2212 = vpack.c.bf16 %v2131, %v2131
  %v2213 = vpack.c.bf16 %v2132, %v2132
  %v2214 = vpack.c.bf16 %v2133, %v2133
  %v2215 = vpack.c.bf16 %v2134, %v2134
  %v2216 = vpack.c.bf16 %v2135, %v2135
  %v2217 = vpack.c.bf16 %v2136, %v2136
  %v2218 = vpack.c.bf16 %v2137, %v2137
  %v2219 = vpack.c.bf16 %v2138, %v2138
  %v2220 = vpack.c.bf16 %v2139, %v2139
  %v2221 = vpack.c.bf16 %v2140, %v2140
  %v2222 = vpack.c.bf16 %v2141, %v2141
  %v2223 = vpack.c.bf16 %v2142, %v2142
  %v2224 = vpack.c.bf16 %v2143, %v2143
  %v2225 = vpack.c.bf16 %v2144, %v2144
  %v2226 = vpack.c.bf16 %v2145, %v2145
  %v2227 = vpack.c.bf16 %v2146, %v2146
  %v2228 = vpack.c.bf16 %v2147, %v2147
  %v2229 = vpack.c.bf16 %v2148, %v2148
  %v2230 = vpack.c.bf16 %v2149, %v2149
  %v2231 = vpack.c.bf16 %v2150, %v2150
  %v2232 = vpack.c.bf16 %v2151, %v2151
  %v2233 = vpack.c.bf16 %v2152, %v2152
  %v2234 = vpack.c.bf16 %v2153, %v2153
  %v2235 = vpack.c.bf16 %v2154, %v2154
  %v2236 = vpack.c.bf16 %v2155, %v2155
  %v2237 = vpack.c.bf16 %v2156, %v2156
  %v2238 = vpack.c.bf16 %v2157, %v2157
  %v2239 = vpack.c.bf16 %v2158, %v2158
  %v2240 = vpack.c.bf16 %v2159, %v2159
  %v2241 = vpack.c.bf16 %v2160, %v2160
  %v2242 = vpack.c.bf16 %v2161, %v2161
  %v2243 = vpack.c.bf16 %v2162, %v2162
  %v2244 = vpack.c.bf16 %v2163, %v2163
  %v2245 = vpack.c.bf16 %v2164, %v2164
  %v2246 = vpack.c.bf16 %v2165, %v2165
  %v2247 = vpack.c.bf16 %v2166, %v2166
  %v2248 = vpack.c.bf16 %v2167, %v2167
  %v2249 = vpack.c.bf16 %v2168, %v2168
  %v2250 = vpack.c.bf16 %v2169, %v2169
  %v2251 = vpack.c.bf16 %v2170, %v2170
  %v2252 = vpack.c.bf16 %v2171, %v2171
  %v2253 = vpack.c.bf16 %v2172, %v2172
  %v2254 = vpack.c.bf16 %v2173, %v2173
  %v2255 = vpack.c.bf16 %v2174, %v2174
  %v2256 = vpack.c.bf16 %v2175, %v2175
  %v2257 = vpack.c.bf16 %v2176, %v2176
  %v2258 = vpack.c.bf16 %v2177, %v2177
  %v2259 = vpack.c.bf16 %v2178, %v2178
  %v2260 = vpack.c.bf16 %v2179, %v2179
  %v2261 = vpack.c.bf16 %v2180, %v2180
  %v2262 = vpack.c.bf16 %v2181, %v2181
  %v2263 = vpack.c.bf16 %v2182, %v2182
  %vm2264 = vcmask 519168
  %2265 = vst.msk [vmem:[%s3] sm:$0xf] %vm2264, %v2183
  %2266 = vst.msk [vmem:[%s3 + $0x4] sm:$0xf] %vm2264, %v2184
  %2267 = vst.msk [vmem:[%s3 + $0x8] sm:$0xf] %vm2264, %v2185
  %2268 = vst.msk [vmem:[%s3 + $0xc] sm:$0xf] %vm2264, %v2186
  %2269 = vst.msk [vmem:[%s3 + $0x10] sm:$0xf] %vm2264, %v2187
  %2270 = vst.msk [vmem:[%s3 + $0x14] sm:$0xf] %vm2264, %v2188
  %2271 = vst.msk [vmem:[%s3 + $0x18] sm:$0xf] %vm2264, %v2189
  %2272 = vst.msk [vmem:[%s3 + $0x1c] sm:$0xf] %vm2264, %v2190
  %2273 = vst.msk [vmem:[%s3 + $0x20] sm:$0xf] %vm2264, %v2191
  %2274 = vst.msk [vmem:[%s3 + $0x24] sm:$0xf] %vm2264, %v2192
  %2275 = vst.msk [vmem:[%s3 + $0x28] sm:$0xf] %vm2264, %v2193
  %2276 = vst.msk [vmem:[%s3 + $0x2c] sm:$0xf] %vm2264, %v2194
  %2277 = vst.msk [vmem:[%s3 + $0x30] sm:$0xf] %vm2264, %v2195
  %2278 = vst.msk [vmem:[%s3 + $0x34] sm:$0xf] %vm2264, %v2196
  %2279 = vst.msk [vmem:[%s3 + $0x38] sm:$0xf] %vm2264, %v2197
  %2280 = vst.msk [vmem:[%s3 + $0x3c] sm:$0xf] %vm2264, %v2198
  %2281 = vst.msk [vmem:[%s3 + $0x40] sm:$0xf] %vm2264, %v2199
  %2282 = vst.msk [vmem:[%s3 + $0x44] sm:$0xf] %vm2264, %v2200
  %2283 = vst.msk [vmem:[%s3 + $0x48] sm:$0xf] %vm2264, %v2201
  %2284 = vst.msk [vmem:[%s3 + $0x4c] sm:$0xf] %vm2264, %v2202
  %2285 = vst.msk [vmem:[%s3 + $0x50] sm:$0xf] %vm2264, %v2203
  %2286 = vst.msk [vmem:[%s3 + $0x54] sm:$0xf] %vm2264, %v2204
  %2287 = vst.msk [vmem:[%s3 + $0x58] sm:$0xf] %vm2264, %v2205
  %2288 = vst.msk [vmem:[%s3 + $0x5c] sm:$0xf] %vm2264, %v2206
  %2289 = vst.msk [vmem:[%s3 + $0x60] sm:$0xf] %vm2264, %v2207
  %2290 = vst.msk [vmem:[%s3 + $0x64] sm:$0xf] %vm2264, %v2208
  %2291 = vst.msk [vmem:[%s3 + $0x68] sm:$0xf] %vm2264, %v2209
  %2292 = vst.msk [vmem:[%s3 + $0x6c] sm:$0xf] %vm2264, %v2210
  %2293 = vst.msk [vmem:[%s3 + $0x70] sm:$0xf] %vm2264, %v2211
  %2294 = vst.msk [vmem:[%s3 + $0x74] sm:$0xf] %vm2264, %v2212
  %2295 = vst.msk [vmem:[%s3 + $0x78] sm:$0xf] %vm2264, %v2213
  %2296 = vst.msk [vmem:[%s3 + $0x7c] sm:$0xf] %vm2264, %v2214
  %2297 = vst.msk [vmem:[%s3 + $0x80] sm:$0xf] %vm2264, %v2215
  %2298 = vst.msk [vmem:[%s3 + $0x84] sm:$0xf] %vm2264, %v2216
  %2299 = vst.msk [vmem:[%s3 + $0x88] sm:$0xf] %vm2264, %v2217
  %2300 = vst.msk [vmem:[%s3 + $0x8c] sm:$0xf] %vm2264, %v2218
  %2301 = vst.msk [vmem:[%s3 + $0x90] sm:$0xf] %vm2264, %v2219
  %2302 = vst.msk [vmem:[%s3 + $0x94] sm:$0xf] %vm2264, %v2220
  %2303 = vst.msk [vmem:[%s3 + $0x98] sm:$0xf] %vm2264, %v2221
  %2304 = vst.msk [vmem:[%s3 + $0x9c] sm:$0xf] %vm2264, %v2222
  %2305 = vst.msk [vmem:[%s3 + $0xa0] sm:$0xf] %vm2264, %v2223
  %2306 = vst.msk [vmem:[%s3 + $0xa4] sm:$0xf] %vm2264, %v2224
  %2307 = vst.msk [vmem:[%s3 + $0xa8] sm:$0xf] %vm2264, %v2225
  %2308 = vst.msk [vmem:[%s3 + $0xac] sm:$0xf] %vm2264, %v2226
  %2309 = vst.msk [vmem:[%s3 + $0xb0] sm:$0xf] %vm2264, %v2227
  %2310 = vst.msk [vmem:[%s3 + $0xb4] sm:$0xf] %vm2264, %v2228
  %2311 = vst.msk [vmem:[%s3 + $0xb8] sm:$0xf] %vm2264, %v2229
  %2312 = vst.msk [vmem:[%s3 + $0xbc] sm:$0xf] %vm2264, %v2230
  %2313 = vst.msk [vmem:[%s3 + $0xc0] sm:$0xf] %vm2264, %v2231
  %2314 = vst.msk [vmem:[%s3 + $0xc4] sm:$0xf] %vm2264, %v2232
  %2315 = vst.msk [vmem:[%s3 + $0xc8] sm:$0xf] %vm2264, %v2233
  %2316 = vst.msk [vmem:[%s3 + $0xcc] sm:$0xf] %vm2264, %v2234
  %2317 = vst.msk [vmem:[%s3 + $0xd0] sm:$0xf] %vm2264, %v2235
  %2318 = vst.msk [vmem:[%s3 + $0xd4] sm:$0xf] %vm2264, %v2236
  %2319 = vst.msk [vmem:[%s3 + $0xd8] sm:$0xf] %vm2264, %v2237
  %2320 = vst.msk [vmem:[%s3 + $0xdc] sm:$0xf] %vm2264, %v2238
  %2321 = vst.msk [vmem:[%s3 + $0xe0] sm:$0xf] %vm2264, %v2239
  %2322 = vst.msk [vmem:[%s3 + $0xe4] sm:$0xf] %vm2264, %v2240
  %2323 = vst.msk [vmem:[%s3 + $0xe8] sm:$0xf] %vm2264, %v2241
  %2324 = vst.msk [vmem:[%s3 + $0xec] sm:$0xf] %vm2264, %v2242
  %2325 = vst.msk [vmem:[%s3 + $0xf0] sm:$0xf] %vm2264, %v2243
  %2326 = vst.msk [vmem:[%s3 + $0xf4] sm:$0xf] %vm2264, %v2244
  %2327 = vst.msk [vmem:[%s3 + $0xf8] sm:$0xf] %vm2264, %v2245
  %2328 = vst.msk [vmem:[%s3 + $0xfc] sm:$0xf] %vm2264, %v2246
  %2329 = vst.msk [vmem:[%s3 + $0x100] sm:$0xf] %vm2264, %v2247
  %2330 = vst.msk [vmem:[%s3 + $0x104] sm:$0xf] %vm2264, %v2248
  %2331 = vst.msk [vmem:[%s3 + $0x108] sm:$0xf] %vm2264, %v2249
  %2332 = vst.msk [vmem:[%s3 + $0x10c] sm:$0xf] %vm2264, %v2250
  %2333 = vst.msk [vmem:[%s3 + $0x110] sm:$0xf] %vm2264, %v2251
  %2334 = vst.msk [vmem:[%s3 + $0x114] sm:$0xf] %vm2264, %v2252
  %2335 = vst.msk [vmem:[%s3 + $0x118] sm:$0xf] %vm2264, %v2253
  %2336 = vst.msk [vmem:[%s3 + $0x11c] sm:$0xf] %vm2264, %v2254
  %2337 = vst.msk [vmem:[%s3 + $0x120] sm:$0xf] %vm2264, %v2255
  %2338 = vst.msk [vmem:[%s3 + $0x124] sm:$0xf] %vm2264, %v2256
  %2339 = vst.msk [vmem:[%s3 + $0x128] sm:$0xf] %vm2264, %v2257
  %2340 = vst.msk [vmem:[%s3 + $0x12c] sm:$0xf] %vm2264, %v2258
  %2341 = vst.msk [vmem:[%s3 + $0x130] sm:$0xf] %vm2264, %v2259
  %2342 = vst.msk [vmem:[%s3 + $0x134] sm:$0xf] %vm2264, %v2260
  %2343 = vst.msk [vmem:[%s3 + $0x138] sm:$0xf] %vm2264, %v2261
  %2344 = vst.msk [vmem:[%s3 + $0x13c] sm:$0xf] %vm2264, %v2262
  %2345 = vst.msk [vmem:[%s3 + $0x140] sm:$0xf] %vm2264, %v2263
  // Predicated region
  $region14: #{decision_forward.5} parent=0 // pred_check
    _
  $region15: #{decision_forward.5} parent=0 // pred_check_branch
    %2347 = sbr.rel (0) target = $region17
  $region16: #{decision_forward.5} parent=0 // pred_region
    _
  $region17: #{decision_forward.5} parent=0 // pred_fallthru
    _
  // Predicated region
  $region18: #{decision_forward.5} parent=0 // pred_check
    _
  $region19: #{decision_forward.5} parent=0 // pred_check_branch
    %2349 = sbr.rel (0) target = $region21
  $region20: #{decision_forward.5} parent=0 // pred_region
    _
  $region21: #{decision_forward.5} parent=0 // pred_fallthru
    _

// kernel: decision_forward.6
$region0: #{decision_forward.6}
  #allocation0 [shape = 'u32[]', space=smem, size = 0x4, offset = 0x4, fixed_abs, tag = 'smem constant byte address 0x4 - core index']
  #allocation1 [shape = 'u32[72,128]{1,0:T(1,128)}', space=vmem, size = 0x9000, scoped, tag = 'internal scratch']
  %s0 = inlined_call_operand.vmem [shape: bf16[392,576], index: 0, kind: input, shape index: {}]
  %s1 = inlined_call_operand.vmem [shape: bf16[576,64], index: 1, kind: input, shape index: {}]
  %s2 = inlined_call_operand.vmem [shape: f32[1,64], index: 2, kind: input, shape index: {}]
  %s3 = inlined_call_operand.vmem [shape: bf16[392,64], index: 3, kind: output, shape index: {}]
  %s4 = sld [smem:[#allocation0]]
  $region22: #{decision_forward.6} parent=0
    _
  %s6 = ssub.s32 1, %s4
  %s7 = scalar_select 0, %s6, %s4
  // Predicated region
  $region2: #{decision_forward.6} parent=0 // pred_check
    _
  $region3: #{decision_forward.6} parent=0 // pred_check_branch
    %9 = sbr.rel (0) target = $region5
  $region4: #{decision_forward.6} parent=0 // pred_region
    _
  $region5: #{decision_forward.6} parent=0 // pred_fallthru
    _
  // Predicated region
  $region6: #{decision_forward.6} parent=0 // pred_check
    _
  $region7: #{decision_forward.6} parent=0 // pred_check_branch
    %11 = sbr.rel (0) target = $region9
  $region8: #{decision_forward.6} parent=0 // pred_region
    _
  $region9: #{decision_forward.6} parent=0 // pred_fallthru
    _
  // Predicated region
  $region10: #{decision_forward.6} parent=0 // pred_check
    _
  $region11: #{decision_forward.6} parent=0 // pred_check_branch
    %13 = sbr.rel (0) target = $region13
  $region12: #{decision_forward.6} parent=0 // pred_region
    _
  $region13: #{decision_forward.6} parent=0 // pred_fallthru
    _
  %v15 = vld [vmem:[%s0] sm:$0xff]
  %v16 = vld [vmem:[%s0 + $0x8] sm:$0xff]
  %v17 = vld [vmem:[%s0 + $0x10] sm:$0xf]
  %v18 = vld [vmem:[%s0 + $0x14] sm:$0xff]
  %v19 = vld [vmem:[%s0 + $0x1c] sm:$0xff]
  %v20 = vld [vmem:[%s0 + $0x24] sm:$0xf]
  %v21 = vld [vmem:[%s0 + $0x28] sm:$0xff]
  %v22 = vld [vmem:[%s0 + $0x30] sm:$0xff]
  %v23 = vld [vmem:[%s0 + $0x38] sm:$0xf]
  %v24 = vld [vmem:[%s0 + $0x3c] sm:$0xff]
  %v25 = vld [vmem:[%s0 + $0x44] sm:$0xff]
  %v26 = vld [vmem:[%s0 + $0x4c] sm:$0xf]
  %v27 = vld [vmem:[%s0 + $0x50] sm:$0xff]
  %v28 = vld [vmem:[%s0 + $0x58] sm:$0xff]
  %v29 = vld [vmem:[%s0 + $0x60] sm:$0xf]
  %v30 = vld [vmem:[%s0 + $0x64] sm:$0xff]
  %v31 = vld [vmem:[%s0 + $0x6c] sm:$0xff]
  %v32 = vld [vmem:[%s0 + $0x74] sm:$0xf]
  %v33 = vld [vmem:[%s0 + $0x78] sm:$0xff]
  %v34 = vld [vmem:[%s0 + $0x80] sm:$0xff]
  %v35 = vld [vmem:[%s0 + $0x88] sm:$0xf]
  %v36 = vld [vmem:[%s0 + $0x8c] sm:$0xff]
  %v37 = vld [vmem:[%s0 + $0x94] sm:$0xff]
  %v38 = vld [vmem:[%s0 + $0x9c] sm:$0xf]
  %v39 = vld [vmem:[%s0 + $0xa0] sm:$0xff]
  %v40 = vld [vmem:[%s0 + $0xa8] sm:$0xff]
  %v41 = vld [vmem:[%s0 + $0xb0] sm:$0xf]
  %v42 = vld [vmem:[%s0 + $0xb4] sm:$0xff]
  %v43 = vld [vmem:[%s0 + $0xbc] sm:$0xff]
  %v44 = vld [vmem:[%s0 + $0xc4] sm:$0xf]
  %v45 = vld [vmem:[%s0 + $0xc8] sm:$0xff]
  %v46 = vld [vmem:[%s0 + $0xd0] sm:$0xff]
  %v47 = vld [vmem:[%s0 + $0xd8] sm:$0xf]
  %v48 = vld [vmem:[%s0 + $0xdc] sm:$0xff]
  %v49 = vld [vmem:[%s0 + $0xe4] sm:$0xff]
  %v50 = vld [vmem:[%s0 + $0xec] sm:$0xf]
  %v51 = vld [vmem:[%s0 + $0xf0] sm:$0xff]
  %v52 = vld [vmem:[%s0 + $0xf8] sm:$0xff]
  %v53 = vld [vmem:[%s0 + $0x100] sm:$0xf]
  %v54 = vld [vmem:[%s0 + $0x104] sm:$0xff]
  %v55 = vld [vmem:[%s0 + $0x10c] sm:$0xff]
  %v56 = vld [vmem:[%s0 + $0x114] sm:$0xf]
  %v57 = vld [vmem:[%s0 + $0x118] sm:$0xff]
  %v58 = vld [vmem:[%s0 + $0x120] sm:$0xff]
  %v59 = vld [vmem:[%s0 + $0x128] sm:$0xf]
  %v60 = vld [vmem:[%s0 + $0x12c] sm:$0xff]
  %v61 = vld [vmem:[%s0 + $0x134] sm:$0xff]
  %v62 = vld [vmem:[%s0 + $0x13c] sm:$0xf]
  %v63 = vld [vmem:[%s0 + $0x140] sm:$0xff]
  %v64 = vld [vmem:[%s0 + $0x148] sm:$0xff]
  %v65 = vld [vmem:[%s0 + $0x150] sm:$0xf]
  %v66 = vld [vmem:[%s0 + $0x154] sm:$0xff]
  %v67 = vld [vmem:[%s0 + $0x15c] sm:$0xff]
  %v68 = vld [vmem:[%s0 + $0x164] sm:$0xf]
  %v69 = vld [vmem:[%s0 + $0x168] sm:$0xff]
  %v70 = vld [vmem:[%s0 + $0x170] sm:$0xff]
  %v71 = vld [vmem:[%s0 + $0x178] sm:$0xf]
  %v72 = vld [vmem:[%s0 + $0x17c] sm:$0xff]
  %v73 = vld [vmem:[%s0 + $0x184] sm:$0xff]
  %v74 = vld [vmem:[%s0 + $0x18c] sm:$0xf]
  %v75 = vld [vmem:[%s0 + $0x190] sm:$0xff]
  %v76 = vld [vmem:[%s0 + $0x198] sm:$0xff]
  %v77 = vld [vmem:[%s0 + $0x1a0] sm:$0xf]
  %v78 = vld [vmem:[%s0 + $0x1a4] sm:$0xff]
  %v79 = vld [vmem:[%s0 + $0x1ac] sm:$0xff]
  %v80 = vld [vmem:[%s0 + $0x1b4] sm:$0xf]
  %v81 = vld [vmem:[%s0 + $0x1b8] sm:$0xff]
  %v82 = vld [vmem:[%s0 + $0x1c0] sm:$0xff]
  %v83 = vld [vmem:[%s0 + $0x1c8] sm:$0xf]
  %v84 = vld [vmem:[%s0 + $0x1cc] sm:$0xff]
  %v85 = vld [vmem:[%s0 + $0x1d4] sm:$0xff]
  %v86 = vld [vmem:[%s0 + $0x1dc] sm:$0xf]
  %v87 = vld [vmem:[%s0 + $0x1e0] sm:$0xff]
  %v88 = vld [vmem:[%s0 + $0x1e8] sm:$0xff]
  %v89 = vld [vmem:[%s0 + $0x1f0] sm:$0xf]
  %v90 = vld [vmem:[%s0 + $0x1f4] sm:$0xff]
  %v91 = vld [vmem:[%s0 + $0x1fc] sm:$0xff]
  %v92 = vld [vmem:[%s0 + $0x204] sm:$0xf]
  %v93 = vld [vmem:[%s0 + $0x208] sm:$0xff]
  %v94 = vld [vmem:[%s0 + $0x210] sm:$0xff]
  %v95 = vld [vmem:[%s0 + $0x218] sm:$0xf]
  %v96 = vld [vmem:[%s0 + $0x21c] sm:$0xff]
  %v97 = vld [vmem:[%s0 + $0x224] sm:$0xff]
  %v98 = vld [vmem:[%s0 + $0x22c] sm:$0xf]
  %v99 = vld [vmem:[%s0 + $0x230] sm:$0xff]
  %v100 = vld [vmem:[%s0 + $0x238] sm:$0xff]
  %v101 = vld [vmem:[%s0 + $0x240] sm:$0xf]
  %v102 = vld [vmem:[%s0 + $0x244] sm:$0xff]
  %v103 = vld [vmem:[%s0 + $0x24c] sm:$0xff]
  %v104 = vld [vmem:[%s0 + $0x254] sm:$0xf]
  %v105 = vld [vmem:[%s0 + $0x258] sm:$0xff]
  %v106 = vld [vmem:[%s0 + $0x260] sm:$0xff]
  %v107 = vld [vmem:[%s0 + $0x268] sm:$0xf]
  %v108 = vld [vmem:[%s0 + $0x26c] sm:$0xff]
  %v109 = vld [vmem:[%s0 + $0x274] sm:$0xff]
  %v110 = vld [vmem:[%s0 + $0x27c] sm:$0xf]
  %v111 = vld [vmem:[%s0 + $0x280] sm:$0xff]
  %v112 = vld [vmem:[%s0 + $0x288] sm:$0xff]
  %v113 = vld [vmem:[%s0 + $0x290] sm:$0xf]
  %v114 = vld [vmem:[%s0 + $0x294] sm:$0xff]
  %v115 = vld [vmem:[%s0 + $0x29c] sm:$0xff]
  %v116 = vld [vmem:[%s0 + $0x2a4] sm:$0xf]
  %v117 = vld [vmem:[%s0 + $0x2a8] sm:$0xff]
  %v118 = vld [vmem:[%s0 + $0x2b0] sm:$0xff]
  %v119 = vld [vmem:[%s0 + $0x2b8] sm:$0xf]
  %v120 = vld [vmem:[%s0 + $0x2bc] sm:$0xff]
  %v121 = vld [vmem:[%s0 + $0x2c4] sm:$0xff]
  %v122 = vld [vmem:[%s0 + $0x2cc] sm:$0xf]
  %v123 = vld [vmem:[%s0 + $0x2d0] sm:$0xff]
  %v124 = vld [vmem:[%s0 + $0x2d8] sm:$0xff]
  %v125 = vld [vmem:[%s0 + $0x2e0] sm:$0xf]
  %v126 = vld [vmem:[%s0 + $0x2e4] sm:$0xff]
  %v127 = vld [vmem:[%s0 + $0x2ec] sm:$0xff]
  %v128 = vld [vmem:[%s0 + $0x2f4] sm:$0xf]
  %v129 = vld [vmem:[%s0 + $0x2f8] sm:$0xff]
  %v130 = vld [vmem:[%s0 + $0x300] sm:$0xff]
  %v131 = vld [vmem:[%s0 + $0x308] sm:$0xf]
  %v132 = vld [vmem:[%s0 + $0x30c] sm:$0xff]
  %v133 = vld [vmem:[%s0 + $0x314] sm:$0xff]
  %v134 = vld [vmem:[%s0 + $0x31c] sm:$0xf]
  %v135 = vld [vmem:[%s0 + $0x320] sm:$0xff]
  %v136 = vld [vmem:[%s0 + $0x328] sm:$0xff]
  %v137 = vld [vmem:[%s0 + $0x330] sm:$0xf]
  %v138 = vld [vmem:[%s0 + $0x334] sm:$0xff]
  %v139 = vld [vmem:[%s0 + $0x33c] sm:$0xff]
  %v140 = vld [vmem:[%s0 + $0x344] sm:$0xf]
  %v141 = vld [vmem:[%s0 + $0x348] sm:$0xff]
  %v142 = vld [vmem:[%s0 + $0x350] sm:$0xff]
  %v143 = vld [vmem:[%s0 + $0x358] sm:$0xf]
  %v144 = vld [vmem:[%s0 + $0x35c] sm:$0xff]
  %v145 = vld [vmem:[%s0 + $0x364] sm:$0xff]
  %v146 = vld [vmem:[%s0 + $0x36c] sm:$0xf]
  %v147 = vld [vmem:[%s0 + $0x370] sm:$0xff]
  %v148 = vld [vmem:[%s0 + $0x378] sm:$0xff]
  %v149 = vld [vmem:[%s0 + $0x380] sm:$0xf]
  %v150 = vld [vmem:[%s0 + $0x384] sm:$0xff]
  %v151 = vld [vmem:[%s0 + $0x38c] sm:$0xff]
  %v152 = vld [vmem:[%s0 + $0x394] sm:$0xf]
  %v153 = vld [vmem:[%s0 + $0x398] sm:$0xff]
  %v154 = vld [vmem:[%s0 + $0x3a0] sm:$0xff]
  %v155 = vld [vmem:[%s0 + $0x3a8] sm:$0xf]
  %v156 = vld [vmem:[%s0 + $0x3ac] sm:$0xff]
  %v157 = vld [vmem:[%s0 + $0x3b4] sm:$0xff]
  %v158 = vld [vmem:[%s0 + $0x3bc] sm:$0xf]
  %v159 = vld [vmem:[%s0 + $0x3c0] sm:$0xff]
  %v160 = vld [vmem:[%s0 + $0x3c8] sm:$0xff]
  %v161 = vld [vmem:[%s0 + $0x3d0] sm:$0xf]
  %v162 = vld [vmem:[%s1] sm:$0xf]
  %v163 = vld [vmem:[%s1 + $0x4] sm:$0xf]
  %v164 = vld [vmem:[%s1 + $0x8] sm:$0xf]
  %v165 = vld [vmem:[%s1 + $0xc] sm:$0xf]
  %v166 = vld [vmem:[%s1 + $0x10] sm:$0xf]
  %v167 = vld [vmem:[%s1 + $0x14] sm:$0xf]
  %v168 = vld [vmem:[%s1 + $0x18] sm:$0xf]
  %v169 = vld [vmem:[%s1 + $0x1c] sm:$0xf]
  %v170 = vld [vmem:[%s1 + $0x20] sm:$0xf]
  %v171 = vld [vmem:[%s1 + $0x24] sm:$0xf]
  %v172 = vld [vmem:[%s1 + $0x28] sm:$0xf]
  %v173 = vld [vmem:[%s1 + $0x2c] sm:$0xf]
  %v174 = vld [vmem:[%s1 + $0x30] sm:$0xf]
  %v175 = vld [vmem:[%s1 + $0x34] sm:$0xf]
  %v176 = vld [vmem:[%s1 + $0x38] sm:$0xf]
  %v177 = vld [vmem:[%s1 + $0x3c] sm:$0xf]
  %v178 = vld [vmem:[%s1 + $0x40] sm:$0xf]
  %v179 = vld [vmem:[%s1 + $0x44] sm:$0xf]
  %v180 = vld [vmem:[%s1 + $0x48] sm:$0xf]
  %v181 = vld [vmem:[%s1 + $0x4c] sm:$0xf]
  %v182 = vld [vmem:[%s1 + $0x50] sm:$0xf]
  %v183 = vld [vmem:[%s1 + $0x54] sm:$0xf]
  %v184 = vld [vmem:[%s1 + $0x58] sm:$0xf]
  %v185 = vld [vmem:[%s1 + $0x5c] sm:$0xf]
  %v186 = vld [vmem:[%s1 + $0x60] sm:$0xf]
  %v187 = vld [vmem:[%s1 + $0x64] sm:$0xf]
  %v188 = vld [vmem:[%s1 + $0x68] sm:$0xf]
  %v189 = vld [vmem:[%s1 + $0x6c] sm:$0xf]
  %v190 = vld [vmem:[%s1 + $0x70] sm:$0xf]
  %v191 = vld [vmem:[%s1 + $0x74] sm:$0xf]
  %v192 = vld [vmem:[%s1 + $0x78] sm:$0xf]
  %v193 = vld [vmem:[%s1 + $0x7c] sm:$0xf]
  %v194 = vld [vmem:[%s1 + $0x80] sm:$0xf]
  %v195 = vld [vmem:[%s1 + $0x84] sm:$0xf]
  %v196 = vld [vmem:[%s1 + $0x88] sm:$0xf]
  %v197 = vld [vmem:[%s1 + $0x8c] sm:$0xf]
  %v198 = vld [vmem:[%s1 + $0x90] sm:$0xf]
  %v199 = vld [vmem:[%s1 + $0x94] sm:$0xf]
  %v200 = vld [vmem:[%s1 + $0x98] sm:$0xf]
  %v201 = vld [vmem:[%s1 + $0x9c] sm:$0xf]
  %v202 = vld [vmem:[%s1 + $0xa0] sm:$0xf]
  %v203 = vld [vmem:[%s1 + $0xa4] sm:$0xf]
  %v204 = vld [vmem:[%s1 + $0xa8] sm:$0xf]
  %v205 = vld [vmem:[%s1 + $0xac] sm:$0xf]
  %v206 = vld [vmem:[%s1 + $0xb0] sm:$0xf]
  %v207 = vld [vmem:[%s1 + $0xb4] sm:$0xf]
  %v208 = vld [vmem:[%s1 + $0xb8] sm:$0xf]
  %v209 = vld [vmem:[%s1 + $0xbc] sm:$0xf]
  %v210 = vld [vmem:[%s1 + $0xc0] sm:$0xf]
  %v211 = vld [vmem:[%s1 + $0xc4] sm:$0xf]
  %v212 = vld [vmem:[%s1 + $0xc8] sm:$0xf]
  %v213 = vld [vmem:[%s1 + $0xcc] sm:$0xf]
  %v214 = vld [vmem:[%s1 + $0xd0] sm:$0xf]
  %v215 = vld [vmem:[%s1 + $0xd4] sm:$0xf]
  %v216 = vld [vmem:[%s1 + $0xd8] sm:$0xf]
  %v217 = vld [vmem:[%s1 + $0xdc] sm:$0xf]
  %v218 = vld [vmem:[%s1 + $0xe0] sm:$0xf]
  %v219 = vld [vmem:[%s1 + $0xe4] sm:$0xf]
  %v220 = vld [vmem:[%s1 + $0xe8] sm:$0xf]
  %v221 = vld [vmem:[%s1 + $0xec] sm:$0xf]
  %v222 = vld [vmem:[%s1 + $0xf0] sm:$0xf]
  %v223 = vld [vmem:[%s1 + $0xf4] sm:$0xf]
  %v224 = vld [vmem:[%s1 + $0xf8] sm:$0xf]
  %v225 = vld [vmem:[%s1 + $0xfc] sm:$0xf]
  %v226 = vld [vmem:[%s1 + $0x100] sm:$0xf]
  %v227 = vld [vmem:[%s1 + $0x104] sm:$0xf]
  %v228 = vld [vmem:[%s1 + $0x108] sm:$0xf]
  %v229 = vld [vmem:[%s1 + $0x10c] sm:$0xf]
  %v230 = vld [vmem:[%s1 + $0x110] sm:$0xf]
  %v231 = vld [vmem:[%s1 + $0x114] sm:$0xf]
  %v232 = vld [vmem:[%s1 + $0x118] sm:$0xf]
  %v233 = vld [vmem:[%s1 + $0x11c] sm:$0xf]
  %v234 = vld [vmem:[%s2] sm:$0x1]
  %v236 = vperm.slane %v234, 0
  %v385 = vunpack.c.l.b16 %v15
  %v386 = vunpack.c.h.b16 %v15
  %v387 = vunpack.c.l.b16 %v16
  %v388 = vunpack.c.h.b16 %v16
  %v389 = vunpack.c.l.b16 %v17
  %v390 = vunpack.c.l.b16 %v18
  %v391 = vunpack.c.h.b16 %v18
  %v392 = vunpack.c.l.b16 %v19
  %v393 = vunpack.c.h.b16 %v19
  %v394 = vunpack.c.l.b16 %v20
  %v395 = vunpack.c.l.b16 %v21
  %v396 = vunpack.c.h.b16 %v21
  %v397 = vunpack.c.l.b16 %v22
  %v398 = vunpack.c.h.b16 %v22
  %v399 = vunpack.c.l.b16 %v23
  %v400 = vunpack.c.l.b16 %v24
  %v401 = vunpack.c.h.b16 %v24
  %v402 = vunpack.c.l.b16 %v25
  %v403 = vunpack.c.h.b16 %v25
  %v404 = vunpack.c.l.b16 %v26
  %v405 = vunpack.c.l.b16 %v27
  %v406 = vunpack.c.h.b16 %v27
  %v407 = vunpack.c.l.b16 %v28
  %v408 = vunpack.c.h.b16 %v28
  %v409 = vunpack.c.l.b16 %v29
  %v410 = vunpack.c.l.b16 %v30
  %v411 = vunpack.c.h.b16 %v30
  %v412 = vunpack.c.l.b16 %v31
  %v413 = vunpack.c.h.b16 %v31
  %v414 = vunpack.c.l.b16 %v32
  %v415 = vunpack.c.l.b16 %v33
  %v416 = vunpack.c.h.b16 %v33
  %v417 = vunpack.c.l.b16 %v34
  %v418 = vunpack.c.h.b16 %v34
  %v419 = vunpack.c.l.b16 %v35
  %v420 = vunpack.c.l.b16 %v36
  %v421 = vunpack.c.h.b16 %v36
  %v422 = vunpack.c.l.b16 %v37
  %v423 = vunpack.c.h.b16 %v37
  %v424 = vunpack.c.l.b16 %v38
  %v425 = vunpack.c.l.b16 %v39
  %v426 = vunpack.c.h.b16 %v39
  %v427 = vunpack.c.l.b16 %v40
  %v428 = vunpack.c.h.b16 %v40
  %v429 = vunpack.c.l.b16 %v41
  %v430 = vunpack.c.l.b16 %v42
  %v431 = vunpack.c.h.b16 %v42
  %v432 = vunpack.c.l.b16 %v43
  %v433 = vunpack.c.h.b16 %v43
  %v434 = vunpack.c.l.b16 %v44
  %v435 = vunpack.c.l.b16 %v45
  %v436 = vunpack.c.h.b16 %v45
  %v437 = vunpack.c.l.b16 %v46
  %v438 = vunpack.c.h.b16 %v46
  %v439 = vunpack.c.l.b16 %v47
  %v440 = vunpack.c.l.b16 %v48
  %v441 = vunpack.c.h.b16 %v48
  %v442 = vunpack.c.l.b16 %v49
  %v443 = vunpack.c.h.b16 %v49
  %v444 = vunpack.c.l.b16 %v50
  %v445 = vunpack.c.l.b16 %v51
  %v446 = vunpack.c.h.b16 %v51
  %v447 = vunpack.c.l.b16 %v52
  %v448 = vunpack.c.h.b16 %v52
  %v449 = vunpack.c.l.b16 %v53
  %v450 = vunpack.c.l.b16 %v54
  %v451 = vunpack.c.h.b16 %v54
  %v452 = vunpack.c.l.b16 %v55
  %v453 = vunpack.c.h.b16 %v55
  %v454 = vunpack.c.l.b16 %v56
  %v455 = vunpack.c.l.b16 %v57
  %v456 = vunpack.c.h.b16 %v57
  %v457 = vunpack.c.l.b16 %v58
  %v458 = vunpack.c.h.b16 %v58
  %v459 = vunpack.c.l.b16 %v59
  %v460 = vunpack.c.l.b16 %v60
  %v461 = vunpack.c.h.b16 %v60
  %v462 = vunpack.c.l.b16 %v61
  %v463 = vunpack.c.h.b16 %v61
  %v464 = vunpack.c.l.b16 %v62
  %v465 = vunpack.c.l.b16 %v63
  %v466 = vunpack.c.h.b16 %v63
  %v467 = vunpack.c.l.b16 %v64
  %v468 = vunpack.c.h.b16 %v64
  %v469 = vunpack.c.l.b16 %v65
  %v470 = vunpack.c.l.b16 %v66
  %v471 = vunpack.c.h.b16 %v66
  %v472 = vunpack.c.l.b16 %v67
  %v473 = vunpack.c.h.b16 %v67
  %v474 = vunpack.c.l.b16 %v68
  %v475 = vunpack.c.l.b16 %v69
  %v476 = vunpack.c.h.b16 %v69
  %v477 = vunpack.c.l.b16 %v70
  %v478 = vunpack.c.h.b16 %v70
  %v479 = vunpack.c.l.b16 %v71
  %v480 = vunpack.c.l.b16 %v72
  %v481 = vunpack.c.h.b16 %v72
  %v482 = vunpack.c.l.b16 %v73
  %v483 = vunpack.c.h.b16 %v73
  %v484 = vunpack.c.l.b16 %v74
  %v485 = vunpack.c.l.b16 %v75
  %v486 = vunpack.c.h.b16 %v75
  %v487 = vunpack.c.l.b16 %v76
  %v488 = vunpack.c.h.b16 %v76
  %v489 = vunpack.c.l.b16 %v77
  %v490 = vunpack.c.l.b16 %v78
  %v491 = vunpack.c.h.b16 %v78
  %v492 = vunpack.c.l.b16 %v79
  %v493 = vunpack.c.h.b16 %v79
  %v494 = vunpack.c.l.b16 %v80
  %v495 = vunpack.c.l.b16 %v81
  %v496 = vunpack.c.h.b16 %v81
  %v497 = vunpack.c.l.b16 %v82
  %v498 = vunpack.c.h.b16 %v82
  %v499 = vunpack.c.l.b16 %v83
  %v500 = vunpack.c.l.b16 %v84
  %v501 = vunpack.c.h.b16 %v84
  %v502 = vunpack.c.l.b16 %v85
  %v503 = vunpack.c.h.b16 %v85
  %v504 = vunpack.c.l.b16 %v86
  %v505 = vunpack.c.l.b16 %v87
  %v506 = vunpack.c.h.b16 %v87
  %v507 = vunpack.c.l.b16 %v88
  %v508 = vunpack.c.h.b16 %v88
  %v509 = vunpack.c.l.b16 %v89
  %v510 = vunpack.c.l.b16 %v90
  %v511 = vunpack.c.h.b16 %v90
  %v512 = vunpack.c.l.b16 %v91
  %v513 = vunpack.c.h.b16 %v91
  %v514 = vunpack.c.l.b16 %v92
  %v515 = vunpack.c.l.b16 %v93
  %v516 = vunpack.c.h.b16 %v93
  %v517 = vunpack.c.l.b16 %v94
  %v518 = vunpack.c.h.b16 %v94
  %v519 = vunpack.c.l.b16 %v95
  %v520 = vunpack.c.l.b16 %v96
  %v521 = vunpack.c.h.b16 %v96
  %v522 = vunpack.c.l.b16 %v97
  %v523 = vunpack.c.h.b16 %v97
  %v524 = vunpack.c.l.b16 %v98
  %v525 = vunpack.c.l.b16 %v99
  %v526 = vunpack.c.h.b16 %v99
  %v527 = vunpack.c.l.b16 %v100
  %v528 = vunpack.c.h.b16 %v100
  %v529 = vunpack.c.l.b16 %v101
  %v530 = vunpack.c.l.b16 %v102
  %v531 = vunpack.c.h.b16 %v102
  %v532 = vunpack.c.l.b16 %v103
  %v533 = vunpack.c.h.b16 %v103
  %v534 = vunpack.c.l.b16 %v104
  %v535 = vunpack.c.l.b16 %v105
  %v536 = vunpack.c.h.b16 %v105
  %v537 = vunpack.c.l.b16 %v106
  %v538 = vunpack.c.h.b16 %v106
  %v539 = vunpack.c.l.b16 %v107
  %v540 = vunpack.c.l.b16 %v108
  %v541 = vunpack.c.h.b16 %v108
  %v542 = vunpack.c.l.b16 %v109
  %v543 = vunpack.c.h.b16 %v109
  %v544 = vunpack.c.l.b16 %v110
  %v545 = vunpack.c.l.b16 %v111
  %v546 = vunpack.c.h.b16 %v111
  %v547 = vunpack.c.l.b16 %v112
  %v548 = vunpack.c.h.b16 %v112
  %v549 = vunpack.c.l.b16 %v113
  %v550 = vunpack.c.l.b16 %v114
  %v551 = vunpack.c.h.b16 %v114
  %v552 = vunpack.c.l.b16 %v115
  %v553 = vunpack.c.h.b16 %v115
  %v554 = vunpack.c.l.b16 %v116
  %v555 = vunpack.c.l.b16 %v117
  %v556 = vunpack.c.h.b16 %v117
  %v557 = vunpack.c.l.b16 %v118
  %v558 = vunpack.c.h.b16 %v118
  %v559 = vunpack.c.l.b16 %v119
  %v560 = vunpack.c.l.b16 %v120
  %v561 = vunpack.c.h.b16 %v120
  %v562 = vunpack.c.l.b16 %v121
  %v563 = vunpack.c.h.b16 %v121
  %v564 = vunpack.c.l.b16 %v122
  %v565 = vunpack.c.l.b16 %v123
  %v566 = vunpack.c.h.b16 %v123
  %v567 = vunpack.c.l.b16 %v124
  %v568 = vunpack.c.h.b16 %v124
  %v569 = vunpack.c.l.b16 %v125
  %v570 = vunpack.c.l.b16 %v126
  %v571 = vunpack.c.h.b16 %v126
  %v572 = vunpack.c.l.b16 %v127
  %v573 = vunpack.c.h.b16 %v127
  %v574 = vunpack.c.l.b16 %v128
  %v575 = vunpack.c.l.b16 %v129
  %v576 = vunpack.c.h.b16 %v129
  %v577 = vunpack.c.l.b16 %v130
  %v578 = vunpack.c.h.b16 %v130
  %v579 = vunpack.c.l.b16 %v131
  %v580 = vunpack.c.l.b16 %v132
  %v581 = vunpack.c.h.b16 %v132
  %v582 = vunpack.c.l.b16 %v133
  %v583 = vunpack.c.h.b16 %v133
  %v584 = vunpack.c.l.b16 %v134
  %v585 = vunpack.c.l.b16 %v135
  %v586 = vunpack.c.h.b16 %v135
  %v587 = vunpack.c.l.b16 %v136
  %v588 = vunpack.c.h.b16 %v136
  %v589 = vunpack.c.l.b16 %v137
  %v590 = vunpack.c.l.b16 %v138
  %v591 = vunpack.c.h.b16 %v138
  %v592 = vunpack.c.l.b16 %v139
  %v593 = vunpack.c.h.b16 %v139
  %v594 = vunpack.c.l.b16 %v140
  %v595 = vunpack.c.l.b16 %v141
  %v596 = vunpack.c.h.b16 %v141
  %v597 = vunpack.c.l.b16 %v142
  %v598 = vunpack.c.h.b16 %v142
  %v599 = vunpack.c.l.b16 %v143
  %v600 = vunpack.c.l.b16 %v144
  %v601 = vunpack.c.h.b16 %v144
  %v602 = vunpack.c.l.b16 %v145
  %v603 = vunpack.c.h.b16 %v145
  %v604 = vunpack.c.l.b16 %v146
  %v605 = vunpack.c.l.b16 %v147
  %v606 = vunpack.c.h.b16 %v147
  %v607 = vunpack.c.l.b16 %v148
  %v608 = vunpack.c.h.b16 %v148
  %v609 = vunpack.c.l.b16 %v149
  %v610 = vunpack.c.l.b16 %v150
  %v611 = vunpack.c.h.b16 %v150
  %v612 = vunpack.c.l.b16 %v151
  %v613 = vunpack.c.h.b16 %v151
  %v614 = vunpack.c.l.b16 %v152
  %v615 = vunpack.c.l.b16 %v153
  %v616 = vunpack.c.h.b16 %v153
  %v617 = vunpack.c.l.b16 %v154
  %v618 = vunpack.c.h.b16 %v154
  %v619 = vunpack.c.l.b16 %v155
  %v620 = vunpack.c.l.b16 %v156
  %v621 = vunpack.c.h.b16 %v156
  %v622 = vunpack.c.l.b16 %v157
  %v623 = vunpack.c.h.b16 %v157
  %v624 = vunpack.c.l.b16 %v158
  %v625 = vunpack.c.l.b16 %v159
  %v626 = vunpack.c.h.b16 %v159
  %v627 = vunpack.c.l.b16 %v160
  %v628 = vunpack.c.h.b16 %v160
  %v629 = vunpack.c.l.b16 %v161
  %v630 = vpack.c.b16 %v390, %v385
  %v631 = vpack.c.b16 %v391, %v386
  %v632 = vpack.c.b16 %v392, %v387
  %v633 = vpack.c.b16 %v393, %v388
  %v634 = vpack.c.b16 %v394, %v389
  %v635 = vpack.c.b16 %v400, %v395
  %v636 = vpack.c.b16 %v401, %v396
  %v637 = vpack.c.b16 %v402, %v397
  %v638 = vpack.c.b16 %v403, %v398
  %v639 = vpack.c.b16 %v404, %v399
  %v640 = vpack.c.b16 %v410, %v405
  %v641 = vpack.c.b16 %v411, %v406
  %v642 = vpack.c.b16 %v412, %v407
  %v643 = vpack.c.b16 %v413, %v408
  %v644 = vpack.c.b16 %v414, %v409
  %v645 = vpack.c.b16 %v420, %v415
  %v646 = vpack.c.b16 %v421, %v416
  %v647 = vpack.c.b16 %v422, %v417
  %v648 = vpack.c.b16 %v423, %v418
  %v649 = vpack.c.b16 %v424, %v419
  %v650 = vpack.c.b16 %v430, %v425
  %v651 = vpack.c.b16 %v431, %v426
  %v652 = vpack.c.b16 %v432, %v427
  %v653 = vpack.c.b16 %v433, %v428
  %v654 = vpack.c.b16 %v434, %v429
  %v655 = vpack.c.b16 %v440, %v435
  %v656 = vpack.c.b16 %v441, %v436
  %v657 = vpack.c.b16 %v442, %v437
  %v658 = vpack.c.b16 %v443, %v438
  %v659 = vpack.c.b16 %v444, %v439
  %v660 = vpack.c.b16 %v450, %v445
  %v661 = vpack.c.b16 %v451, %v446
  %v662 = vpack.c.b16 %v452, %v447
  %v663 = vpack.c.b16 %v453, %v448
  %v664 = vpack.c.b16 %v454, %v449
  %v665 = vpack.c.b16 %v460, %v455
  %v666 = vpack.c.b16 %v461, %v456
  %v667 = vpack.c.b16 %v462, %v457
  %v668 = vpack.c.b16 %v463, %v458
  %v669 = vpack.c.b16 %v464, %v459
  %v670 = vpack.c.b16 %v470, %v465
  %v671 = vpack.c.b16 %v471, %v466
  %v672 = vpack.c.b16 %v472, %v467
  %v673 = vpack.c.b16 %v473, %v468
  %v674 = vpack.c.b16 %v474, %v469
  %v675 = vpack.c.b16 %v480, %v475
  %v676 = vpack.c.b16 %v481, %v476
  %v677 = vpack.c.b16 %v482, %v477
  %v678 = vpack.c.b16 %v483, %v478
  %v679 = vpack.c.b16 %v484, %v479
  %v680 = vpack.c.b16 %v490, %v485
  %v681 = vpack.c.b16 %v491, %v486
  %v682 = vpack.c.b16 %v492, %v487
  %v683 = vpack.c.b16 %v493, %v488
  %v684 = vpack.c.b16 %v494, %v489
  %v685 = vpack.c.b16 %v500, %v495
  %v686 = vpack.c.b16 %v501, %v496
  %v687 = vpack.c.b16 %v502, %v497
  %v688 = vpack.c.b16 %v503, %v498
  %v689 = vpack.c.b16 %v504, %v499
  %v690 = vpack.c.b16 %v510, %v505
  %v691 = vpack.c.b16 %v511, %v506
  %v692 = vpack.c.b16 %v512, %v507
  %v693 = vpack.c.b16 %v513, %v508
  %v694 = vpack.c.b16 %v514, %v509
  %v695 = vpack.c.b16 %v520, %v515
  %v696 = vpack.c.b16 %v521, %v516
  %v697 = vpack.c.b16 %v522, %v517
  %v698 = vpack.c.b16 %v523, %v518
  %v699 = vpack.c.b16 %v524, %v519
  %v700 = vpack.c.b16 %v530, %v525
  %v701 = vpack.c.b16 %v531, %v526
  %v702 = vpack.c.b16 %v532, %v527
  %v703 = vpack.c.b16 %v533, %v528
  %v704 = vpack.c.b16 %v534, %v529
  %v705 = vpack.c.b16 %v540, %v535
  %v706 = vpack.c.b16 %v541, %v536
  %v707 = vpack.c.b16 %v542, %v537
  %v708 = vpack.c.b16 %v543, %v538
  %v709 = vpack.c.b16 %v544, %v539
  %v710 = vpack.c.b16 %v550, %v545
  %v711 = vpack.c.b16 %v551, %v546
  %v712 = vpack.c.b16 %v552, %v547
  %v713 = vpack.c.b16 %v553, %v548
  %v714 = vpack.c.b16 %v554, %v549
  %v715 = vpack.c.b16 %v560, %v555
  %v716 = vpack.c.b16 %v561, %v556
  %v717 = vpack.c.b16 %v562, %v557
  %v718 = vpack.c.b16 %v563, %v558
  %v719 = vpack.c.b16 %v564, %v559
  %v720 = vpack.c.b16 %v570, %v565
  %v721 = vpack.c.b16 %v571, %v566
  %v722 = vpack.c.b16 %v572, %v567
  %v723 = vpack.c.b16 %v573, %v568
  %v724 = vpack.c.b16 %v574, %v569
  %v725 = vpack.c.b16 %v580, %v575
  %v726 = vpack.c.b16 %v581, %v576
  %v727 = vpack.c.b16 %v582, %v577
  %v728 = vpack.c.b16 %v583, %v578
  %v729 = vpack.c.b16 %v584, %v579
  %v730 = vpack.c.b16 %v590, %v585
  %v731 = vpack.c.b16 %v591, %v586
  %v732 = vpack.c.b16 %v592, %v587
  %v733 = vpack.c.b16 %v593, %v588
  %v734 = vpack.c.b16 %v594, %v589
  %v735 = vpack.c.b16 %v600, %v595
  %v736 = vpack.c.b16 %v601, %v596
  %v737 = vpack.c.b16 %v602, %v597
  %v738 = vpack.c.b16 %v603, %v598
  %v739 = vpack.c.b16 %v604, %v599
  %v740 = vpack.c.b16 %v610, %v605
  %v741 = vpack.c.b16 %v611, %v606
  %v742 = vpack.c.b16 %v612, %v607
  %v743 = vpack.c.b16 %v613, %v608
  %v744 = vpack.c.b16 %v614, %v609
  %v745 = vpack.c.b16 %v620, %v615
  %v746 = vpack.c.b16 %v621, %v616
  %v747 = vpack.c.b16 %v622, %v617
  %v748 = vpack.c.b16 %v623, %v618
  %v749 = vpack.c.b16 %v624, %v619
  %v750 = vpack.c.b16 %v625, %v625
  %v751 = vpack.c.b16 %v626, %v626
  %v752 = vpack.c.b16 %v627, %v627
  %v753 = vpack.c.b16 %v628, %v628
  %v754 = vpack.c.b16 %v629, %v629
  %v927 = vunpack.c.l.b16 %v162
  %v928 = vunpack.c.l.b16 %v163
  %v929 = vunpack.c.l.b16 %v164
  %v930 = vunpack.c.l.b16 %v165
  %v931 = vunpack.c.l.b16 %v166
  %v932 = vunpack.c.l.b16 %v167
  %v933 = vunpack.c.l.b16 %v168
  %v934 = vunpack.c.l.b16 %v169
  %v935 = vunpack.c.l.b16 %v170
  %v936 = vunpack.c.l.b16 %v171
  %v937 = vunpack.c.l.b16 %v172
  %v938 = vunpack.c.l.b16 %v173
  %v939 = vunpack.c.l.b16 %v174
  %v940 = vunpack.c.l.b16 %v175
  %v941 = vunpack.c.l.b16 %v176
  %v942 = vunpack.c.l.b16 %v177
  %v943 = vunpack.c.l.b16 %v178
  %v944 = vunpack.c.l.b16 %v179
  %v945 = vunpack.c.l.b16 %v180
  %v946 = vunpack.c.l.b16 %v181
  %v947 = vunpack.c.l.b16 %v182
  %v948 = vunpack.c.l.b16 %v183
  %v949 = vunpack.c.l.b16 %v184
  %v950 = vunpack.c.l.b16 %v185
  %v951 = vunpack.c.l.b16 %v186
  %v952 = vunpack.c.l.b16 %v187
  %v953 = vunpack.c.l.b16 %v188
  %v954 = vunpack.c.l.b16 %v189
  %v955 = vunpack.c.l.b16 %v190
  %v956 = vunpack.c.l.b16 %v191
  %v957 = vunpack.c.l.b16 %v192
  %v958 = vunpack.c.l.b16 %v193
  %v959 = vunpack.c.l.b16 %v194
  %v960 = vunpack.c.l.b16 %v195
  %v961 = vunpack.c.l.b16 %v196
  %v962 = vunpack.c.l.b16 %v197
  %v963 = vunpack.c.l.b16 %v198
  %v964 = vunpack.c.l.b16 %v199
  %v965 = vunpack.c.l.b16 %v200
  %v966 = vunpack.c.l.b16 %v201
  %v967 = vunpack.c.l.b16 %v202
  %v968 = vunpack.c.l.b16 %v203
  %v969 = vunpack.c.l.b16 %v204
  %v970 = vunpack.c.l.b16 %v205
  %v971 = vunpack.c.l.b16 %v206
  %v972 = vunpack.c.l.b16 %v207
  %v973 = vunpack.c.l.b16 %v208
  %v974 = vunpack.c.l.b16 %v209
  %v975 = vunpack.c.l.b16 %v210
  %v976 = vunpack.c.l.b16 %v211
  %v977 = vunpack.c.l.b16 %v212
  %v978 = vunpack.c.l.b16 %v213
  %v979 = vunpack.c.l.b16 %v214
  %v980 = vunpack.c.l.b16 %v215
  %v981 = vunpack.c.l.b16 %v216
  %v982 = vunpack.c.l.b16 %v217
  %v983 = vunpack.c.l.b16 %v218
  %v984 = vunpack.c.l.b16 %v219
  %v985 = vunpack.c.l.b16 %v220
  %v986 = vunpack.c.l.b16 %v221
  %v987 = vunpack.c.l.b16 %v222
  %v988 = vunpack.c.l.b16 %v223
  %v989 = vunpack.c.l.b16 %v224
  %v990 = vunpack.c.l.b16 %v225
  %v991 = vunpack.c.l.b16 %v226
  %v992 = vunpack.c.l.b16 %v227
  %v993 = vunpack.c.l.b16 %v228
  %v994 = vunpack.c.l.b16 %v229
  %v995 = vunpack.c.l.b16 %v230
  %v996 = vunpack.c.l.b16 %v231
  %v997 = vunpack.c.l.b16 %v232
  %v998 = vunpack.c.l.b16 %v233
  %v999 = vpack.c.b16 %v928, %v927
  %v1000 = vpack.c.b16 %v930, %v929
  %v1001 = vpack.c.b16 %v932, %v931
  %v1002 = vpack.c.b16 %v934, %v933
  %v1003 = vpack.c.b16 %v936, %v935
  %v1004 = vpack.c.b16 %v938, %v937
  %v1005 = vpack.c.b16 %v940, %v939
  %v1006 = vpack.c.b16 %v942, %v941
  %v1007 = vpack.c.b16 %v944, %v943
  %v1008 = vpack.c.b16 %v946, %v945
  %v1009 = vpack.c.b16 %v948, %v947
  %v1010 = vpack.c.b16 %v950, %v949
  %v1011 = vpack.c.b16 %v952, %v951
  %v1012 = vpack.c.b16 %v954, %v953
  %v1013 = vpack.c.b16 %v956, %v955
  %v1014 = vpack.c.b16 %v958, %v957
  %v1015 = vpack.c.b16 %v960, %v959
  %v1016 = vpack.c.b16 %v962, %v961
  %v1017 = vpack.c.b16 %v964, %v963
  %v1018 = vpack.c.b16 %v966, %v965
  %v1019 = vpack.c.b16 %v968, %v967
  %v1020 = vpack.c.b16 %v970, %v969
  %v1021 = vpack.c.b16 %v972, %v971
  %v1022 = vpack.c.b16 %v974, %v973
  %v1023 = vpack.c.b16 %v976, %v975
  %v1024 = vpack.c.b16 %v978, %v977
  %v1025 = vpack.c.b16 %v980, %v979
  %v1026 = vpack.c.b16 %v982, %v981
  %v1027 = vpack.c.b16 %v984, %v983
  %v1028 = vpack.c.b16 %v986, %v985
  %v1029 = vpack.c.b16 %v988, %v987
  %v1030 = vpack.c.b16 %v990, %v989
  %v1031 = vpack.c.b16 %v992, %v991
  %v1032 = vpack.c.b16 %v994, %v993
  %v1033 = vpack.c.b16 %v996, %v995
  %v1034 = vpack.c.b16 %v998, %v997
  %vm1071 = vcmask 523264
  %v1073 = vsel %vm1071, %v634, 0
  %v1076 = vsel %vm1071, %v639, 0
  %v1079 = vsel %vm1071, %v644, 0
  %v1082 = vsel %vm1071, %v649, 0
  %v1085 = vsel %vm1071, %v654, 0
  %v1088 = vsel %vm1071, %v659, 0
  %v1091 = vsel %vm1071, %v664, 0
  %v1094 = vsel %vm1071, %v669, 0
  %v1097 = vsel %vm1071, %v674, 0
  %v1100 = vsel %vm1071, %v679, 0
  %v1103 = vsel %vm1071, %v684, 0
  %v1106 = vsel %vm1071, %v689, 0
  %v1109 = vsel %vm1071, %v694, 0
  %v1112 = vsel %vm1071, %v699, 0
  %v1115 = vsel %vm1071, %v704, 0
  %v1118 = vsel %vm1071, %v709, 0
  %v1121 = vsel %vm1071, %v714, 0
  %v1124 = vsel %vm1071, %v719, 0
  %v1127 = vsel %vm1071, %v724, 0
  %v1130 = vsel %vm1071, %v729, 0
  %v1133 = vsel %vm1071, %v734, 0
  %v1136 = vsel %vm1071, %v739, 0
  %v1139 = vsel %vm1071, %v744, 0
  %v1142 = vsel %vm1071, %v749, 0
  %v1145 = vsel %vm1071, %v754, 0
  %1147 = vmatpush.bf16.msra.mxu0 %v1006
  %1148 = vmatpush.bf16.msra.mxu0 %v1005
  %1149 = vmatpush.bf16.msra.mxu0 %v1004
  %1150 = vmatpush.bf16.msra.mxu0 %v1003
  %1151 = vmatpush.bf16.msra.mxu0 %v1002
  %1152 = vmatpush.bf16.msra.mxu0 %v1001
  %1153 = vmatpush.bf16.msra.mxu0 %v1000
  %1154 = vmatpush.bf16.msra.mxu0 %v999
  %1155 = vmatmul.bf16.gmra.mxu0 %v630
  %v1156 = vpop.f32.mrf.mxu0
  %v1157 = vadd.f32 %v236, %v1156
  %v1158 = vpop.f32.mrf.mxu0
  %v1159 = vadd.f32 %v236, %v1158
  %1160 = vmatmul.bf16.gmra.mxu0 %v635
  %v1161 = vpop.f32.mrf.mxu0
  %v1162 = vadd.f32 %v236, %v1161
  %v1163 = vpop.f32.mrf.mxu0
  %v1164 = vadd.f32 %v236, %v1163
  %1165 = vmatmul.bf16.gmra.mxu0 %v640
  %v1166 = vpop.f32.mrf.mxu0
  %v1167 = vadd.f32 %v236, %v1166
  %v1168 = vpop.f32.mrf.mxu0
  %v1169 = vadd.f32 %v236, %v1168
  %1170 = vmatmul.bf16.gmra.mxu0 %v645
  %v1171 = vpop.f32.mrf.mxu0
  %v1172 = vadd.f32 %v236, %v1171
  %v1173 = vpop.f32.mrf.mxu0
  %v1174 = vadd.f32 %v236, %v1173
  %1175 = vmatmul.bf16.gmra.mxu0 %v650
  %v1176 = vpop.f32.mrf.mxu0
  %v1177 = vadd.f32 %v236, %v1176
  %v1178 = vpop.f32.mrf.mxu0
  %v1179 = vadd.f32 %v236, %v1178
  %1180 = vmatmul.bf16.gmra.mxu0 %v655
  %v1181 = vpop.f32.mrf.mxu0
  %v1182 = vadd.f32 %v236, %v1181
  %v1183 = vpop.f32.mrf.mxu0
  %v1184 = vadd.f32 %v236, %v1183
  %1185 = vmatmul.bf16.gmra.mxu0 %v660
  %v1186 = vpop.f32.mrf.mxu0
  %v1187 = vadd.f32 %v236, %v1186
  %v1188 = vpop.f32.mrf.mxu0
  %v1189 = vadd.f32 %v236, %v1188
  %1190 = vmatmul.bf16.gmra.mxu0 %v665
  %v1191 = vpop.f32.mrf.mxu0
  %v1192 = vadd.f32 %v236, %v1191
  %v1193 = vpop.f32.mrf.mxu0
  %v1194 = vadd.f32 %v236, %v1193
  %1195 = vmatmul.bf16.gmra.mxu0 %v670
  %v1196 = vpop.f32.mrf.mxu0
  %v1197 = vadd.f32 %v236, %v1196
  %v1198 = vpop.f32.mrf.mxu0
  %v1199 = vadd.f32 %v236, %v1198
  %1200 = vmatmul.bf16.gmra.mxu0 %v675
  %v1201 = vpop.f32.mrf.mxu0
  %v1202 = vadd.f32 %v236, %v1201
  %v1203 = vpop.f32.mrf.mxu0
  %v1204 = vadd.f32 %v236, %v1203
  %1205 = vmatmul.bf16.gmra.mxu0 %v680
  %v1206 = vpop.f32.mrf.mxu0
  %v1207 = vadd.f32 %v236, %v1206
  %v1208 = vpop.f32.mrf.mxu0
  %v1209 = vadd.f32 %v236, %v1208
  %1210 = vmatmul.bf16.gmra.mxu0 %v685
  %v1211 = vpop.f32.mrf.mxu0
  %v1212 = vadd.f32 %v236, %v1211
  %v1213 = vpop.f32.mrf.mxu0
  %v1214 = vadd.f32 %v236, %v1213
  %1215 = vmatmul.bf16.gmra.mxu0 %v690
  %v1216 = vpop.f32.mrf.mxu0
  %v1217 = vadd.f32 %v236, %v1216
  %v1218 = vpop.f32.mrf.mxu0
  %v1219 = vadd.f32 %v236, %v1218
  %1220 = vmatmul.bf16.gmra.mxu0 %v695
  %v1221 = vpop.f32.mrf.mxu0
  %v1222 = vadd.f32 %v236, %v1221
  %v1223 = vpop.f32.mrf.mxu0
  %v1224 = vadd.f32 %v236, %v1223
  %1225 = vmatmul.bf16.gmra.mxu0 %v700
  %v1226 = vpop.f32.mrf.mxu0
  %v1227 = vadd.f32 %v236, %v1226
  %v1228 = vpop.f32.mrf.mxu0
  %v1229 = vadd.f32 %v236, %v1228
  %1230 = vmatmul.bf16.gmra.mxu0 %v705
  %v1231 = vpop.f32.mrf.mxu0
  %v1232 = vadd.f32 %v236, %v1231
  %v1233 = vpop.f32.mrf.mxu0
  %v1234 = vadd.f32 %v236, %v1233
  %1235 = vmatmul.bf16.gmra.mxu0 %v710
  %v1236 = vpop.f32.mrf.mxu0
  %v1237 = vadd.f32 %v236, %v1236
  %v1238 = vpop.f32.mrf.mxu0
  %v1239 = vadd.f32 %v236, %v1238
  %1240 = vmatmul.bf16.gmra.mxu0 %v715
  %v1241 = vpop.f32.mrf.mxu0
  %v1242 = vadd.f32 %v236, %v1241
  %v1243 = vpop.f32.mrf.mxu0
  %v1244 = vadd.f32 %v236, %v1243
  %1245 = vmatmul.bf16.gmra.mxu0 %v720
  %v1246 = vpop.f32.mrf.mxu0
  %v1247 = vadd.f32 %v236, %v1246
  %v1248 = vpop.f32.mrf.mxu0
  %v1249 = vadd.f32 %v236, %v1248
  %1250 = vmatmul.bf16.gmra.mxu0 %v725
  %v1251 = vpop.f32.mrf.mxu0
  %v1252 = vadd.f32 %v236, %v1251
  %v1253 = vpop.f32.mrf.mxu0
  %v1254 = vadd.f32 %v236, %v1253
  %1255 = vmatmul.bf16.gmra.mxu0 %v730
  %v1256 = vpop.f32.mrf.mxu0
  %v1257 = vadd.f32 %v236, %v1256
  %v1258 = vpop.f32.mrf.mxu0
  %v1259 = vadd.f32 %v236, %v1258
  %1260 = vmatmul.bf16.gmra.mxu0 %v735
  %v1261 = vpop.f32.mrf.mxu0
  %v1262 = vadd.f32 %v236, %v1261
  %v1263 = vpop.f32.mrf.mxu0
  %v1264 = vadd.f32 %v236, %v1263
  %1265 = vmatmul.bf16.gmra.mxu0 %v740
  %v1266 = vpop.f32.mrf.mxu0
  %v1267 = vadd.f32 %v236, %v1266
  %v1268 = vpop.f32.mrf.mxu0
  %v1269 = vadd.f32 %v236, %v1268
  %1270 = vmatmul.bf16.gmra.mxu0 %v745
  %v1271 = vpop.f32.mrf.mxu0
  %v1272 = vadd.f32 %v236, %v1271
  %v1273 = vpop.f32.mrf.mxu0
  %v1274 = vadd.f32 %v236, %v1273
  %1275 = vmatmul.bf16.gmra.mxu0 %v750
  %v1276 = vpop.f32.mrf.mxu0
  %v1277 = vadd.f32 %v236, %v1276
  %v1278 = vpop.f32.mrf.mxu0
  %1279 = vdwg.mxu0
  %1280 = vmatpush.bf16.msra.mxu0 %v1014
  %1281 = vmatpush.bf16.msra.mxu0 %v1013
  %1282 = vmatpush.bf16.msra.mxu0 %v1012
  %1283 = vmatpush.bf16.msra.mxu0 %v1011
  %1284 = vmatpush.bf16.msra.mxu0 %v1010
  %1285 = vmatpush.bf16.msra.mxu0 %v1009
  %1286 = vmatpush.bf16.msra.mxu0 %v1008
  %1287 = vmatpush.bf16.msra.mxu0 %v1007
  %1288 = vmatmul.bf16.gmra.mxu0 %v631
  %v1289 = vpop.f32.mrf.mxu0
  %v1290 = vadd.f32 %v1157, %v1289
  %v1291 = vpop.f32.mrf.mxu0
  %v1292 = vadd.f32 %v1159, %v1291
  %1293 = vmatmul.bf16.gmra.mxu0 %v636
  %v1294 = vpop.f32.mrf.mxu0
  %v1295 = vadd.f32 %v1162, %v1294
  %v1296 = vpop.f32.mrf.mxu0
  %v1297 = vadd.f32 %v1164, %v1296
  %1298 = vmatmul.bf16.gmra.mxu0 %v641
  %v1299 = vpop.f32.mrf.mxu0
  %v1300 = vadd.f32 %v1167, %v1299
  %v1301 = vpop.f32.mrf.mxu0
  %v1302 = vadd.f32 %v1169, %v1301
  %1303 = vmatmul.bf16.gmra.mxu0 %v646
  %v1304 = vpop.f32.mrf.mxu0
  %v1305 = vadd.f32 %v1172, %v1304
  %v1306 = vpop.f32.mrf.mxu0
  %v1307 = vadd.f32 %v1174, %v1306
  %1308 = vmatmul.bf16.gmra.mxu0 %v651
  %v1309 = vpop.f32.mrf.mxu0
  %v1310 = vadd.f32 %v1177, %v1309
  %v1311 = vpop.f32.mrf.mxu0
  %v1312 = vadd.f32 %v1179, %v1311
  %1313 = vmatmul.bf16.gmra.mxu0 %v656
  %v1314 = vpop.f32.mrf.mxu0
  %v1315 = vadd.f32 %v1182, %v1314
  %v1316 = vpop.f32.mrf.mxu0
  %v1317 = vadd.f32 %v1184, %v1316
  %1318 = vmatmul.bf16.gmra.mxu0 %v661
  %v1319 = vpop.f32.mrf.mxu0
  %v1320 = vadd.f32 %v1187, %v1319
  %v1321 = vpop.f32.mrf.mxu0
  %v1322 = vadd.f32 %v1189, %v1321
  %1323 = vmatmul.bf16.gmra.mxu0 %v666
  %v1324 = vpop.f32.mrf.mxu0
  %v1325 = vadd.f32 %v1192, %v1324
  %v1326 = vpop.f32.mrf.mxu0
  %v1327 = vadd.f32 %v1194, %v1326
  %1328 = vmatmul.bf16.gmra.mxu0 %v671
  %v1329 = vpop.f32.mrf.mxu0
  %v1330 = vadd.f32 %v1197, %v1329
  %v1331 = vpop.f32.mrf.mxu0
  %v1332 = vadd.f32 %v1199, %v1331
  %1333 = vmatmul.bf16.gmra.mxu0 %v676
  %v1334 = vpop.f32.mrf.mxu0
  %v1335 = vadd.f32 %v1202, %v1334
  %v1336 = vpop.f32.mrf.mxu0
  %v1337 = vadd.f32 %v1204, %v1336
  %1338 = vmatmul.bf16.gmra.mxu0 %v681
  %v1339 = vpop.f32.mrf.mxu0
  %v1340 = vadd.f32 %v1207, %v1339
  %v1341 = vpop.f32.mrf.mxu0
  %v1342 = vadd.f32 %v1209, %v1341
  %1343 = vmatmul.bf16.gmra.mxu0 %v686
  %v1344 = vpop.f32.mrf.mxu0
  %v1345 = vadd.f32 %v1212, %v1344
  %v1346 = vpop.f32.mrf.mxu0
  %v1347 = vadd.f32 %v1214, %v1346
  %1348 = vmatmul.bf16.gmra.mxu0 %v691
  %v1349 = vpop.f32.mrf.mxu0
  %v1350 = vadd.f32 %v1217, %v1349
  %v1351 = vpop.f32.mrf.mxu0
  %v1352 = vadd.f32 %v1219, %v1351
  %1353 = vmatmul.bf16.gmra.mxu0 %v696
  %v1354 = vpop.f32.mrf.mxu0
  %v1355 = vadd.f32 %v1222, %v1354
  %v1356 = vpop.f32.mrf.mxu0
  %v1357 = vadd.f32 %v1224, %v1356
  %1358 = vmatmul.bf16.gmra.mxu0 %v701
  %v1359 = vpop.f32.mrf.mxu0
  %v1360 = vadd.f32 %v1227, %v1359
  %v1361 = vpop.f32.mrf.mxu0
  %v1362 = vadd.f32 %v1229, %v1361
  %1363 = vmatmul.bf16.gmra.mxu0 %v706
  %v1364 = vpop.f32.mrf.mxu0
  %v1365 = vadd.f32 %v1232, %v1364
  %v1366 = vpop.f32.mrf.mxu0
  %v1367 = vadd.f32 %v1234, %v1366
  %1368 = vmatmul.bf16.gmra.mxu0 %v711
  %v1369 = vpop.f32.mrf.mxu0
  %v1370 = vadd.f32 %v1237, %v1369
  %v1371 = vpop.f32.mrf.mxu0
  %v1372 = vadd.f32 %v1239, %v1371
  %1373 = vmatmul.bf16.gmra.mxu0 %v716
  %v1374 = vpop.f32.mrf.mxu0
  %v1375 = vadd.f32 %v1242, %v1374
  %v1376 = vpop.f32.mrf.mxu0
  %v1377 = vadd.f32 %v1244, %v1376
  %1378 = vmatmul.bf16.gmra.mxu0 %v721
  %v1379 = vpop.f32.mrf.mxu0
  %v1380 = vadd.f32 %v1247, %v1379
  %v1381 = vpop.f32.mrf.mxu0
  %v1382 = vadd.f32 %v1249, %v1381
  %1383 = vmatmul.bf16.gmra.mxu0 %v726
  %v1384 = vpop.f32.mrf.mxu0
  %v1385 = vadd.f32 %v1252, %v1384
  %v1386 = vpop.f32.mrf.mxu0
  %v1387 = vadd.f32 %v1254, %v1386
  %1388 = vmatmul.bf16.gmra.mxu0 %v731
  %v1389 = vpop.f32.mrf.mxu0
  %v1390 = vadd.f32 %v1257, %v1389
  %v1391 = vpop.f32.mrf.mxu0
  %v1392 = vadd.f32 %v1259, %v1391
  %1393 = vmatmul.bf16.gmra.mxu0 %v736
  %v1394 = vpop.f32.mrf.mxu0
  %v1395 = vadd.f32 %v1262, %v1394
  %v1396 = vpop.f32.mrf.mxu0
  %v1397 = vadd.f32 %v1264, %v1396
  %1398 = vmatmul.bf16.gmra.mxu0 %v741
  %v1399 = vpop.f32.mrf.mxu0
  %v1400 = vadd.f32 %v1267, %v1399
  %v1401 = vpop.f32.mrf.mxu0
  %v1402 = vadd.f32 %v1269, %v1401
  %1403 = vmatmul.bf16.gmra.mxu0 %v746
  %v1404 = vpop.f32.mrf.mxu0
  %v1405 = vadd.f32 %v1272, %v1404
  %v1406 = vpop.f32.mrf.mxu0
  %v1407 = vadd.f32 %v1274, %v1406
  %1408 = vmatmul.bf16.gmra.mxu0 %v751
  %v1409 = vpop.f32.mrf.mxu0
  %v1410 = vadd.f32 %v1277, %v1409
  %v1411 = vpop.f32.mrf.mxu0
  %1412 = vdwg.mxu0
  %1413 = vmatpush.bf16.msra.mxu0 %v1022
  %1414 = vmatpush.bf16.msra.mxu0 %v1021
  %1415 = vmatpush.bf16.msra.mxu0 %v1020
  %1416 = vmatpush.bf16.msra.mxu0 %v1019
  %1417 = vmatpush.bf16.msra.mxu0 %v1018
  %1418 = vmatpush.bf16.msra.mxu0 %v1017
  %1419 = vmatpush.bf16.msra.mxu0 %v1016
  %1420 = vmatpush.bf16.msra.mxu0 %v1015
  %1421 = vmatmul.bf16.gmra.mxu0 %v632
  %v1422 = vpop.f32.mrf.mxu0
  %v1423 = vadd.f32 %v1290, %v1422
  %v1424 = vpop.f32.mrf.mxu0
  %v1425 = vadd.f32 %v1292, %v1424
  %1426 = vmatmul.bf16.gmra.mxu0 %v637
  %v1427 = vpop.f32.mrf.mxu0
  %v1428 = vadd.f32 %v1295, %v1427
  %v1429 = vpop.f32.mrf.mxu0
  %v1430 = vadd.f32 %v1297, %v1429
  %1431 = vmatmul.bf16.gmra.mxu0 %v642
  %v1432 = vpop.f32.mrf.mxu0
  %v1433 = vadd.f32 %v1300, %v1432
  %v1434 = vpop.f32.mrf.mxu0
  %v1435 = vadd.f32 %v1302, %v1434
  %1436 = vmatmul.bf16.gmra.mxu0 %v647
  %v1437 = vpop.f32.mrf.mxu0
  %v1438 = vadd.f32 %v1305, %v1437
  %v1439 = vpop.f32.mrf.mxu0
  %v1440 = vadd.f32 %v1307, %v1439
  %1441 = vmatmul.bf16.gmra.mxu0 %v652
  %v1442 = vpop.f32.mrf.mxu0
  %v1443 = vadd.f32 %v1310, %v1442
  %v1444 = vpop.f32.mrf.mxu0
  %v1445 = vadd.f32 %v1312, %v1444
  %1446 = vmatmul.bf16.gmra.mxu0 %v657
  %v1447 = vpop.f32.mrf.mxu0
  %v1448 = vadd.f32 %v1315, %v1447
  %v1449 = vpop.f32.mrf.mxu0
  %v1450 = vadd.f32 %v1317, %v1449
  %1451 = vmatmul.bf16.gmra.mxu0 %v662
  %v1452 = vpop.f32.mrf.mxu0
  %v1453 = vadd.f32 %v1320, %v1452
  %v1454 = vpop.f32.mrf.mxu0
  %v1455 = vadd.f32 %v1322, %v1454
  %1456 = vmatmul.bf16.gmra.mxu0 %v667
  %v1457 = vpop.f32.mrf.mxu0
  %v1458 = vadd.f32 %v1325, %v1457
  %v1459 = vpop.f32.mrf.mxu0
  %v1460 = vadd.f32 %v1327, %v1459
  %1461 = vmatmul.bf16.gmra.mxu0 %v672
  %v1462 = vpop.f32.mrf.mxu0
  %v1463 = vadd.f32 %v1330, %v1462
  %v1464 = vpop.f32.mrf.mxu0
  %v1465 = vadd.f32 %v1332, %v1464
  %1466 = vmatmul.bf16.gmra.mxu0 %v677
  %v1467 = vpop.f32.mrf.mxu0
  %v1468 = vadd.f32 %v1335, %v1467
  %v1469 = vpop.f32.mrf.mxu0
  %v1470 = vadd.f32 %v1337, %v1469
  %1471 = vmatmul.bf16.gmra.mxu0 %v682
  %v1472 = vpop.f32.mrf.mxu0
  %v1473 = vadd.f32 %v1340, %v1472
  %v1474 = vpop.f32.mrf.mxu0
  %v1475 = vadd.f32 %v1342, %v1474
  %1476 = vmatmul.bf16.gmra.mxu0 %v687
  %v1477 = vpop.f32.mrf.mxu0
  %v1478 = vadd.f32 %v1345, %v1477
  %v1479 = vpop.f32.mrf.mxu0
  %v1480 = vadd.f32 %v1347, %v1479
  %1481 = vmatmul.bf16.gmra.mxu0 %v692
  %v1482 = vpop.f32.mrf.mxu0
  %v1483 = vadd.f32 %v1350, %v1482
  %v1484 = vpop.f32.mrf.mxu0
  %v1485 = vadd.f32 %v1352, %v1484
  %1486 = vmatmul.bf16.gmra.mxu0 %v697
  %v1487 = vpop.f32.mrf.mxu0
  %v1488 = vadd.f32 %v1355, %v1487
  %v1489 = vpop.f32.mrf.mxu0
  %v1490 = vadd.f32 %v1357, %v1489
  %1491 = vmatmul.bf16.gmra.mxu0 %v702
  %v1492 = vpop.f32.mrf.mxu0
  %v1493 = vadd.f32 %v1360, %v1492
  %v1494 = vpop.f32.mrf.mxu0
  %v1495 = vadd.f32 %v1362, %v1494
  %1496 = vmatmul.bf16.gmra.mxu0 %v707
  %v1497 = vpop.f32.mrf.mxu0
  %v1498 = vadd.f32 %v1365, %v1497
  %v1499 = vpop.f32.mrf.mxu0
  %v1500 = vadd.f32 %v1367, %v1499
  %1501 = vmatmul.bf16.gmra.mxu0 %v712
  %v1502 = vpop.f32.mrf.mxu0
  %v1503 = vadd.f32 %v1370, %v1502
  %v1504 = vpop.f32.mrf.mxu0
  %v1505 = vadd.f32 %v1372, %v1504
  %1506 = vmatmul.bf16.gmra.mxu0 %v717
  %v1507 = vpop.f32.mrf.mxu0
  %v1508 = vadd.f32 %v1375, %v1507
  %v1509 = vpop.f32.mrf.mxu0
  %v1510 = vadd.f32 %v1377, %v1509
  %1511 = vmatmul.bf16.gmra.mxu0 %v722
  %v1512 = vpop.f32.mrf.mxu0
  %v1513 = vadd.f32 %v1380, %v1512
  %v1514 = vpop.f32.mrf.mxu0
  %v1515 = vadd.f32 %v1382, %v1514
  %1516 = vmatmul.bf16.gmra.mxu0 %v727
  %v1517 = vpop.f32.mrf.mxu0
  %v1518 = vadd.f32 %v1385, %v1517
  %v1519 = vpop.f32.mrf.mxu0
  %v1520 = vadd.f32 %v1387, %v1519
  %1521 = vmatmul.bf16.gmra.mxu0 %v732
  %v1522 = vpop.f32.mrf.mxu0
  %v1523 = vadd.f32 %v1390, %v1522
  %v1524 = vpop.f32.mrf.mxu0
  %v1525 = vadd.f32 %v1392, %v1524
  %1526 = vmatmul.bf16.gmra.mxu0 %v737
  %v1527 = vpop.f32.mrf.mxu0
  %v1528 = vadd.f32 %v1395, %v1527
  %v1529 = vpop.f32.mrf.mxu0
  %v1530 = vadd.f32 %v1397, %v1529
  %1531 = vmatmul.bf16.gmra.mxu0 %v742
  %v1532 = vpop.f32.mrf.mxu0
  %v1533 = vadd.f32 %v1400, %v1532
  %v1534 = vpop.f32.mrf.mxu0
  %v1535 = vadd.f32 %v1402, %v1534
  %1536 = vmatmul.bf16.gmra.mxu0 %v747
  %v1537 = vpop.f32.mrf.mxu0
  %v1538 = vadd.f32 %v1405, %v1537
  %v1539 = vpop.f32.mrf.mxu0
  %v1540 = vadd.f32 %v1407, %v1539
  %1541 = vmatmul.bf16.gmra.mxu0 %v752
  %v1542 = vpop.f32.mrf.mxu0
  %v1543 = vadd.f32 %v1410, %v1542
  %v1544 = vpop.f32.mrf.mxu0
  %1545 = vdwg.mxu0
  %1546 = vmatpush.bf16.msra.mxu0 %v1030
  %1547 = vmatpush.bf16.msra.mxu0 %v1029
  %1548 = vmatpush.bf16.msra.mxu0 %v1028
  %1549 = vmatpush.bf16.msra.mxu0 %v1027
  %1550 = vmatpush.bf16.msra.mxu0 %v1026
  %1551 = vmatpush.bf16.msra.mxu0 %v1025
  %1552 = vmatpush.bf16.msra.mxu0 %v1024
  %1553 = vmatpush.bf16.msra.mxu0 %v1023
  %1554 = vmatmul.bf16.gmra.mxu0 %v633
  %v1555 = vpop.f32.mrf.mxu0
  %v1556 = vadd.f32 %v1423, %v1555
  %v1557 = vpop.f32.mrf.mxu0
  %v1558 = vadd.f32 %v1425, %v1557
  %1559 = vmatmul.bf16.gmra.mxu0 %v638
  %v1560 = vpop.f32.mrf.mxu0
  %v1561 = vadd.f32 %v1428, %v1560
  %v1562 = vpop.f32.mrf.mxu0
  %v1563 = vadd.f32 %v1430, %v1562
  %1564 = vmatmul.bf16.gmra.mxu0 %v643
  %v1565 = vpop.f32.mrf.mxu0
  %v1566 = vadd.f32 %v1433, %v1565
  %v1567 = vpop.f32.mrf.mxu0
  %v1568 = vadd.f32 %v1435, %v1567
  %1569 = vmatmul.bf16.gmra.mxu0 %v648
  %v1570 = vpop.f32.mrf.mxu0
  %v1571 = vadd.f32 %v1438, %v1570
  %v1572 = vpop.f32.mrf.mxu0
  %v1573 = vadd.f32 %v1440, %v1572
  %1574 = vmatmul.bf16.gmra.mxu0 %v653
  %v1575 = vpop.f32.mrf.mxu0
  %v1576 = vadd.f32 %v1443, %v1575
  %v1577 = vpop.f32.mrf.mxu0
  %v1578 = vadd.f32 %v1445, %v1577
  %1579 = vmatmul.bf16.gmra.mxu0 %v658
  %v1580 = vpop.f32.mrf.mxu0
  %v1581 = vadd.f32 %v1448, %v1580
  %v1582 = vpop.f32.mrf.mxu0
  %v1583 = vadd.f32 %v1450, %v1582
  %1584 = vmatmul.bf16.gmra.mxu0 %v663
  %v1585 = vpop.f32.mrf.mxu0
  %v1586 = vadd.f32 %v1453, %v1585
  %v1587 = vpop.f32.mrf.mxu0
  %v1588 = vadd.f32 %v1455, %v1587
  %1589 = vmatmul.bf16.gmra.mxu0 %v668
  %v1590 = vpop.f32.mrf.mxu0
  %v1591 = vadd.f32 %v1458, %v1590
  %v1592 = vpop.f32.mrf.mxu0
  %v1593 = vadd.f32 %v1460, %v1592
  %1594 = vmatmul.bf16.gmra.mxu0 %v673
  %v1595 = vpop.f32.mrf.mxu0
  %v1596 = vadd.f32 %v1463, %v1595
  %v1597 = vpop.f32.mrf.mxu0
  %v1598 = vadd.f32 %v1465, %v1597
  %1599 = vmatmul.bf16.gmra.mxu0 %v678
  %v1600 = vpop.f32.mrf.mxu0
  %v1601 = vadd.f32 %v1468, %v1600
  %v1602 = vpop.f32.mrf.mxu0
  %v1603 = vadd.f32 %v1470, %v1602
  %1604 = vmatmul.bf16.gmra.mxu0 %v683
  %v1605 = vpop.f32.mrf.mxu0
  %v1606 = vadd.f32 %v1473, %v1605
  %v1607 = vpop.f32.mrf.mxu0
  %v1608 = vadd.f32 %v1475, %v1607
  %1609 = vmatmul.bf16.gmra.mxu0 %v688
  %v1610 = vpop.f32.mrf.mxu0
  %v1611 = vadd.f32 %v1478, %v1610
  %v1612 = vpop.f32.mrf.mxu0
  %v1613 = vadd.f32 %v1480, %v1612
  %1614 = vmatmul.bf16.gmra.mxu0 %v693
  %v1615 = vpop.f32.mrf.mxu0
  %v1616 = vadd.f32 %v1483, %v1615
  %v1617 = vpop.f32.mrf.mxu0
  %v1618 = vadd.f32 %v1485, %v1617
  %1619 = vmatmul.bf16.gmra.mxu0 %v698
  %v1620 = vpop.f32.mrf.mxu0
  %v1621 = vadd.f32 %v1488, %v1620
  %v1622 = vpop.f32.mrf.mxu0
  %v1623 = vadd.f32 %v1490, %v1622
  %1624 = vmatmul.bf16.gmra.mxu0 %v703
  %v1625 = vpop.f32.mrf.mxu0
  %v1626 = vadd.f32 %v1493, %v1625
  %v1627 = vpop.f32.mrf.mxu0
  %v1628 = vadd.f32 %v1495, %v1627
  %1629 = vmatmul.bf16.gmra.mxu0 %v708
  %v1630 = vpop.f32.mrf.mxu0
  %v1631 = vadd.f32 %v1498, %v1630
  %v1632 = vpop.f32.mrf.mxu0
  %v1633 = vadd.f32 %v1500, %v1632
  %1634 = vmatmul.bf16.gmra.mxu0 %v713
  %v1635 = vpop.f32.mrf.mxu0
  %v1636 = vadd.f32 %v1503, %v1635
  %v1637 = vpop.f32.mrf.mxu0
  %v1638 = vadd.f32 %v1505, %v1637
  %1639 = vmatmul.bf16.gmra.mxu0 %v718
  %v1640 = vpop.f32.mrf.mxu0
  %v1641 = vadd.f32 %v1508, %v1640
  %v1642 = vpop.f32.mrf.mxu0
  %v1643 = vadd.f32 %v1510, %v1642
  %1644 = vmatmul.bf16.gmra.mxu0 %v723
  %v1645 = vpop.f32.mrf.mxu0
  %v1646 = vadd.f32 %v1513, %v1645
  %v1647 = vpop.f32.mrf.mxu0
  %v1648 = vadd.f32 %v1515, %v1647
  %1649 = vmatmul.bf16.gmra.mxu0 %v728
  %v1650 = vpop.f32.mrf.mxu0
  %v1651 = vadd.f32 %v1518, %v1650
  %v1652 = vpop.f32.mrf.mxu0
  %v1653 = vadd.f32 %v1520, %v1652
  %1654 = vmatmul.bf16.gmra.mxu0 %v733
  %v1655 = vpop.f32.mrf.mxu0
  %v1656 = vadd.f32 %v1523, %v1655
  %v1657 = vpop.f32.mrf.mxu0
  %v1658 = vadd.f32 %v1525, %v1657
  %1659 = vmatmul.bf16.gmra.mxu0 %v738
  %v1660 = vpop.f32.mrf.mxu0
  %v1661 = vadd.f32 %v1528, %v1660
  %v1662 = vpop.f32.mrf.mxu0
  %v1663 = vadd.f32 %v1530, %v1662
  %1664 = vmatmul.bf16.gmra.mxu0 %v743
  %v1665 = vpop.f32.mrf.mxu0
  %v1666 = vadd.f32 %v1533, %v1665
  %v1667 = vpop.f32.mrf.mxu0
  %v1668 = vadd.f32 %v1535, %v1667
  %1669 = vmatmul.bf16.gmra.mxu0 %v748
  %v1670 = vpop.f32.mrf.mxu0
  %v1671 = vadd.f32 %v1538, %v1670
  %v1672 = vpop.f32.mrf.mxu0
  %v1673 = vadd.f32 %v1540, %v1672
  %1674 = vmatmul.bf16.gmra.mxu0 %v753
  %v1675 = vpop.f32.mrf.mxu0
  %v1676 = vadd.f32 %v1543, %v1675
  %v1677 = vpop.f32.mrf.mxu0
  %1678 = vdwg.mxu0
  %1679 = vmatpush.bf16.msra.mxu0 0
  %1680 = vmatpush.bf16.msra.mxu0 0
  %1681 = vmatpush.bf16.msra.mxu0 0
  %1682 = vmatpush.bf16.msra.mxu0 0
  %1683 = vmatpush.bf16.msra.mxu0 %v1034
  %1684 = vmatpush.bf16.msra.mxu0 %v1033
  %1685 = vmatpush.bf16.msra.mxu0 %v1032
  %1686 = vmatpush.bf16.msra.mxu0 %v1031
  %1687 = vmatmul.bf16.gmra.mxu0 %v1073
  %v1688 = vpop.f32.mrf.mxu0
  %v1689 = vadd.f32 %v1556, %v1688
  %v1690 = vpop.f32.mrf.mxu0
  %v1691 = vadd.f32 %v1558, %v1690
  %1692 = vmatmul.bf16.gmra.mxu0 %v1076
  %v1693 = vpop.f32.mrf.mxu0
  %v1694 = vadd.f32 %v1561, %v1693
  %v1695 = vpop.f32.mrf.mxu0
  %v1696 = vadd.f32 %v1563, %v1695
  %1697 = vmatmul.bf16.gmra.mxu0 %v1079
  %v1698 = vpop.f32.mrf.mxu0
  %v1699 = vadd.f32 %v1566, %v1698
  %v1700 = vpop.f32.mrf.mxu0
  %v1701 = vadd.f32 %v1568, %v1700
  %1702 = vmatmul.bf16.gmra.mxu0 %v1082
  %v1703 = vpop.f32.mrf.mxu0
  %v1704 = vadd.f32 %v1571, %v1703
  %v1705 = vpop.f32.mrf.mxu0
  %v1706 = vadd.f32 %v1573, %v1705
  %1707 = vmatmul.bf16.gmra.mxu0 %v1085
  %v1708 = vpop.f32.mrf.mxu0
  %v1709 = vadd.f32 %v1576, %v1708
  %v1710 = vpop.f32.mrf.mxu0
  %v1711 = vadd.f32 %v1578, %v1710
  %1712 = vmatmul.bf16.gmra.mxu0 %v1088
  %v1713 = vpop.f32.mrf.mxu0
  %v1714 = vadd.f32 %v1581, %v1713
  %v1715 = vpop.f32.mrf.mxu0
  %v1716 = vadd.f32 %v1583, %v1715
  %1717 = vmatmul.bf16.gmra.mxu0 %v1091
  %v1718 = vpop.f32.mrf.mxu0
  %v1719 = vadd.f32 %v1586, %v1718
  %v1720 = vpop.f32.mrf.mxu0
  %v1721 = vadd.f32 %v1588, %v1720
  %1722 = vmatmul.bf16.gmra.mxu0 %v1094
  %v1723 = vpop.f32.mrf.mxu0
  %v1724 = vadd.f32 %v1591, %v1723
  %v1725 = vpop.f32.mrf.mxu0
  %v1726 = vadd.f32 %v1593, %v1725
  %1727 = vmatmul.bf16.gmra.mxu0 %v1097
  %v1728 = vpop.f32.mrf.mxu0
  %v1729 = vadd.f32 %v1596, %v1728
  %v1730 = vpop.f32.mrf.mxu0
  %v1731 = vadd.f32 %v1598, %v1730
  %1732 = vmatmul.bf16.gmra.mxu0 %v1100
  %v1733 = vpop.f32.mrf.mxu0
  %v1734 = vadd.f32 %v1601, %v1733
  %v1735 = vpop.f32.mrf.mxu0
  %v1736 = vadd.f32 %v1603, %v1735
  %1737 = vmatmul.bf16.gmra.mxu0 %v1103
  %v1738 = vpop.f32.mrf.mxu0
  %v1739 = vadd.f32 %v1606, %v1738
  %v1740 = vpop.f32.mrf.mxu0
  %v1741 = vadd.f32 %v1608, %v1740
  %1742 = vmatmul.bf16.gmra.mxu0 %v1106
  %v1743 = vpop.f32.mrf.mxu0
  %v1744 = vadd.f32 %v1611, %v1743
  %v1745 = vpop.f32.mrf.mxu0
  %v1746 = vadd.f32 %v1613, %v1745
  %1747 = vmatmul.bf16.gmra.mxu0 %v1109
  %v1748 = vpop.f32.mrf.mxu0
  %v1749 = vadd.f32 %v1616, %v1748
  %v1750 = vpop.f32.mrf.mxu0
  %v1751 = vadd.f32 %v1618, %v1750
  %1752 = vmatmul.bf16.gmra.mxu0 %v1112
  %v1753 = vpop.f32.mrf.mxu0
  %v1754 = vadd.f32 %v1621, %v1753
  %v1755 = vpop.f32.mrf.mxu0
  %v1756 = vadd.f32 %v1623, %v1755
  %1757 = vmatmul.bf16.gmra.mxu0 %v1115
  %v1758 = vpop.f32.mrf.mxu0
  %v1759 = vadd.f32 %v1626, %v1758
  %v1760 = vpop.f32.mrf.mxu0
  %v1761 = vadd.f32 %v1628, %v1760
  %1762 = vmatmul.bf16.gmra.mxu0 %v1118
  %v1763 = vpop.f32.mrf.mxu0
  %v1764 = vadd.f32 %v1631, %v1763
  %v1765 = vpop.f32.mrf.mxu0
  %v1766 = vadd.f32 %v1633, %v1765
  %1767 = vmatmul.bf16.gmra.mxu0 %v1121
  %v1768 = vpop.f32.mrf.mxu0
  %v1769 = vadd.f32 %v1636, %v1768
  %v1770 = vpop.f32.mrf.mxu0
  %v1771 = vadd.f32 %v1638, %v1770
  %1772 = vmatmul.bf16.gmra.mxu0 %v1124
  %v1773 = vpop.f32.mrf.mxu0
  %v1774 = vadd.f32 %v1641, %v1773
  %v1775 = vpop.f32.mrf.mxu0
  %v1776 = vadd.f32 %v1643, %v1775
  %1777 = vmatmul.bf16.gmra.mxu0 %v1127
  %v1778 = vpop.f32.mrf.mxu0
  %v1779 = vadd.f32 %v1646, %v1778
  %v1780 = vpop.f32.mrf.mxu0
  %v1781 = vadd.f32 %v1648, %v1780
  %1782 = vmatmul.bf16.gmra.mxu0 %v1130
  %v1783 = vpop.f32.mrf.mxu0
  %v1784 = vadd.f32 %v1651, %v1783
  %v1785 = vpop.f32.mrf.mxu0
  %v1786 = vadd.f32 %v1653, %v1785
  %1787 = vmatmul.bf16.gmra.mxu0 %v1133
  %v1788 = vpop.f32.mrf.mxu0
  %v1789 = vadd.f32 %v1656, %v1788
  %v1790 = vpop.f32.mrf.mxu0
  %v1791 = vadd.f32 %v1658, %v1790
  %1792 = vmatmul.bf16.gmra.mxu0 %v1136
  %v1793 = vpop.f32.mrf.mxu0
  %v1794 = vadd.f32 %v1661, %v1793
  %v1795 = vpop.f32.mrf.mxu0
  %v1796 = vadd.f32 %v1663, %v1795
  %1797 = vmatmul.bf16.gmra.mxu0 %v1139
  %v1798 = vpop.f32.mrf.mxu0
  %v1799 = vadd.f32 %v1666, %v1798
  %v1800 = vpop.f32.mrf.mxu0
  %v1801 = vadd.f32 %v1668, %v1800
  %1802 = vmatmul.bf16.gmra.mxu0 %v1142
  %v1803 = vpop.f32.mrf.mxu0
  %v1804 = vadd.f32 %v1671, %v1803
  %v1805 = vpop.f32.mrf.mxu0
  %v1806 = vadd.f32 %v1673, %v1805
  %1807 = vmatmul.bf16.gmra.mxu0 %v1145
  %v1808 = vpop.f32.mrf.mxu0
  %v1809 = vadd.f32 %v1676, %v1808
  %v1810 = vpop.f32.mrf.mxu0
  %1811 = vdwg.mxu0
  %v1812 = vmax.f32 %v1689, 0.0
  %v1813 = vmax.f32 %v1691, 0.0
  %v1814 = vmax.f32 %v1694, 0.0
  %v1815 = vmax.f32 %v1696, 0.0
  %v1816 = vmax.f32 %v1699, 0.0
  %v1817 = vmax.f32 %v1701, 0.0
  %v1818 = vmax.f32 %v1704, 0.0
  %v1819 = vmax.f32 %v1706, 0.0
  %v1820 = vmax.f32 %v1709, 0.0
  %v1821 = vmax.f32 %v1711, 0.0
  %v1822 = vmax.f32 %v1714, 0.0
  %v1823 = vmax.f32 %v1716, 0.0
  %v1824 = vmax.f32 %v1719, 0.0
  %v1825 = vmax.f32 %v1721, 0.0
  %v1826 = vmax.f32 %v1724, 0.0
  %v1827 = vmax.f32 %v1726, 0.0
  %v1828 = vmax.f32 %v1729, 0.0
  %v1829 = vmax.f32 %v1731, 0.0
  %v1830 = vmax.f32 %v1734, 0.0
  %v1831 = vmax.f32 %v1736, 0.0
  %v1832 = vmax.f32 %v1739, 0.0
  %v1833 = vmax.f32 %v1741, 0.0
  %v1834 = vmax.f32 %v1744, 0.0
  %v1835 = vmax.f32 %v1746, 0.0
  %v1836 = vmax.f32 %v1749, 0.0
  %v1837 = vmax.f32 %v1751, 0.0
  %v1838 = vmax.f32 %v1754, 0.0
  %v1839 = vmax.f32 %v1756, 0.0
  %v1840 = vmax.f32 %v1759, 0.0
  %v1841 = vmax.f32 %v1761, 0.0
  %v1842 = vmax.f32 %v1764, 0.0
  %v1843 = vmax.f32 %v1766, 0.0
  %v1844 = vmax.f32 %v1769, 0.0
  %v1845 = vmax.f32 %v1771, 0.0
  %v1846 = vmax.f32 %v1774, 0.0
  %v1847 = vmax.f32 %v1776, 0.0
  %v1848 = vmax.f32 %v1779, 0.0
  %v1849 = vmax.f32 %v1781, 0.0
  %v1850 = vmax.f32 %v1784, 0.0
  %v1851 = vmax.f32 %v1786, 0.0
  %v1852 = vmax.f32 %v1789, 0.0
  %v1853 = vmax.f32 %v1791, 0.0
  %v1854 = vmax.f32 %v1794, 0.0
  %v1855 = vmax.f32 %v1796, 0.0
  %v1856 = vmax.f32 %v1799, 0.0
  %v1857 = vmax.f32 %v1801, 0.0
  %v1858 = vmax.f32 %v1804, 0.0
  %v1859 = vmax.f32 %v1806, 0.0
  %v1860 = vmax.f32 %v1809, 0.0
  %v1861 = vpack.c.bf16 %v1812, %v1812
  %v1862 = vpack.c.bf16 %v1813, %v1813
  %v1863 = vpack.c.bf16 %v1814, %v1814
  %v1864 = vpack.c.bf16 %v1815, %v1815
  %v1865 = vpack.c.bf16 %v1816, %v1816
  %v1866 = vpack.c.bf16 %v1817, %v1817
  %v1867 = vpack.c.bf16 %v1818, %v1818
  %v1868 = vpack.c.bf16 %v1819, %v1819
  %v1869 = vpack.c.bf16 %v1820, %v1820
  %v1870 = vpack.c.bf16 %v1821, %v1821
  %v1871 = vpack.c.bf16 %v1822, %v1822
  %v1872 = vpack.c.bf16 %v1823, %v1823
  %v1873 = vpack.c.bf16 %v1824, %v1824
  %v1874 = vpack.c.bf16 %v1825, %v1825
  %v1875 = vpack.c.bf16 %v1826, %v1826
  %v1876 = vpack.c.bf16 %v1827, %v1827
  %v1877 = vpack.c.bf16 %v1828, %v1828
  %v1878 = vpack.c.bf16 %v1829, %v1829
  %v1879 = vpack.c.bf16 %v1830, %v1830
  %v1880 = vpack.c.bf16 %v1831, %v1831
  %v1881 = vpack.c.bf16 %v1832, %v1832
  %v1882 = vpack.c.bf16 %v1833, %v1833
  %v1883 = vpack.c.bf16 %v1834, %v1834
  %v1884 = vpack.c.bf16 %v1835, %v1835
  %v1885 = vpack.c.bf16 %v1836, %v1836
  %v1886 = vpack.c.bf16 %v1837, %v1837
  %v1887 = vpack.c.bf16 %v1838, %v1838
  %v1888 = vpack.c.bf16 %v1839, %v1839
  %v1889 = vpack.c.bf16 %v1840, %v1840
  %v1890 = vpack.c.bf16 %v1841, %v1841
  %v1891 = vpack.c.bf16 %v1842, %v1842
  %v1892 = vpack.c.bf16 %v1843, %v1843
  %v1893 = vpack.c.bf16 %v1844, %v1844
  %v1894 = vpack.c.bf16 %v1845, %v1845
  %v1895 = vpack.c.bf16 %v1846, %v1846
  %v1896 = vpack.c.bf16 %v1847, %v1847
  %v1897 = vpack.c.bf16 %v1848, %v1848
  %v1898 = vpack.c.bf16 %v1849, %v1849
  %v1899 = vpack.c.bf16 %v1850, %v1850
  %v1900 = vpack.c.bf16 %v1851, %v1851
  %v1901 = vpack.c.bf16 %v1852, %v1852
  %v1902 = vpack.c.bf16 %v1853, %v1853
  %v1903 = vpack.c.bf16 %v1854, %v1854
  %v1904 = vpack.c.bf16 %v1855, %v1855
  %v1905 = vpack.c.bf16 %v1856, %v1856
  %v1906 = vpack.c.bf16 %v1857, %v1857
  %v1907 = vpack.c.bf16 %v1858, %v1858
  %v1908 = vpack.c.bf16 %v1859, %v1859
  %v1909 = vpack.c.bf16 %v1860, %v1860
  %vm1910 = vcmask 519168
  %1911 = vst.msk [vmem:[%s3] sm:$0xf] %vm1910, %v1861
  %1912 = vst.msk [vmem:[%s3 + $0x4] sm:$0xf] %vm1910, %v1862
  %1913 = vst.msk [vmem:[%s3 + $0x8] sm:$0xf] %vm1910, %v1863
  %1914 = vst.msk [vmem:[%s3 + $0xc] sm:$0xf] %vm1910, %v1864
  %1915 = vst.msk [vmem:[%s3 + $0x10] sm:$0xf] %vm1910, %v1865
  %1916 = vst.msk [vmem:[%s3 + $0x14] sm:$0xf] %vm1910, %v1866
  %1917 = vst.msk [vmem:[%s3 + $0x18] sm:$0xf] %vm1910, %v1867
  %1918 = vst.msk [vmem:[%s3 + $0x1c] sm:$0xf] %vm1910, %v1868
  %1919 = vst.msk [vmem:[%s3 + $0x20] sm:$0xf] %vm1910, %v1869
  %1920 = vst.msk [vmem:[%s3 + $0x24] sm:$0xf] %vm1910, %v1870
  %1921 = vst.msk [vmem:[%s3 + $0x28] sm:$0xf] %vm1910, %v1871
  %1922 = vst.msk [vmem:[%s3 + $0x2c] sm:$0xf] %vm1910, %v1872
  %1923 = vst.msk [vmem:[%s3 + $0x30] sm:$0xf] %vm1910, %v1873
  %1924 = vst.msk [vmem:[%s3 + $0x34] sm:$0xf] %vm1910, %v1874
  %1925 = vst.msk [vmem:[%s3 + $0x38] sm:$0xf] %vm1910, %v1875
  %1926 = vst.msk [vmem:[%s3 + $0x3c] sm:$0xf] %vm1910, %v1876
  %1927 = vst.msk [vmem:[%s3 + $0x40] sm:$0xf] %vm1910, %v1877
  %1928 = vst.msk [vmem:[%s3 + $0x44] sm:$0xf] %vm1910, %v1878
  %1929 = vst.msk [vmem:[%s3 + $0x48] sm:$0xf] %vm1910, %v1879
  %1930 = vst.msk [vmem:[%s3 + $0x4c] sm:$0xf] %vm1910, %v1880
  %1931 = vst.msk [vmem:[%s3 + $0x50] sm:$0xf] %vm1910, %v1881
  %1932 = vst.msk [vmem:[%s3 + $0x54] sm:$0xf] %vm1910, %v1882
  %1933 = vst.msk [vmem:[%s3 + $0x58] sm:$0xf] %vm1910, %v1883
  %1934 = vst.msk [vmem:[%s3 + $0x5c] sm:$0xf] %vm1910, %v1884
  %1935 = vst.msk [vmem:[%s3 + $0x60] sm:$0xf] %vm1910, %v1885
  %1936 = vst.msk [vmem:[%s3 + $0x64] sm:$0xf] %vm1910, %v1886
  %1937 = vst.msk [vmem:[%s3 + $0x68] sm:$0xf] %vm1910, %v1887
  %1938 = vst.msk [vmem:[%s3 + $0x6c] sm:$0xf] %vm1910, %v1888
  %1939 = vst.msk [vmem:[%s3 + $0x70] sm:$0xf] %vm1910, %v1889
  %1940 = vst.msk [vmem:[%s3 + $0x74] sm:$0xf] %vm1910, %v1890
  %1941 = vst.msk [vmem:[%s3 + $0x78] sm:$0xf] %vm1910, %v1891
  %1942 = vst.msk [vmem:[%s3 + $0x7c] sm:$0xf] %vm1910, %v1892
  %1943 = vst.msk [vmem:[%s3 + $0x80] sm:$0xf] %vm1910, %v1893
  %1944 = vst.msk [vmem:[%s3 + $0x84] sm:$0xf] %vm1910, %v1894
  %1945 = vst.msk [vmem:[%s3 + $0x88] sm:$0xf] %vm1910, %v1895
  %1946 = vst.msk [vmem:[%s3 + $0x8c] sm:$0xf] %vm1910, %v1896
  %1947 = vst.msk [vmem:[%s3 + $0x90] sm:$0xf] %vm1910, %v1897
  %1948 = vst.msk [vmem:[%s3 + $0x94] sm:$0xf] %vm1910, %v1898
  %1949 = vst.msk [vmem:[%s3 + $0x98] sm:$0xf] %vm1910, %v1899
  %1950 = vst.msk [vmem:[%s3 + $0x9c] sm:$0xf] %vm1910, %v1900
  %1951 = vst.msk [vmem:[%s3 + $0xa0] sm:$0xf] %vm1910, %v1901
  %1952 = vst.msk [vmem:[%s3 + $0xa4] sm:$0xf] %vm1910, %v1902
  %1953 = vst.msk [vmem:[%s3 + $0xa8] sm:$0xf] %vm1910, %v1903
  %1954 = vst.msk [vmem:[%s3 + $0xac] sm:$0xf] %vm1910, %v1904
  %1955 = vst.msk [vmem:[%s3 + $0xb0] sm:$0xf] %vm1910, %v1905
  %1956 = vst.msk [vmem:[%s3 + $0xb4] sm:$0xf] %vm1910, %v1906
  %1957 = vst.msk [vmem:[%s3 + $0xb8] sm:$0xf] %vm1910, %v1907
  %1958 = vst.msk [vmem:[%s3 + $0xbc] sm:$0xf] %vm1910, %v1908
  %1959 = vst.msk [vmem:[%s3 + $0xc0] sm:$0xf] %vm1910, %v1909
  // Predicated region
  $region14: #{decision_forward.6} parent=0 // pred_check
    _
  $region15: #{decision_forward.6} parent=0 // pred_check_branch
    %1961 = sbr.rel (0) target = $region17
  $region16: #{decision_forward.6} parent=0 // pred_region
    _
  $region17: #{decision_forward.6} parent=0 // pred_fallthru
    _
  // Predicated region
  $region18: #{decision_forward.6} parent=0 // pred_check
    _
  $region19: #{decision_forward.6} parent=0 // pred_check_branch
    %1963 = sbr.rel (0) target = $region21
  $region20: #{decision_forward.6} parent=0 // pred_region
    _
  $region21: #{decision_forward.6} parent=0 // pred_fallthru
    _

// kernel: decision_forward.7
$region0: #{decision_forward.7}
  #allocation0 [shape = 'u32[]', space=smem, size = 0x4, offset = 0x4, fixed_abs, tag = 'smem constant byte address 0x4 - core index']
  #allocation1 [shape = 'u32[72,128]{1,0:T(1,128)}', space=vmem, size = 0x9000, scoped, tag = 'internal scratch']
  %s0 = inlined_call_operand.vmem [shape: bf16[8,3136], index: 0, kind: input, shape index: {}]
  %s1 = inlined_call_operand.vmem [shape: bf16[3136,128], index: 1, kind: input, shape index: {}]
  %s2 = inlined_call_operand.vmem [shape: f32[1,128], index: 2, kind: input, shape index: {}]
  %s3 = inlined_call_operand.vmem [shape: f32[8,128], index: 3, kind: input, shape index: {}]
  %s4 = inlined_call_operand.vmem [shape: f32[1,128], index: 4, kind: input, shape index: {}]
  %s5 = inlined_call_operand.vmem [shape: f32[1,128], index: 5, kind: input, shape index: {}]
  %s6 = inlined_call_operand.vmem [shape: f32[128,128], index: 6, kind: input, shape index: {}]
  %s7 = inlined_call_operand.hbm [shape: f32[8,128], index: 7, kind: output, shape index: {}]
  %s8 = sld [smem:[#allocation0]]
  $region38: #{decision_forward.7} parent=0
    _
  %s10 = ssub.s32 1, %s8
  %s11 = scalar_select 0, %s10, %s8
  $region1: #{decision_forward.7} parent=0
    #allocation2 [shape = 'u8[4096]{0}', space=vmem, size = 0x1000, scoped, tag = 'output window, operand 0, single buffered']
    #allocation3 [shape = 's32[1]{0}', space=sflag, size = 0x4, scoped, tag = 'scoped memory for decision_forward.7']
    %12 = vsyncpa [#allocation3], 0
    // Predicated region
    $region2: #{decision_forward.7} parent=1 // pred_check
      _
    $region3: #{decision_forward.7} parent=1 // pred_check_branch
      %14 = sbr.rel (0) target = $region5
    $region4: #{decision_forward.7} parent=1 // pred_region
      _
    $region5: #{decision_forward.7} parent=1 // pred_fallthru
      _
    // Predicated region
    $region6: #{decision_forward.7} parent=1 // pred_check
      _
    $region7: #{decision_forward.7} parent=1 // pred_check_branch
      %16 = sbr.rel (0) target = $region9
    $region8: #{decision_forward.7} parent=1 // pred_region
      _
    $region9: #{decision_forward.7} parent=1 // pred_fallthru
      _
    // Predicated region
    $region10: #{decision_forward.7} parent=1 // pred_check
      _
    $region11: #{decision_forward.7} parent=1 // pred_check_branch
      %18 = sbr.rel (0) target = $region13
    $region12: #{decision_forward.7} parent=1 // pred_region
      _
    $region13: #{decision_forward.7} parent=1 // pred_fallthru
      _
    // Predicated region
    $region14: #{decision_forward.7} parent=1 // pred_check
      _
    $region15: #{decision_forward.7} parent=1 // pred_check_branch
      %20 = sbr.rel (0) target = $region17
    $region16: #{decision_forward.7} parent=1 // pred_region
      _
    $region17: #{decision_forward.7} parent=1 // pred_fallthru
      _
    // Predicated region
    $region18: #{decision_forward.7} parent=1 // pred_check
      _
    $region19: #{decision_forward.7} parent=1 // pred_check_branch
      %22 = sbr.rel (0) target = $region21
    $region20: #{decision_forward.7} parent=1 // pred_region
      _
    $region21: #{decision_forward.7} parent=1 // pred_fallthru
      _
    // Predicated region
    $region22: #{decision_forward.7} parent=1 // pred_check
      _
    $region23: #{decision_forward.7} parent=1 // pred_check_branch
      %24 = sbr.rel (0) target = $region25
    $region24: #{decision_forward.7} parent=1 // pred_region
      _
    $region25: #{decision_forward.7} parent=1 // pred_fallthru
      _
    // Predicated region
    $region26: #{decision_forward.7} parent=1 // pred_check
      _
    $region27: #{decision_forward.7} parent=1 // pred_check_branch
      %26 = sbr.rel (0) target = $region29
    $region28: #{decision_forward.7} parent=1 // pred_region
      _
    $region29: #{decision_forward.7} parent=1 // pred_fallthru
      _
    %v28 = vld [vmem:[%s0] sm:$0xff]
    %v29 = vld [vmem:[%s0 + $0x8] sm:$0xff]
    %v30 = vld [vmem:[%s0 + $0x10] sm:$0xff]
    %v31 = vld [vmem:[%s0 + $0x18] sm:$0xff]
    %v32 = vld [vmem:[%s0 + $0x20] sm:$0xff]
    %v33 = vld [vmem:[%s0 + $0x28] sm:$0xff]
    %v34 = vld [vmem:[%s0 + $0x30] sm:$0xff]
    %v35 = vld [vmem:[%s0 + $0x38] sm:$0xff]
    %v36 = vld [vmem:[%s0 + $0x40] sm:$0xff]
    %v37 = vld [vmem:[%s0 + $0x48] sm:$0xff]
    %v38 = vld [vmem:[%s0 + $0x50] sm:$0xff]
    %v39 = vld [vmem:[%s0 + $0x58] sm:$0xff]
    %v40 = vld [vmem:[%s0 + $0x60] sm:$0xf]
    %v41 = vld [vmem:[%s1] sm:$0xf]
    %v42 = vld [vmem:[%s1 + $0x4] sm:$0xf]
    %v43 = vld [vmem:[%s1 + $0x8] sm:$0xf]
    %v44 = vld [vmem:[%s1 + $0xc] sm:$0xf]
    %v45 = vld [vmem:[%s1 + $0x10] sm:$0xf]
    %v46 = vld [vmem:[%s1 + $0x14] sm:$0xf]
    %v47 = vld [vmem:[%s1 + $0x18] sm:$0xf]
    %v48 = vld [vmem:[%s1 + $0x1c] sm:$0xf]
    %v49 = vld [vmem:[%s1 + $0x20] sm:$0xf]
    %v50 = vld [vmem:[%s1 + $0x24] sm:$0xf]
    %v51 = vld [vmem:[%s1 + $0x28] sm:$0xf]
    %v52 = vld [vmem:[%s1 + $0x2c] sm:$0xf]
    %v53 = vld [vmem:[%s1 + $0x30] sm:$0xf]
    %v54 = vld [vmem:[%s1 + $0x34] sm:$0xf]
    %v55 = vld [vmem:[%s1 + $0x38] sm:$0xf]
    %v56 = vld [vmem:[%s1 + $0x3c] sm:$0xf]
    %v57 = vld [vmem:[%s1 + $0x40] sm:$0xf]
    %v58 = vld [vmem:[%s1 + $0x44] sm:$0xf]
    %v59 = vld [vmem:[%s1 + $0x48] sm:$0xf]
    %v60 = vld [vmem:[%s1 + $0x4c] sm:$0xf]
    %v61 = vld [vmem:[%s1 + $0x50] sm:$0xf]
    %v62 = vld [vmem:[%s1 + $0x54] sm:$0xf]
    %v63 = vld [vmem:[%s1 + $0x58] sm:$0xf]
    %v64 = vld [vmem:[%s1 + $0x5c] sm:$0xf]
    %v65 = vld [vmem:[%s1 + $0x60] sm:$0xf]
    %v66 = vld [vmem:[%s1 + $0x64] sm:$0xf]
    %v67 = vld [vmem:[%s1 + $0x68] sm:$0xf]
    %v68 = vld [vmem:[%s1 + $0x6c] sm:$0xf]
    %v69 = vld [vmem:[%s1 + $0x70] sm:$0xf]
    %v70 = vld [vmem:[%s1 + $0x74] sm:$0xf]
    %v71 = vld [vmem:[%s1 + $0x78] sm:$0xf]
    %v72 = vld [vmem:[%s1 + $0x7c] sm:$0xf]
    %v73 = vld [vmem:[%s1 + $0x80] sm:$0xf]
    %v74 = vld [vmem:[%s1 + $0x84] sm:$0xf]
    %v75 = vld [vmem:[%s1 + $0x88] sm:$0xf]
    %v76 = vld [vmem:[%s1 + $0x8c] sm:$0xf]
    %v77 = vld [vmem:[%s1 + $0x90] sm:$0xf]
    %v78 = vld [vmem:[%s1 + $0x94] sm:$0xf]
    %v79 = vld [vmem:[%s1 + $0x98] sm:$0xf]
    %v80 = vld [vmem:[%s1 + $0x9c] sm:$0xf]
    %v81 = vld [vmem:[%s1 + $0xa0] sm:$0xf]
    %v82 = vld [vmem:[%s1 + $0xa4] sm:$0xf]
    %v83 = vld [vmem:[%s1 + $0xa8] sm:$0xf]
    %v84 = vld [vmem:[%s1 + $0xac] sm:$0xf]
    %v85 = vld [vmem:[%s1 + $0xb0] sm:$0xf]
    %v86 = vld [vmem:[%s1 + $0xb4] sm:$0xf]
    %v87 = vld [vmem:[%s1 + $0xb8] sm:$0xf]
    %v88 = vld [vmem:[%s1 + $0xbc] sm:$0xf]
    %v89 = vld [vmem:[%s1 + $0xc0] sm:$0xf]
    %v90 = vld [vmem:[%s1 + $0xc4] sm:$0xf]
    %v91 = vld [vmem:[%s1 + $0xc8] sm:$0xf]
    %v92 = vld [vmem:[%s1 + $0xcc] sm:$0xf]
    %v93 = vld [vmem:[%s1 + $0xd0] sm:$0xf]
    %v94 = vld [vmem:[%s1 + $0xd4] sm:$0xf]
    %v95 = vld [vmem:[%s1 + $0xd8] sm:$0xf]
    %v96 = vld [vmem:[%s1 + $0xdc] sm:$0xf]
    %v97 = vld [vmem:[%s1 + $0xe0] sm:$0xf]
    %v98 = vld [vmem:[%s1 + $0xe4] sm:$0xf]
    %v99 = vld [vmem:[%s1 + $0xe8] sm:$0xf]
    %v100 = vld [vmem:[%s1 + $0xec] sm:$0xf]
    %v101 = vld [vmem:[%s1 + $0xf0] sm:$0xf]
    %v102 = vld [vmem:[%s1 + $0xf4] sm:$0xf]
    %v103 = vld [vmem:[%s1 + $0xf8] sm:$0xf]
    %v104 = vld [vmem:[%s1 + $0xfc] sm:$0xf]
    %v105 = vld [vmem:[%s1 + $0x100] sm:$0xf]
    %v106 = vld [vmem:[%s1 + $0x104] sm:$0xf]
    %v107 = vld [vmem:[%s1 + $0x108] sm:$0xf]
    %v108 = vld [vmem:[%s1 + $0x10c] sm:$0xf]
    %v109 = vld [vmem:[%s1 + $0x110] sm:$0xf]
    %v110 = vld [vmem:[%s1 + $0x114] sm:$0xf]
    %v111 = vld [vmem:[%s1 + $0x118] sm:$0xf]
    %v112 = vld [vmem:[%s1 + $0x11c] sm:$0xf]
    %v113 = vld [vmem:[%s1 + $0x120] sm:$0xf]
    %v114 = vld [vmem:[%s1 + $0x124] sm:$0xf]
    %v115 = vld [vmem:[%s1 + $0x128] sm:$0xf]
    %v116 = vld [vmem:[%s1 + $0x12c] sm:$0xf]
    %v117 = vld [vmem:[%s1 + $0x130] sm:$0xf]
    %v118 = vld [vmem:[%s1 + $0x134] sm:$0xf]
    %v119 = vld [vmem:[%s1 + $0x138] sm:$0xf]
    %v120 = vld [vmem:[%s1 + $0x13c] sm:$0xf]
    %v121 = vld [vmem:[%s1 + $0x140] sm:$0xf]
    %v122 = vld [vmem:[%s1 + $0x144] sm:$0xf]
    %v123 = vld [vmem:[%s1 + $0x148] sm:$0xf]
    %v124 = vld [vmem:[%s1 + $0x14c] sm:$0xf]
    %v125 = vld [vmem:[%s1 + $0x150] sm:$0xf]
    %v126 = vld [vmem:[%s1 + $0x154] sm:$0xf]
    %v127 = vld [vmem:[%s1 + $0x158] sm:$0xf]
    %v128 = vld [vmem:[%s1 + $0x15c] sm:$0xf]
    %v129 = vld [vmem:[%s1 + $0x160] sm:$0xf]
    %v130 = vld [vmem:[%s1 + $0x164] sm:$0xf]
    %v131 = vld [vmem:[%s1 + $0x168] sm:$0xf]
    %v132 = vld [vmem:[%s1 + $0x16c] sm:$0xf]
    %v133 = vld [vmem:[%s1 + $0x170] sm:$0xf]
    %v134 = vld [vmem:[%s1 + $0x174] sm:$0xf]
    %v135 = vld [vmem:[%s1 + $0x178] sm:$0xf]
    %v136 = vld [vmem:[%s1 + $0x17c] sm:$0xf]
    %v137 = vld [vmem:[%s1 + $0x180] sm:$0xf]
    %v138 = vld [vmem:[%s1 + $0x184] sm:$0xf]
    %v139 = vld [vmem:[%s1 + $0x188] sm:$0xf]
    %v140 = vld [vmem:[%s1 + $0x18c] sm:$0xf]
    %v141 = vld [vmem:[%s1 + $0x190] sm:$0xf]
    %v142 = vld [vmem:[%s1 + $0x194] sm:$0xf]
    %v143 = vld [vmem:[%s1 + $0x198] sm:$0xf]
    %v144 = vld [vmem:[%s1 + $0x19c] sm:$0xf]
    %v145 = vld [vmem:[%s1 + $0x1a0] sm:$0xf]
    %v146 = vld [vmem:[%s1 + $0x1a4] sm:$0xf]
    %v147 = vld [vmem:[%s1 + $0x1a8] sm:$0xf]
    %v148 = vld [vmem:[%s1 + $0x1ac] sm:$0xf]
    %v149 = vld [vmem:[%s1 + $0x1b0] sm:$0xf]
    %v150 = vld [vmem:[%s1 + $0x1b4] sm:$0xf]
    %v151 = vld [vmem:[%s1 + $0x1b8] sm:$0xf]
    %v152 = vld [vmem:[%s1 + $0x1bc] sm:$0xf]
    %v153 = vld [vmem:[%s1 + $0x1c0] sm:$0xf]
    %v154 = vld [vmem:[%s1 + $0x1c4] sm:$0xf]
    %v155 = vld [vmem:[%s1 + $0x1c8] sm:$0xf]
    %v156 = vld [vmem:[%s1 + $0x1cc] sm:$0xf]
    %v157 = vld [vmem:[%s1 + $0x1d0] sm:$0xf]
    %v158 = vld [vmem:[%s1 + $0x1d4] sm:$0xf]
    %v159 = vld [vmem:[%s1 + $0x1d8] sm:$0xf]
    %v160 = vld [vmem:[%s1 + $0x1dc] sm:$0xf]
    %v161 = vld [vmem:[%s1 + $0x1e0] sm:$0xf]
    %v162 = vld [vmem:[%s1 + $0x1e4] sm:$0xf]
    %v163 = vld [vmem:[%s1 + $0x1e8] sm:$0xf]
    %v164 = vld [vmem:[%s1 + $0x1ec] sm:$0xf]
    %v165 = vld [vmem:[%s1 + $0x1f0] sm:$0xf]
    %v166 = vld [vmem:[%s1 + $0x1f4] sm:$0xf]
    %v167 = vld [vmem:[%s1 + $0x1f8] sm:$0xf]
    %v168 = vld [vmem:[%s1 + $0x1fc] sm:$0xf]
    %v169 = vld [vmem:[%s1 + $0x200] sm:$0xf]
    %v170 = vld [vmem:[%s1 + $0x204] sm:$0xf]
    %v171 = vld [vmem:[%s1 + $0x208] sm:$0xf]
    %v172 = vld [vmem:[%s1 + $0x20c] sm:$0xf]
    %v173 = vld [vmem:[%s1 + $0x210] sm:$0xf]
    %v174 = vld [vmem:[%s1 + $0x214] sm:$0xf]
    %v175 = vld [vmem:[%s1 + $0x218] sm:$0xf]
    %v176 = vld [vmem:[%s1 + $0x21c] sm:$0xf]
    %v177 = vld [vmem:[%s1 + $0x220] sm:$0xf]
    %v178 = vld [vmem:[%s1 + $0x224] sm:$0xf]
    %v179 = vld [vmem:[%s1 + $0x228] sm:$0xf]
    %v180 = vld [vmem:[%s1 + $0x22c] sm:$0xf]
    %v181 = vld [vmem:[%s1 + $0x230] sm:$0xf]
    %v182 = vld [vmem:[%s1 + $0x234] sm:$0xf]
    %v183 = vld [vmem:[%s1 + $0x238] sm:$0xf]
    %v184 = vld [vmem:[%s1 + $0x23c] sm:$0xf]
    %v185 = vld [vmem:[%s1 + $0x240] sm:$0xf]
    %v186 = vld [vmem:[%s1 + $0x244] sm:$0xf]
    %v187 = vld [vmem:[%s1 + $0x248] sm:$0xf]
    %v188 = vld [vmem:[%s1 + $0x24c] sm:$0xf]
    %v189 = vld [vmem:[%s1 + $0x250] sm:$0xf]
    %v190 = vld [vmem:[%s1 + $0x254] sm:$0xf]
    %v191 = vld [vmem:[%s1 + $0x258] sm:$0xf]
    %v192 = vld [vmem:[%s1 + $0x25c] sm:$0xf]
    %v193 = vld [vmem:[%s1 + $0x260] sm:$0xf]
    %v194 = vld [vmem:[%s1 + $0x264] sm:$0xf]
    %v195 = vld [vmem:[%s1 + $0x268] sm:$0xf]
    %v196 = vld [vmem:[%s1 + $0x26c] sm:$0xf]
    %v197 = vld [vmem:[%s1 + $0x270] sm:$0xf]
    %v198 = vld [vmem:[%s1 + $0x274] sm:$0xf]
    %v199 = vld [vmem:[%s1 + $0x278] sm:$0xf]
    %v200 = vld [vmem:[%s1 + $0x27c] sm:$0xf]
    %v201 = vld [vmem:[%s1 + $0x280] sm:$0xf]
    %v202 = vld [vmem:[%s1 + $0x284] sm:$0xf]
    %v203 = vld [vmem:[%s1 + $0x288] sm:$0xf]
    %v204 = vld [vmem:[%s1 + $0x28c] sm:$0xf]
    %v205 = vld [vmem:[%s1 + $0x290] sm:$0xf]
    %v206 = vld [vmem:[%s1 + $0x294] sm:$0xf]
    %v207 = vld [vmem:[%s1 + $0x298] sm:$0xf]
    %v208 = vld [vmem:[%s1 + $0x29c] sm:$0xf]
    %v209 = vld [vmem:[%s1 + $0x2a0] sm:$0xf]
    %v210 = vld [vmem:[%s1 + $0x2a4] sm:$0xf]
    %v211 = vld [vmem:[%s1 + $0x2a8] sm:$0xf]
    %v212 = vld [vmem:[%s1 + $0x2ac] sm:$0xf]
    %v213 = vld [vmem:[%s1 + $0x2b0] sm:$0xf]
    %v214 = vld [vmem:[%s1 + $0x2b4] sm:$0xf]
    %v215 = vld [vmem:[%s1 + $0x2b8] sm:$0xf]
    %v216 = vld [vmem:[%s1 + $0x2bc] sm:$0xf]
    %v217 = vld [vmem:[%s1 + $0x2c0] sm:$0xf]
    %v218 = vld [vmem:[%s1 + $0x2c4] sm:$0xf]
    %v219 = vld [vmem:[%s1 + $0x2c8] sm:$0xf]
    %v220 = vld [vmem:[%s1 + $0x2cc] sm:$0xf]
    %v221 = vld [vmem:[%s1 + $0x2d0] sm:$0xf]
    %v222 = vld [vmem:[%s1 + $0x2d4] sm:$0xf]
    %v223 = vld [vmem:[%s1 + $0x2d8] sm:$0xf]
    %v224 = vld [vmem:[%s1 + $0x2dc] sm:$0xf]
    %v225 = vld [vmem:[%s1 + $0x2e0] sm:$0xf]
    %v226 = vld [vmem:[%s1 + $0x2e4] sm:$0xf]
    %v227 = vld [vmem:[%s1 + $0x2e8] sm:$0xf]
    %v228 = vld [vmem:[%s1 + $0x2ec] sm:$0xf]
    %v229 = vld [vmem:[%s1 + $0x2f0] sm:$0xf]
    %v230 = vld [vmem:[%s1 + $0x2f4] sm:$0xf]
    %v231 = vld [vmem:[%s1 + $0x2f8] sm:$0xf]
    %v232 = vld [vmem:[%s1 + $0x2fc] sm:$0xf]
    %v233 = vld [vmem:[%s1 + $0x300] sm:$0xf]
    %v234 = vld [vmem:[%s1 + $0x304] sm:$0xf]
    %v235 = vld [vmem:[%s1 + $0x308] sm:$0xf]
    %v236 = vld [vmem:[%s1 + $0x30c] sm:$0xf]
    %v237 = vld [vmem:[%s1 + $0x310] sm:$0xf]
    %v238 = vld [vmem:[%s1 + $0x314] sm:$0xf]
    %v239 = vld [vmem:[%s1 + $0x318] sm:$0xf]
    %v240 = vld [vmem:[%s1 + $0x31c] sm:$0xf]
    %v241 = vld [vmem:[%s1 + $0x320] sm:$0xf]
    %v242 = vld [vmem:[%s1 + $0x324] sm:$0xf]
    %v243 = vld [vmem:[%s1 + $0x328] sm:$0xf]
    %v244 = vld [vmem:[%s1 + $0x32c] sm:$0xf]
    %v245 = vld [vmem:[%s1 + $0x330] sm:$0xf]
    %v246 = vld [vmem:[%s1 + $0x334] sm:$0xf]
    %v247 = vld [vmem:[%s1 + $0x338] sm:$0xf]
    %v248 = vld [vmem:[%s1 + $0x33c] sm:$0xf]
    %v249 = vld [vmem:[%s1 + $0x340] sm:$0xf]
    %v250 = vld [vmem:[%s1 + $0x344] sm:$0xf]
    %v251 = vld [vmem:[%s1 + $0x348] sm:$0xf]
    %v252 = vld [vmem:[%s1 + $0x34c] sm:$0xf]
    %v253 = vld [vmem:[%s1 + $0x350] sm:$0xf]
    %v254 = vld [vmem:[%s1 + $0x354] sm:$0xf]
    %v255 = vld [vmem:[%s1 + $0x358] sm:$0xf]
    %v256 = vld [vmem:[%s1 + $0x35c] sm:$0xf]
    %v257 = vld [vmem:[%s1 + $0x360] sm:$0xf]
    %v258 = vld [vmem:[%s1 + $0x364] sm:$0xf]
    %v259 = vld [vmem:[%s1 + $0x368] sm:$0xf]
    %v260 = vld [vmem:[%s1 + $0x36c] sm:$0xf]
    %v261 = vld [vmem:[%s1 + $0x370] sm:$0xf]
    %v262 = vld [vmem:[%s1 + $0x374] sm:$0xf]
    %v263 = vld [vmem:[%s1 + $0x378] sm:$0xf]
    %v264 = vld [vmem:[%s1 + $0x37c] sm:$0xf]
    %v265 = vld [vmem:[%s1 + $0x380] sm:$0xf]
    %v266 = vld [vmem:[%s1 + $0x384] sm:$0xf]
    %v267 = vld [vmem:[%s1 + $0x388] sm:$0xf]
    %v268 = vld [vmem:[%s1 + $0x38c] sm:$0xf]
    %v269 = vld [vmem:[%s1 + $0x390] sm:$0xf]
    %v270 = vld [vmem:[%s1 + $0x394] sm:$0xf]
    %v271 = vld [vmem:[%s1 + $0x398] sm:$0xf]
    %v272 = vld [vmem:[%s1 + $0x39c] sm:$0xf]
    %v273 = vld [vmem:[%s1 + $0x3a0] sm:$0xf]
    %v274 = vld [vmem:[%s1 + $0x3a4] sm:$0xf]
    %v275 = vld [vmem:[%s1 + $0x3a8] sm:$0xf]
    %v276 = vld [vmem:[%s1 + $0x3ac] sm:$0xf]
    %v277 = vld [vmem:[%s1 + $0x3b0] sm:$0xf]
    %v278 = vld [vmem:[%s1 + $0x3b4] sm:$0xf]
    %v279 = vld [vmem:[%s1 + $0x3b8] sm:$0xf]
    %v280 = vld [vmem:[%s1 + $0x3bc] sm:$0xf]
    %v281 = vld [vmem:[%s1 + $0x3c0] sm:$0xf]
    %v282 = vld [vmem:[%s1 + $0x3c4] sm:$0xf]
    %v283 = vld [vmem:[%s1 + $0x3c8] sm:$0xf]
    %v284 = vld [vmem:[%s1 + $0x3cc] sm:$0xf]
    %v285 = vld [vmem:[%s1 + $0x3d0] sm:$0xf]
    %v286 = vld [vmem:[%s1 + $0x3d4] sm:$0xf]
    %v287 = vld [vmem:[%s1 + $0x3d8] sm:$0xf]
    %v288 = vld [vmem:[%s1 + $0x3dc] sm:$0xf]
    %v289 = vld [vmem:[%s1 + $0x3e0] sm:$0xf]
    %v290 = vld [vmem:[%s1 + $0x3e4] sm:$0xf]
    %v291 = vld [vmem:[%s1 + $0x3e8] sm:$0xf]
    %v292 = vld [vmem:[%s1 + $0x3ec] sm:$0xf]
    %v293 = vld [vmem:[%s1 + $0x3f0] sm:$0xf]
    %v294 = vld [vmem:[%s1 + $0x3f4] sm:$0xf]
    %v295 = vld [vmem:[%s1 + $0x3f8] sm:$0xf]
    %v296 = vld [vmem:[%s1 + $0x3fc] sm:$0xf]
    %v297 = vld [vmem:[%s1 + $0x400] sm:$0xf]
    %v298 = vld [vmem:[%s1 + $0x404] sm:$0xf]
    %v299 = vld [vmem:[%s1 + $0x408] sm:$0xf]
    %v300 = vld [vmem:[%s1 + $0x40c] sm:$0xf]
    %v301 = vld [vmem:[%s1 + $0x410] sm:$0xf]
    %v302 = vld [vmem:[%s1 + $0x414] sm:$0xf]
    %v303 = vld [vmem:[%s1 + $0x418] sm:$0xf]
    %v304 = vld [vmem:[%s1 + $0x41c] sm:$0xf]
    %v305 = vld [vmem:[%s1 + $0x420] sm:$0xf]
    %v306 = vld [vmem:[%s1 + $0x424] sm:$0xf]
    %v307 = vld [vmem:[%s1 + $0x428] sm:$0xf]
    %v308 = vld [vmem:[%s1 + $0x42c] sm:$0xf]
    %v309 = vld [vmem:[%s1 + $0x430] sm:$0xf]
    %v310 = vld [vmem:[%s1 + $0x434] sm:$0xf]
    %v311 = vld [vmem:[%s1 + $0x438] sm:$0xf]
    %v312 = vld [vmem:[%s1 + $0x43c] sm:$0xf]
    %v313 = vld [vmem:[%s1 + $0x440] sm:$0xf]
    %v314 = vld [vmem:[%s1 + $0x444] sm:$0xf]
    %v315 = vld [vmem:[%s1 + $0x448] sm:$0xf]
    %v316 = vld [vmem:[%s1 + $0x44c] sm:$0xf]
    %v317 = vld [vmem:[%s1 + $0x450] sm:$0xf]
    %v318 = vld [vmem:[%s1 + $0x454] sm:$0xf]
    %v319 = vld [vmem:[%s1 + $0x458] sm:$0xf]
    %v320 = vld [vmem:[%s1 + $0x45c] sm:$0xf]
    %v321 = vld [vmem:[%s1 + $0x460] sm:$0xf]
    %v322 = vld [vmem:[%s1 + $0x464] sm:$0xf]
    %v323 = vld [vmem:[%s1 + $0x468] sm:$0xf]
    %v324 = vld [vmem:[%s1 + $0x46c] sm:$0xf]
    %v325 = vld [vmem:[%s1 + $0x470] sm:$0xf]
    %v326 = vld [vmem:[%s1 + $0x474] sm:$0xf]
    %v327 = vld [vmem:[%s1 + $0x478] sm:$0xf]
    %v328 = vld [vmem:[%s1 + $0x47c] sm:$0xf]
    %v329 = vld [vmem:[%s1 + $0x480] sm:$0xf]
    %v330 = vld [vmem:[%s1 + $0x484] sm:$0xf]
    %v331 = vld [vmem:[%s1 + $0x488] sm:$0xf]
    %v332 = vld [vmem:[%s1 + $0x48c] sm:$0xf]
    %v333 = vld [vmem:[%s1 + $0x490] sm:$0xf]
    %v334 = vld [vmem:[%s1 + $0x494] sm:$0xf]
    %v335 = vld [vmem:[%s1 + $0x498] sm:$0xf]
    %v336 = vld [vmem:[%s1 + $0x49c] sm:$0xf]
    %v337 = vld [vmem:[%s1 + $0x4a0] sm:$0xf]
    %v338 = vld [vmem:[%s1 + $0x4a4] sm:$0xf]
    %v339 = vld [vmem:[%s1 + $0x4a8] sm:$0xf]
    %v340 = vld [vmem:[%s1 + $0x4ac] sm:$0xf]
    %v341 = vld [vmem:[%s1 + $0x4b0] sm:$0xf]
    %v342 = vld [vmem:[%s1 + $0x4b4] sm:$0xf]
    %v343 = vld [vmem:[%s1 + $0x4b8] sm:$0xf]
    %v344 = vld [vmem:[%s1 + $0x4bc] sm:$0xf]
    %v345 = vld [vmem:[%s1 + $0x4c0] sm:$0xf]
    %v346 = vld [vmem:[%s1 + $0x4c4] sm:$0xf]
    %v347 = vld [vmem:[%s1 + $0x4c8] sm:$0xf]
    %v348 = vld [vmem:[%s1 + $0x4cc] sm:$0xf]
    %v349 = vld [vmem:[%s1 + $0x4d0] sm:$0xf]
    %v350 = vld [vmem:[%s1 + $0x4d4] sm:$0xf]
    %v351 = vld [vmem:[%s1 + $0x4d8] sm:$0xf]
    %v352 = vld [vmem:[%s1 + $0x4dc] sm:$0xf]
    %v353 = vld [vmem:[%s1 + $0x4e0] sm:$0xf]
    %v354 = vld [vmem:[%s1 + $0x4e4] sm:$0xf]
    %v355 = vld [vmem:[%s1 + $0x4e8] sm:$0xf]
    %v356 = vld [vmem:[%s1 + $0x4ec] sm:$0xf]
    %v357 = vld [vmem:[%s1 + $0x4f0] sm:$0xf]
    %v358 = vld [vmem:[%s1 + $0x4f4] sm:$0xf]
    %v359 = vld [vmem:[%s1 + $0x4f8] sm:$0xf]
    %v360 = vld [vmem:[%s1 + $0x4fc] sm:$0xf]
    %v361 = vld [vmem:[%s1 + $0x500] sm:$0xf]
    %v362 = vld [vmem:[%s1 + $0x504] sm:$0xf]
    %v363 = vld [vmem:[%s1 + $0x508] sm:$0xf]
    %v364 = vld [vmem:[%s1 + $0x50c] sm:$0xf]
    %v365 = vld [vmem:[%s1 + $0x510] sm:$0xf]
    %v366 = vld [vmem:[%s1 + $0x514] sm:$0xf]
    %v367 = vld [vmem:[%s1 + $0x518] sm:$0xf]
    %v368 = vld [vmem:[%s1 + $0x51c] sm:$0xf]
    %v369 = vld [vmem:[%s1 + $0x520] sm:$0xf]
    %v370 = vld [vmem:[%s1 + $0x524] sm:$0xf]
    %v371 = vld [vmem:[%s1 + $0x528] sm:$0xf]
    %v372 = vld [vmem:[%s1 + $0x52c] sm:$0xf]
    %v373 = vld [vmem:[%s1 + $0x530] sm:$0xf]
    %v374 = vld [vmem:[%s1 + $0x534] sm:$0xf]
    %v375 = vld [vmem:[%s1 + $0x538] sm:$0xf]
    %v376 = vld [vmem:[%s1 + $0x53c] sm:$0xf]
    %v377 = vld [vmem:[%s1 + $0x540] sm:$0xf]
    %v378 = vld [vmem:[%s1 + $0x544] sm:$0xf]
    %v379 = vld [vmem:[%s1 + $0x548] sm:$0xf]
    %v380 = vld [vmem:[%s1 + $0x54c] sm:$0xf]
    %v381 = vld [vmem:[%s1 + $0x550] sm:$0xf]
    %v382 = vld [vmem:[%s1 + $0x554] sm:$0xf]
    %v383 = vld [vmem:[%s1 + $0x558] sm:$0xf]
    %v384 = vld [vmem:[%s1 + $0x55c] sm:$0xf]
    %v385 = vld [vmem:[%s1 + $0x560] sm:$0xf]
    %v386 = vld [vmem:[%s1 + $0x564] sm:$0xf]
    %v387 = vld [vmem:[%s1 + $0x568] sm:$0xf]
    %v388 = vld [vmem:[%s1 + $0x56c] sm:$0xf]
    %v389 = vld [vmem:[%s1 + $0x570] sm:$0xf]
    %v390 = vld [vmem:[%s1 + $0x574] sm:$0xf]
    %v391 = vld [vmem:[%s1 + $0x578] sm:$0xf]
    %v392 = vld [vmem:[%s1 + $0x57c] sm:$0xf]
    %v393 = vld [vmem:[%s1 + $0x580] sm:$0xf]
    %v394 = vld [vmem:[%s1 + $0x584] sm:$0xf]
    %v395 = vld [vmem:[%s1 + $0x588] sm:$0xf]
    %v396 = vld [vmem:[%s1 + $0x58c] sm:$0xf]
    %v397 = vld [vmem:[%s1 + $0x590] sm:$0xf]
    %v398 = vld [vmem:[%s1 + $0x594] sm:$0xf]
    %v399 = vld [vmem:[%s1 + $0x598] sm:$0xf]
    %v400 = vld [vmem:[%s1 + $0x59c] sm:$0xf]
    %v401 = vld [vmem:[%s1 + $0x5a0] sm:$0xf]
    %v402 = vld [vmem:[%s1 + $0x5a4] sm:$0xf]
    %v403 = vld [vmem:[%s1 + $0x5a8] sm:$0xf]
    %v404 = vld [vmem:[%s1 + $0x5ac] sm:$0xf]
    %v405 = vld [vmem:[%s1 + $0x5b0] sm:$0xf]
    %v406 = vld [vmem:[%s1 + $0x5b4] sm:$0xf]
    %v407 = vld [vmem:[%s1 + $0x5b8] sm:$0xf]
    %v408 = vld [vmem:[%s1 + $0x5bc] sm:$0xf]
    %v409 = vld [vmem:[%s1 + $0x5c0] sm:$0xf]
    %v410 = vld [vmem:[%s1 + $0x5c4] sm:$0xf]
    %v411 = vld [vmem:[%s1 + $0x5c8] sm:$0xf]
    %v412 = vld [vmem:[%s1 + $0x5cc] sm:$0xf]
    %v413 = vld [vmem:[%s1 + $0x5d0] sm:$0xf]
    %v414 = vld [vmem:[%s1 + $0x5d4] sm:$0xf]
    %v415 = vld [vmem:[%s1 + $0x5d8] sm:$0xf]
    %v416 = vld [vmem:[%s1 + $0x5dc] sm:$0xf]
    %v417 = vld [vmem:[%s1 + $0x5e0] sm:$0xf]
    %v418 = vld [vmem:[%s1 + $0x5e4] sm:$0xf]
    %v419 = vld [vmem:[%s1 + $0x5e8] sm:$0xf]
    %v420 = vld [vmem:[%s1 + $0x5ec] sm:$0xf]
    %v421 = vld [vmem:[%s1 + $0x5f0] sm:$0xf]
    %v422 = vld [vmem:[%s1 + $0x5f4] sm:$0xf]
    %v423 = vld [vmem:[%s1 + $0x5f8] sm:$0xf]
    %v424 = vld [vmem:[%s1 + $0x5fc] sm:$0xf]
    %v425 = vld [vmem:[%s1 + $0x600] sm:$0xf]
    %v426 = vld [vmem:[%s1 + $0x604] sm:$0xf]
    %v427 = vld [vmem:[%s1 + $0x608] sm:$0xf]
    %v428 = vld [vmem:[%s1 + $0x60c] sm:$0xf]
    %v429 = vld [vmem:[%s1 + $0x610] sm:$0xf]
    %v430 = vld [vmem:[%s1 + $0x614] sm:$0xf]
    %v431 = vld [vmem:[%s1 + $0x618] sm:$0xf]
    %v432 = vld [vmem:[%s1 + $0x61c] sm:$0xf]
    %v433 = vld [vmem:[%s2] sm:$0x1]
    %v435 = vperm.slane %v433, 0
    %v450 = vunpack.c.l.b16 %v28
    %v451 = vunpack.c.h.b16 %v28
    %v452 = vunpack.c.l.b16 %v29
    %v453 = vunpack.c.h.b16 %v29
    %v454 = vunpack.c.l.b16 %v30
    %v455 = vunpack.c.h.b16 %v30
    %v456 = vunpack.c.l.b16 %v31
    %v457 = vunpack.c.h.b16 %v31
    %v458 = vunpack.c.l.b16 %v32
    %v459 = vunpack.c.h.b16 %v32
    %v460 = vunpack.c.l.b16 %v33
    %v461 = vunpack.c.h.b16 %v33
    %v462 = vunpack.c.l.b16 %v34
    %v463 = vunpack.c.h.b16 %v34
    %v464 = vunpack.c.l.b16 %v35
    %v465 = vunpack.c.h.b16 %v35
    %v466 = vunpack.c.l.b16 %v36
    %v467 = vunpack.c.h.b16 %v36
    %v468 = vunpack.c.l.b16 %v37
    %v469 = vunpack.c.h.b16 %v37
    %v470 = vunpack.c.l.b16 %v38
    %v471 = vunpack.c.h.b16 %v38
    %v472 = vunpack.c.l.b16 %v39
    %v473 = vunpack.c.h.b16 %v39
    %v474 = vunpack.c.l.b16 %v40
    %v475 = vpack.c.b16 %v450, %v450
    %v476 = vpack.c.b16 %v451, %v451
    %v477 = vpack.c.b16 %v452, %v452
    %v478 = vpack.c.b16 %v453, %v453
    %v479 = vpack.c.b16 %v454, %v454
    %v480 = vpack.c.b16 %v455, %v455
    %v481 = vpack.c.b16 %v456, %v456
    %v482 = vpack.c.b16 %v457, %v457
    %v483 = vpack.c.b16 %v458, %v458
    %v484 = vpack.c.b16 %v459, %v459
    %v485 = vpack.c.b16 %v460, %v460
    %v486 = vpack.c.b16 %v461, %v461
    %v487 = vpack.c.b16 %v462, %v462
    %v488 = vpack.c.b16 %v463, %v463
    %v489 = vpack.c.b16 %v464, %v464
    %v490 = vpack.c.b16 %v465, %v465
    %v491 = vpack.c.b16 %v466, %v466
    %v492 = vpack.c.b16 %v467, %v467
    %v493 = vpack.c.b16 %v468, %v468
    %v494 = vpack.c.b16 %v469, %v469
    %v495 = vpack.c.b16 %v470, %v470
    %v496 = vpack.c.b16 %v471, %v471
    %v497 = vpack.c.b16 %v472, %v472
    %v498 = vpack.c.b16 %v473, %v473
    %v499 = vpack.c.b16 %v474, %v474
    %v916 = vunpack.c.l.b16 %v41
    %v917 = vunpack.c.l.b16 %v42
    %v918 = vunpack.c.l.b16 %v43
    %v919 = vunpack.c.l.b16 %v44
    %v920 = vunpack.c.l.b16 %v45
    %v921 = vunpack.c.l.b16 %v46
    %v922 = vunpack.c.l.b16 %v47
    %v923 = vunpack.c.l.b16 %v48
    %v924 = vunpack.c.l.b16 %v49
    %v925 = vunpack.c.l.b16 %v50
    %v926 = vunpack.c.l.b16 %v51
    %v927 = vunpack.c.l.b16 %v52
    %v928 = vunpack.c.l.b16 %v53
    %v929 = vunpack.c.l.b16 %v54
    %v930 = vunpack.c.l.b16 %v55
    %v931 = vunpack.c.l.b16 %v56
    %v932 = vunpack.c.l.b16 %v57
    %v933 = vunpack.c.l.b16 %v58
    %v934 = vunpack.c.l.b16 %v59
    %v935 = vunpack.c.l.b16 %v60
    %v936 = vunpack.c.l.b16 %v61
    %v937 = vunpack.c.l.b16 %v62
    %v938 = vunpack.c.l.b16 %v63
    %v939 = vunpack.c.l.b16 %v64
    %v940 = vunpack.c.l.b16 %v65
    %v941 = vunpack.c.l.b16 %v66
    %v942 = vunpack.c.l.b16 %v67
    %v943 = vunpack.c.l.b16 %v68
    %v944 = vunpack.c.l.b16 %v69
    %v945 = vunpack.c.l.b16 %v70
    %v946 = vunpack.c.l.b16 %v71
    %v947 = vunpack.c.l.b16 %v72
    %v948 = vunpack.c.l.b16 %v73
    %v949 = vunpack.c.l.b16 %v74
    %v950 = vunpack.c.l.b16 %v75
    %v951 = vunpack.c.l.b16 %v76
    %v952 = vunpack.c.l.b16 %v77
    %v953 = vunpack.c.l.b16 %v78
    %v954 = vunpack.c.l.b16 %v79
    %v955 = vunpack.c.l.b16 %v80
    %v956 = vunpack.c.l.b16 %v81
    %v957 = vunpack.c.l.b16 %v82
    %v958 = vunpack.c.l.b16 %v83
    %v959 = vunpack.c.l.b16 %v84
    %v960 = vunpack.c.l.b16 %v85
    %v961 = vunpack.c.l.b16 %v86
    %v962 = vunpack.c.l.b16 %v87
    %v963 = vunpack.c.l.b16 %v88
    %v964 = vunpack.c.l.b16 %v89
    %v965 = vunpack.c.l.b16 %v90
    %v966 = vunpack.c.l.b16 %v91
    %v967 = vunpack.c.l.b16 %v92
    %v968 = vunpack.c.l.b16 %v93
    %v969 = vunpack.c.l.b16 %v94
    %v970 = vunpack.c.l.b16 %v95
    %v971 = vunpack.c.l.b16 %v96
    %v972 = vunpack.c.l.b16 %v97
    %v973 = vunpack.c.l.b16 %v98
    %v974 = vunpack.c.l.b16 %v99
    %v975 = vunpack.c.l.b16 %v100
    %v976 = vunpack.c.l.b16 %v101
    %v977 = vunpack.c.l.b16 %v102
    %v978 = vunpack.c.l.b16 %v103
    %v979 = vunpack.c.l.b16 %v104
    %v980 = vunpack.c.l.b16 %v105
    %v981 = vunpack.c.l.b16 %v106
    %v982 = vunpack.c.l.b16 %v107
    %v983 = vunpack.c.l.b16 %v108
    %v984 = vunpack.c.l.b16 %v109
    %v985 = vunpack.c.l.b16 %v110
    %v986 = vunpack.c.l.b16 %v111
    %v987 = vunpack.c.l.b16 %v112
    %v988 = vunpack.c.l.b16 %v113
    %v989 = vunpack.c.l.b16 %v114
    %v990 = vunpack.c.l.b16 %v115
    %v991 = vunpack.c.l.b16 %v116
    %v992 = vunpack.c.l.b16 %v117
    %v993 = vunpack.c.l.b16 %v118
    %v994 = vunpack.c.l.b16 %v119
    %v995 = vunpack.c.l.b16 %v120
    %v996 = vunpack.c.l.b16 %v121
    %v997 = vunpack.c.l.b16 %v122
    %v998 = vunpack.c.l.b16 %v123
    %v999 = vunpack.c.l.b16 %v124
    %v1000 = vunpack.c.l.b16 %v125
    %v1001 = vunpack.c.l.b16 %v126
    %v1002 = vunpack.c.l.b16 %v127
    %v1003 = vunpack.c.l.b16 %v128
    %v1004 = vunpack.c.l.b16 %v129
    %v1005 = vunpack.c.l.b16 %v130
    %v1006 = vunpack.c.l.b16 %v131
    %v1007 = vunpack.c.l.b16 %v132
    %v1008 = vunpack.c.l.b16 %v133
    %v1009 = vunpack.c.l.b16 %v134
    %v1010 = vunpack.c.l.b16 %v135
    %v1011 = vunpack.c.l.b16 %v136
    %v1012 = vunpack.c.l.b16 %v137
    %v1013 = vunpack.c.l.b16 %v138
    %v1014 = vunpack.c.l.b16 %v139
    %v1015 = vunpack.c.l.b16 %v140
    %v1016 = vunpack.c.l.b16 %v141
    %v1017 = vunpack.c.l.b16 %v142
    %v1018 = vunpack.c.l.b16 %v143
    %v1019 = vunpack.c.l.b16 %v144
    %v1020 = vunpack.c.l.b16 %v145
    %v1021 = vunpack.c.l.b16 %v146
    %v1022 = vunpack.c.l.b16 %v147
    %v1023 = vunpack.c.l.b16 %v148
    %v1024 = vunpack.c.l.b16 %v149
    %v1025 = vunpack.c.l.b16 %v150
    %v1026 = vunpack.c.l.b16 %v151
    %v1027 = vunpack.c.l.b16 %v152
    %v1028 = vunpack.c.l.b16 %v153
    %v1029 = vunpack.c.l.b16 %v154
    %v1030 = vunpack.c.l.b16 %v155
    %v1031 = vunpack.c.l.b16 %v156
    %v1032 = vunpack.c.l.b16 %v157
    %v1033 = vunpack.c.l.b16 %v158
    %v1034 = vunpack.c.l.b16 %v159
    %v1035 = vunpack.c.l.b16 %v160
    %v1036 = vunpack.c.l.b16 %v161
    %v1037 = vunpack.c.l.b16 %v162
    %v1038 = vunpack.c.l.b16 %v163
    %v1039 = vunpack.c.l.b16 %v164
    %v1040 = vunpack.c.l.b16 %v165
    %v1041 = vunpack.c.l.b16 %v166
    %v1042 = vunpack.c.l.b16 %v167
    %v1043 = vunpack.c.l.b16 %v168
    %v1044 = vunpack.c.l.b16 %v169
    %v1045 = vunpack.c.l.b16 %v170
    %v1046 = vunpack.c.l.b16 %v171
    %v1047 = vunpack.c.l.b16 %v172
    %v1048 = vunpack.c.l.b16 %v173
    %v1049 = vunpack.c.l.b16 %v174
    %v1050 = vunpack.c.l.b16 %v175
    %v1051 = vunpack.c.l.b16 %v176
    %v1052 = vunpack.c.l.b16 %v177
    %v1053 = vunpack.c.l.b16 %v178
    %v1054 = vunpack.c.l.b16 %v179
    %v1055 = vunpack.c.l.b16 %v180
    %v1056 = vunpack.c.l.b16 %v181
    %v1057 = vunpack.c.l.b16 %v182
    %v1058 = vunpack.c.l.b16 %v183
    %v1059 = vunpack.c.l.b16 %v184
    %v1060 = vunpack.c.l.b16 %v185
    %v1061 = vunpack.c.l.b16 %v186
    %v1062 = vunpack.c.l.b16 %v187
    %v1063 = vunpack.c.l.b16 %v188
    %v1064 = vunpack.c.l.b16 %v189
    %v1065 = vunpack.c.l.b16 %v190
    %v1066 = vunpack.c.l.b16 %v191
    %v1067 = vunpack.c.l.b16 %v192
    %v1068 = vunpack.c.l.b16 %v193
    %v1069 = vunpack.c.l.b16 %v194
    %v1070 = vunpack.c.l.b16 %v195
    %v1071 = vunpack.c.l.b16 %v196
    %v1072 = vunpack.c.l.b16 %v197
    %v1073 = vunpack.c.l.b16 %v198
    %v1074 = vunpack.c.l.b16 %v199
    %v1075 = vunpack.c.l.b16 %v200
    %v1076 = vunpack.c.l.b16 %v201
    %v1077 = vunpack.c.l.b16 %v202
    %v1078 = vunpack.c.l.b16 %v203
    %v1079 = vunpack.c.l.b16 %v204
    %v1080 = vunpack.c.l.b16 %v205
    %v1081 = vunpack.c.l.b16 %v206
    %v1082 = vunpack.c.l.b16 %v207
    %v1083 = vunpack.c.l.b16 %v208
    %v1084 = vunpack.c.l.b16 %v209
    %v1085 = vunpack.c.l.b16 %v210
    %v1086 = vunpack.c.l.b16 %v211
    %v1087 = vunpack.c.l.b16 %v212
    %v1088 = vunpack.c.l.b16 %v213
    %v1089 = vunpack.c.l.b16 %v214
    %v1090 = vunpack.c.l.b16 %v215
    %v1091 = vunpack.c.l.b16 %v216
    %v1092 = vunpack.c.l.b16 %v217
    %v1093 = vunpack.c.l.b16 %v218
    %v1094 = vunpack.c.l.b16 %v219
    %v1095 = vunpack.c.l.b16 %v220
    %v1096 = vunpack.c.l.b16 %v221
    %v1097 = vunpack.c.l.b16 %v222
    %v1098 = vunpack.c.l.b16 %v223
    %v1099 = vunpack.c.l.b16 %v224
    %v1100 = vunpack.c.l.b16 %v225
    %v1101 = vunpack.c.l.b16 %v226
    %v1102 = vunpack.c.l.b16 %v227
    %v1103 = vunpack.c.l.b16 %v228
    %v1104 = vunpack.c.l.b16 %v229
    %v1105 = vunpack.c.l.b16 %v230
    %v1106 = vunpack.c.l.b16 %v231
    %v1107 = vunpack.c.l.b16 %v232
    %v1108 = vunpack.c.l.b16 %v233
    %v1109 = vunpack.c.l.b16 %v234
    %v1110 = vunpack.c.l.b16 %v235
    %v1111 = vunpack.c.l.b16 %v236
    %v1112 = vunpack.c.l.b16 %v237
    %v1113 = vunpack.c.l.b16 %v238
    %v1114 = vunpack.c.l.b16 %v239
    %v1115 = vunpack.c.l.b16 %v240
    %v1116 = vunpack.c.l.b16 %v241
    %v1117 = vunpack.c.l.b16 %v242
    %v1118 = vunpack.c.l.b16 %v243
    %v1119 = vunpack.c.l.b16 %v244
    %v1120 = vunpack.c.l.b16 %v245
    %v1121 = vunpack.c.l.b16 %v246
    %v1122 = vunpack.c.l.b16 %v247
    %v1123 = vunpack.c.l.b16 %v248
    %v1124 = vunpack.c.l.b16 %v249
    %v1125 = vunpack.c.l.b16 %v250
    %v1126 = vunpack.c.l.b16 %v251
    %v1127 = vunpack.c.l.b16 %v252
    %v1128 = vunpack.c.l.b16 %v253
    %v1129 = vunpack.c.l.b16 %v254
    %v1130 = vunpack.c.l.b16 %v255
    %v1131 = vunpack.c.l.b16 %v256
    %v1132 = vunpack.c.l.b16 %v257
    %v1133 = vunpack.c.l.b16 %v258
    %v1134 = vunpack.c.l.b16 %v259
    %v1135 = vunpack.c.l.b16 %v260
    %v1136 = vunpack.c.l.b16 %v261
    %v1137 = vunpack.c.l.b16 %v262
    %v1138 = vunpack.c.l.b16 %v263
    %v1139 = vunpack.c.l.b16 %v264
    %v1140 = vunpack.c.l.b16 %v265
    %v1141 = vunpack.c.l.b16 %v266
    %v1142 = vunpack.c.l.b16 %v267
    %v1143 = vunpack.c.l.b16 %v268
    %v1144 = vunpack.c.l.b16 %v269
    %v1145 = vunpack.c.l.b16 %v270
    %v1146 = vunpack.c.l.b16 %v271
    %v1147 = vunpack.c.l.b16 %v272
    %v1148 = vunpack.c.l.b16 %v273
    %v1149 = vunpack.c.l.b16 %v274
    %v1150 = vunpack.c.l.b16 %v275
    %v1151 = vunpack.c.l.b16 %v276
    %v1152 = vunpack.c.l.b16 %v277
    %v1153 = vunpack.c.l.b16 %v278
    %v1154 = vunpack.c.l.b16 %v279
    %v1155 = vunpack.c.l.b16 %v280
    %v1156 = vunpack.c.l.b16 %v281
    %v1157 = vunpack.c.l.b16 %v282
    %v1158 = vunpack.c.l.b16 %v283
    %v1159 = vunpack.c.l.b16 %v284
    %v1160 = vunpack.c.l.b16 %v285
    %v1161 = vunpack.c.l.b16 %v286
    %v1162 = vunpack.c.l.b16 %v287
    %v1163 = vunpack.c.l.b16 %v288
    %v1164 = vunpack.c.l.b16 %v289
    %v1165 = vunpack.c.l.b16 %v290
    %v1166 = vunpack.c.l.b16 %v291
    %v1167 = vunpack.c.l.b16 %v292
    %v1168 = vunpack.c.l.b16 %v293
    %v1169 = vunpack.c.l.b16 %v294
    %v1170 = vunpack.c.l.b16 %v295
    %v1171 = vunpack.c.l.b16 %v296
    %v1172 = vunpack.c.l.b16 %v297
    %v1173 = vunpack.c.l.b16 %v298
    %v1174 = vunpack.c.l.b16 %v299
    %v1175 = vunpack.c.l.b16 %v300
    %v1176 = vunpack.c.l.b16 %v301
    %v1177 = vunpack.c.l.b16 %v302
    %v1178 = vunpack.c.l.b16 %v303
    %v1179 = vunpack.c.l.b16 %v304
    %v1180 = vunpack.c.l.b16 %v305
    %v1181 = vunpack.c.l.b16 %v306
    %v1182 = vunpack.c.l.b16 %v307
    %v1183 = vunpack.c.l.b16 %v308
    %v1184 = vunpack.c.l.b16 %v309
    %v1185 = vunpack.c.l.b16 %v310
    %v1186 = vunpack.c.l.b16 %v311
    %v1187 = vunpack.c.l.b16 %v312
    %v1188 = vunpack.c.l.b16 %v313
    %v1189 = vunpack.c.l.b16 %v314
    %v1190 = vunpack.c.l.b16 %v315
    %v1191 = vunpack.c.l.b16 %v316
    %v1192 = vunpack.c.l.b16 %v317
    %v1193 = vunpack.c.l.b16 %v318
    %v1194 = vunpack.c.l.b16 %v319
    %v1195 = vunpack.c.l.b16 %v320
    %v1196 = vunpack.c.l.b16 %v321
    %v1197 = vunpack.c.l.b16 %v322
    %v1198 = vunpack.c.l.b16 %v323
    %v1199 = vunpack.c.l.b16 %v324
    %v1200 = vunpack.c.l.b16 %v325
    %v1201 = vunpack.c.l.b16 %v326
    %v1202 = vunpack.c.l.b16 %v327
    %v1203 = vunpack.c.l.b16 %v328
    %v1204 = vunpack.c.l.b16 %v329
    %v1205 = vunpack.c.l.b16 %v330
    %v1206 = vunpack.c.l.b16 %v331
    %v1207 = vunpack.c.l.b16 %v332
    %v1208 = vunpack.c.l.b16 %v333
    %v1209 = vunpack.c.l.b16 %v334
    %v1210 = vunpack.c.l.b16 %v335
    %v1211 = vunpack.c.l.b16 %v336
    %v1212 = vunpack.c.l.b16 %v337
    %v1213 = vunpack.c.l.b16 %v338
    %v1214 = vunpack.c.l.b16 %v339
    %v1215 = vunpack.c.l.b16 %v340
    %v1216 = vunpack.c.l.b16 %v341
    %v1217 = vunpack.c.l.b16 %v342
    %v1218 = vunpack.c.l.b16 %v343
    %v1219 = vunpack.c.l.b16 %v344
    %v1220 = vunpack.c.l.b16 %v345
    %v1221 = vunpack.c.l.b16 %v346
    %v1222 = vunpack.c.l.b16 %v347
    %v1223 = vunpack.c.l.b16 %v348
    %v1224 = vunpack.c.l.b16 %v349
    %v1225 = vunpack.c.l.b16 %v350
    %v1226 = vunpack.c.l.b16 %v351
    %v1227 = vunpack.c.l.b16 %v352
    %v1228 = vunpack.c.l.b16 %v353
    %v1229 = vunpack.c.l.b16 %v354
    %v1230 = vunpack.c.l.b16 %v355
    %v1231 = vunpack.c.l.b16 %v356
    %v1232 = vunpack.c.l.b16 %v357
    %v1233 = vunpack.c.l.b16 %v358
    %v1234 = vunpack.c.l.b16 %v359
    %v1235 = vunpack.c.l.b16 %v360
    %v1236 = vunpack.c.l.b16 %v361
    %v1237 = vunpack.c.l.b16 %v362
    %v1238 = vunpack.c.l.b16 %v363
    %v1239 = vunpack.c.l.b16 %v364
    %v1240 = vunpack.c.l.b16 %v365
    %v1241 = vunpack.c.l.b16 %v366
    %v1242 = vunpack.c.l.b16 %v367
    %v1243 = vunpack.c.l.b16 %v368
    %v1244 = vunpack.c.l.b16 %v369
    %v1245 = vunpack.c.l.b16 %v370
    %v1246 = vunpack.c.l.b16 %v371
    %v1247 = vunpack.c.l.b16 %v372
    %v1248 = vunpack.c.l.b16 %v373
    %v1249 = vunpack.c.l.b16 %v374
    %v1250 = vunpack.c.l.b16 %v375
    %v1251 = vunpack.c.l.b16 %v376
    %v1252 = vunpack.c.l.b16 %v377
    %v1253 = vunpack.c.l.b16 %v378
    %v1254 = vunpack.c.l.b16 %v379
    %v1255 = vunpack.c.l.b16 %v380
    %v1256 = vunpack.c.l.b16 %v381
    %v1257 = vunpack.c.l.b16 %v382
    %v1258 = vunpack.c.l.b16 %v383
    %v1259 = vunpack.c.l.b16 %v384
    %v1260 = vunpack.c.l.b16 %v385
    %v1261 = vunpack.c.l.b16 %v386
    %v1262 = vunpack.c.l.b16 %v387
    %v1263 = vunpack.c.l.b16 %v388
    %v1264 = vunpack.c.l.b16 %v389
    %v1265 = vunpack.c.l.b16 %v390
    %v1266 = vunpack.c.l.b16 %v391
    %v1267 = vunpack.c.l.b16 %v392
    %v1268 = vunpack.c.l.b16 %v393
    %v1269 = vunpack.c.l.b16 %v394
    %v1270 = vunpack.c.l.b16 %v395
    %v1271 = vunpack.c.l.b16 %v396
    %v1272 = vunpack.c.l.b16 %v397
    %v1273 = vunpack.c.l.b16 %v398
    %v1274 = vunpack.c.l.b16 %v399
    %v1275 = vunpack.c.l.b16 %v400
    %v1276 = vunpack.c.l.b16 %v401
    %v1277 = vunpack.c.l.b16 %v402
    %v1278 = vunpack.c.l.b16 %v403
    %v1279 = vunpack.c.l.b16 %v404
    %v1280 = vunpack.c.l.b16 %v405
    %v1281 = vunpack.c.l.b16 %v406
    %v1282 = vunpack.c.l.b16 %v407
    %v1283 = vunpack.c.l.b16 %v408
    %v1284 = vunpack.c.l.b16 %v409
    %v1285 = vunpack.c.l.b16 %v410
    %v1286 = vunpack.c.l.b16 %v411
    %v1287 = vunpack.c.l.b16 %v412
    %v1288 = vunpack.c.l.b16 %v413
    %v1289 = vunpack.c.l.b16 %v414
    %v1290 = vunpack.c.l.b16 %v415
    %v1291 = vunpack.c.l.b16 %v416
    %v1292 = vunpack.c.l.b16 %v417
    %v1293 = vunpack.c.l.b16 %v418
    %v1294 = vunpack.c.l.b16 %v419
    %v1295 = vunpack.c.l.b16 %v420
    %v1296 = vunpack.c.l.b16 %v421
    %v1297 = vunpack.c.l.b16 %v422
    %v1298 = vunpack.c.l.b16 %v423
    %v1299 = vunpack.c.l.b16 %v424
    %v1300 = vunpack.c.l.b16 %v425
    %v1301 = vunpack.c.l.b16 %v426
    %v1302 = vunpack.c.l.b16 %v427
    %v1303 = vunpack.c.l.b16 %v428
    %v1304 = vunpack.c.l.b16 %v429
    %v1305 = vunpack.c.l.b16 %v430
    %v1306 = vunpack.c.l.b16 %v431
    %v1307 = vunpack.c.l.b16 %v432
    %v1308 = vpack.c.b16 %v917, %v916
    %v1309 = vpack.c.b16 %v919, %v918
    %v1310 = vpack.c.b16 %v921, %v920
    %v1311 = vpack.c.b16 %v923, %v922
    %v1312 = vpack.c.b16 %v925, %v924
    %v1313 = vpack.c.b16 %v927, %v926
    %v1314 = vpack.c.b16 %v929, %v928
    %v1315 = vpack.c.b16 %v931, %v930
    %v1316 = vpack.c.b16 %v933, %v932
    %v1317 = vpack.c.b16 %v935, %v934
    %v1318 = vpack.c.b16 %v937, %v936
    %v1319 = vpack.c.b16 %v939, %v938
    %v1320 = vpack.c.b16 %v941, %v940
    %v1321 = vpack.c.b16 %v943, %v942
    %v1322 = vpack.c.b16 %v945, %v944
    %v1323 = vpack.c.b16 %v947, %v946
    %v1324 = vpack.c.b16 %v949, %v948
    %v1325 = vpack.c.b16 %v951, %v950
    %v1326 = vpack.c.b16 %v953, %v952
    %v1327 = vpack.c.b16 %v955, %v954
    %v1328 = vpack.c.b16 %v957, %v956
    %v1329 = vpack.c.b16 %v959, %v958
    %v1330 = vpack.c.b16 %v961, %v960
    %v1331 = vpack.c.b16 %v963, %v962
    %v1332 = vpack.c.b16 %v965, %v964
    %v1333 = vpack.c.b16 %v967, %v966
    %v1334 = vpack.c.b16 %v969, %v968
    %v1335 = vpack.c.b16 %v971, %v970
    %v1336 = vpack.c.b16 %v973, %v972
    %v1337 = vpack.c.b16 %v975, %v974
    %v1338 = vpack.c.b16 %v977, %v976
    %v1339 = vpack.c.b16 %v979, %v978
    %v1340 = vpack.c.b16 %v981, %v980
    %v1341 = vpack.c.b16 %v983, %v982
    %v1342 = vpack.c.b16 %v985, %v984
    %v1343 = vpack.c.b16 %v987, %v986
    %v1344 = vpack.c.b16 %v989, %v988
    %v1345 = vpack.c.b16 %v991, %v990
    %v1346 = vpack.c.b16 %v993, %v992
    %v1347 = vpack.c.b16 %v995, %v994
    %v1348 = vpack.c.b16 %v997, %v996
    %v1349 = vpack.c.b16 %v999, %v998
    %v1350 = vpack.c.b16 %v1001, %v1000
    %v1351 = vpack.c.b16 %v1003, %v1002
    %v1352 = vpack.c.b16 %v1005, %v1004
    %v1353 = vpack.c.b16 %v1007, %v1006
    %v1354 = vpack.c.b16 %v1009, %v1008
    %v1355 = vpack.c.b16 %v1011, %v1010
    %v1356 = vpack.c.b16 %v1013, %v1012
    %v1357 = vpack.c.b16 %v1015, %v1014
    %v1358 = vpack.c.b16 %v1017, %v1016
    %v1359 = vpack.c.b16 %v1019, %v1018
    %v1360 = vpack.c.b16 %v1021, %v1020
    %v1361 = vpack.c.b16 %v1023, %v1022
    %v1362 = vpack.c.b16 %v1025, %v1024
    %v1363 = vpack.c.b16 %v1027, %v1026
    %v1364 = vpack.c.b16 %v1029, %v1028
    %v1365 = vpack.c.b16 %v1031, %v1030
    %v1366 = vpack.c.b16 %v1033, %v1032
    %v1367 = vpack.c.b16 %v1035, %v1034
    %v1368 = vpack.c.b16 %v1037, %v1036
    %v1369 = vpack.c.b16 %v1039, %v1038
    %v1370 = vpack.c.b16 %v1041, %v1040
    %v1371 = vpack.c.b16 %v1043, %v1042
    %v1372 = vpack.c.b16 %v1045, %v1044
    %v1373 = vpack.c.b16 %v1047, %v1046
    %v1374 = vpack.c.b16 %v1049, %v1048
    %v1375 = vpack.c.b16 %v1051, %v1050
    %v1376 = vpack.c.b16 %v1053, %v1052
    %v1377 = vpack.c.b16 %v1055, %v1054
    %v1378 = vpack.c.b16 %v1057, %v1056
    %v1379 = vpack.c.b16 %v1059, %v1058
    %v1380 = vpack.c.b16 %v1061, %v1060
    %v1381 = vpack.c.b16 %v1063, %v1062
    %v1382 = vpack.c.b16 %v1065, %v1064
    %v1383 = vpack.c.b16 %v1067, %v1066
    %v1384 = vpack.c.b16 %v1069, %v1068
    %v1385 = vpack.c.b16 %v1071, %v1070
    %v1386 = vpack.c.b16 %v1073, %v1072
    %v1387 = vpack.c.b16 %v1075, %v1074
    %v1388 = vpack.c.b16 %v1077, %v1076
    %v1389 = vpack.c.b16 %v1079, %v1078
    %v1390 = vpack.c.b16 %v1081, %v1080
    %v1391 = vpack.c.b16 %v1083, %v1082
    %v1392 = vpack.c.b16 %v1085, %v1084
    %v1393 = vpack.c.b16 %v1087, %v1086
    %v1394 = vpack.c.b16 %v1089, %v1088
    %v1395 = vpack.c.b16 %v1091, %v1090
    %v1396 = vpack.c.b16 %v1093, %v1092
    %v1397 = vpack.c.b16 %v1095, %v1094
    %v1398 = vpack.c.b16 %v1097, %v1096
    %v1399 = vpack.c.b16 %v1099, %v1098
    %v1400 = vpack.c.b16 %v1101, %v1100
    %v1401 = vpack.c.b16 %v1103, %v1102
    %v1402 = vpack.c.b16 %v1105, %v1104
    %v1403 = vpack.c.b16 %v1107, %v1106
    %v1404 = vpack.c.b16 %v1109, %v1108
    %v1405 = vpack.c.b16 %v1111, %v1110
    %v1406 = vpack.c.b16 %v1113, %v1112
    %v1407 = vpack.c.b16 %v1115, %v1114
    %v1408 = vpack.c.b16 %v1117, %v1116
    %v1409 = vpack.c.b16 %v1119, %v1118
    %v1410 = vpack.c.b16 %v1121, %v1120
    %v1411 = vpack.c.b16 %v1123, %v1122
    %v1412 = vpack.c.b16 %v1125, %v1124
    %v1413 = vpack.c.b16 %v1127, %v1126
    %v1414 = vpack.c.b16 %v1129, %v1128
    %v1415 = vpack.c.b16 %v1131, %v1130
    %v1416 = vpack.c.b16 %v1133, %v1132
    %v1417 = vpack.c.b16 %v1135, %v1134
    %v1418 = vpack.c.b16 %v1137, %v1136
    %v1419 = vpack.c.b16 %v1139, %v1138
    %v1420 = vpack.c.b16 %v1141, %v1140
    %v1421 = vpack.c.b16 %v1143, %v1142
    %v1422 = vpack.c.b16 %v1145, %v1144
    %v1423 = vpack.c.b16 %v1147, %v1146
    %v1424 = vpack.c.b16 %v1149, %v1148
    %v1425 = vpack.c.b16 %v1151, %v1150
    %v1426 = vpack.c.b16 %v1153, %v1152
    %v1427 = vpack.c.b16 %v1155, %v1154
    %v1428 = vpack.c.b16 %v1157, %v1156
    %v1429 = vpack.c.b16 %v1159, %v1158
    %v1430 = vpack.c.b16 %v1161, %v1160
    %v1431 = vpack.c.b16 %v1163, %v1162
    %v1432 = vpack.c.b16 %v1165, %v1164
    %v1433 = vpack.c.b16 %v1167, %v1166
    %v1434 = vpack.c.b16 %v1169, %v1168
    %v1435 = vpack.c.b16 %v1171, %v1170
    %v1436 = vpack.c.b16 %v1173, %v1172
    %v1437 = vpack.c.b16 %v1175, %v1174
    %v1438 = vpack.c.b16 %v1177, %v1176
    %v1439 = vpack.c.b16 %v1179, %v1178
    %v1440 = vpack.c.b16 %v1181, %v1180
    %v1441 = vpack.c.b16 %v1183, %v1182
    %v1442 = vpack.c.b16 %v1185, %v1184
    %v1443 = vpack.c.b16 %v1187, %v1186
    %v1444 = vpack.c.b16 %v1189, %v1188
    %v1445 = vpack.c.b16 %v1191, %v1190
    %v1446 = vpack.c.b16 %v1193, %v1192
    %v1447 = vpack.c.b16 %v1195, %v1194
    %v1448 = vpack.c.b16 %v1197, %v1196
    %v1449 = vpack.c.b16 %v1199, %v1198
    %v1450 = vpack.c.b16 %v1201, %v1200
    %v1451 = vpack.c.b16 %v1203, %v1202
    %v1452 = vpack.c.b16 %v1205, %v1204
    %v1453 = vpack.c.b16 %v1207, %v1206
    %v1454 = vpack.c.b16 %v1209, %v1208
    %v1455 = vpack.c.b16 %v1211, %v1210
    %v1456 = vpack.c.b16 %v1213, %v1212
    %v1457 = vpack.c.b16 %v1215, %v1214
    %v1458 = vpack.c.b16 %v1217, %v1216
    %v1459 = vpack.c.b16 %v1219, %v1218
    %v1460 = vpack.c.b16 %v1221, %v1220
    %v1461 = vpack.c.b16 %v1223, %v1222
    %v1462 = vpack.c.b16 %v1225, %v1224
    %v1463 = vpack.c.b16 %v1227, %v1226
    %v1464 = vpack.c.b16 %v1229, %v1228
    %v1465 = vpack.c.b16 %v1231, %v1230
    %v1466 = vpack.c.b16 %v1233, %v1232
    %v1467 = vpack.c.b16 %v1235, %v1234
    %v1468 = vpack.c.b16 %v1237, %v1236
    %v1469 = vpack.c.b16 %v1239, %v1238
    %v1470 = vpack.c.b16 %v1241, %v1240
    %v1471 = vpack.c.b16 %v1243, %v1242
    %v1472 = vpack.c.b16 %v1245, %v1244
    %v1473 = vpack.c.b16 %v1247, %v1246
    %v1474 = vpack.c.b16 %v1249, %v1248
    %v1475 = vpack.c.b16 %v1251, %v1250
    %v1476 = vpack.c.b16 %v1253, %v1252
    %v1477 = vpack.c.b16 %v1255, %v1254
    %v1478 = vpack.c.b16 %v1257, %v1256
    %v1479 = vpack.c.b16 %v1259, %v1258
    %v1480 = vpack.c.b16 %v1261, %v1260
    %v1481 = vpack.c.b16 %v1263, %v1262
    %v1482 = vpack.c.b16 %v1265, %v1264
    %v1483 = vpack.c.b16 %v1267, %v1266
    %v1484 = vpack.c.b16 %v1269, %v1268
    %v1485 = vpack.c.b16 %v1271, %v1270
    %v1486 = vpack.c.b16 %v1273, %v1272
    %v1487 = vpack.c.b16 %v1275, %v1274
    %v1488 = vpack.c.b16 %v1277, %v1276
    %v1489 = vpack.c.b16 %v1279, %v1278
    %v1490 = vpack.c.b16 %v1281, %v1280
    %v1491 = vpack.c.b16 %v1283, %v1282
    %v1492 = vpack.c.b16 %v1285, %v1284
    %v1493 = vpack.c.b16 %v1287, %v1286
    %v1494 = vpack.c.b16 %v1289, %v1288
    %v1495 = vpack.c.b16 %v1291, %v1290
    %v1496 = vpack.c.b16 %v1293, %v1292
    %v1497 = vpack.c.b16 %v1295, %v1294
    %v1498 = vpack.c.b16 %v1297, %v1296
    %v1499 = vpack.c.b16 %v1299, %v1298
    %v1500 = vpack.c.b16 %v1301, %v1300
    %v1501 = vpack.c.b16 %v1303, %v1302
    %v1502 = vpack.c.b16 %v1305, %v1304
    %v1503 = vpack.c.b16 %v1307, %v1306
    %vm1700 = vcmask 523264
    %v1702 = vsel %vm1700, %v499, 0
    %1704 = vmatpush.bf16.msra.mxu0 %v1315
    %1705 = vmatpush.bf16.msra.mxu0 %v1314
    %1706 = vmatpush.bf16.msra.mxu0 %v1313
    %1707 = vmatpush.bf16.msra.mxu0 %v1312
    %1708 = vmatpush.bf16.msra.mxu0 %v1311
    %1709 = vmatpush.bf16.msra.mxu0 %v1310
    %1710 = vmatpush.bf16.msra.mxu0 %v1309
    %1711 = vmatpush.bf16.msra.mxu0 %v1308
    %1712 = vmatmul.bf16.gmra.mxu0 %v475
    %v1713 = vpop.f32.mrf.mxu0
    %v1714 = vadd.f32 %v435, %v1713
    %v1715 = vpop.f32.mrf.mxu0
    %1716 = vdwg.mxu0
    %1717 = vmatpush.bf16.msra.mxu0 %v1323
    %1718 = vmatpush.bf16.msra.mxu0 %v1322
    %1719 = vmatpush.bf16.msra.mxu0 %v1321
    %1720 = vmatpush.bf16.msra.mxu0 %v1320
    %1721 = vmatpush.bf16.msra.mxu0 %v1319
    %1722 = vmatpush.bf16.msra.mxu0 %v1318
    %1723 = vmatpush.bf16.msra.mxu0 %v1317
    %1724 = vmatpush.bf16.msra.mxu0 %v1316
    %1725 = vmatmul.bf16.gmra.mxu0 %v476
    %v1726 = vpop.f32.mrf.mxu0
    %v1727 = vadd.f32 %v1714, %v1726
    %v1728 = vpop.f32.mrf.mxu0
    %1729 = vdwg.mxu0
    %1730 = vmatpush.bf16.msra.mxu0 %v1331
    %1731 = vmatpush.bf16.msra.mxu0 %v1330
    %1732 = vmatpush.bf16.msra.mxu0 %v1329
    %1733 = vmatpush.bf16.msra.mxu0 %v1328
    %1734 = vmatpush.bf16.msra.mxu0 %v1327
    %1735 = vmatpush.bf16.msra.mxu0 %v1326
    %1736 = vmatpush.bf16.msra.mxu0 %v1325
    %1737 = vmatpush.bf16.msra.mxu0 %v1324
    %1738 = vmatmul.bf16.gmra.mxu0 %v477
    %v1739 = vpop.f32.mrf.mxu0
    %v1740 = vadd.f32 %v1727, %v1739
    %v1741 = vpop.f32.mrf.mxu0
    %1742 = vdwg.mxu0
    %1743 = vmatpush.bf16.msra.mxu0 %v1339
    %1744 = vmatpush.bf16.msra.mxu0 %v1338
    %1745 = vmatpush.bf16.msra.mxu0 %v1337
    %1746 = vmatpush.bf16.msra.mxu0 %v1336
    %1747 = vmatpush.bf16.msra.mxu0 %v1335
    %1748 = vmatpush.bf16.msra.mxu0 %v1334
    %1749 = vmatpush.bf16.msra.mxu0 %v1333
    %1750 = vmatpush.bf16.msra.mxu0 %v1332
    %1751 = vmatmul.bf16.gmra.mxu0 %v478
    %v1752 = vpop.f32.mrf.mxu0
    %v1753 = vadd.f32 %v1740, %v1752
    %v1754 = vpop.f32.mrf.mxu0
    %1755 = vdwg.mxu0
    %1756 = vmatpush.bf16.msra.mxu0 %v1347
    %1757 = vmatpush.bf16.msra.mxu0 %v1346
    %1758 = vmatpush.bf16.msra.mxu0 %v1345
    %1759 = vmatpush.bf16.msra.mxu0 %v1344
    %1760 = vmatpush.bf16.msra.mxu0 %v1343
    %1761 = vmatpush.bf16.msra.mxu0 %v1342
    %1762 = vmatpush.bf16.msra.mxu0 %v1341
    %1763 = vmatpush.bf16.msra.mxu0 %v1340
    %1764 = vmatmul.bf16.gmra.mxu0 %v479
    %v1765 = vpop.f32.mrf.mxu0
    %v1766 = vadd.f32 %v1753, %v1765
    %v1767 = vpop.f32.mrf.mxu0
    %1768 = vdwg.mxu0
    %1769 = vmatpush.bf16.msra.mxu0 %v1355
    %1770 = vmatpush.bf16.msra.mxu0 %v1354
    %1771 = vmatpush.bf16.msra.mxu0 %v1353
    %1772 = vmatpush.bf16.msra.mxu0 %v1352
    %1773 = vmatpush.bf16.msra.mxu0 %v1351
    %1774 = vmatpush.bf16.msra.mxu0 %v1350
    %1775 = vmatpush.bf16.msra.mxu0 %v1349
    %1776 = vmatpush.bf16.msra.mxu0 %v1348
    %1777 = vmatmul.bf16.gmra.mxu0 %v480
    %v1778 = vpop.f32.mrf.mxu0
    %v1779 = vadd.f32 %v1766, %v1778
    %v1780 = vpop.f32.mrf.mxu0
    %1781 = vdwg.mxu0
    %1782 = vmatpush.bf16.msra.mxu0 %v1363
    %1783 = vmatpush.bf16.msra.mxu0 %v1362
    %1784 = vmatpush.bf16.msra.mxu0 %v1361
    %1785 = vmatpush.bf16.msra.mxu0 %v1360
    %1786 = vmatpush.bf16.msra.mxu0 %v1359
    %1787 = vmatpush.bf16.msra.mxu0 %v1358
    %1788 = vmatpush.bf16.msra.mxu0 %v1357
    %1789 = vmatpush.bf16.msra.mxu0 %v1356
    %1790 = vmatmul.bf16.gmra.mxu0 %v481
    %v1791 = vpop.f32.mrf.mxu0
    %v1792 = vadd.f32 %v1779, %v1791
    %v1793 = vpop.f32.mrf.mxu0
    %1794 = vdwg.mxu0
    %1795 = vmatpush.bf16.msra.mxu0 %v1371
    %1796 = vmatpush.bf16.msra.mxu0 %v1370
    %1797 = vmatpush.bf16.msra.mxu0 %v1369
    %1798 = vmatpush.bf16.msra.mxu0 %v1368
    %1799 = vmatpush.bf16.msra.mxu0 %v1367
    %1800 = vmatpush.bf16.msra.mxu0 %v1366
    %1801 = vmatpush.bf16.msra.mxu0 %v1365
    %1802 = vmatpush.bf16.msra.mxu0 %v1364
    %1803 = vmatmul.bf16.gmra.mxu0 %v482
    %v1804 = vpop.f32.mrf.mxu0
    %v1805 = vadd.f32 %v1792, %v1804
    %v1806 = vpop.f32.mrf.mxu0
    %1807 = vdwg.mxu0
    %1808 = vmatpush.bf16.msra.mxu0 %v1379
    %1809 = vmatpush.bf16.msra.mxu0 %v1378
    %1810 = vmatpush.bf16.msra.mxu0 %v1377
    %1811 = vmatpush.bf16.msra.mxu0 %v1376
    %1812 = vmatpush.bf16.msra.mxu0 %v1375
    %1813 = vmatpush.bf16.msra.mxu0 %v1374
    %1814 = vmatpush.bf16.msra.mxu0 %v1373
    %1815 = vmatpush.bf16.msra.mxu0 %v1372
    %1816 = vmatmul.bf16.gmra.mxu0 %v483
    %v1817 = vpop.f32.mrf.mxu0
    %v1818 = vadd.f32 %v1805, %v1817
    %v1819 = vpop.f32.mrf.mxu0
    %1820 = vdwg.mxu0
    %1821 = vmatpush.bf16.msra.mxu0 %v1387
    %1822 = vmatpush.bf16.msra.mxu0 %v1386
    %1823 = vmatpush.bf16.msra.mxu0 %v1385
    %1824 = vmatpush.bf16.msra.mxu0 %v1384
    %1825 = vmatpush.bf16.msra.mxu0 %v1383
    %1826 = vmatpush.bf16.msra.mxu0 %v1382
    %1827 = vmatpush.bf16.msra.mxu0 %v1381
    %1828 = vmatpush.bf16.msra.mxu0 %v1380
    %1829 = vmatmul.bf16.gmra.mxu0 %v484
    %v1830 = vpop.f32.mrf.mxu0
    %v1831 = vadd.f32 %v1818, %v1830
    %v1832 = vpop.f32.mrf.mxu0
    %1833 = vdwg.mxu0
    %1834 = vmatpush.bf16.msra.mxu0 %v1395
    %1835 = vmatpush.bf16.msra.mxu0 %v1394
    %1836 = vmatpush.bf16.msra.mxu0 %v1393
    %1837 = vmatpush.bf16.msra.mxu0 %v1392
    %1838 = vmatpush.bf16.msra.mxu0 %v1391
    %1839 = vmatpush.bf16.msra.mxu0 %v1390
    %1840 = vmatpush.bf16.msra.mxu0 %v1389
    %1841 = vmatpush.bf16.msra.mxu0 %v1388
    %1842 = vmatmul.bf16.gmra.mxu0 %v485
    %v1843 = vpop.f32.mrf.mxu0
    %v1844 = vadd.f32 %v1831, %v1843
    %v1845 = vpop.f32.mrf.mxu0
    %1846 = vdwg.mxu0
    %1847 = vmatpush.bf16.msra.mxu0 %v1403
    %1848 = vmatpush.bf16.msra.mxu0 %v1402
    %1849 = vmatpush.bf16.msra.mxu0 %v1401
    %1850 = vmatpush.bf16.msra.mxu0 %v1400
    %1851 = vmatpush.bf16.msra.mxu0 %v1399
    %1852 = vmatpush.bf16.msra.mxu0 %v1398
    %1853 = vmatpush.bf16.msra.mxu0 %v1397
    %1854 = vmatpush.bf16.msra.mxu0 %v1396
    %1855 = vmatmul.bf16.gmra.mxu0 %v486
    %v1856 = vpop.f32.mrf.mxu0
    %v1857 = vadd.f32 %v1844, %v1856
    %v1858 = vpop.f32.mrf.mxu0
    %1859 = vdwg.mxu0
    %1860 = vmatpush.bf16.msra.mxu0 %v1411
    %1861 = vmatpush.bf16.msra.mxu0 %v1410
    %1862 = vmatpush.bf16.msra.mxu0 %v1409
    %1863 = vmatpush.bf16.msra.mxu0 %v1408
    %1864 = vmatpush.bf16.msra.mxu0 %v1407
    %1865 = vmatpush.bf16.msra.mxu0 %v1406
    %1866 = vmatpush.bf16.msra.mxu0 %v1405
    %1867 = vmatpush.bf16.msra.mxu0 %v1404
    %1868 = vmatmul.bf16.gmra.mxu0 %v487
    %v1869 = vpop.f32.mrf.mxu0
    %v1870 = vadd.f32 %v1857, %v1869
    %v1871 = vpop.f32.mrf.mxu0
    %1872 = vdwg.mxu0
    %1873 = vmatpush.bf16.msra.mxu0 %v1419
    %1874 = vmatpush.bf16.msra.mxu0 %v1418
    %1875 = vmatpush.bf16.msra.mxu0 %v1417
    %1876 = vmatpush.bf16.msra.mxu0 %v1416
    %1877 = vmatpush.bf16.msra.mxu0 %v1415
    %1878 = vmatpush.bf16.msra.mxu0 %v1414
    %1879 = vmatpush.bf16.msra.mxu0 %v1413
    %1880 = vmatpush.bf16.msra.mxu0 %v1412
    %1881 = vmatmul.bf16.gmra.mxu0 %v488
    %v1882 = vpop.f32.mrf.mxu0
    %v1883 = vadd.f32 %v1870, %v1882
    %v1884 = vpop.f32.mrf.mxu0
    %1885 = vdwg.mxu0
    %1886 = vmatpush.bf16.msra.mxu0 %v1427
    %1887 = vmatpush.bf16.msra.mxu0 %v1426
    %1888 = vmatpush.bf16.msra.mxu0 %v1425
    %1889 = vmatpush.bf16.msra.mxu0 %v1424
    %1890 = vmatpush.bf16.msra.mxu0 %v1423
    %1891 = vmatpush.bf16.msra.mxu0 %v1422
    %1892 = vmatpush.bf16.msra.mxu0 %v1421
    %1893 = vmatpush.bf16.msra.mxu0 %v1420
    %1894 = vmatmul.bf16.gmra.mxu0 %v489
    %v1895 = vpop.f32.mrf.mxu0
    %v1896 = vadd.f32 %v1883, %v1895
    %v1897 = vpop.f32.mrf.mxu0
    %1898 = vdwg.mxu0
    %1899 = vmatpush.bf16.msra.mxu0 %v1435
    %1900 = vmatpush.bf16.msra.mxu0 %v1434
    %1901 = vmatpush.bf16.msra.mxu0 %v1433
    %1902 = vmatpush.bf16.msra.mxu0 %v1432
    %1903 = vmatpush.bf16.msra.mxu0 %v1431
    %1904 = vmatpush.bf16.msra.mxu0 %v1430
    %1905 = vmatpush.bf16.msra.mxu0 %v1429
    %1906 = vmatpush.bf16.msra.mxu0 %v1428
    %1907 = vmatmul.bf16.gmra.mxu0 %v490
    %v1908 = vpop.f32.mrf.mxu0
    %v1909 = vadd.f32 %v1896, %v1908
    %v1910 = vpop.f32.mrf.mxu0
    %1911 = vdwg.mxu0
    %1912 = vmatpush.bf16.msra.mxu0 %v1443
    %1913 = vmatpush.bf16.msra.mxu0 %v1442
    %1914 = vmatpush.bf16.msra.mxu0 %v1441
    %1915 = vmatpush.bf16.msra.mxu0 %v1440
    %1916 = vmatpush.bf16.msra.mxu0 %v1439
    %1917 = vmatpush.bf16.msra.mxu0 %v1438
    %1918 = vmatpush.bf16.msra.mxu0 %v1437
    %1919 = vmatpush.bf16.msra.mxu0 %v1436
    %1920 = vmatmul.bf16.gmra.mxu0 %v491
    %v1921 = vpop.f32.mrf.mxu0
    %v1922 = vadd.f32 %v1909, %v1921
    %v1923 = vpop.f32.mrf.mxu0
    %1924 = vdwg.mxu0
    %1925 = vmatpush.bf16.msra.mxu0 %v1451
    %1926 = vmatpush.bf16.msra.mxu0 %v1450
    %1927 = vmatpush.bf16.msra.mxu0 %v1449
    %1928 = vmatpush.bf16.msra.mxu0 %v1448
    %1929 = vmatpush.bf16.msra.mxu0 %v1447
    %1930 = vmatpush.bf16.msra.mxu0 %v1446
    %1931 = vmatpush.bf16.msra.mxu0 %v1445
    %1932 = vmatpush.bf16.msra.mxu0 %v1444
    %1933 = vmatmul.bf16.gmra.mxu0 %v492
    %v1934 = vpop.f32.mrf.mxu0
    %v1935 = vadd.f32 %v1922, %v1934
    %v1936 = vpop.f32.mrf.mxu0
    %1937 = vdwg.mxu0
    %1938 = vmatpush.bf16.msra.mxu0 %v1459
    %1939 = vmatpush.bf16.msra.mxu0 %v1458
    %1940 = vmatpush.bf16.msra.mxu0 %v1457
    %1941 = vmatpush.bf16.msra.mxu0 %v1456
    %1942 = vmatpush.bf16.msra.mxu0 %v1455
    %1943 = vmatpush.bf16.msra.mxu0 %v1454
    %1944 = vmatpush.bf16.msra.mxu0 %v1453
    %1945 = vmatpush.bf16.msra.mxu0 %v1452
    %1946 = vmatmul.bf16.gmra.mxu0 %v493
    %v1947 = vpop.f32.mrf.mxu0
    %v1948 = vadd.f32 %v1935, %v1947
    %v1949 = vpop.f32.mrf.mxu0
    %1950 = vdwg.mxu0
    %1951 = vmatpush.bf16.msra.mxu0 %v1467
    %1952 = vmatpush.bf16.msra.mxu0 %v1466
    %1953 = vmatpush.bf16.msra.mxu0 %v1465
    %1954 = vmatpush.bf16.msra.mxu0 %v1464
    %1955 = vmatpush.bf16.msra.mxu0 %v1463
    %1956 = vmatpush.bf16.msra.mxu0 %v1462
    %1957 = vmatpush.bf16.msra.mxu0 %v1461
    %1958 = vmatpush.bf16.msra.mxu0 %v1460
    %1959 = vmatmul.bf16.gmra.mxu0 %v494
    %v1960 = vpop.f32.mrf.mxu0
    %v1961 = vadd.f32 %v1948, %v1960
    %v1962 = vpop.f32.mrf.mxu0
    %1963 = vdwg.mxu0
    %1964 = vmatpush.bf16.msra.mxu0 %v1475
    %1965 = vmatpush.bf16.msra.mxu0 %v1474
    %1966 = vmatpush.bf16.msra.mxu0 %v1473
    %1967 = vmatpush.bf16.msra.mxu0 %v1472
    %1968 = vmatpush.bf16.msra.mxu0 %v1471
    %1969 = vmatpush.bf16.msra.mxu0 %v1470
    %1970 = vmatpush.bf16.msra.mxu0 %v1469
    %1971 = vmatpush.bf16.msra.mxu0 %v1468
    %1972 = vmatmul.bf16.gmra.mxu0 %v495
    %v1973 = vpop.f32.mrf.mxu0
    %v1974 = vadd.f32 %v1961, %v1973
    %v1975 = vpop.f32.mrf.mxu0
    %1976 = vdwg.mxu0
    %1977 = vmatpush.bf16.msra.mxu0 %v1483
    %1978 = vmatpush.bf16.msra.mxu0 %v1482
    %1979 = vmatpush.bf16.msra.mxu0 %v1481
    %1980 = vmatpush.bf16.msra.mxu0 %v1480
    %1981 = vmatpush.bf16.msra.mxu0 %v1479
    %1982 = vmatpush.bf16.msra.mxu0 %v1478
    %1983 = vmatpush.bf16.msra.mxu0 %v1477
    %1984 = vmatpush.bf16.msra.mxu0 %v1476
    %1985 = vmatmul.bf16.gmra.mxu0 %v496
    %v1986 = vpop.f32.mrf.mxu0
    %v1987 = vadd.f32 %v1974, %v1986
    %v1988 = vpop.f32.mrf.mxu0
    %1989 = vdwg.mxu0
    %1990 = vmatpush.bf16.msra.mxu0 %v1491
    %1991 = vmatpush.bf16.msra.mxu0 %v1490
    %1992 = vmatpush.bf16.msra.mxu0 %v1489
    %1993 = vmatpush.bf16.msra.mxu0 %v1488
    %1994 = vmatpush.bf16.msra.mxu0 %v1487
    %1995 = vmatpush.bf16.msra.mxu0 %v1486
    %1996 = vmatpush.bf16.msra.mxu0 %v1485
    %1997 = vmatpush.bf16.msra.mxu0 %v1484
    %1998 = vmatmul.bf16.gmra.mxu0 %v497
    %v1999 = vpop.f32.mrf.mxu0
    %v2000 = vadd.f32 %v1987, %v1999
    %v2001 = vpop.f32.mrf.mxu0
    %2002 = vdwg.mxu0
    %2003 = vmatpush.bf16.msra.mxu0 %v1499
    %2004 = vmatpush.bf16.msra.mxu0 %v1498
    %2005 = vmatpush.bf16.msra.mxu0 %v1497
    %2006 = vmatpush.bf16.msra.mxu0 %v1496
    %2007 = vmatpush.bf16.msra.mxu0 %v1495
    %2008 = vmatpush.bf16.msra.mxu0 %v1494
    %2009 = vmatpush.bf16.msra.mxu0 %v1493
    %2010 = vmatpush.bf16.msra.mxu0 %v1492
    %2011 = vmatmul.bf16.gmra.mxu0 %v498
    %v2012 = vpop.f32.mrf.mxu0
    %v2013 = vadd.f32 %v2000, %v2012
    %v2014 = vpop.f32.mrf.mxu0
    %2015 = vdwg.mxu0
    %2016 = vmatpush.bf16.msra.mxu0 0
    %2017 = vmatpush.bf16.msra.mxu0 0
    %2018 = vmatpush.bf16.msra.mxu0 0
    %2019 = vmatpush.bf16.msra.mxu0 0
    %2020 = vmatpush.bf16.msra.mxu0 %v1503
    %2021 = vmatpush.bf16.msra.mxu0 %v1502
    %2022 = vmatpush.bf16.msra.mxu0 %v1501
    %2023 = vmatpush.bf16.msra.mxu0 %v1500
    %2024 = vmatmul.bf16.gmra.mxu0 %v1702
    %v2025 = vpop.f32.mrf.mxu0
    %v2026 = vadd.f32 %v2013, %v2025
    %v2027 = vpop.f32.mrf.mxu0
    %2028 = vdwg.mxu0
    %v2029 = vtanh.pop %v2026
    %v2030 = vld [vmem:[%s3] sm:$0xff]
    %v2031 = vadd.f32 %v2029, %v2030
    %2032 = vadd.xlane.f32.xlu0 %v2031
    %v2033 = vpop.xlane.xlu0 %2032
    %v2034 = vrcp.pop 128.0
    %v2035 = vmul.f32 128.0, %v2034
    %v2036 = vsub.f32 1.0, %v2035
    %v2037 = vmul.f32 %v2034, %v2036
    %v2038 = vadd.f32 %v2034, %v2037
    %vm2039 = vweird.f32 %v2034
    %v2040 = vsel %vm2039, %v2034, %v2038
    %v2041 = vmul.f32 %v2033, %v2040
    %v2042 = vsub.f32 %v2031, %v2041
    %v2043 = vmul.f32 %v2042, %v2042
    %2044 = vadd.xlane.f32.xlu0 %v2043
    %v2045 = vpop.xlane.xlu0 %2044
    %v2046 = vmul.f32 %v2045, %v2040
    %v2047 = vadd.f32 %v2046, 1e-05
    %v2048 = vrsqrt.pop %v2047
    %v2049 = vmul.f32 %v2048, %v2047
    %v2050 = vmul.f32 %v2049, %v2048
    %v2051 = vmul.f32 0.5, %v2050
    %v2052 = vsub.f32 1.5, %v2051
    %v2053 = vmul.f32 %v2048, %v2052
    %vm2054 = vweird.f32 %v2047
    %vm2055 = vweird.f32 %v2048
    %vm2056 = vmor %vm2054, %vm2055
    %v2057 = vsel %vm2056, %v2048, %v2053
    %v2058 = vmul.f32 %v2042, %v2057
    %v2059 = vld [vmem:[%s4] sm:$0x1]
    %v2061 = vperm.slane %v2059, 0
    %v2063 = vmul.f32 %v2058, %v2061
    %v2064 = vld [vmem:[%s5] sm:$0x1]
    %v2066 = vperm.slane %v2064, 0
    %v2068 = vadd.f32 %v2063, %v2066
    %v2069 = vld [vmem:[%s6] sm:$0xff]
    %v2070 = vld [vmem:[%s6 + $0x8] sm:$0xff]
    %v2071 = vld [vmem:[%s6 + $0x10] sm:$0xff]
    %v2072 = vld [vmem:[%s6 + $0x18] sm:$0xff]
    %v2073 = vld [vmem:[%s6 + $0x20] sm:$0xff]
    %v2074 = vld [vmem:[%s6 + $0x28] sm:$0xff]
    %v2075 = vld [vmem:[%s6 + $0x30] sm:$0xff]
    %v2076 = vld [vmem:[%s6 + $0x38] sm:$0xff]
    %v2077 = vld [vmem:[%s6 + $0x40] sm:$0xff]
    %v2078 = vld [vmem:[%s6 + $0x48] sm:$0xff]
    %v2079 = vld [vmem:[%s6 + $0x50] sm:$0xff]
    %v2080 = vld [vmem:[%s6 + $0x58] sm:$0xff]
    %v2081 = vld [vmem:[%s6 + $0x60] sm:$0xff]
    %v2082 = vld [vmem:[%s6 + $0x68] sm:$0xff]
    %v2083 = vld [vmem:[%s6 + $0x70] sm:$0xff]
    %v2084 = vld [vmem:[%s6 + $0x78] sm:$0xff]
    %2085 = vmatpush.msra.mxu0 %v2084
    %2086 = vmatpush.msra.mxu0 %v2083
    %2087 = vmatpush.msra.mxu0 %v2082
    %2088 = vmatpush.msra.mxu0 %v2081
    %2089 = vmatpush.msra.mxu0 %v2080
    %2090 = vmatpush.msra.mxu0 %v2079
    %2091 = vmatpush.msra.mxu0 %v2078
    %2092 = vmatpush.msra.mxu0 %v2077
    %2093 = vmatpush.msra.mxu0 %v2076
    %2094 = vmatpush.msra.mxu0 %v2075
    %2095 = vmatpush.msra.mxu0 %v2074
    %2096 = vmatpush.msra.mxu0 %v2073
    %2097 = vmatpush.msra.mxu0 %v2072
    %2098 = vmatpush.msra.mxu0 %v2071
    %2099 = vmatpush.msra.mxu0 %v2070
    %2100 = vmatpush.msra.mxu0 %v2069
    %2101 = vmatmul.f32.gmra.mxu0 %v2068
    %v2102 = vpop.f32.mrf.mxu0
    %v2103 = vadd.f32 0.0, %v2102
    %2104 = vdwg.mxu0
    %2105 = vst [vmem:[#allocation2] sm:$0xff] %v2103
    // Predicated region
    $region30: #{decision_forward.7} parent=1 // pred_check
      _
    $region31: #{decision_forward.7} parent=1 // pred_check_branch
      %2107 = sbr.rel (0) target = $region33
    $region32: #{decision_forward.7} parent=1 // pred_region
      %2109 = vsyncadd [#allocation3], 0
      %s2111 = sshll.u32 [#allocation2], 4
      %s2112 = int_to_ptr.vmem [resolvable:$true] %s2111
      %s2113 = sshll.u32 %s7, 4
      %s2114 = int_to_ptr.hbm [resolvable:$true] %s2113
      %2116 = dma.vmem_to_hbm [thread:$0]  %s2112, 128, %s2114, [#allocation3]
    $region33: #{decision_forward.7} parent=1 // pred_fallthru
      _
    // Predicated region
    $region34: #{decision_forward.7} parent=1 // pred_check
      _
    $region35: #{decision_forward.7} parent=1 // pred_check_branch
      %2118 = sbr.rel (0) target = $region37
    $region36: #{decision_forward.7} parent=1 // pred_region
      %2120 = dma.done [#allocation3], 128
    $region37: #{decision_forward.7} parent=1 // pred_fallthru
      _
    %2121 = vsyncpa [#allocation3], 1

</llo_original>
